<compile_context>
chip_gen: v7x
topology: tpu7x:2x2x1
jax: 0.10.0
libtpu: 0.0.40
codegen_flags: <defaults>
</compile_context>

<pallas_src>
import functools

import numpy as np
import jax
import jax.numpy as jnp
from jax.experimental import pallas as pl
from jax.experimental.pallas import tpu as pltpu

# Static module geometry (Feature_Classifier consumes Lenet5's (B,6,14,14) maps).
_CIN, _COUT, _K = 6, 16, 5
_H = _W = 14
_OH = _OW = _H - _K + 1            # 10x10 conv output
_PH = _PW = _OH // 2               # 5x5 pooled output
_KIN = _CIN * _H * _W              # 1176 flattened input features per sample
_NCONV = _COUT * _PH * _PW         # 400 pooled features (torch flatten order)
_HID1, _HID2 = 1024, 128
_NPAD = 128                        # logits padded to one lane tile


def _round_up(v, m):
    return ((v + m - 1) // m) * m


# ------------------------------ fused kernel ------------------------------- #

def _fused_kernel(x_ref, wc_ref, bc_ref, w1_ref, b1_ref,
                  w2_ref, b2_ref, w3_ref, b3_ref, out_ref):
    f32, bf16 = jnp.float32, jnp.bfloat16
    x = x_ref[...]                                   # (TILE_B, 1176) bf16

    # Conv2d(6,16,5) + MaxPool2d(2,2): one matmul per 2x2 pool tap against a
    # structured weight whose 400 output columns are already in torch flatten
    # order (c_out*25 + ph*5 + pw). Elementwise max over the 4 taps, then
    # bias + ReLU (both commute with the per-column max).
    m = jnp.dot(x, wc_ref[0], preferred_element_type=f32)
    for t in range(1, 4):
        m = jnp.maximum(m, jnp.dot(x, wc_ref[t], preferred_element_type=f32))
    pooled = jnp.maximum(m + bc_ref[...], 0.0)       # (TILE_B, 400) f32

    # classifier: Linear(400,1024)+ReLU -> Linear(1024,128)+ReLU -> Linear(128,ncls)
    h1 = jnp.dot(pooled.astype(bf16), w1_ref[...], preferred_element_type=f32)
    h1 = jnp.maximum(h1 + b1_ref[...], 0.0)          # (TILE_B, 1024)
    h2 = jnp.dot(h1.astype(bf16), w2_ref[...], preferred_element_type=f32)
    h2 = jnp.maximum(h2 + b2_ref[...], 0.0)          # (TILE_B, 128)
    out = jnp.dot(h2.astype(bf16), w3_ref[...], preferred_element_type=f32) + b3_ref[...]
    out_ref[...] = out.astype(out_ref.dtype)         # (TILE_B, 128) lane-dense


# ------------------------- one-time parameter prep ------------------------- #

def prepare_params(params):
    """Rebuild PyTorch-layout weights ONCE into MXU-friendly bf16 layouts.

    The conv+pool is re-expressed as 4 structured matmul weights of shape
    (1176, 400): tap t=(i,j), input index k=c_in*196+h*14+w, output column
    n = c_out*25 + ph*5 + pw holds conv_w[c_out, c_in, kh, kw] when
    h = 2*ph+i+kh and w = 2*pw+j+kw, else 0.
    """
    conv_w, conv_b, w1, b1, w2, b2, w3, b3 = [np.asarray(p, np.float32) for p in params]
    ncls = w3.shape[0]
    assert ncls <= _NPAD

    wc = np.zeros((4, _KIN, _NCONV), np.float32)
    ci = np.arange(_CIN)
    co = np.arange(_COUT)
    for i in range(2):
        for j in range(2):
            t = i * 2 + j
            for ph in range(_PH):
                for pw in range(_PW):
                    n0 = ph * _PW + pw
                    cols = co * (_PH * _PW) + n0                     # (16,)
                    for kh in range(_K):
                        for kw in range(_K):
                            h = 2 * ph + i + kh
                            w = 2 * pw + j + kw
                            rows = ci * (_H * _W) + h * _W + w       # (6,)
                            wc[t, rows[:, None], cols[None, :]] = conv_w[:, :, kh, kw].T

    bc = np.repeat(conv_b, _PH * _PW).reshape(1, _NCONV)             # (1, 400)

    w1t = w1.T                                                       # (400, 1024)
    b1r = b1.reshape(1, _HID1)
    w2t = w2.T                                                       # (1024, 128)
    b2r = b2.reshape(1, _HID2)
    w3t = np.zeros((_HID2, _NPAD), np.float32); w3t[:, :ncls] = w3.T  # (128, 128)
    b3r = np.zeros((1, _NPAD), np.float32);     b3r[0, :ncls] = b3

    bf16, f32 = jnp.bfloat16, jnp.float32
    return (jnp.asarray(wc, bf16), jnp.asarray(bc, f32),
            jnp.asarray(w1t, bf16), jnp.asarray(b1r, f32),
            jnp.asarray(w2t, bf16), jnp.asarray(b2r, f32),
            jnp.asarray(w3t, bf16), jnp.asarray(b3r, f32))


# ------------------------------ jitted wrapper ------------------------------ #

@functools.partial(jax.jit, static_argnames=("num_classes", "tile_b"))
def feature_classifier_forward(x, prep, *, num_classes=10, tile_b=128):
    b = x.shape[0]
    tile = min(tile_b, _round_up(b, 8))              # small batches stay small
    bp = _round_up(b, tile)
    xf = x.reshape(b, _KIN).astype(jnp.bfloat16)     # raw features only (no im2col)
    xf = jnp.pad(xf, ((0, bp - b), (0, 0)))

    flops = 2 * bp * (4 * _KIN * _NCONV + _NCONV * _HID1 + _HID1 * _HID2 + _HID2 * _NPAD)
    bytes_accessed = (xf.size * 2
                      + sum(int(p.size) * p.dtype.itemsize for p in prep)
                      + bp * _NPAD * 4)

    out = pl.pallas_call(
        _fused_kernel,
        out_shape=jax.ShapeDtypeStruct((bp, _NPAD), jnp.float32),
        grid=(bp // tile,),
        in_specs=[
            pl.BlockSpec((tile, _KIN), lambda i: (i, 0)),            # streamed
            pl.BlockSpec((4, _KIN, _NCONV), lambda i: (0, 0, 0)),    # resident
            pl.BlockSpec((1, _NCONV), lambda i: (0, 0)),
            pl.BlockSpec((_NCONV, _HID1), lambda i: (0, 0)),
            pl.BlockSpec((1, _HID1), lambda i: (0, 0)),
            pl.BlockSpec((_HID1, _HID2), lambda i: (0, 0)),
            pl.BlockSpec((1, _HID2), lambda i: (0, 0)),
            pl.BlockSpec((_HID2, _NPAD), lambda i: (0, 0)),
            pl.BlockSpec((1, _NPAD), lambda i: (0, 0)),
        ],
        out_specs=pl.BlockSpec((tile, _NPAD), lambda i: (i, 0)),
        compiler_params=pltpu.CompilerParams(
            dimension_semantics=("parallel",),
            vmem_limit_bytes=48 * 1024 * 1024),
        cost_estimate=pl.CostEstimate(flops=flops, transcendentals=0,
                                      bytes_accessed=bytes_accessed),
    )(xf, *prep)
    return out[:b, :num_classes]


# --------------------------- pure-JAX reference ----------------------------- #

def reference_forward(x, params):
    conv_w, conv_b, w1, b1, w2, b2, w3, b3 = params
    y = jax.lax.conv_general_dilated(
        x, conv_w, window_strides=(1, 1), padding="VALID",
        dimension_numbers=("NCHW", "OIHW", "NCHW"))
    y = jnp.maximum(y + conv_b[None, :, None, None], 0.0)
    y = jax.lax.reduce_window(y, -jnp.inf, jax.lax.max,
                              (1, 1, 2, 2), (1, 1, 2, 2), "VALID")
    y = y.reshape(y.shape[0], -1)
    y = jnp.maximum(y @ w1.T + b1, 0.0)
    y = jnp.maximum(y @ w2.T + b2, 0.0)
    return y @ w3.T + b3


# ---------------------------------- main ------------------------------------ #

if __name__ == "__main__":
    num_classes = 10
    key = jax.random.PRNGKey(0)
    ks = jax.random.split(key, 10)

    # Deterministic synthetic parameters (PyTorch shapes / conventions).
    conv_w = jax.random.normal(ks[0], (16, 6, 5, 5), jnp.float32) * 0.08
    conv_b = jax.random.normal(ks[1], (16,), jnp.float32) * 0.05
    w1 = jax.random.normal(ks[2], (1024, 400), jnp.float32) * 0.05
    b1 = jax.random.normal(ks[3], (1024,), jnp.float32) * 0.05
    w2 = jax.random.normal(ks[4], (128, 1024), jnp.float32) * 0.03
    b2 = jax.random.normal(ks[5], (128,), jnp.float32) * 0.05
    w3 = jax.random.normal(ks[6], (num_classes, 128), jnp.float32) * 0.05
    b3 = jax.random.normal(ks[7], (num_classes,), jnp.float32) * 0.05
    params = (conv_w, conv_b, w1, b1, w2, b2, w3, b3)

    prep = prepare_params(params)                    # one-time weight layout prep

    # Small test (batch=2): the Lenet5 stage-2 feature map this module consumes.
    x = jax.random.normal(ks[8], (2, 6, 14, 14), jnp.float32)
    out = jax.block_until_ready(
        feature_classifier_forward(x, prep, num_classes=num_classes))
    ref = reference_forward(x, params)
    assert out.shape == (2, num_classes), out.shape
    assert jnp.allclose(out, ref, rtol=2e-2, atol=2e-2), \
        float(jnp.max(jnp.abs(out - ref)))

    # Multi-tile grid test (batch=70, TILE_B=32 -> 3 grid steps + batch padding).
    x2 = jax.random.normal(ks[9], (70, 6, 14, 14), jnp.float32)
    out2 = jax.block_until_ready(
        feature_classifier_forward(x2, prep, num_classes=num_classes, tile_b=32))
    ref2 = reference_forward(x2, params)
    assert out2.shape == (70, num_classes), out2.shape
    assert jnp.allclose(out2, ref2, rtol=2e-2, atol=2e-2), \
        float(jnp.max(jnp.abs(out2 - ref2)))

    print("KERNEL_OK")
</pallas_src>

<mosaic_0001>
module attributes {stable_mosaic.version = 11 : i64} {
  func.func @_fused_kernel(%arg0: i32, %arg1: memref<8x1176xbf16, #tpu.memory_space<vmem>>, %arg2: memref<4x1176x400xbf16, #tpu.memory_space<vmem>>, %arg3: memref<1x400xf32, #tpu.memory_space<vmem>>, %arg4: memref<400x1024xbf16, #tpu.memory_space<vmem>>, %arg5: memref<1x1024xf32, #tpu.memory_space<vmem>>, %arg6: memref<1024x128xbf16, #tpu.memory_space<vmem>>, %arg7: memref<1x128xf32, #tpu.memory_space<vmem>>, %arg8: memref<128x128xbf16, #tpu.memory_space<vmem>>, %arg9: memref<1x128xf32, #tpu.memory_space<vmem>>, %arg10: memref<8x128xf32, #tpu.memory_space<vmem>>) attributes {dimension_semantics = [#tpu.dimension_semantics<parallel>], iteration_bounds = array<i64: 1>, scalar_prefetch = 0 : i64, scratch_operands = 0 : i64, tpu.core_type = #tpu.core_type<tc>, window_params = [{transform_indices = @transform_0, window_bounds = array<i64: 8, 1176>}, {pipeline_mode = #tpu.pipeline_mode<synchronous>, transform_indices = @transform_1, window_bounds = array<i64: 4, 1176, 400>}, {pipeline_mode = #tpu.pipeline_mode<synchronous>, transform_indices = @transform_2, window_bounds = array<i64: 1, 400>}, {pipeline_mode = #tpu.pipeline_mode<synchronous>, transform_indices = @transform_3, window_bounds = array<i64: 400, 1024>}, {pipeline_mode = #tpu.pipeline_mode<synchronous>, transform_indices = @transform_4, window_bounds = array<i64: 1, 1024>}, {pipeline_mode = #tpu.pipeline_mode<synchronous>, transform_indices = @transform_5, window_bounds = array<i64: 1024, 128>}, {pipeline_mode = #tpu.pipeline_mode<synchronous>, transform_indices = @transform_6, window_bounds = array<i64: 1, 128>}, {pipeline_mode = #tpu.pipeline_mode<synchronous>, transform_indices = @transform_7, window_bounds = array<i64: 128, 128>}, {pipeline_mode = #tpu.pipeline_mode<synchronous>, transform_indices = @transform_8, window_bounds = array<i64: 1, 128>}, {transform_indices = @transform_9, window_bounds = array<i64: 8, 128>}]} {
    %c0 = arith.constant 0 : index
    %c0_0 = arith.constant 0 : index
    %0 = vector.load %arg1[%c0, %c0_0] : memref<8x1176xbf16, #tpu.memory_space<vmem>>, vector<8x1176xbf16>
    %c0_1 = arith.constant 0 : index
    %c0_2 = arith.constant 0 : index
    %c0_3 = arith.constant 0 : index
    %1 = vector.load %arg2[%c0_1, %c0_2, %c0_3] : memref<4x1176x400xbf16, #tpu.memory_space<vmem>>, vector<1x1176x400xbf16>
    %2 = vector.shape_cast %1 : vector<1x1176x400xbf16> to vector<1176x400xbf16>
    %cst = arith.constant dense<0.000000e+00> : vector<8x400xf32>
    %3 = tpu.matmul %0, %2, %cst {dimension_numbers = #tpu.dot_dimension_numbers<[1], [0], [0], [1], [0, 0, 1, 1], [], []>} : vector<8x1176xbf16>, vector<1176x400xbf16>, vector<8x400xf32> -> vector<8x400xf32>
    %c1 = arith.constant 1 : index
    %c0_4 = arith.constant 0 : index
    %c0_5 = arith.constant 0 : index
    %4 = vector.load %arg2[%c1, %c0_4, %c0_5] : memref<4x1176x400xbf16, #tpu.memory_space<vmem>>, vector<1x1176x400xbf16>
    %5 = vector.shape_cast %4 : vector<1x1176x400xbf16> to vector<1176x400xbf16>
    %cst_6 = arith.constant dense<0.000000e+00> : vector<8x400xf32>
    %6 = tpu.matmul %0, %5, %cst_6 {dimension_numbers = #tpu.dot_dimension_numbers<[1], [0], [0], [1], [0, 0, 1, 1], [], []>} : vector<8x1176xbf16>, vector<1176x400xbf16>, vector<8x400xf32> -> vector<8x400xf32>
    %7 = arith.maximumf %3, %6 : vector<8x400xf32>
    %c2 = arith.constant 2 : index
    %c0_7 = arith.constant 0 : index
    %c0_8 = arith.constant 0 : index
    %8 = vector.load %arg2[%c2, %c0_7, %c0_8] : memref<4x1176x400xbf16, #tpu.memory_space<vmem>>, vector<1x1176x400xbf16>
    %9 = vector.shape_cast %8 : vector<1x1176x400xbf16> to vector<1176x400xbf16>
    %cst_9 = arith.constant dense<0.000000e+00> : vector<8x400xf32>
    %10 = tpu.matmul %0, %9, %cst_9 {dimension_numbers = #tpu.dot_dimension_numbers<[1], [0], [0], [1], [0, 0, 1, 1], [], []>} : vector<8x1176xbf16>, vector<1176x400xbf16>, vector<8x400xf32> -> vector<8x400xf32>
    %11 = arith.maximumf %7, %10 : vector<8x400xf32>
    %c3 = arith.constant 3 : index
    %c0_10 = arith.constant 0 : index
    %c0_11 = arith.constant 0 : index
    %12 = vector.load %arg2[%c3, %c0_10, %c0_11] : memref<4x1176x400xbf16, #tpu.memory_space<vmem>>, vector<1x1176x400xbf16>
    %13 = vector.shape_cast %12 : vector<1x1176x400xbf16> to vector<1176x400xbf16>
    %cst_12 = arith.constant dense<0.000000e+00> : vector<8x400xf32>
    %14 = tpu.matmul %0, %13, %cst_12 {dimension_numbers = #tpu.dot_dimension_numbers<[1], [0], [0], [1], [0, 0, 1, 1], [], []>} : vector<8x1176xbf16>, vector<1176x400xbf16>, vector<8x400xf32> -> vector<8x400xf32>
    %15 = arith.maximumf %11, %14 : vector<8x400xf32>
    %c0_13 = arith.constant 0 : index
    %c0_14 = arith.constant 0 : index
    %16 = vector.load %arg3[%c0_13, %c0_14] : memref<1x400xf32, #tpu.memory_space<vmem>>, vector<1x400xf32>
    %17 = vector.broadcast %16 : vector<1x400xf32> to vector<8x400xf32>
    %18 = arith.addf %15, %17 : vector<8x400xf32>
    %cst_15 = arith.constant 0.000000e+00 : f32
    %19 = vector.broadcast %cst_15 : f32 to vector<8x400xf32>
    %20 = arith.maximumf %18, %19 : vector<8x400xf32>
    %21 = arith.truncf %20 : vector<8x400xf32> to vector<8x400xbf16>
    %c0_16 = arith.constant 0 : index
    %c0_17 = arith.constant 0 : index
    %22 = vector.load %arg4[%c0_16, %c0_17] : memref<400x1024xbf16, #tpu.memory_space<vmem>>, vector<400x1024xbf16>
    %cst_18 = arith.constant dense<0.000000e+00> : vector<8x1024xf32>
    %23 = tpu.matmul %21, %22, %cst_18 {dimension_numbers = #tpu.dot_dimension_numbers<[1], [0], [0], [1], [0, 0, 1, 1], [], []>} : vector<8x400xbf16>, vector<400x1024xbf16>, vector<8x1024xf32> -> vector<8x1024xf32>
    %c0_19 = arith.constant 0 : index
    %c0_20 = arith.constant 0 : index
    %24 = vector.load %arg5[%c0_19, %c0_20] : memref<1x1024xf32, #tpu.memory_space<vmem>>, vector<1x1024xf32>
    %25 = vector.broadcast %24 : vector<1x1024xf32> to vector<8x1024xf32>
    %26 = arith.addf %23, %25 : vector<8x1024xf32>
    %cst_21 = arith.constant 0.000000e+00 : f32
    %27 = vector.broadcast %cst_21 : f32 to vector<8x1024xf32>
    %28 = arith.maximumf %26, %27 : vector<8x1024xf32>
    %29 = arith.truncf %28 : vector<8x1024xf32> to vector<8x1024xbf16>
    %c0_22 = arith.constant 0 : index
    %c0_23 = arith.constant 0 : index
    %30 = vector.load %arg6[%c0_22, %c0_23] : memref<1024x128xbf16, #tpu.memory_space<vmem>>, vector<1024x128xbf16>
    %cst_24 = arith.constant dense<0.000000e+00> : vector<8x128xf32>
    %31 = tpu.matmul %29, %30, %cst_24 {dimension_numbers = #tpu.dot_dimension_numbers<[1], [0], [0], [1], [0, 0, 1, 1], [], []>} : vector<8x1024xbf16>, vector<1024x128xbf16>, vector<8x128xf32> -> vector<8x128xf32>
    %c0_25 = arith.constant 0 : index
    %c0_26 = arith.constant 0 : index
    %32 = vector.load %arg7[%c0_25, %c0_26] : memref<1x128xf32, #tpu.memory_space<vmem>>, vector<1x128xf32>
    %33 = vector.broadcast %32 : vector<1x128xf32> to vector<8x128xf32>
    %34 = arith.addf %31, %33 : vector<8x128xf32>
    %cst_27 = arith.constant 0.000000e+00 : f32
    %35 = vector.broadcast %cst_27 : f32 to vector<8x128xf32>
    %36 = arith.maximumf %34, %35 : vector<8x128xf32>
    %37 = arith.truncf %36 : vector<8x128xf32> to vector<8x128xbf16>
    %c0_28 = arith.constant 0 : index
    %c0_29 = arith.constant 0 : index
    %38 = vector.load %arg8[%c0_28, %c0_29] : memref<128x128xbf16, #tpu.memory_space<vmem>>, vector<128x128xbf16>
    %cst_30 = arith.constant dense<0.000000e+00> : vector<8x128xf32>
    %39 = tpu.matmul %37, %38, %cst_30 {dimension_numbers = #tpu.dot_dimension_numbers<[1], [0], [0], [1], [0, 0, 1, 1], [], []>} : vector<8x128xbf16>, vector<128x128xbf16>, vector<8x128xf32> -> vector<8x128xf32>
    %c0_31 = arith.constant 0 : index
    %c0_32 = arith.constant 0 : index
    %40 = vector.load %arg9[%c0_31, %c0_32] : memref<1x128xf32, #tpu.memory_space<vmem>>, vector<1x128xf32>
    %41 = vector.broadcast %40 : vector<1x128xf32> to vector<8x128xf32>
    %42 = arith.addf %39, %41 : vector<8x128xf32>
    %c0_33 = arith.constant 0 : index
    %c0_34 = arith.constant 0 : index
    %43 = vector.load %arg10[%c0_33, %c0_34] : memref<8x128xf32, #tpu.memory_space<vmem>>, vector<8x128xf32>
    tpu.vector_store %arg10[%c0_33, %c0_34], %42 {strides = array<i32>} : memref<8x128xf32, #tpu.memory_space<vmem>>, vector<8x128xf32>,
    return
  }
  func.func @transform_0(%arg0: i32) -> (i32, i32) {
    %c0_i32 = arith.constant 0 : i32
    %c0_i32_0 = arith.constant 0 : i32
    return %arg0, %c0_i32 : i32, i32
  }
  func.func @transform_1(%arg0: i32) -> (i32, i32, i32) {
    %c0_i32 = arith.constant 0 : i32
    %c0_i32_0 = arith.constant 0 : i32
    %c0_i32_1 = arith.constant 0 : i32
    %c0_i32_2 = arith.constant 0 : i32
    return %c0_i32, %c0_i32_0, %c0_i32_1 : i32, i32, i32
  }
  func.func @transform_2(%arg0: i32) -> (i32, i32) {
    %c0_i32 = arith.constant 0 : i32
    %c0_i32_0 = arith.constant 0 : i32
    %c0_i32_1 = arith.constant 0 : i32
    return %c0_i32, %c0_i32_0 : i32, i32
  }
  func.func @transform_3(%arg0: i32) -> (i32, i32) {
    %c0_i32 = arith.constant 0 : i32
    %c0_i32_0 = arith.constant 0 : i32
    %c0_i32_1 = arith.constant 0 : i32
    return %c0_i32, %c0_i32_0 : i32, i32
  }
  func.func @transform_4(%arg0: i32) -> (i32, i32) {
    %c0_i32 = arith.constant 0 : i32
    %c0_i32_0 = arith.constant 0 : i32
    %c0_i32_1 = arith.constant 0 : i32
    return %c0_i32, %c0_i32_0 : i32, i32
  }
  func.func @transform_5(%arg0: i32) -> (i32, i32) {
    %c0_i32 = arith.constant 0 : i32
    %c0_i32_0 = arith.constant 0 : i32
    %c0_i32_1 = arith.constant 0 : i32
    return %c0_i32, %c0_i32_0 : i32, i32
  }
  func.func @transform_6(%arg0: i32) -> (i32, i32) {
    %c0_i32 = arith.constant 0 : i32
    %c0_i32_0 = arith.constant 0 : i32
    %c0_i32_1 = arith.constant 0 : i32
    return %c0_i32, %c0_i32_0 : i32, i32
  }
  func.func @transform_7(%arg0: i32) -> (i32, i32) {
    %c0_i32 = arith.constant 0 : i32
    %c0_i32_0 = arith.constant 0 : i32
    %c0_i32_1 = arith.constant 0 : i32
    return %c0_i32, %c0_i32_0 : i32, i32
  }
  func.func @transform_8(%arg0: i32) -> (i32, i32) {
    %c0_i32 = arith.constant 0 : i32
    %c0_i32_0 = arith.constant 0 : i32
    %c0_i32_1 = arith.constant 0 : i32
    return %c0_i32, %c0_i32_0 : i32, i32
  }
  func.func @transform_9(%arg0: i32) -> (i32, i32) {
    %c0_i32 = arith.constant 0 : i32
    %c0_i32_0 = arith.constant 0 : i32
    return %arg0, %c0_i32 : i32, i32
  }
}

</mosaic_0001>

<llo_original>
// kernel: feature_classifier_forward.1
$region0: #{feature_classifier_forward.1}
  #allocation0 [shape = 'u32[]', space=smem, size = 0x4, offset = 0x4, fixed_abs, tag = 'smem constant byte address 0x4 - core index']
  #allocation1 [shape = 'u32[144,128]{1,0:T(1,128)}', space=vmem, size = 0x12000, scoped, tag = 'internal scratch']
  %s0 = inlined_call_operand.vmem [shape: bf16[8,1176], index: 0, kind: input, shape index: {}]
  %s1 = inlined_call_operand.vmem [shape: bf16[4,1176,400], index: 1, kind: input, shape index: {}]
  %s2 = inlined_call_operand.vmem [shape: f32[1,400], index: 2, kind: input, shape index: {}]
  %s3 = inlined_call_operand.vmem [shape: bf16[400,1024], index: 3, kind: input, shape index: {}]
  %s4 = inlined_call_operand.vmem [shape: f32[1,1024], index: 4, kind: input, shape index: {}]
  %s5 = inlined_call_operand.vmem [shape: bf16[1024,128], index: 5, kind: input, shape index: {}]
  %s6 = inlined_call_operand.vmem [shape: f32[1,128], index: 6, kind: input, shape index: {}]
  %s7 = inlined_call_operand.vmem [shape: bf16[128,128], index: 7, kind: input, shape index: {}]
  %s8 = inlined_call_operand.vmem [shape: f32[1,128], index: 8, kind: input, shape index: {}]
  %s9 = inlined_call_operand.vmem [shape: f32[8,128], index: 9, kind: output, shape index: {}]
  %s10 = sld [smem:[#allocation0]]
  $region46: #{feature_classifier_forward.1} parent=0
    _
  %s12 = ssub.s32 1, %s10
  %s13 = scalar_select 0, %s12, %s10
  // Predicated region
  $region2: #{feature_classifier_forward.1} parent=0 // pred_check
    _
  $region3: #{feature_classifier_forward.1} parent=0 // pred_check_branch
    %15 = sbr.rel (0) target = $region5
  $region4: #{feature_classifier_forward.1} parent=0 // pred_region
    _
  $region5: #{feature_classifier_forward.1} parent=0 // pred_fallthru
    _
  // Predicated region
  $region6: #{feature_classifier_forward.1} parent=0 // pred_check
    _
  $region7: #{feature_classifier_forward.1} parent=0 // pred_check_branch
    %17 = sbr.rel (0) target = $region9
  $region8: #{feature_classifier_forward.1} parent=0 // pred_region
    _
  $region9: #{feature_classifier_forward.1} parent=0 // pred_fallthru
    _
  // Predicated region
  $region10: #{feature_classifier_forward.1} parent=0 // pred_check
    _
  $region11: #{feature_classifier_forward.1} parent=0 // pred_check_branch
    %19 = sbr.rel (0) target = $region13
  $region12: #{feature_classifier_forward.1} parent=0 // pred_region
    _
  $region13: #{feature_classifier_forward.1} parent=0 // pred_fallthru
    _
  // Predicated region
  $region14: #{feature_classifier_forward.1} parent=0 // pred_check
    _
  $region15: #{feature_classifier_forward.1} parent=0 // pred_check_branch
    %21 = sbr.rel (0) target = $region17
  $region16: #{feature_classifier_forward.1} parent=0 // pred_region
    _
  $region17: #{feature_classifier_forward.1} parent=0 // pred_fallthru
    _
  // Predicated region
  $region18: #{feature_classifier_forward.1} parent=0 // pred_check
    _
  $region19: #{feature_classifier_forward.1} parent=0 // pred_check_branch
    %23 = sbr.rel (0) target = $region21
  $region20: #{feature_classifier_forward.1} parent=0 // pred_region
    _
  $region21: #{feature_classifier_forward.1} parent=0 // pred_fallthru
    _
  // Predicated region
  $region22: #{feature_classifier_forward.1} parent=0 // pred_check
    _
  $region23: #{feature_classifier_forward.1} parent=0 // pred_check_branch
    %25 = sbr.rel (0) target = $region25
  $region24: #{feature_classifier_forward.1} parent=0 // pred_region
    _
  $region25: #{feature_classifier_forward.1} parent=0 // pred_fallthru
    _
  // Predicated region
  $region26: #{feature_classifier_forward.1} parent=0 // pred_check
    _
  $region27: #{feature_classifier_forward.1} parent=0 // pred_check_branch
    %27 = sbr.rel (0) target = $region29
  $region28: #{feature_classifier_forward.1} parent=0 // pred_region
    _
  $region29: #{feature_classifier_forward.1} parent=0 // pred_fallthru
    _
  // Predicated region
  $region30: #{feature_classifier_forward.1} parent=0 // pred_check
    _
  $region31: #{feature_classifier_forward.1} parent=0 // pred_check_branch
    %29 = sbr.rel (0) target = $region33
  $region32: #{feature_classifier_forward.1} parent=0 // pred_region
    _
  $region33: #{feature_classifier_forward.1} parent=0 // pred_fallthru
    _
  // Predicated region
  $region34: #{feature_classifier_forward.1} parent=0 // pred_check
    _
  $region35: #{feature_classifier_forward.1} parent=0 // pred_check_branch
    %31 = sbr.rel (0) target = $region37
  $region36: #{feature_classifier_forward.1} parent=0 // pred_region
    _
  $region37: #{feature_classifier_forward.1} parent=0 // pred_fallthru
    _
  %v33 = vld [vmem:[%s0] sm:$0xff]
  %v34 = vld [vmem:[%s0 + $0x8] sm:$0xff]
  %v35 = vld [vmem:[%s0 + $0x10] sm:$0xff]
  %v36 = vld [vmem:[%s0 + $0x18] sm:$0xff]
  %v37 = vld [vmem:[%s0 + $0x20] sm:$0xff]
  %v38 = vld [vmem:[%s1] sm:$0xff]
  %v39 = vld [vmem:[%s1 + $0x8] sm:$0xff]
  %v40 = vld [vmem:[%s1 + $0x10] sm:$0xff]
  %v41 = vld [vmem:[%s1 + $0x18] sm:$0xff]
  %v42 = vld [vmem:[%s1 + $0x20] sm:$0xff]
  %v43 = vld [vmem:[%s1 + $0x28] sm:$0xff]
  %v44 = vld [vmem:[%s1 + $0x30] sm:$0xff]
  %v45 = vld [vmem:[%s1 + $0x38] sm:$0xff]
  %v46 = vld [vmem:[%s1 + $0x40] sm:$0xff]
  %v47 = vld [vmem:[%s1 + $0x48] sm:$0xff]
  %v48 = vld [vmem:[%s1 + $0x50] sm:$0xff]
  %v49 = vld [vmem:[%s1 + $0x58] sm:$0xff]
  %v50 = vld [vmem:[%s1 + $0x60] sm:$0xff]
  %v51 = vld [vmem:[%s1 + $0x68] sm:$0xff]
  %v52 = vld [vmem:[%s1 + $0x70] sm:$0xff]
  %v53 = vld [vmem:[%s1 + $0x78] sm:$0xff]
  %v54 = vld [vmem:[%s1 + $0x80] sm:$0xff]
  %v55 = vld [vmem:[%s1 + $0x88] sm:$0xff]
  %v56 = vld [vmem:[%s1 + $0x90] sm:$0xff]
  %v57 = vld [vmem:[%s1 + $0x98] sm:$0xff]
  %v58 = vld [vmem:[%s1 + $0xa0] sm:$0xff]
  %v59 = vld [vmem:[%s1 + $0xa8] sm:$0xff]
  %v60 = vld [vmem:[%s1 + $0xb0] sm:$0xff]
  %v61 = vld [vmem:[%s1 + $0xb8] sm:$0xff]
  %v62 = vld [vmem:[%s1 + $0xc0] sm:$0xff]
  %v63 = vld [vmem:[%s1 + $0xc8] sm:$0xff]
  %v64 = vld [vmem:[%s1 + $0xd0] sm:$0xff]
  %v65 = vld [vmem:[%s1 + $0xd8] sm:$0xff]
  %v66 = vld [vmem:[%s1 + $0xe0] sm:$0xff]
  %v67 = vld [vmem:[%s1 + $0xe8] sm:$0xff]
  %v68 = vld [vmem:[%s1 + $0xf0] sm:$0xff]
  %v69 = vld [vmem:[%s1 + $0xf8] sm:$0xff]
  %v70 = vld [vmem:[%s1 + $0x100] sm:$0xff]
  %v71 = vld [vmem:[%s1 + $0x108] sm:$0xff]
  %v72 = vld [vmem:[%s1 + $0x110] sm:$0xff]
  %v73 = vld [vmem:[%s1 + $0x118] sm:$0xff]
  %v74 = vld [vmem:[%s1 + $0x120] sm:$0xff]
  %v75 = vld [vmem:[%s1 + $0x128] sm:$0xff]
  %v76 = vld [vmem:[%s1 + $0x130] sm:$0xff]
  %v77 = vld [vmem:[%s1 + $0x138] sm:$0xff]
  %v78 = vld [vmem:[%s1 + $0x140] sm:$0xff]
  %v79 = vld [vmem:[%s1 + $0x148] sm:$0xff]
  %v80 = vld [vmem:[%s1 + $0x150] sm:$0xff]
  %v81 = vld [vmem:[%s1 + $0x158] sm:$0xff]
  %v82 = vld [vmem:[%s1 + $0x160] sm:$0xff]
  %v83 = vld [vmem:[%s1 + $0x168] sm:$0xff]
  %v84 = vld [vmem:[%s1 + $0x170] sm:$0xff]
  %v85 = vld [vmem:[%s1 + $0x178] sm:$0xff]
  %v86 = vld [vmem:[%s1 + $0x180] sm:$0xff]
  %v87 = vld [vmem:[%s1 + $0x188] sm:$0xff]
  %v88 = vld [vmem:[%s1 + $0x190] sm:$0xff]
  %v89 = vld [vmem:[%s1 + $0x198] sm:$0xff]
  %v90 = vld [vmem:[%s1 + $0x1a0] sm:$0xff]
  %v91 = vld [vmem:[%s1 + $0x1a8] sm:$0xff]
  %v92 = vld [vmem:[%s1 + $0x1b0] sm:$0xff]
  %v93 = vld [vmem:[%s1 + $0x1b8] sm:$0xff]
  %v94 = vld [vmem:[%s1 + $0x1c0] sm:$0xff]
  %v95 = vld [vmem:[%s1 + $0x1c8] sm:$0xff]
  %v96 = vld [vmem:[%s1 + $0x1d0] sm:$0xff]
  %v97 = vld [vmem:[%s1 + $0x1d8] sm:$0xff]
  %v98 = vld [vmem:[%s1 + $0x1e0] sm:$0xff]
  %v99 = vld [vmem:[%s1 + $0x1e8] sm:$0xff]
  %v100 = vld [vmem:[%s1 + $0x1f0] sm:$0xff]
  %v101 = vld [vmem:[%s1 + $0x1f8] sm:$0xff]
  %v102 = vld [vmem:[%s1 + $0x200] sm:$0xff]
  %v103 = vld [vmem:[%s1 + $0x208] sm:$0xff]
  %v104 = vld [vmem:[%s1 + $0x210] sm:$0xff]
  %v105 = vld [vmem:[%s1 + $0x218] sm:$0xff]
  %v106 = vld [vmem:[%s1 + $0x220] sm:$0xff]
  %v107 = vld [vmem:[%s1 + $0x228] sm:$0xff]
  %v108 = vld [vmem:[%s1 + $0x230] sm:$0xff]
  %v109 = vld [vmem:[%s1 + $0x238] sm:$0xff]
  %v110 = vld [vmem:[%s1 + $0x240] sm:$0xff]
  %v111 = vld [vmem:[%s1 + $0x248] sm:$0xff]
  %v112 = vld [vmem:[%s1 + $0x250] sm:$0xff]
  %v113 = vld [vmem:[%s1 + $0x258] sm:$0xff]
  %v114 = vld [vmem:[%s1 + $0x260] sm:$0xff]
  %v115 = vld [vmem:[%s1 + $0x268] sm:$0xff]
  %v116 = vld [vmem:[%s1 + $0x270] sm:$0xff]
  %v117 = vld [vmem:[%s1 + $0x278] sm:$0xff]
  %v118 = vld [vmem:[%s1 + $0x280] sm:$0xff]
  %v119 = vld [vmem:[%s1 + $0x288] sm:$0xff]
  %v120 = vld [vmem:[%s1 + $0x290] sm:$0xff]
  %v121 = vld [vmem:[%s1 + $0x298] sm:$0xff]
  %v122 = vld [vmem:[%s1 + $0x2a0] sm:$0xff]
  %v123 = vld [vmem:[%s1 + $0x2a8] sm:$0xff]
  %v124 = vld [vmem:[%s1 + $0x2b0] sm:$0xff]
  %v125 = vld [vmem:[%s1 + $0x2b8] sm:$0xff]
  %v126 = vld [vmem:[%s1 + $0x2c0] sm:$0xff]
  %v127 = vld [vmem:[%s1 + $0x2c8] sm:$0xff]
  %v128 = vld [vmem:[%s1 + $0x2d0] sm:$0xff]
  %v129 = vld [vmem:[%s1 + $0x2d8] sm:$0xff]
  %v130 = vld [vmem:[%s1 + $0x2e0] sm:$0xff]
  %v131 = vld [vmem:[%s1 + $0x2e8] sm:$0xff]
  %v132 = vld [vmem:[%s1 + $0x2f0] sm:$0xff]
  %v133 = vld [vmem:[%s1 + $0x2f8] sm:$0xff]
  %v134 = vld [vmem:[%s1 + $0x300] sm:$0xff]
  %v135 = vld [vmem:[%s1 + $0x308] sm:$0xff]
  %v136 = vld [vmem:[%s1 + $0x310] sm:$0xff]
  %v137 = vld [vmem:[%s1 + $0x318] sm:$0xff]
  %v138 = vld [vmem:[%s1 + $0x320] sm:$0xff]
  %v139 = vld [vmem:[%s1 + $0x328] sm:$0xff]
  %v140 = vld [vmem:[%s1 + $0x330] sm:$0xff]
  %v141 = vld [vmem:[%s1 + $0x338] sm:$0xff]
  %v142 = vld [vmem:[%s1 + $0x340] sm:$0xff]
  %v143 = vld [vmem:[%s1 + $0x348] sm:$0xff]
  %v144 = vld [vmem:[%s1 + $0x350] sm:$0xff]
  %v145 = vld [vmem:[%s1 + $0x358] sm:$0xff]
  %v146 = vld [vmem:[%s1 + $0x360] sm:$0xff]
  %v147 = vld [vmem:[%s1 + $0x368] sm:$0xff]
  %v148 = vld [vmem:[%s1 + $0x370] sm:$0xff]
  %v149 = vld [vmem:[%s1 + $0x378] sm:$0xff]
  %v150 = vld [vmem:[%s1 + $0x380] sm:$0xff]
  %v151 = vld [vmem:[%s1 + $0x388] sm:$0xff]
  %v152 = vld [vmem:[%s1 + $0x390] sm:$0xff]
  %v153 = vld [vmem:[%s1 + $0x398] sm:$0xff]
  %v154 = vld [vmem:[%s1 + $0x3a0] sm:$0xff]
  %v155 = vld [vmem:[%s1 + $0x3a8] sm:$0xff]
  %v156 = vld [vmem:[%s1 + $0x3b0] sm:$0xff]
  %v157 = vld [vmem:[%s1 + $0x3b8] sm:$0xff]
  %v158 = vld [vmem:[%s1 + $0x3c0] sm:$0xff]
  %v159 = vld [vmem:[%s1 + $0x3c8] sm:$0xff]
  %v160 = vld [vmem:[%s1 + $0x3d0] sm:$0xff]
  %v161 = vld [vmem:[%s1 + $0x3d8] sm:$0xff]
  %v162 = vld [vmem:[%s1 + $0x3e0] sm:$0xff]
  %v163 = vld [vmem:[%s1 + $0x3e8] sm:$0xff]
  %v164 = vld [vmem:[%s1 + $0x3f0] sm:$0xff]
  %v165 = vld [vmem:[%s1 + $0x3f8] sm:$0xff]
  %v166 = vld [vmem:[%s1 + $0x400] sm:$0xff]
  %v167 = vld [vmem:[%s1 + $0x408] sm:$0xff]
  %v168 = vld [vmem:[%s1 + $0x410] sm:$0xff]
  %v169 = vld [vmem:[%s1 + $0x418] sm:$0xff]
  %v170 = vld [vmem:[%s1 + $0x420] sm:$0xff]
  %v171 = vld [vmem:[%s1 + $0x428] sm:$0xff]
  %v172 = vld [vmem:[%s1 + $0x430] sm:$0xff]
  %v173 = vld [vmem:[%s1 + $0x438] sm:$0xff]
  %v174 = vld [vmem:[%s1 + $0x440] sm:$0xff]
  %v175 = vld [vmem:[%s1 + $0x448] sm:$0xff]
  %v176 = vld [vmem:[%s1 + $0x450] sm:$0xff]
  %v177 = vld [vmem:[%s1 + $0x458] sm:$0xff]
  %v178 = vld [vmem:[%s1 + $0x460] sm:$0xff]
  %v179 = vld [vmem:[%s1 + $0x468] sm:$0xff]
  %v180 = vld [vmem:[%s1 + $0x470] sm:$0xff]
  %v181 = vld [vmem:[%s1 + $0x478] sm:$0xff]
  %v182 = vld [vmem:[%s1 + $0x480] sm:$0xff]
  %v183 = vld [vmem:[%s1 + $0x488] sm:$0xff]
  %v184 = vld [vmem:[%s1 + $0x490] sm:$0xff]
  %v185 = vld [vmem:[%s1 + $0x498] sm:$0xff]
  %v186 = vld [vmem:[%s1 + $0x4a0] sm:$0xff]
  %v187 = vld [vmem:[%s1 + $0x4a8] sm:$0xff]
  %v188 = vld [vmem:[%s1 + $0x4b0] sm:$0xff]
  %v189 = vld [vmem:[%s1 + $0x4b8] sm:$0xff]
  %v190 = vld [vmem:[%s1 + $0x4c0] sm:$0xff]
  %v191 = vld [vmem:[%s1 + $0x4c8] sm:$0xff]
  %v192 = vld [vmem:[%s1 + $0x4d0] sm:$0xff]
  %v193 = vld [vmem:[%s1 + $0x4d8] sm:$0xff]
  %v194 = vld [vmem:[%s1 + $0x4e0] sm:$0xff]
  %v195 = vld [vmem:[%s1 + $0x4e8] sm:$0xff]
  %v196 = vld [vmem:[%s1 + $0x4f0] sm:$0xff]
  %v197 = vld [vmem:[%s1 + $0x4f8] sm:$0xff]
  %v198 = vld [vmem:[%s1 + $0x500] sm:$0xff]
  %v199 = vld [vmem:[%s1 + $0x508] sm:$0xff]
  %v200 = vld [vmem:[%s1 + $0x510] sm:$0xff]
  %v201 = vld [vmem:[%s1 + $0x518] sm:$0xff]
  %v202 = vld [vmem:[%s1 + $0x520] sm:$0xff]
  %v203 = vld [vmem:[%s1 + $0x528] sm:$0xff]
  %v204 = vld [vmem:[%s1 + $0x530] sm:$0xff]
  %v205 = vld [vmem:[%s1 + $0x538] sm:$0xff]
  %v206 = vld [vmem:[%s1 + $0x540] sm:$0xff]
  %v207 = vld [vmem:[%s1 + $0x548] sm:$0xff]
  %v208 = vld [vmem:[%s1 + $0x550] sm:$0xff]
  %v209 = vld [vmem:[%s1 + $0x558] sm:$0xff]
  %v210 = vld [vmem:[%s1 + $0x560] sm:$0xff]
  %v211 = vld [vmem:[%s1 + $0x568] sm:$0xff]
  %v212 = vld [vmem:[%s1 + $0x570] sm:$0xff]
  %v213 = vld [vmem:[%s1 + $0x578] sm:$0xff]
  %v214 = vld [vmem:[%s1 + $0x580] sm:$0xff]
  %v215 = vld [vmem:[%s1 + $0x588] sm:$0xff]
  %v216 = vld [vmem:[%s1 + $0x590] sm:$0xff]
  %v217 = vld [vmem:[%s1 + $0x598] sm:$0xff]
  %v218 = vld [vmem:[%s1 + $0x5a0] sm:$0xff]
  %v219 = vld [vmem:[%s1 + $0x5a8] sm:$0xff]
  %v220 = vld [vmem:[%s1 + $0x5b0] sm:$0xff]
  %v221 = vld [vmem:[%s1 + $0x5b8] sm:$0xff]
  %v222 = vld [vmem:[%s1 + $0x5c0] sm:$0xff]
  %v223 = vld [vmem:[%s1 + $0x5c8] sm:$0xff]
  %v224 = vld [vmem:[%s1 + $0x5d0] sm:$0xff]
  %v225 = vld [vmem:[%s1 + $0x5d8] sm:$0xff]
  %v226 = vld [vmem:[%s1 + $0x5e0] sm:$0xff]
  %v227 = vld [vmem:[%s1 + $0x5e8] sm:$0xff]
  %v228 = vld [vmem:[%s1 + $0x5f0] sm:$0xff]
  %v229 = vld [vmem:[%s1 + $0x5f8] sm:$0xff]
  %v230 = vld [vmem:[%s1 + $0x600] sm:$0xff]
  %v231 = vld [vmem:[%s1 + $0x608] sm:$0xff]
  %v232 = vld [vmem:[%s1 + $0x610] sm:$0xff]
  %v233 = vld [vmem:[%s1 + $0x618] sm:$0xff]
  %v234 = vld [vmem:[%s1 + $0x620] sm:$0xff]
  %v235 = vld [vmem:[%s1 + $0x628] sm:$0xff]
  %v236 = vld [vmem:[%s1 + $0x630] sm:$0xff]
  %v237 = vld [vmem:[%s1 + $0x638] sm:$0xff]
  %v238 = vld [vmem:[%s1 + $0x640] sm:$0xff]
  %v239 = vld [vmem:[%s1 + $0x648] sm:$0xff]
  %v240 = vld [vmem:[%s1 + $0x650] sm:$0xff]
  %v241 = vld [vmem:[%s1 + $0x658] sm:$0xff]
  %v242 = vld [vmem:[%s1 + $0x660] sm:$0xff]
  %v243 = vld [vmem:[%s1 + $0x668] sm:$0xff]
  %v244 = vld [vmem:[%s1 + $0x670] sm:$0xff]
  %v245 = vld [vmem:[%s1 + $0x678] sm:$0xff]
  %v246 = vld [vmem:[%s1 + $0x680] sm:$0xff]
  %v247 = vld [vmem:[%s1 + $0x688] sm:$0xff]
  %v248 = vld [vmem:[%s1 + $0x690] sm:$0xff]
  %v249 = vld [vmem:[%s1 + $0x698] sm:$0xff]
  %v250 = vld [vmem:[%s1 + $0x6a0] sm:$0xff]
  %v251 = vld [vmem:[%s1 + $0x6a8] sm:$0xff]
  %v252 = vld [vmem:[%s1 + $0x6b0] sm:$0xff]
  %v253 = vld [vmem:[%s1 + $0x6b8] sm:$0xff]
  %v254 = vld [vmem:[%s1 + $0x6c0] sm:$0xff]
  %v255 = vld [vmem:[%s1 + $0x6c8] sm:$0xff]
  %v256 = vld [vmem:[%s1 + $0x6d0] sm:$0xff]
  %v257 = vld [vmem:[%s1 + $0x6d8] sm:$0xff]
  %v258 = vld [vmem:[%s1 + $0x6e0] sm:$0xff]
  %v259 = vld [vmem:[%s1 + $0x6e8] sm:$0xff]
  %v260 = vld [vmem:[%s1 + $0x6f0] sm:$0xff]
  %v261 = vld [vmem:[%s1 + $0x6f8] sm:$0xff]
  %v262 = vld [vmem:[%s1 + $0x700] sm:$0xff]
  %v263 = vld [vmem:[%s1 + $0x708] sm:$0xff]
  %v264 = vld [vmem:[%s1 + $0x710] sm:$0xff]
  %v265 = vld [vmem:[%s1 + $0x718] sm:$0xff]
  %v266 = vld [vmem:[%s1 + $0x720] sm:$0xff]
  %v267 = vld [vmem:[%s1 + $0x728] sm:$0xff]
  %v268 = vld [vmem:[%s1 + $0x730] sm:$0xff]
  %v269 = vld [vmem:[%s1 + $0x738] sm:$0xff]
  %v270 = vld [vmem:[%s1 + $0x740] sm:$0xff]
  %v271 = vld [vmem:[%s1 + $0x748] sm:$0xff]
  %v272 = vld [vmem:[%s1 + $0x750] sm:$0xff]
  %v273 = vld [vmem:[%s1 + $0x758] sm:$0xff]
  %v274 = vld [vmem:[%s1 + $0x760] sm:$0xff]
  %v275 = vld [vmem:[%s1 + $0x768] sm:$0xff]
  %v276 = vld [vmem:[%s1 + $0x770] sm:$0xff]
  %v277 = vld [vmem:[%s1 + $0x778] sm:$0xff]
  %v278 = vld [vmem:[%s1 + $0x780] sm:$0xff]
  %v279 = vld [vmem:[%s1 + $0x788] sm:$0xff]
  %v280 = vld [vmem:[%s1 + $0x790] sm:$0xff]
  %v281 = vld [vmem:[%s1 + $0x798] sm:$0xff]
  %v282 = vld [vmem:[%s1 + $0x7a0] sm:$0xff]
  %v283 = vld [vmem:[%s1 + $0x7a8] sm:$0xff]
  %v284 = vld [vmem:[%s1 + $0x7b0] sm:$0xff]
  %v285 = vld [vmem:[%s1 + $0x7b8] sm:$0xff]
  %v286 = vld [vmem:[%s1 + $0x7c0] sm:$0xff]
  %v287 = vld [vmem:[%s1 + $0x7c8] sm:$0xff]
  %v288 = vld [vmem:[%s1 + $0x7d0] sm:$0xff]
  %v289 = vld [vmem:[%s1 + $0x7d8] sm:$0xff]
  %v290 = vld [vmem:[%s1 + $0x7e0] sm:$0xff]
  %v291 = vld [vmem:[%s1 + $0x7e8] sm:$0xff]
  %v292 = vld [vmem:[%s1 + $0x7f0] sm:$0xff]
  %v293 = vld [vmem:[%s1 + $0x7f8] sm:$0xff]
  %v294 = vld [vmem:[%s1 + $0x800] sm:$0xff]
  %v295 = vld [vmem:[%s1 + $0x808] sm:$0xff]
  %v296 = vld [vmem:[%s1 + $0x810] sm:$0xff]
  %v297 = vld [vmem:[%s1 + $0x818] sm:$0xff]
  %v298 = vld [vmem:[%s1 + $0x820] sm:$0xff]
  %v299 = vld [vmem:[%s1 + $0x828] sm:$0xff]
  %v300 = vld [vmem:[%s1 + $0x830] sm:$0xff]
  %v301 = vld [vmem:[%s1 + $0x838] sm:$0xff]
  %v302 = vld [vmem:[%s1 + $0x840] sm:$0xff]
  %v303 = vld [vmem:[%s1 + $0x848] sm:$0xff]
  %v304 = vld [vmem:[%s1 + $0x850] sm:$0xff]
  %v305 = vld [vmem:[%s1 + $0x858] sm:$0xff]
  %v306 = vld [vmem:[%s1 + $0x860] sm:$0xff]
  %v307 = vld [vmem:[%s1 + $0x868] sm:$0xff]
  %v308 = vld [vmem:[%s1 + $0x870] sm:$0xff]
  %v309 = vld [vmem:[%s1 + $0x878] sm:$0xff]
  %v310 = vld [vmem:[%s1 + $0x880] sm:$0xff]
  %v311 = vld [vmem:[%s1 + $0x888] sm:$0xff]
  %v312 = vld [vmem:[%s1 + $0x890] sm:$0xff]
  %v313 = vld [vmem:[%s1 + $0x898] sm:$0xff]
  %v314 = vld [vmem:[%s1 + $0x8a0] sm:$0xff]
  %v315 = vld [vmem:[%s1 + $0x8a8] sm:$0xff]
  %v316 = vld [vmem:[%s1 + $0x8b0] sm:$0xff]
  %v317 = vld [vmem:[%s1 + $0x8b8] sm:$0xff]
  %v318 = vld [vmem:[%s1 + $0x8c0] sm:$0xff]
  %v319 = vld [vmem:[%s1 + $0x8c8] sm:$0xff]
  %v320 = vld [vmem:[%s1 + $0x8d0] sm:$0xff]
  %v321 = vld [vmem:[%s1 + $0x8d8] sm:$0xff]
  %v322 = vld [vmem:[%s1 + $0x8e0] sm:$0xff]
  %v323 = vld [vmem:[%s1 + $0x8e8] sm:$0xff]
  %v324 = vld [vmem:[%s1 + $0x8f0] sm:$0xff]
  %v325 = vld [vmem:[%s1 + $0x8f8] sm:$0xff]
  %v326 = vld [vmem:[%s1 + $0x900] sm:$0xff]
  %v327 = vld [vmem:[%s1 + $0x908] sm:$0xff]
  %v328 = vld [vmem:[%s1 + $0x910] sm:$0xff]
  %v329 = vld [vmem:[%s1 + $0x918] sm:$0xff]
  %v330 = vld [vmem:[%s1 + $0x920] sm:$0xff]
  %v331 = vld [vmem:[%s1 + $0x928] sm:$0xff]
  %v337 = vunpack.c.l.b16 %v33
  %v338 = vunpack.c.h.b16 %v33
  %v339 = vunpack.c.l.b16 %v34
  %v340 = vunpack.c.h.b16 %v34
  %v341 = vunpack.c.l.b16 %v35
  %v342 = vunpack.c.h.b16 %v35
  %v343 = vunpack.c.l.b16 %v36
  %v344 = vunpack.c.h.b16 %v36
  %v345 = vunpack.c.l.b16 %v37
  %v346 = vunpack.c.h.b16 %v37
  %v347 = vpack.c.b16 %v337, %v337
  %v348 = vpack.c.b16 %v338, %v338
  %v349 = vpack.c.b16 %v339, %v339
  %v350 = vpack.c.b16 %v340, %v340
  %v351 = vpack.c.b16 %v341, %v341
  %v352 = vpack.c.b16 %v342, %v342
  %v353 = vpack.c.b16 %v343, %v343
  %v354 = vpack.c.b16 %v344, %v344
  %v355 = vpack.c.b16 %v345, %v345
  %v356 = vpack.c.b16 %v346, %v346
  %v660 = vunpack.c.l.b16 %v38
  %v661 = vunpack.c.h.b16 %v38
  %v662 = vunpack.c.l.b16 %v39
  %v663 = vunpack.c.h.b16 %v39
  %v664 = vunpack.c.l.b16 %v40
  %v665 = vunpack.c.h.b16 %v40
  %v666 = vunpack.c.l.b16 %v41
  %v667 = vunpack.c.h.b16 %v41
  %v668 = vunpack.c.l.b16 %v42
  %v669 = vunpack.c.h.b16 %v42
  %v670 = vunpack.c.l.b16 %v43
  %v671 = vunpack.c.h.b16 %v43
  %v672 = vunpack.c.l.b16 %v44
  %v673 = vunpack.c.h.b16 %v44
  %v674 = vunpack.c.l.b16 %v45
  %v675 = vunpack.c.h.b16 %v45
  %v676 = vunpack.c.l.b16 %v46
  %v677 = vunpack.c.h.b16 %v46
  %v678 = vunpack.c.l.b16 %v47
  %v679 = vunpack.c.h.b16 %v47
  %v680 = vunpack.c.l.b16 %v48
  %v681 = vunpack.c.h.b16 %v48
  %v682 = vunpack.c.l.b16 %v49
  %v683 = vunpack.c.h.b16 %v49
  %v684 = vunpack.c.l.b16 %v50
  %v685 = vunpack.c.h.b16 %v50
  %v686 = vunpack.c.l.b16 %v51
  %v687 = vunpack.c.h.b16 %v51
  %v688 = vunpack.c.l.b16 %v52
  %v689 = vunpack.c.h.b16 %v52
  %v690 = vunpack.c.l.b16 %v53
  %v691 = vunpack.c.h.b16 %v53
  %v692 = vunpack.c.l.b16 %v54
  %v693 = vunpack.c.h.b16 %v54
  %v694 = vunpack.c.l.b16 %v55
  %v695 = vunpack.c.h.b16 %v55
  %v696 = vunpack.c.l.b16 %v56
  %v697 = vunpack.c.h.b16 %v56
  %v698 = vunpack.c.l.b16 %v57
  %v699 = vunpack.c.h.b16 %v57
  %v700 = vunpack.c.l.b16 %v58
  %v701 = vunpack.c.h.b16 %v58
  %v702 = vunpack.c.l.b16 %v59
  %v703 = vunpack.c.h.b16 %v59
  %v704 = vunpack.c.l.b16 %v60
  %v705 = vunpack.c.h.b16 %v60
  %v706 = vunpack.c.l.b16 %v61
  %v707 = vunpack.c.h.b16 %v61
  %v708 = vunpack.c.l.b16 %v62
  %v709 = vunpack.c.h.b16 %v62
  %v710 = vunpack.c.l.b16 %v63
  %v711 = vunpack.c.h.b16 %v63
  %v712 = vunpack.c.l.b16 %v64
  %v713 = vunpack.c.h.b16 %v64
  %v714 = vunpack.c.l.b16 %v65
  %v715 = vunpack.c.h.b16 %v65
  %v716 = vunpack.c.l.b16 %v66
  %v717 = vunpack.c.h.b16 %v66
  %v718 = vunpack.c.l.b16 %v67
  %v719 = vunpack.c.h.b16 %v67
  %v720 = vunpack.c.l.b16 %v68
  %v721 = vunpack.c.h.b16 %v68
  %v722 = vunpack.c.l.b16 %v69
  %v723 = vunpack.c.h.b16 %v69
  %v724 = vunpack.c.l.b16 %v70
  %v725 = vunpack.c.h.b16 %v70
  %v726 = vunpack.c.l.b16 %v71
  %v727 = vunpack.c.h.b16 %v71
  %v728 = vunpack.c.l.b16 %v72
  %v729 = vunpack.c.h.b16 %v72
  %v730 = vunpack.c.l.b16 %v73
  %v731 = vunpack.c.h.b16 %v73
  %v732 = vunpack.c.l.b16 %v74
  %v733 = vunpack.c.h.b16 %v74
  %v734 = vunpack.c.l.b16 %v75
  %v735 = vunpack.c.h.b16 %v75
  %v736 = vunpack.c.l.b16 %v76
  %v737 = vunpack.c.h.b16 %v76
  %v738 = vunpack.c.l.b16 %v77
  %v739 = vunpack.c.h.b16 %v77
  %v740 = vunpack.c.l.b16 %v78
  %v741 = vunpack.c.h.b16 %v78
  %v742 = vunpack.c.l.b16 %v79
  %v743 = vunpack.c.h.b16 %v79
  %v744 = vunpack.c.l.b16 %v80
  %v745 = vunpack.c.h.b16 %v80
  %v746 = vunpack.c.l.b16 %v81
  %v747 = vunpack.c.h.b16 %v81
  %v748 = vunpack.c.l.b16 %v82
  %v749 = vunpack.c.h.b16 %v82
  %v750 = vunpack.c.l.b16 %v83
  %v751 = vunpack.c.h.b16 %v83
  %v752 = vunpack.c.l.b16 %v84
  %v753 = vunpack.c.h.b16 %v84
  %v754 = vunpack.c.l.b16 %v85
  %v755 = vunpack.c.h.b16 %v85
  %v756 = vunpack.c.l.b16 %v86
  %v757 = vunpack.c.h.b16 %v86
  %v758 = vunpack.c.l.b16 %v87
  %v759 = vunpack.c.h.b16 %v87
  %v760 = vunpack.c.l.b16 %v88
  %v761 = vunpack.c.h.b16 %v88
  %v762 = vunpack.c.l.b16 %v89
  %v763 = vunpack.c.h.b16 %v89
  %v764 = vunpack.c.l.b16 %v90
  %v765 = vunpack.c.h.b16 %v90
  %v766 = vunpack.c.l.b16 %v91
  %v767 = vunpack.c.h.b16 %v91
  %v768 = vunpack.c.l.b16 %v92
  %v769 = vunpack.c.h.b16 %v92
  %v770 = vunpack.c.l.b16 %v93
  %v771 = vunpack.c.h.b16 %v93
  %v772 = vunpack.c.l.b16 %v94
  %v773 = vunpack.c.h.b16 %v94
  %v774 = vunpack.c.l.b16 %v95
  %v775 = vunpack.c.h.b16 %v95
  %v776 = vunpack.c.l.b16 %v96
  %v777 = vunpack.c.h.b16 %v96
  %v778 = vunpack.c.l.b16 %v97
  %v779 = vunpack.c.h.b16 %v97
  %v780 = vunpack.c.l.b16 %v98
  %v781 = vunpack.c.h.b16 %v98
  %v782 = vunpack.c.l.b16 %v99
  %v783 = vunpack.c.h.b16 %v99
  %v784 = vunpack.c.l.b16 %v100
  %v785 = vunpack.c.h.b16 %v100
  %v786 = vunpack.c.l.b16 %v101
  %v787 = vunpack.c.h.b16 %v101
  %v788 = vunpack.c.l.b16 %v102
  %v789 = vunpack.c.h.b16 %v102
  %v790 = vunpack.c.l.b16 %v103
  %v791 = vunpack.c.h.b16 %v103
  %v792 = vunpack.c.l.b16 %v104
  %v793 = vunpack.c.h.b16 %v104
  %v794 = vunpack.c.l.b16 %v105
  %v795 = vunpack.c.h.b16 %v105
  %v796 = vunpack.c.l.b16 %v106
  %v797 = vunpack.c.h.b16 %v106
  %v798 = vunpack.c.l.b16 %v107
  %v799 = vunpack.c.h.b16 %v107
  %v800 = vunpack.c.l.b16 %v108
  %v801 = vunpack.c.h.b16 %v108
  %v802 = vunpack.c.l.b16 %v109
  %v803 = vunpack.c.h.b16 %v109
  %v804 = vunpack.c.l.b16 %v110
  %v805 = vunpack.c.h.b16 %v110
  %v806 = vunpack.c.l.b16 %v111
  %v807 = vunpack.c.h.b16 %v111
  %v808 = vunpack.c.l.b16 %v112
  %v809 = vunpack.c.h.b16 %v112
  %v810 = vunpack.c.l.b16 %v113
  %v811 = vunpack.c.h.b16 %v113
  %v812 = vunpack.c.l.b16 %v114
  %v813 = vunpack.c.h.b16 %v114
  %v814 = vunpack.c.l.b16 %v115
  %v815 = vunpack.c.h.b16 %v115
  %v816 = vunpack.c.l.b16 %v116
  %v817 = vunpack.c.h.b16 %v116
  %v818 = vunpack.c.l.b16 %v117
  %v819 = vunpack.c.h.b16 %v117
  %v820 = vunpack.c.l.b16 %v118
  %v821 = vunpack.c.h.b16 %v118
  %v822 = vunpack.c.l.b16 %v119
  %v823 = vunpack.c.h.b16 %v119
  %v824 = vunpack.c.l.b16 %v120
  %v825 = vunpack.c.h.b16 %v120
  %v826 = vunpack.c.l.b16 %v121
  %v827 = vunpack.c.h.b16 %v121
  %v828 = vunpack.c.l.b16 %v122
  %v829 = vunpack.c.h.b16 %v122
  %v830 = vunpack.c.l.b16 %v123
  %v831 = vunpack.c.h.b16 %v123
  %v832 = vunpack.c.l.b16 %v124
  %v833 = vunpack.c.h.b16 %v124
  %v834 = vunpack.c.l.b16 %v125
  %v835 = vunpack.c.h.b16 %v125
  %v836 = vunpack.c.l.b16 %v126
  %v837 = vunpack.c.h.b16 %v126
  %v838 = vunpack.c.l.b16 %v127
  %v839 = vunpack.c.h.b16 %v127
  %v840 = vunpack.c.l.b16 %v128
  %v841 = vunpack.c.h.b16 %v128
  %v842 = vunpack.c.l.b16 %v129
  %v843 = vunpack.c.h.b16 %v129
  %v844 = vunpack.c.l.b16 %v130
  %v845 = vunpack.c.h.b16 %v130
  %v846 = vunpack.c.l.b16 %v131
  %v847 = vunpack.c.h.b16 %v131
  %v848 = vunpack.c.l.b16 %v132
  %v849 = vunpack.c.h.b16 %v132
  %v850 = vunpack.c.l.b16 %v133
  %v851 = vunpack.c.h.b16 %v133
  %v852 = vunpack.c.l.b16 %v134
  %v853 = vunpack.c.h.b16 %v134
  %v854 = vunpack.c.l.b16 %v135
  %v855 = vunpack.c.h.b16 %v135
  %v856 = vunpack.c.l.b16 %v136
  %v857 = vunpack.c.h.b16 %v136
  %v858 = vunpack.c.l.b16 %v137
  %v859 = vunpack.c.h.b16 %v137
  %v860 = vunpack.c.l.b16 %v138
  %v861 = vunpack.c.h.b16 %v138
  %v862 = vunpack.c.l.b16 %v139
  %v863 = vunpack.c.h.b16 %v139
  %v864 = vunpack.c.l.b16 %v140
  %v865 = vunpack.c.h.b16 %v140
  %v866 = vunpack.c.l.b16 %v141
  %v867 = vunpack.c.h.b16 %v141
  %v868 = vunpack.c.l.b16 %v142
  %v869 = vunpack.c.h.b16 %v142
  %v870 = vunpack.c.l.b16 %v143
  %v871 = vunpack.c.h.b16 %v143
  %v872 = vunpack.c.l.b16 %v144
  %v873 = vunpack.c.h.b16 %v144
  %v874 = vunpack.c.l.b16 %v145
  %v875 = vunpack.c.h.b16 %v145
  %v876 = vunpack.c.l.b16 %v146
  %v877 = vunpack.c.h.b16 %v146
  %v878 = vunpack.c.l.b16 %v147
  %v879 = vunpack.c.h.b16 %v147
  %v880 = vunpack.c.l.b16 %v148
  %v881 = vunpack.c.h.b16 %v148
  %v882 = vunpack.c.l.b16 %v149
  %v883 = vunpack.c.h.b16 %v149
  %v884 = vunpack.c.l.b16 %v150
  %v885 = vunpack.c.h.b16 %v150
  %v886 = vunpack.c.l.b16 %v151
  %v887 = vunpack.c.h.b16 %v151
  %v888 = vunpack.c.l.b16 %v152
  %v889 = vunpack.c.h.b16 %v152
  %v890 = vunpack.c.l.b16 %v153
  %v891 = vunpack.c.h.b16 %v153
  %v892 = vunpack.c.l.b16 %v154
  %v893 = vunpack.c.h.b16 %v154
  %v894 = vunpack.c.l.b16 %v155
  %v895 = vunpack.c.h.b16 %v155
  %v896 = vunpack.c.l.b16 %v156
  %v897 = vunpack.c.h.b16 %v156
  %v898 = vunpack.c.l.b16 %v157
  %v899 = vunpack.c.h.b16 %v157
  %v900 = vunpack.c.l.b16 %v158
  %v901 = vunpack.c.h.b16 %v158
  %v902 = vunpack.c.l.b16 %v159
  %v903 = vunpack.c.h.b16 %v159
  %v904 = vunpack.c.l.b16 %v160
  %v905 = vunpack.c.h.b16 %v160
  %v906 = vunpack.c.l.b16 %v161
  %v907 = vunpack.c.h.b16 %v161
  %v908 = vunpack.c.l.b16 %v162
  %v909 = vunpack.c.h.b16 %v162
  %v910 = vunpack.c.l.b16 %v163
  %v911 = vunpack.c.h.b16 %v163
  %v912 = vunpack.c.l.b16 %v164
  %v913 = vunpack.c.h.b16 %v164
  %v914 = vunpack.c.l.b16 %v165
  %v915 = vunpack.c.h.b16 %v165
  %v916 = vunpack.c.l.b16 %v166
  %v917 = vunpack.c.h.b16 %v166
  %v918 = vunpack.c.l.b16 %v167
  %v919 = vunpack.c.h.b16 %v167
  %v920 = vunpack.c.l.b16 %v168
  %v921 = vunpack.c.h.b16 %v168
  %v922 = vunpack.c.l.b16 %v169
  %v923 = vunpack.c.h.b16 %v169
  %v924 = vunpack.c.l.b16 %v170
  %v925 = vunpack.c.h.b16 %v170
  %v926 = vunpack.c.l.b16 %v171
  %v927 = vunpack.c.h.b16 %v171
  %v928 = vunpack.c.l.b16 %v172
  %v929 = vunpack.c.h.b16 %v172
  %v930 = vunpack.c.l.b16 %v173
  %v931 = vunpack.c.h.b16 %v173
  %v932 = vunpack.c.l.b16 %v174
  %v933 = vunpack.c.h.b16 %v174
  %v934 = vunpack.c.l.b16 %v175
  %v935 = vunpack.c.h.b16 %v175
  %v936 = vunpack.c.l.b16 %v176
  %v937 = vunpack.c.h.b16 %v176
  %v938 = vunpack.c.l.b16 %v177
  %v939 = vunpack.c.h.b16 %v177
  %v940 = vunpack.c.l.b16 %v178
  %v941 = vunpack.c.h.b16 %v178
  %v942 = vunpack.c.l.b16 %v179
  %v943 = vunpack.c.h.b16 %v179
  %v944 = vunpack.c.l.b16 %v180
  %v945 = vunpack.c.h.b16 %v180
  %v946 = vunpack.c.l.b16 %v181
  %v947 = vunpack.c.h.b16 %v181
  %v948 = vunpack.c.l.b16 %v182
  %v949 = vunpack.c.h.b16 %v182
  %v950 = vunpack.c.l.b16 %v183
  %v951 = vunpack.c.h.b16 %v183
  %v952 = vunpack.c.l.b16 %v184
  %v953 = vunpack.c.h.b16 %v184
  %v954 = vunpack.c.l.b16 %v185
  %v955 = vunpack.c.h.b16 %v185
  %v956 = vunpack.c.l.b16 %v186
  %v957 = vunpack.c.h.b16 %v186
  %v958 = vunpack.c.l.b16 %v187
  %v959 = vunpack.c.h.b16 %v187
  %v960 = vunpack.c.l.b16 %v188
  %v961 = vunpack.c.h.b16 %v188
  %v962 = vunpack.c.l.b16 %v189
  %v963 = vunpack.c.h.b16 %v189
  %v964 = vunpack.c.l.b16 %v190
  %v965 = vunpack.c.h.b16 %v190
  %v966 = vunpack.c.l.b16 %v191
  %v967 = vunpack.c.h.b16 %v191
  %v968 = vunpack.c.l.b16 %v192
  %v969 = vunpack.c.h.b16 %v192
  %v970 = vunpack.c.l.b16 %v193
  %v971 = vunpack.c.h.b16 %v193
  %v972 = vunpack.c.l.b16 %v194
  %v973 = vunpack.c.h.b16 %v194
  %v974 = vunpack.c.l.b16 %v195
  %v975 = vunpack.c.h.b16 %v195
  %v976 = vunpack.c.l.b16 %v196
  %v977 = vunpack.c.h.b16 %v196
  %v978 = vunpack.c.l.b16 %v197
  %v979 = vunpack.c.h.b16 %v197
  %v980 = vunpack.c.l.b16 %v198
  %v981 = vunpack.c.h.b16 %v198
  %v982 = vunpack.c.l.b16 %v199
  %v983 = vunpack.c.h.b16 %v199
  %v984 = vunpack.c.l.b16 %v200
  %v985 = vunpack.c.h.b16 %v200
  %v986 = vunpack.c.l.b16 %v201
  %v987 = vunpack.c.h.b16 %v201
  %v988 = vunpack.c.l.b16 %v202
  %v989 = vunpack.c.h.b16 %v202
  %v990 = vunpack.c.l.b16 %v203
  %v991 = vunpack.c.h.b16 %v203
  %v992 = vunpack.c.l.b16 %v204
  %v993 = vunpack.c.h.b16 %v204
  %v994 = vunpack.c.l.b16 %v205
  %v995 = vunpack.c.h.b16 %v205
  %v996 = vunpack.c.l.b16 %v206
  %v997 = vunpack.c.h.b16 %v206
  %v998 = vunpack.c.l.b16 %v207
  %v999 = vunpack.c.h.b16 %v207
  %v1000 = vunpack.c.l.b16 %v208
  %v1001 = vunpack.c.h.b16 %v208
  %v1002 = vunpack.c.l.b16 %v209
  %v1003 = vunpack.c.h.b16 %v209
  %v1004 = vunpack.c.l.b16 %v210
  %v1005 = vunpack.c.h.b16 %v210
  %v1006 = vunpack.c.l.b16 %v211
  %v1007 = vunpack.c.h.b16 %v211
  %v1008 = vunpack.c.l.b16 %v212
  %v1009 = vunpack.c.h.b16 %v212
  %v1010 = vunpack.c.l.b16 %v213
  %v1011 = vunpack.c.h.b16 %v213
  %v1012 = vunpack.c.l.b16 %v214
  %v1013 = vunpack.c.h.b16 %v214
  %v1014 = vunpack.c.l.b16 %v215
  %v1015 = vunpack.c.h.b16 %v215
  %v1016 = vunpack.c.l.b16 %v216
  %v1017 = vunpack.c.h.b16 %v216
  %v1018 = vunpack.c.l.b16 %v217
  %v1019 = vunpack.c.h.b16 %v217
  %v1020 = vunpack.c.l.b16 %v218
  %v1021 = vunpack.c.h.b16 %v218
  %v1022 = vunpack.c.l.b16 %v219
  %v1023 = vunpack.c.h.b16 %v219
  %v1024 = vunpack.c.l.b16 %v220
  %v1025 = vunpack.c.h.b16 %v220
  %v1026 = vunpack.c.l.b16 %v221
  %v1027 = vunpack.c.h.b16 %v221
  %v1028 = vunpack.c.l.b16 %v222
  %v1029 = vunpack.c.h.b16 %v222
  %v1030 = vunpack.c.l.b16 %v223
  %v1031 = vunpack.c.h.b16 %v223
  %v1032 = vunpack.c.l.b16 %v224
  %v1033 = vunpack.c.h.b16 %v224
  %v1034 = vunpack.c.l.b16 %v225
  %v1035 = vunpack.c.h.b16 %v225
  %v1036 = vunpack.c.l.b16 %v226
  %v1037 = vunpack.c.h.b16 %v226
  %v1038 = vunpack.c.l.b16 %v227
  %v1039 = vunpack.c.h.b16 %v227
  %v1040 = vunpack.c.l.b16 %v228
  %v1041 = vunpack.c.h.b16 %v228
  %v1042 = vunpack.c.l.b16 %v229
  %v1043 = vunpack.c.h.b16 %v229
  %v1044 = vunpack.c.l.b16 %v230
  %v1045 = vunpack.c.h.b16 %v230
  %v1046 = vunpack.c.l.b16 %v231
  %v1047 = vunpack.c.h.b16 %v231
  %v1048 = vunpack.c.l.b16 %v232
  %v1049 = vunpack.c.h.b16 %v232
  %v1050 = vunpack.c.l.b16 %v233
  %v1051 = vunpack.c.h.b16 %v233
  %v1052 = vunpack.c.l.b16 %v234
  %v1053 = vunpack.c.h.b16 %v234
  %v1054 = vunpack.c.l.b16 %v235
  %v1055 = vunpack.c.h.b16 %v235
  %v1056 = vunpack.c.l.b16 %v236
  %v1057 = vunpack.c.h.b16 %v236
  %v1058 = vunpack.c.l.b16 %v237
  %v1059 = vunpack.c.h.b16 %v237
  %v1060 = vunpack.c.l.b16 %v238
  %v1061 = vunpack.c.h.b16 %v238
  %v1062 = vunpack.c.l.b16 %v239
  %v1063 = vunpack.c.h.b16 %v239
  %v1064 = vunpack.c.l.b16 %v240
  %v1065 = vunpack.c.h.b16 %v240
  %v1066 = vunpack.c.l.b16 %v241
  %v1067 = vunpack.c.h.b16 %v241
  %v1068 = vunpack.c.l.b16 %v242
  %v1069 = vunpack.c.h.b16 %v242
  %v1070 = vunpack.c.l.b16 %v243
  %v1071 = vunpack.c.h.b16 %v243
  %v1072 = vunpack.c.l.b16 %v244
  %v1073 = vunpack.c.h.b16 %v244
  %v1074 = vunpack.c.l.b16 %v245
  %v1075 = vunpack.c.h.b16 %v245
  %v1076 = vunpack.c.l.b16 %v246
  %v1077 = vunpack.c.h.b16 %v246
  %v1078 = vunpack.c.l.b16 %v247
  %v1079 = vunpack.c.h.b16 %v247
  %v1080 = vunpack.c.l.b16 %v248
  %v1081 = vunpack.c.h.b16 %v248
  %v1082 = vunpack.c.l.b16 %v249
  %v1083 = vunpack.c.h.b16 %v249
  %v1084 = vunpack.c.l.b16 %v250
  %v1085 = vunpack.c.h.b16 %v250
  %v1086 = vunpack.c.l.b16 %v251
  %v1087 = vunpack.c.h.b16 %v251
  %v1088 = vunpack.c.l.b16 %v252
  %v1089 = vunpack.c.h.b16 %v252
  %v1090 = vunpack.c.l.b16 %v253
  %v1091 = vunpack.c.h.b16 %v253
  %v1092 = vunpack.c.l.b16 %v254
  %v1093 = vunpack.c.h.b16 %v254
  %v1094 = vunpack.c.l.b16 %v255
  %v1095 = vunpack.c.h.b16 %v255
  %v1096 = vunpack.c.l.b16 %v256
  %v1097 = vunpack.c.h.b16 %v256
  %v1098 = vunpack.c.l.b16 %v257
  %v1099 = vunpack.c.h.b16 %v257
  %v1100 = vunpack.c.l.b16 %v258
  %v1101 = vunpack.c.h.b16 %v258
  %v1102 = vunpack.c.l.b16 %v259
  %v1103 = vunpack.c.h.b16 %v259
  %v1104 = vunpack.c.l.b16 %v260
  %v1105 = vunpack.c.h.b16 %v260
  %v1106 = vunpack.c.l.b16 %v261
  %v1107 = vunpack.c.h.b16 %v261
  %v1108 = vunpack.c.l.b16 %v262
  %v1109 = vunpack.c.h.b16 %v262
  %v1110 = vunpack.c.l.b16 %v263
  %v1111 = vunpack.c.h.b16 %v263
  %v1112 = vunpack.c.l.b16 %v264
  %v1113 = vunpack.c.h.b16 %v264
  %v1114 = vunpack.c.l.b16 %v265
  %v1115 = vunpack.c.h.b16 %v265
  %v1116 = vunpack.c.l.b16 %v266
  %v1117 = vunpack.c.h.b16 %v266
  %v1118 = vunpack.c.l.b16 %v267
  %v1119 = vunpack.c.h.b16 %v267
  %v1120 = vunpack.c.l.b16 %v268
  %v1121 = vunpack.c.h.b16 %v268
  %v1122 = vunpack.c.l.b16 %v269
  %v1123 = vunpack.c.h.b16 %v269
  %v1124 = vunpack.c.l.b16 %v270
  %v1125 = vunpack.c.h.b16 %v270
  %v1126 = vunpack.c.l.b16 %v271
  %v1127 = vunpack.c.h.b16 %v271
  %v1128 = vunpack.c.l.b16 %v272
  %v1129 = vunpack.c.h.b16 %v272
  %v1130 = vunpack.c.l.b16 %v273
  %v1131 = vunpack.c.h.b16 %v273
  %v1132 = vunpack.c.l.b16 %v274
  %v1133 = vunpack.c.h.b16 %v274
  %v1134 = vunpack.c.l.b16 %v275
  %v1135 = vunpack.c.h.b16 %v275
  %v1136 = vunpack.c.l.b16 %v276
  %v1137 = vunpack.c.h.b16 %v276
  %v1138 = vunpack.c.l.b16 %v277
  %v1139 = vunpack.c.h.b16 %v277
  %v1140 = vunpack.c.l.b16 %v278
  %v1141 = vunpack.c.h.b16 %v278
  %v1142 = vunpack.c.l.b16 %v279
  %v1143 = vunpack.c.h.b16 %v279
  %v1144 = vunpack.c.l.b16 %v280
  %v1145 = vunpack.c.h.b16 %v280
  %v1146 = vunpack.c.l.b16 %v281
  %v1147 = vunpack.c.h.b16 %v281
  %v1148 = vunpack.c.l.b16 %v282
  %v1149 = vunpack.c.h.b16 %v282
  %v1150 = vunpack.c.l.b16 %v283
  %v1151 = vunpack.c.h.b16 %v283
  %v1152 = vunpack.c.l.b16 %v284
  %v1153 = vunpack.c.h.b16 %v284
  %v1154 = vunpack.c.l.b16 %v285
  %v1155 = vunpack.c.h.b16 %v285
  %v1156 = vunpack.c.l.b16 %v286
  %v1157 = vunpack.c.h.b16 %v286
  %v1158 = vunpack.c.l.b16 %v287
  %v1159 = vunpack.c.h.b16 %v287
  %v1160 = vunpack.c.l.b16 %v288
  %v1161 = vunpack.c.h.b16 %v288
  %v1162 = vunpack.c.l.b16 %v289
  %v1163 = vunpack.c.h.b16 %v289
  %v1164 = vunpack.c.l.b16 %v290
  %v1165 = vunpack.c.h.b16 %v290
  %v1166 = vunpack.c.l.b16 %v291
  %v1167 = vunpack.c.h.b16 %v291
  %v1168 = vunpack.c.l.b16 %v292
  %v1169 = vunpack.c.h.b16 %v292
  %v1170 = vunpack.c.l.b16 %v293
  %v1171 = vunpack.c.h.b16 %v293
  %v1172 = vunpack.c.l.b16 %v294
  %v1173 = vunpack.c.h.b16 %v294
  %v1174 = vunpack.c.l.b16 %v295
  %v1175 = vunpack.c.h.b16 %v295
  %v1176 = vunpack.c.l.b16 %v296
  %v1177 = vunpack.c.h.b16 %v296
  %v1178 = vunpack.c.l.b16 %v297
  %v1179 = vunpack.c.h.b16 %v297
  %v1180 = vunpack.c.l.b16 %v298
  %v1181 = vunpack.c.h.b16 %v298
  %v1182 = vunpack.c.l.b16 %v299
  %v1183 = vunpack.c.h.b16 %v299
  %v1184 = vunpack.c.l.b16 %v300
  %v1185 = vunpack.c.h.b16 %v300
  %v1186 = vunpack.c.l.b16 %v301
  %v1187 = vunpack.c.h.b16 %v301
  %v1188 = vunpack.c.l.b16 %v302
  %v1189 = vunpack.c.h.b16 %v302
  %v1190 = vunpack.c.l.b16 %v303
  %v1191 = vunpack.c.h.b16 %v303
  %v1192 = vunpack.c.l.b16 %v304
  %v1193 = vunpack.c.h.b16 %v304
  %v1194 = vunpack.c.l.b16 %v305
  %v1195 = vunpack.c.h.b16 %v305
  %v1196 = vunpack.c.l.b16 %v306
  %v1197 = vunpack.c.h.b16 %v306
  %v1198 = vunpack.c.l.b16 %v307
  %v1199 = vunpack.c.h.b16 %v307
  %v1200 = vunpack.c.l.b16 %v308
  %v1201 = vunpack.c.h.b16 %v308
  %v1202 = vunpack.c.l.b16 %v309
  %v1203 = vunpack.c.h.b16 %v309
  %v1204 = vunpack.c.l.b16 %v310
  %v1205 = vunpack.c.h.b16 %v310
  %v1206 = vunpack.c.l.b16 %v311
  %v1207 = vunpack.c.h.b16 %v311
  %v1208 = vunpack.c.l.b16 %v312
  %v1209 = vunpack.c.h.b16 %v312
  %v1210 = vunpack.c.l.b16 %v313
  %v1211 = vunpack.c.h.b16 %v313
  %v1212 = vunpack.c.l.b16 %v314
  %v1213 = vunpack.c.h.b16 %v314
  %v1214 = vunpack.c.l.b16 %v315
  %v1215 = vunpack.c.h.b16 %v315
  %v1216 = vunpack.c.l.b16 %v316
  %v1217 = vunpack.c.h.b16 %v316
  %v1218 = vunpack.c.l.b16 %v317
  %v1219 = vunpack.c.h.b16 %v317
  %v1220 = vunpack.c.l.b16 %v318
  %v1221 = vunpack.c.h.b16 %v318
  %v1222 = vunpack.c.l.b16 %v319
  %v1223 = vunpack.c.h.b16 %v319
  %v1224 = vunpack.c.l.b16 %v320
  %v1225 = vunpack.c.h.b16 %v320
  %v1226 = vunpack.c.l.b16 %v321
  %v1227 = vunpack.c.h.b16 %v321
  %v1228 = vunpack.c.l.b16 %v322
  %v1229 = vunpack.c.h.b16 %v322
  %v1230 = vunpack.c.l.b16 %v323
  %v1231 = vunpack.c.h.b16 %v323
  %v1232 = vunpack.c.l.b16 %v324
  %v1233 = vunpack.c.h.b16 %v324
  %v1234 = vunpack.c.l.b16 %v325
  %v1235 = vunpack.c.h.b16 %v325
  %v1236 = vunpack.c.l.b16 %v326
  %v1237 = vunpack.c.h.b16 %v326
  %v1238 = vunpack.c.l.b16 %v327
  %v1239 = vunpack.c.h.b16 %v327
  %v1240 = vunpack.c.l.b16 %v328
  %v1241 = vunpack.c.h.b16 %v328
  %v1242 = vunpack.c.l.b16 %v329
  %v1243 = vunpack.c.h.b16 %v329
  %v1244 = vunpack.c.l.b16 %v330
  %v1245 = vunpack.c.h.b16 %v330
  %v1246 = vunpack.c.l.b16 %v331
  %v1247 = vunpack.c.h.b16 %v331
  %v1248 = vpack.c.b16 %v664, %v660
  %v1249 = vpack.c.b16 %v665, %v661
  %v1250 = vpack.c.b16 %v666, %v662
  %v1251 = vpack.c.b16 %v667, %v663
  %v1252 = vpack.c.b16 %v672, %v668
  %v1253 = vpack.c.b16 %v673, %v669
  %v1254 = vpack.c.b16 %v674, %v670
  %v1255 = vpack.c.b16 %v675, %v671
  %v1256 = vpack.c.b16 %v680, %v676
  %v1257 = vpack.c.b16 %v681, %v677
  %v1258 = vpack.c.b16 %v682, %v678
  %v1259 = vpack.c.b16 %v683, %v679
  %v1260 = vpack.c.b16 %v688, %v684
  %v1261 = vpack.c.b16 %v689, %v685
  %v1262 = vpack.c.b16 %v690, %v686
  %v1263 = vpack.c.b16 %v691, %v687
  %v1264 = vpack.c.b16 %v696, %v692
  %v1265 = vpack.c.b16 %v697, %v693
  %v1266 = vpack.c.b16 %v698, %v694
  %v1267 = vpack.c.b16 %v699, %v695
  %v1268 = vpack.c.b16 %v704, %v700
  %v1269 = vpack.c.b16 %v705, %v701
  %v1270 = vpack.c.b16 %v706, %v702
  %v1271 = vpack.c.b16 %v707, %v703
  %v1272 = vpack.c.b16 %v712, %v708
  %v1273 = vpack.c.b16 %v713, %v709
  %v1274 = vpack.c.b16 %v714, %v710
  %v1275 = vpack.c.b16 %v715, %v711
  %v1276 = vpack.c.b16 %v720, %v716
  %v1277 = vpack.c.b16 %v721, %v717
  %v1278 = vpack.c.b16 %v722, %v718
  %v1279 = vpack.c.b16 %v723, %v719
  %v1280 = vpack.c.b16 %v728, %v724
  %v1281 = vpack.c.b16 %v729, %v725
  %v1282 = vpack.c.b16 %v730, %v726
  %v1283 = vpack.c.b16 %v731, %v727
  %v1284 = vpack.c.b16 %v736, %v732
  %v1285 = vpack.c.b16 %v737, %v733
  %v1286 = vpack.c.b16 %v738, %v734
  %v1287 = vpack.c.b16 %v739, %v735
  %v1288 = vpack.c.b16 %v744, %v740
  %v1289 = vpack.c.b16 %v745, %v741
  %v1290 = vpack.c.b16 %v746, %v742
  %v1291 = vpack.c.b16 %v747, %v743
  %v1292 = vpack.c.b16 %v752, %v748
  %v1293 = vpack.c.b16 %v753, %v749
  %v1294 = vpack.c.b16 %v754, %v750
  %v1295 = vpack.c.b16 %v755, %v751
  %v1296 = vpack.c.b16 %v760, %v756
  %v1297 = vpack.c.b16 %v761, %v757
  %v1298 = vpack.c.b16 %v762, %v758
  %v1299 = vpack.c.b16 %v763, %v759
  %v1300 = vpack.c.b16 %v768, %v764
  %v1301 = vpack.c.b16 %v769, %v765
  %v1302 = vpack.c.b16 %v770, %v766
  %v1303 = vpack.c.b16 %v771, %v767
  %v1304 = vpack.c.b16 %v776, %v772
  %v1305 = vpack.c.b16 %v777, %v773
  %v1306 = vpack.c.b16 %v778, %v774
  %v1307 = vpack.c.b16 %v779, %v775
  %v1308 = vpack.c.b16 %v784, %v780
  %v1309 = vpack.c.b16 %v785, %v781
  %v1310 = vpack.c.b16 %v786, %v782
  %v1311 = vpack.c.b16 %v787, %v783
  %v1312 = vpack.c.b16 %v792, %v788
  %v1313 = vpack.c.b16 %v793, %v789
  %v1314 = vpack.c.b16 %v794, %v790
  %v1315 = vpack.c.b16 %v795, %v791
  %v1316 = vpack.c.b16 %v800, %v796
  %v1317 = vpack.c.b16 %v801, %v797
  %v1318 = vpack.c.b16 %v802, %v798
  %v1319 = vpack.c.b16 %v803, %v799
  %v1320 = vpack.c.b16 %v808, %v804
  %v1321 = vpack.c.b16 %v809, %v805
  %v1322 = vpack.c.b16 %v810, %v806
  %v1323 = vpack.c.b16 %v811, %v807
  %v1324 = vpack.c.b16 %v816, %v812
  %v1325 = vpack.c.b16 %v817, %v813
  %v1326 = vpack.c.b16 %v818, %v814
  %v1327 = vpack.c.b16 %v819, %v815
  %v1328 = vpack.c.b16 %v824, %v820
  %v1329 = vpack.c.b16 %v825, %v821
  %v1330 = vpack.c.b16 %v826, %v822
  %v1331 = vpack.c.b16 %v827, %v823
  %v1332 = vpack.c.b16 %v832, %v828
  %v1333 = vpack.c.b16 %v833, %v829
  %v1334 = vpack.c.b16 %v834, %v830
  %v1335 = vpack.c.b16 %v835, %v831
  %v1336 = vpack.c.b16 %v840, %v836
  %v1337 = vpack.c.b16 %v841, %v837
  %v1338 = vpack.c.b16 %v842, %v838
  %v1339 = vpack.c.b16 %v843, %v839
  %v1340 = vpack.c.b16 %v848, %v844
  %v1341 = vpack.c.b16 %v849, %v845
  %v1342 = vpack.c.b16 %v850, %v846
  %v1343 = vpack.c.b16 %v851, %v847
  %v1344 = vpack.c.b16 %v856, %v852
  %v1345 = vpack.c.b16 %v857, %v853
  %v1346 = vpack.c.b16 %v858, %v854
  %v1347 = vpack.c.b16 %v859, %v855
  %v1348 = vpack.c.b16 %v864, %v860
  %v1349 = vpack.c.b16 %v865, %v861
  %v1350 = vpack.c.b16 %v866, %v862
  %v1351 = vpack.c.b16 %v867, %v863
  %v1352 = vpack.c.b16 %v872, %v868
  %v1353 = vpack.c.b16 %v873, %v869
  %v1354 = vpack.c.b16 %v874, %v870
  %v1355 = vpack.c.b16 %v875, %v871
  %v1356 = vpack.c.b16 %v880, %v876
  %v1357 = vpack.c.b16 %v881, %v877
  %v1358 = vpack.c.b16 %v882, %v878
  %v1359 = vpack.c.b16 %v883, %v879
  %v1360 = vpack.c.b16 %v888, %v884
  %v1361 = vpack.c.b16 %v889, %v885
  %v1362 = vpack.c.b16 %v890, %v886
  %v1363 = vpack.c.b16 %v891, %v887
  %v1364 = vpack.c.b16 %v896, %v892
  %v1365 = vpack.c.b16 %v897, %v893
  %v1366 = vpack.c.b16 %v898, %v894
  %v1367 = vpack.c.b16 %v899, %v895
  %v1368 = vpack.c.b16 %v904, %v900
  %v1369 = vpack.c.b16 %v905, %v901
  %v1370 = vpack.c.b16 %v906, %v902
  %v1371 = vpack.c.b16 %v907, %v903
  %v1372 = vpack.c.b16 %v912, %v908
  %v1373 = vpack.c.b16 %v913, %v909
  %v1374 = vpack.c.b16 %v914, %v910
  %v1375 = vpack.c.b16 %v915, %v911
  %v1376 = vpack.c.b16 %v920, %v916
  %v1377 = vpack.c.b16 %v921, %v917
  %v1378 = vpack.c.b16 %v922, %v918
  %v1379 = vpack.c.b16 %v923, %v919
  %v1380 = vpack.c.b16 %v928, %v924
  %v1381 = vpack.c.b16 %v929, %v925
  %v1382 = vpack.c.b16 %v930, %v926
  %v1383 = vpack.c.b16 %v931, %v927
  %v1384 = vpack.c.b16 %v936, %v932
  %v1385 = vpack.c.b16 %v937, %v933
  %v1386 = vpack.c.b16 %v938, %v934
  %v1387 = vpack.c.b16 %v939, %v935
  %v1388 = vpack.c.b16 %v944, %v940
  %v1389 = vpack.c.b16 %v945, %v941
  %v1390 = vpack.c.b16 %v946, %v942
  %v1391 = vpack.c.b16 %v947, %v943
  %v1392 = vpack.c.b16 %v952, %v948
  %v1393 = vpack.c.b16 %v953, %v949
  %v1394 = vpack.c.b16 %v954, %v950
  %v1395 = vpack.c.b16 %v955, %v951
  %v1396 = vpack.c.b16 %v960, %v956
  %v1397 = vpack.c.b16 %v961, %v957
  %v1398 = vpack.c.b16 %v962, %v958
  %v1399 = vpack.c.b16 %v963, %v959
  %v1400 = vpack.c.b16 %v968, %v964
  %v1401 = vpack.c.b16 %v969, %v965
  %v1402 = vpack.c.b16 %v970, %v966
  %v1403 = vpack.c.b16 %v971, %v967
  %v1404 = vpack.c.b16 %v976, %v972
  %v1405 = vpack.c.b16 %v977, %v973
  %v1406 = vpack.c.b16 %v978, %v974
  %v1407 = vpack.c.b16 %v979, %v975
  %v1408 = vpack.c.b16 %v984, %v980
  %v1409 = vpack.c.b16 %v985, %v981
  %v1410 = vpack.c.b16 %v986, %v982
  %v1411 = vpack.c.b16 %v987, %v983
  %v1412 = vpack.c.b16 %v992, %v988
  %v1413 = vpack.c.b16 %v993, %v989
  %v1414 = vpack.c.b16 %v994, %v990
  %v1415 = vpack.c.b16 %v995, %v991
  %v1416 = vpack.c.b16 %v1000, %v996
  %v1417 = vpack.c.b16 %v1001, %v997
  %v1418 = vpack.c.b16 %v1002, %v998
  %v1419 = vpack.c.b16 %v1003, %v999
  %v1420 = vpack.c.b16 %v1008, %v1004
  %v1421 = vpack.c.b16 %v1009, %v1005
  %v1422 = vpack.c.b16 %v1010, %v1006
  %v1423 = vpack.c.b16 %v1011, %v1007
  %v1424 = vpack.c.b16 %v1016, %v1012
  %v1425 = vpack.c.b16 %v1017, %v1013
  %v1426 = vpack.c.b16 %v1018, %v1014
  %v1427 = vpack.c.b16 %v1019, %v1015
  %v1428 = vpack.c.b16 %v1024, %v1020
  %v1429 = vpack.c.b16 %v1025, %v1021
  %v1430 = vpack.c.b16 %v1026, %v1022
  %v1431 = vpack.c.b16 %v1027, %v1023
  %v1432 = vpack.c.b16 %v1032, %v1028
  %v1433 = vpack.c.b16 %v1033, %v1029
  %v1434 = vpack.c.b16 %v1034, %v1030
  %v1435 = vpack.c.b16 %v1035, %v1031
  %v1436 = vpack.c.b16 %v1040, %v1036
  %v1437 = vpack.c.b16 %v1041, %v1037
  %v1438 = vpack.c.b16 %v1042, %v1038
  %v1439 = vpack.c.b16 %v1043, %v1039
  %v1440 = vpack.c.b16 %v1048, %v1044
  %v1441 = vpack.c.b16 %v1049, %v1045
  %v1442 = vpack.c.b16 %v1050, %v1046
  %v1443 = vpack.c.b16 %v1051, %v1047
  %v1444 = vpack.c.b16 %v1056, %v1052
  %v1445 = vpack.c.b16 %v1057, %v1053
  %v1446 = vpack.c.b16 %v1058, %v1054
  %v1447 = vpack.c.b16 %v1059, %v1055
  %v1448 = vpack.c.b16 %v1064, %v1060
  %v1449 = vpack.c.b16 %v1065, %v1061
  %v1450 = vpack.c.b16 %v1066, %v1062
  %v1451 = vpack.c.b16 %v1067, %v1063
  %v1452 = vpack.c.b16 %v1072, %v1068
  %v1453 = vpack.c.b16 %v1073, %v1069
  %v1454 = vpack.c.b16 %v1074, %v1070
  %v1455 = vpack.c.b16 %v1075, %v1071
  %v1456 = vpack.c.b16 %v1080, %v1076
  %v1457 = vpack.c.b16 %v1081, %v1077
  %v1458 = vpack.c.b16 %v1082, %v1078
  %v1459 = vpack.c.b16 %v1083, %v1079
  %v1460 = vpack.c.b16 %v1088, %v1084
  %v1461 = vpack.c.b16 %v1089, %v1085
  %v1462 = vpack.c.b16 %v1090, %v1086
  %v1463 = vpack.c.b16 %v1091, %v1087
  %v1464 = vpack.c.b16 %v1096, %v1092
  %v1465 = vpack.c.b16 %v1097, %v1093
  %v1466 = vpack.c.b16 %v1098, %v1094
  %v1467 = vpack.c.b16 %v1099, %v1095
  %v1468 = vpack.c.b16 %v1104, %v1100
  %v1469 = vpack.c.b16 %v1105, %v1101
  %v1470 = vpack.c.b16 %v1106, %v1102
  %v1471 = vpack.c.b16 %v1107, %v1103
  %v1472 = vpack.c.b16 %v1112, %v1108
  %v1473 = vpack.c.b16 %v1113, %v1109
  %v1474 = vpack.c.b16 %v1114, %v1110
  %v1475 = vpack.c.b16 %v1115, %v1111
  %v1476 = vpack.c.b16 %v1120, %v1116
  %v1477 = vpack.c.b16 %v1121, %v1117
  %v1478 = vpack.c.b16 %v1122, %v1118
  %v1479 = vpack.c.b16 %v1123, %v1119
  %v1480 = vpack.c.b16 %v1128, %v1124
  %v1481 = vpack.c.b16 %v1129, %v1125
  %v1482 = vpack.c.b16 %v1130, %v1126
  %v1483 = vpack.c.b16 %v1131, %v1127
  %v1484 = vpack.c.b16 %v1136, %v1132
  %v1485 = vpack.c.b16 %v1137, %v1133
  %v1486 = vpack.c.b16 %v1138, %v1134
  %v1487 = vpack.c.b16 %v1139, %v1135
  %v1488 = vpack.c.b16 %v1144, %v1140
  %v1489 = vpack.c.b16 %v1145, %v1141
  %v1490 = vpack.c.b16 %v1146, %v1142
  %v1491 = vpack.c.b16 %v1147, %v1143
  %v1492 = vpack.c.b16 %v1152, %v1148
  %v1493 = vpack.c.b16 %v1153, %v1149
  %v1494 = vpack.c.b16 %v1154, %v1150
  %v1495 = vpack.c.b16 %v1155, %v1151
  %v1496 = vpack.c.b16 %v1160, %v1156
  %v1497 = vpack.c.b16 %v1161, %v1157
  %v1498 = vpack.c.b16 %v1162, %v1158
  %v1499 = vpack.c.b16 %v1163, %v1159
  %v1500 = vpack.c.b16 %v1168, %v1164
  %v1501 = vpack.c.b16 %v1169, %v1165
  %v1502 = vpack.c.b16 %v1170, %v1166
  %v1503 = vpack.c.b16 %v1171, %v1167
  %v1504 = vpack.c.b16 %v1176, %v1172
  %v1505 = vpack.c.b16 %v1177, %v1173
  %v1506 = vpack.c.b16 %v1178, %v1174
  %v1507 = vpack.c.b16 %v1179, %v1175
  %v1508 = vpack.c.b16 %v1184, %v1180
  %v1509 = vpack.c.b16 %v1185, %v1181
  %v1510 = vpack.c.b16 %v1186, %v1182
  %v1511 = vpack.c.b16 %v1187, %v1183
  %v1512 = vpack.c.b16 %v1192, %v1188
  %v1513 = vpack.c.b16 %v1193, %v1189
  %v1514 = vpack.c.b16 %v1194, %v1190
  %v1515 = vpack.c.b16 %v1195, %v1191
  %v1516 = vpack.c.b16 %v1200, %v1196
  %v1517 = vpack.c.b16 %v1201, %v1197
  %v1518 = vpack.c.b16 %v1202, %v1198
  %v1519 = vpack.c.b16 %v1203, %v1199
  %v1520 = vpack.c.b16 %v1208, %v1204
  %v1521 = vpack.c.b16 %v1209, %v1205
  %v1522 = vpack.c.b16 %v1210, %v1206
  %v1523 = vpack.c.b16 %v1211, %v1207
  %v1524 = vpack.c.b16 %v1216, %v1212
  %v1525 = vpack.c.b16 %v1217, %v1213
  %v1526 = vpack.c.b16 %v1218, %v1214
  %v1527 = vpack.c.b16 %v1219, %v1215
  %v1528 = vpack.c.b16 %v1224, %v1220
  %v1529 = vpack.c.b16 %v1225, %v1221
  %v1530 = vpack.c.b16 %v1226, %v1222
  %v1531 = vpack.c.b16 %v1227, %v1223
  %v1532 = vpack.c.b16 %v1232, %v1228
  %v1533 = vpack.c.b16 %v1233, %v1229
  %v1534 = vpack.c.b16 %v1234, %v1230
  %v1535 = vpack.c.b16 %v1235, %v1231
  %v1536 = vpack.c.b16 %v1240, %v1236
  %v1537 = vpack.c.b16 %v1241, %v1237
  %v1538 = vpack.c.b16 %v1242, %v1238
  %v1539 = vpack.c.b16 %v1243, %v1239
  %v1540 = vpack.c.b16 %v1244, %v1244
  %v1541 = vpack.c.b16 %v1245, %v1245
  %v1542 = vpack.c.b16 %v1246, %v1246
  %v1543 = vpack.c.b16 %v1247, %v1247
  %vm1836 = vcmask 195584
  %v1838 = vsel %vm1836, %v356, 0
  %vm1840 = vcmask 1043456
  %v1842 = vsel %vm1840, %v1540, 0
  %v1845 = vsel %vm1840, %v1541, 0
  %v1848 = vsel %vm1840, %v1542, 0
  %v1851 = vsel %vm1840, %v1543, 0
  %1853 = vmatprep.subr.bf16.mxu0 %v1249
  %1854 = vmatpush1.bf16.msra.mxu0 %v1248
  %1855 = vmatprep.subr.bf16.mxu0 %v1253
  %1856 = vmatpush1.bf16.msra.mxu0 %v1252
  %1857 = vmatprep.subr.bf16.mxu0 %v1257
  %1858 = vmatpush1.bf16.msra.mxu0 %v1256
  %1859 = vmatprep.subr.bf16.mxu0 %v1261
  %1860 = vmatpush1.bf16.msra.mxu0 %v1260
  %1861 = vmatprep.subr.bf16.mxu0 %v1265
  %1862 = vmatpush1.bf16.msra.mxu0 %v1264
  %1863 = vmatprep.subr.bf16.mxu0 %v1269
  %1864 = vmatpush1.bf16.msra.mxu0 %v1268
  %1865 = vmatprep.subr.bf16.mxu0 %v1273
  %1866 = vmatpush1.bf16.msra.mxu0 %v1272
  %1867 = vmatprep.subr.bf16.mxu0 %v1277
  %1868 = vmatpush1.bf16.msra.mxu0 %v1276
  %1869 = vmatprep.subr.bf16.mxu0 %v1281
  %1870 = vmatpush1.bf16.msra.mxu0 %v1280
  %1871 = vmatprep.subr.bf16.mxu0 %v1285
  %1872 = vmatpush1.bf16.msra.mxu0 %v1284
  %1873 = vmatprep.subr.bf16.mxu0 %v1289
  %1874 = vmatpush1.bf16.msra.mxu0 %v1288
  %1875 = vmatprep.subr.bf16.mxu0 %v1293
  %1876 = vmatpush1.bf16.msra.mxu0 %v1292
  %1877 = vmatprep.subr.bf16.mxu0 %v1297
  %1878 = vmatpush1.bf16.msra.mxu0 %v1296
  %1879 = vmatprep.subr.bf16.mxu0 %v1301
  %1880 = vmatpush1.bf16.msra.mxu0 %v1300
  %1881 = vmatprep.subr.bf16.mxu0 %v1305
  %1882 = vmatpush1.bf16.msra.mxu0 %v1304
  %1883 = vmatprep.subr.bf16.mxu0 %v1309
  %1884 = vmatpush1.bf16.msra.mxu0 %v1308
  %1885 = vmatprep.mubr.bf16.mxu0 %v348
  %1886 = vmatmul.mubr.bf16.gmra.mrb[0].mxu0 %v347
  %v1887 = vpop.f32.mrb[0].mxu0
  %v1888 = vadd.f32 0.0, %v1887
  %v1889 = vpop.f32.mrb[0].mxu0
  %v1890 = vadd.f32 0.0, %v1889
  %v1891 = vpop.f32.mrb[0].mxu0
  %v1892 = vpop.f32.mrb[0].mxu0
  %1893 = vdwg.mxu0
  %1894 = vmatprep.subr.bf16.mxu0 %v1313
  %1895 = vmatpush1.bf16.msra.mxu0 %v1312
  %1896 = vmatprep.subr.bf16.mxu0 %v1317
  %1897 = vmatpush1.bf16.msra.mxu0 %v1316
  %1898 = vmatprep.subr.bf16.mxu0 %v1321
  %1899 = vmatpush1.bf16.msra.mxu0 %v1320
  %1900 = vmatprep.subr.bf16.mxu0 %v1325
  %1901 = vmatpush1.bf16.msra.mxu0 %v1324
  %1902 = vmatprep.subr.bf16.mxu0 %v1329
  %1903 = vmatpush1.bf16.msra.mxu0 %v1328
  %1904 = vmatprep.subr.bf16.mxu0 %v1333
  %1905 = vmatpush1.bf16.msra.mxu0 %v1332
  %1906 = vmatprep.subr.bf16.mxu0 %v1337
  %1907 = vmatpush1.bf16.msra.mxu0 %v1336
  %1908 = vmatprep.subr.bf16.mxu0 %v1341
  %1909 = vmatpush1.bf16.msra.mxu0 %v1340
  %1910 = vmatprep.subr.bf16.mxu0 %v1345
  %1911 = vmatpush1.bf16.msra.mxu0 %v1344
  %1912 = vmatprep.subr.bf16.mxu0 %v1349
  %1913 = vmatpush1.bf16.msra.mxu0 %v1348
  %1914 = vmatprep.subr.bf16.mxu0 %v1353
  %1915 = vmatpush1.bf16.msra.mxu0 %v1352
  %1916 = vmatprep.subr.bf16.mxu0 %v1357
  %1917 = vmatpush1.bf16.msra.mxu0 %v1356
  %1918 = vmatprep.subr.bf16.mxu0 %v1361
  %1919 = vmatpush1.bf16.msra.mxu0 %v1360
  %1920 = vmatprep.subr.bf16.mxu0 %v1365
  %1921 = vmatpush1.bf16.msra.mxu0 %v1364
  %1922 = vmatprep.subr.bf16.mxu0 %v1369
  %1923 = vmatpush1.bf16.msra.mxu0 %v1368
  %1924 = vmatprep.subr.bf16.mxu0 %v1373
  %1925 = vmatpush1.bf16.msra.mxu0 %v1372
  %1926 = vmatprep.mubr.bf16.mxu0 %v350
  %1927 = vmatmul.mubr.bf16.gmra.mrb[0].mxu0 %v349
  %v1928 = vpop.f32.mrb[0].mxu0
  %v1929 = vadd.f32 %v1888, %v1928
  %v1930 = vpop.f32.mrb[0].mxu0
  %v1931 = vadd.f32 %v1890, %v1930
  %v1932 = vpop.f32.mrb[0].mxu0
  %v1933 = vpop.f32.mrb[0].mxu0
  %1934 = vdwg.mxu0
  %1935 = vmatprep.subr.bf16.mxu0 %v1377
  %1936 = vmatpush1.bf16.msra.mxu0 %v1376
  %1937 = vmatprep.subr.bf16.mxu0 %v1381
  %1938 = vmatpush1.bf16.msra.mxu0 %v1380
  %1939 = vmatprep.subr.bf16.mxu0 %v1385
  %1940 = vmatpush1.bf16.msra.mxu0 %v1384
  %1941 = vmatprep.subr.bf16.mxu0 %v1389
  %1942 = vmatpush1.bf16.msra.mxu0 %v1388
  %1943 = vmatprep.subr.bf16.mxu0 %v1393
  %1944 = vmatpush1.bf16.msra.mxu0 %v1392
  %1945 = vmatprep.subr.bf16.mxu0 %v1397
  %1946 = vmatpush1.bf16.msra.mxu0 %v1396
  %1947 = vmatprep.subr.bf16.mxu0 %v1401
  %1948 = vmatpush1.bf16.msra.mxu0 %v1400
  %1949 = vmatprep.subr.bf16.mxu0 %v1405
  %1950 = vmatpush1.bf16.msra.mxu0 %v1404
  %1951 = vmatprep.subr.bf16.mxu0 %v1409
  %1952 = vmatpush1.bf16.msra.mxu0 %v1408
  %1953 = vmatprep.subr.bf16.mxu0 %v1413
  %1954 = vmatpush1.bf16.msra.mxu0 %v1412
  %1955 = vmatprep.subr.bf16.mxu0 %v1417
  %1956 = vmatpush1.bf16.msra.mxu0 %v1416
  %1957 = vmatprep.subr.bf16.mxu0 %v1421
  %1958 = vmatpush1.bf16.msra.mxu0 %v1420
  %1959 = vmatprep.subr.bf16.mxu0 %v1425
  %1960 = vmatpush1.bf16.msra.mxu0 %v1424
  %1961 = vmatprep.subr.bf16.mxu0 %v1429
  %1962 = vmatpush1.bf16.msra.mxu0 %v1428
  %1963 = vmatprep.subr.bf16.mxu0 %v1433
  %1964 = vmatpush1.bf16.msra.mxu0 %v1432
  %1965 = vmatprep.subr.bf16.mxu0 %v1437
  %1966 = vmatpush1.bf16.msra.mxu0 %v1436
  %1967 = vmatprep.mubr.bf16.mxu0 %v352
  %1968 = vmatmul.mubr.bf16.gmra.mrb[0].mxu0 %v351
  %v1969 = vpop.f32.mrb[0].mxu0
  %v1970 = vadd.f32 %v1929, %v1969
  %v1971 = vpop.f32.mrb[0].mxu0
  %v1972 = vadd.f32 %v1931, %v1971
  %v1973 = vpop.f32.mrb[0].mxu0
  %v1974 = vpop.f32.mrb[0].mxu0
  %1975 = vdwg.mxu0
  %1976 = vmatprep.subr.bf16.mxu0 %v1441
  %1977 = vmatpush1.bf16.msra.mxu0 %v1440
  %1978 = vmatprep.subr.bf16.mxu0 %v1445
  %1979 = vmatpush1.bf16.msra.mxu0 %v1444
  %1980 = vmatprep.subr.bf16.mxu0 %v1449
  %1981 = vmatpush1.bf16.msra.mxu0 %v1448
  %1982 = vmatprep.subr.bf16.mxu0 %v1453
  %1983 = vmatpush1.bf16.msra.mxu0 %v1452
  %1984 = vmatprep.subr.bf16.mxu0 %v1457
  %1985 = vmatpush1.bf16.msra.mxu0 %v1456
  %1986 = vmatprep.subr.bf16.mxu0 %v1461
  %1987 = vmatpush1.bf16.msra.mxu0 %v1460
  %1988 = vmatprep.subr.bf16.mxu0 %v1465
  %1989 = vmatpush1.bf16.msra.mxu0 %v1464
  %1990 = vmatprep.subr.bf16.mxu0 %v1469
  %1991 = vmatpush1.bf16.msra.mxu0 %v1468
  %1992 = vmatprep.subr.bf16.mxu0 %v1473
  %1993 = vmatpush1.bf16.msra.mxu0 %v1472
  %1994 = vmatprep.subr.bf16.mxu0 %v1477
  %1995 = vmatpush1.bf16.msra.mxu0 %v1476
  %1996 = vmatprep.subr.bf16.mxu0 %v1481
  %1997 = vmatpush1.bf16.msra.mxu0 %v1480
  %1998 = vmatprep.subr.bf16.mxu0 %v1485
  %1999 = vmatpush1.bf16.msra.mxu0 %v1484
  %2000 = vmatprep.subr.bf16.mxu0 %v1489
  %2001 = vmatpush1.bf16.msra.mxu0 %v1488
  %2002 = vmatprep.subr.bf16.mxu0 %v1493
  %2003 = vmatpush1.bf16.msra.mxu0 %v1492
  %2004 = vmatprep.subr.bf16.mxu0 %v1497
  %2005 = vmatpush1.bf16.msra.mxu0 %v1496
  %2006 = vmatprep.subr.bf16.mxu0 %v1501
  %2007 = vmatpush1.bf16.msra.mxu0 %v1500
  %2008 = vmatprep.mubr.bf16.mxu0 %v354
  %2009 = vmatmul.mubr.bf16.gmra.mrb[0].mxu0 %v353
  %v2010 = vpop.f32.mrb[0].mxu0
  %v2011 = vadd.f32 %v1970, %v2010
  %v2012 = vpop.f32.mrb[0].mxu0
  %v2013 = vadd.f32 %v1972, %v2012
  %v2014 = vpop.f32.mrb[0].mxu0
  %v2015 = vpop.f32.mrb[0].mxu0
  %2016 = vdwg.mxu0
  %2017 = vmatprep.subr.bf16.mxu0 %v1505
  %2018 = vmatpush1.bf16.msra.mxu0 %v1504
  %2019 = vmatprep.subr.bf16.mxu0 %v1509
  %2020 = vmatpush1.bf16.msra.mxu0 %v1508
  %2021 = vmatprep.subr.bf16.mxu0 %v1513
  %2022 = vmatpush1.bf16.msra.mxu0 %v1512
  %2023 = vmatprep.subr.bf16.mxu0 %v1517
  %2024 = vmatpush1.bf16.msra.mxu0 %v1516
  %2025 = vmatprep.subr.bf16.mxu0 %v1521
  %2026 = vmatpush1.bf16.msra.mxu0 %v1520
  %2027 = vmatprep.subr.bf16.mxu0 %v1525
  %2028 = vmatpush1.bf16.msra.mxu0 %v1524
  %2029 = vmatprep.subr.bf16.mxu0 %v1529
  %2030 = vmatpush1.bf16.msra.mxu0 %v1528
  %2031 = vmatprep.subr.bf16.mxu0 %v1533
  %2032 = vmatpush1.bf16.msra.mxu0 %v1532
  %2033 = vmatprep.subr.bf16.mxu0 %v1537
  %2034 = vmatpush1.bf16.msra.mxu0 %v1536
  %2035 = vmatprep.subr.bf16.mxu0 %v1845
  %2036 = vmatpush1.bf16.msra.mxu0 %v1842
  %2037 = vmatprep.subr.bf16.mxu0 0
  %2038 = vmatpush1.bf16.msra.mxu0 0
  %2039 = vmatprep.subr.bf16.mxu0 0
  %2040 = vmatpush1.bf16.msra.mxu0 0
  %2041 = vmatprep.subr.bf16.mxu0 0
  %2042 = vmatpush1.bf16.msra.mxu0 0
  %2043 = vmatprep.subr.bf16.mxu0 0
  %2044 = vmatpush1.bf16.msra.mxu0 0
  %2045 = vmatprep.subr.bf16.mxu0 0
  %2046 = vmatpush1.bf16.msra.mxu0 0
  %2047 = vmatprep.subr.bf16.mxu0 0
  %2048 = vmatpush1.bf16.msra.mxu0 0
  %2049 = vmatprep.mubr.bf16.mxu0 %v1838
  %2050 = vmatmul.mubr.bf16.gmra.mrb[0].mxu0 %v355
  %v2051 = vpop.f32.mrb[0].mxu0
  %v2052 = vadd.f32 %v2011, %v2051
  %v2053 = vpop.f32.mrb[0].mxu0
  %v2054 = vadd.f32 %v2013, %v2053
  %v2055 = vpop.f32.mrb[0].mxu0
  %v2056 = vpop.f32.mrb[0].mxu0
  %2057 = vdwg.mxu0
  %2058 = vmatprep.subr.bf16.mxu0 %v1251
  %2059 = vmatpush1.bf16.msra.mxu0 %v1250
  %2060 = vmatprep.subr.bf16.mxu0 %v1255
  %2061 = vmatpush1.bf16.msra.mxu0 %v1254
  %2062 = vmatprep.subr.bf16.mxu0 %v1259
  %2063 = vmatpush1.bf16.msra.mxu0 %v1258
  %2064 = vmatprep.subr.bf16.mxu0 %v1263
  %2065 = vmatpush1.bf16.msra.mxu0 %v1262
  %2066 = vmatprep.subr.bf16.mxu0 %v1267
  %2067 = vmatpush1.bf16.msra.mxu0 %v1266
  %2068 = vmatprep.subr.bf16.mxu0 %v1271
  %2069 = vmatpush1.bf16.msra.mxu0 %v1270
  %2070 = vmatprep.subr.bf16.mxu0 %v1275
  %2071 = vmatpush1.bf16.msra.mxu0 %v1274
  %2072 = vmatprep.subr.bf16.mxu0 %v1279
  %2073 = vmatpush1.bf16.msra.mxu0 %v1278
  %2074 = vmatprep.subr.bf16.mxu0 %v1283
  %2075 = vmatpush1.bf16.msra.mxu0 %v1282
  %2076 = vmatprep.subr.bf16.mxu0 %v1287
  %2077 = vmatpush1.bf16.msra.mxu0 %v1286
  %2078 = vmatprep.subr.bf16.mxu0 %v1291
  %2079 = vmatpush1.bf16.msra.mxu0 %v1290
  %2080 = vmatprep.subr.bf16.mxu0 %v1295
  %2081 = vmatpush1.bf16.msra.mxu0 %v1294
  %2082 = vmatprep.subr.bf16.mxu0 %v1299
  %2083 = vmatpush1.bf16.msra.mxu0 %v1298
  %2084 = vmatprep.subr.bf16.mxu0 %v1303
  %2085 = vmatpush1.bf16.msra.mxu0 %v1302
  %2086 = vmatprep.subr.bf16.mxu0 %v1307
  %2087 = vmatpush1.bf16.msra.mxu0 %v1306
  %2088 = vmatprep.subr.bf16.mxu0 %v1311
  %2089 = vmatpush1.bf16.msra.mxu0 %v1310
  %2090 = vmatprep.mubr.bf16.mxu0 %v348
  %2091 = vmatmul.mubr.bf16.gmra.mrb[0].mxu0 %v347
  %v2092 = vpop.f32.mrb[0].mxu0
  %v2093 = vadd.f32 0.0, %v2092
  %v2094 = vpop.f32.mrb[0].mxu0
  %v2095 = vadd.f32 0.0, %v2094
  %v2096 = vpop.f32.mrb[0].mxu0
  %v2097 = vpop.f32.mrb[0].mxu0
  %2098 = vdwg.mxu0
  %2099 = vmatprep.subr.bf16.mxu0 %v1315
  %2100 = vmatpush1.bf16.msra.mxu0 %v1314
  %2101 = vmatprep.subr.bf16.mxu0 %v1319
  %2102 = vmatpush1.bf16.msra.mxu0 %v1318
  %2103 = vmatprep.subr.bf16.mxu0 %v1323
  %2104 = vmatpush1.bf16.msra.mxu0 %v1322
  %2105 = vmatprep.subr.bf16.mxu0 %v1327
  %2106 = vmatpush1.bf16.msra.mxu0 %v1326
  %2107 = vmatprep.subr.bf16.mxu0 %v1331
  %2108 = vmatpush1.bf16.msra.mxu0 %v1330
  %2109 = vmatprep.subr.bf16.mxu0 %v1335
  %2110 = vmatpush1.bf16.msra.mxu0 %v1334
  %2111 = vmatprep.subr.bf16.mxu0 %v1339
  %2112 = vmatpush1.bf16.msra.mxu0 %v1338
  %2113 = vmatprep.subr.bf16.mxu0 %v1343
  %2114 = vmatpush1.bf16.msra.mxu0 %v1342
  %2115 = vmatprep.subr.bf16.mxu0 %v1347
  %2116 = vmatpush1.bf16.msra.mxu0 %v1346
  %2117 = vmatprep.subr.bf16.mxu0 %v1351
  %2118 = vmatpush1.bf16.msra.mxu0 %v1350
  %2119 = vmatprep.subr.bf16.mxu0 %v1355
  %2120 = vmatpush1.bf16.msra.mxu0 %v1354
  %2121 = vmatprep.subr.bf16.mxu0 %v1359
  %2122 = vmatpush1.bf16.msra.mxu0 %v1358
  %2123 = vmatprep.subr.bf16.mxu0 %v1363
  %2124 = vmatpush1.bf16.msra.mxu0 %v1362
  %2125 = vmatprep.subr.bf16.mxu0 %v1367
  %2126 = vmatpush1.bf16.msra.mxu0 %v1366
  %2127 = vmatprep.subr.bf16.mxu0 %v1371
  %2128 = vmatpush1.bf16.msra.mxu0 %v1370
  %2129 = vmatprep.subr.bf16.mxu0 %v1375
  %2130 = vmatpush1.bf16.msra.mxu0 %v1374
  %2131 = vmatprep.mubr.bf16.mxu0 %v350
  %2132 = vmatmul.mubr.bf16.gmra.mrb[0].mxu0 %v349
  %v2133 = vpop.f32.mrb[0].mxu0
  %v2134 = vadd.f32 %v2093, %v2133
  %v2135 = vpop.f32.mrb[0].mxu0
  %v2136 = vadd.f32 %v2095, %v2135
  %v2137 = vpop.f32.mrb[0].mxu0
  %v2138 = vpop.f32.mrb[0].mxu0
  %2139 = vdwg.mxu0
  %2140 = vmatprep.subr.bf16.mxu0 %v1379
  %2141 = vmatpush1.bf16.msra.mxu0 %v1378
  %2142 = vmatprep.subr.bf16.mxu0 %v1383
  %2143 = vmatpush1.bf16.msra.mxu0 %v1382
  %2144 = vmatprep.subr.bf16.mxu0 %v1387
  %2145 = vmatpush1.bf16.msra.mxu0 %v1386
  %2146 = vmatprep.subr.bf16.mxu0 %v1391
  %2147 = vmatpush1.bf16.msra.mxu0 %v1390
  %2148 = vmatprep.subr.bf16.mxu0 %v1395
  %2149 = vmatpush1.bf16.msra.mxu0 %v1394
  %2150 = vmatprep.subr.bf16.mxu0 %v1399
  %2151 = vmatpush1.bf16.msra.mxu0 %v1398
  %2152 = vmatprep.subr.bf16.mxu0 %v1403
  %2153 = vmatpush1.bf16.msra.mxu0 %v1402
  %2154 = vmatprep.subr.bf16.mxu0 %v1407
  %2155 = vmatpush1.bf16.msra.mxu0 %v1406
  %2156 = vmatprep.subr.bf16.mxu0 %v1411
  %2157 = vmatpush1.bf16.msra.mxu0 %v1410
  %2158 = vmatprep.subr.bf16.mxu0 %v1415
  %2159 = vmatpush1.bf16.msra.mxu0 %v1414
  %2160 = vmatprep.subr.bf16.mxu0 %v1419
  %2161 = vmatpush1.bf16.msra.mxu0 %v1418
  %2162 = vmatprep.subr.bf16.mxu0 %v1423
  %2163 = vmatpush1.bf16.msra.mxu0 %v1422
  %2164 = vmatprep.subr.bf16.mxu0 %v1427
  %2165 = vmatpush1.bf16.msra.mxu0 %v1426
  %2166 = vmatprep.subr.bf16.mxu0 %v1431
  %2167 = vmatpush1.bf16.msra.mxu0 %v1430
  %2168 = vmatprep.subr.bf16.mxu0 %v1435
  %2169 = vmatpush1.bf16.msra.mxu0 %v1434
  %2170 = vmatprep.subr.bf16.mxu0 %v1439
  %2171 = vmatpush1.bf16.msra.mxu0 %v1438
  %2172 = vmatprep.mubr.bf16.mxu0 %v352
  %2173 = vmatmul.mubr.bf16.gmra.mrb[0].mxu0 %v351
  %v2174 = vpop.f32.mrb[0].mxu0
  %v2175 = vadd.f32 %v2134, %v2174
  %v2176 = vpop.f32.mrb[0].mxu0
  %v2177 = vadd.f32 %v2136, %v2176
  %v2178 = vpop.f32.mrb[0].mxu0
  %v2179 = vpop.f32.mrb[0].mxu0
  %2180 = vdwg.mxu0
  %2181 = vmatprep.subr.bf16.mxu0 %v1443
  %2182 = vmatpush1.bf16.msra.mxu0 %v1442
  %2183 = vmatprep.subr.bf16.mxu0 %v1447
  %2184 = vmatpush1.bf16.msra.mxu0 %v1446
  %2185 = vmatprep.subr.bf16.mxu0 %v1451
  %2186 = vmatpush1.bf16.msra.mxu0 %v1450
  %2187 = vmatprep.subr.bf16.mxu0 %v1455
  %2188 = vmatpush1.bf16.msra.mxu0 %v1454
  %2189 = vmatprep.subr.bf16.mxu0 %v1459
  %2190 = vmatpush1.bf16.msra.mxu0 %v1458
  %2191 = vmatprep.subr.bf16.mxu0 %v1463
  %2192 = vmatpush1.bf16.msra.mxu0 %v1462
  %2193 = vmatprep.subr.bf16.mxu0 %v1467
  %2194 = vmatpush1.bf16.msra.mxu0 %v1466
  %2195 = vmatprep.subr.bf16.mxu0 %v1471
  %2196 = vmatpush1.bf16.msra.mxu0 %v1470
  %2197 = vmatprep.subr.bf16.mxu0 %v1475
  %2198 = vmatpush1.bf16.msra.mxu0 %v1474
  %2199 = vmatprep.subr.bf16.mxu0 %v1479
  %2200 = vmatpush1.bf16.msra.mxu0 %v1478
  %2201 = vmatprep.subr.bf16.mxu0 %v1483
  %2202 = vmatpush1.bf16.msra.mxu0 %v1482
  %2203 = vmatprep.subr.bf16.mxu0 %v1487
  %2204 = vmatpush1.bf16.msra.mxu0 %v1486
  %2205 = vmatprep.subr.bf16.mxu0 %v1491
  %2206 = vmatpush1.bf16.msra.mxu0 %v1490
  %2207 = vmatprep.subr.bf16.mxu0 %v1495
  %2208 = vmatpush1.bf16.msra.mxu0 %v1494
  %2209 = vmatprep.subr.bf16.mxu0 %v1499
  %2210 = vmatpush1.bf16.msra.mxu0 %v1498
  %2211 = vmatprep.subr.bf16.mxu0 %v1503
  %2212 = vmatpush1.bf16.msra.mxu0 %v1502
  %2213 = vmatprep.mubr.bf16.mxu0 %v354
  %2214 = vmatmul.mubr.bf16.gmra.mrb[0].mxu0 %v353
  %v2215 = vpop.f32.mrb[0].mxu0
  %v2216 = vadd.f32 %v2175, %v2215
  %v2217 = vpop.f32.mrb[0].mxu0
  %v2218 = vadd.f32 %v2177, %v2217
  %v2219 = vpop.f32.mrb[0].mxu0
  %v2220 = vpop.f32.mrb[0].mxu0
  %2221 = vdwg.mxu0
  %2222 = vmatprep.subr.bf16.mxu0 %v1507
  %2223 = vmatpush1.bf16.msra.mxu0 %v1506
  %2224 = vmatprep.subr.bf16.mxu0 %v1511
  %2225 = vmatpush1.bf16.msra.mxu0 %v1510
  %2226 = vmatprep.subr.bf16.mxu0 %v1515
  %2227 = vmatpush1.bf16.msra.mxu0 %v1514
  %2228 = vmatprep.subr.bf16.mxu0 %v1519
  %2229 = vmatpush1.bf16.msra.mxu0 %v1518
  %2230 = vmatprep.subr.bf16.mxu0 %v1523
  %2231 = vmatpush1.bf16.msra.mxu0 %v1522
  %2232 = vmatprep.subr.bf16.mxu0 %v1527
  %2233 = vmatpush1.bf16.msra.mxu0 %v1526
  %2234 = vmatprep.subr.bf16.mxu0 %v1531
  %2235 = vmatpush1.bf16.msra.mxu0 %v1530
  %2236 = vmatprep.subr.bf16.mxu0 %v1535
  %2237 = vmatpush1.bf16.msra.mxu0 %v1534
  %2238 = vmatprep.subr.bf16.mxu0 %v1539
  %2239 = vmatpush1.bf16.msra.mxu0 %v1538
  %2240 = vmatprep.subr.bf16.mxu0 %v1851
  %2241 = vmatpush1.bf16.msra.mxu0 %v1848
  %2242 = vmatprep.subr.bf16.mxu0 0
  %2243 = vmatpush1.bf16.msra.mxu0 0
  %2244 = vmatprep.subr.bf16.mxu0 0
  %2245 = vmatpush1.bf16.msra.mxu0 0
  %2246 = vmatprep.subr.bf16.mxu0 0
  %2247 = vmatpush1.bf16.msra.mxu0 0
  %2248 = vmatprep.subr.bf16.mxu0 0
  %2249 = vmatpush1.bf16.msra.mxu0 0
  %2250 = vmatprep.subr.bf16.mxu0 0
  %2251 = vmatpush1.bf16.msra.mxu0 0
  %2252 = vmatprep.subr.bf16.mxu0 0
  %2253 = vmatpush1.bf16.msra.mxu0 0
  %2254 = vmatprep.mubr.bf16.mxu0 %v1838
  %2255 = vmatmul.mubr.bf16.gmra.mrb[0].mxu0 %v355
  %v2256 = vpop.f32.mrb[0].mxu0
  %v2257 = vadd.f32 %v2216, %v2256
  %v2258 = vpop.f32.mrb[0].mxu0
  %v2259 = vadd.f32 %v2218, %v2258
  %v2260 = vpop.f32.mrb[0].mxu0
  %v2261 = vpop.f32.mrb[0].mxu0
  %2262 = vdwg.mxu0
  %s2263 = scalar_lea.vmem %s1, 2352
  %v2264 = vld [vmem:[%s2263] sm:$0xff]
  %v2265 = vld [vmem:[%s2263 + $0x8] sm:$0xff]
  %v2266 = vld [vmem:[%s2263 + $0x10] sm:$0xff]
  %v2267 = vld [vmem:[%s2263 + $0x18] sm:$0xff]
  %v2268 = vld [vmem:[%s2263 + $0x20] sm:$0xff]
  %v2269 = vld [vmem:[%s2263 + $0x28] sm:$0xff]
  %v2270 = vld [vmem:[%s2263 + $0x30] sm:$0xff]
  %v2271 = vld [vmem:[%s2263 + $0x38] sm:$0xff]
  %v2272 = vld [vmem:[%s2263 + $0x40] sm:$0xff]
  %v2273 = vld [vmem:[%s2263 + $0x48] sm:$0xff]
  %v2274 = vld [vmem:[%s2263 + $0x50] sm:$0xff]
  %v2275 = vld [vmem:[%s2263 + $0x58] sm:$0xff]
  %v2276 = vld [vmem:[%s2263 + $0x60] sm:$0xff]
  %v2277 = vld [vmem:[%s2263 + $0x68] sm:$0xff]
  %v2278 = vld [vmem:[%s2263 + $0x70] sm:$0xff]
  %v2279 = vld [vmem:[%s2263 + $0x78] sm:$0xff]
  %v2280 = vld [vmem:[%s2263 + $0x80] sm:$0xff]
  %v2281 = vld [vmem:[%s2263 + $0x88] sm:$0xff]
  %v2282 = vld [vmem:[%s2263 + $0x90] sm:$0xff]
  %v2283 = vld [vmem:[%s2263 + $0x98] sm:$0xff]
  %v2284 = vld [vmem:[%s2263 + $0xa0] sm:$0xff]
  %v2285 = vld [vmem:[%s2263 + $0xa8] sm:$0xff]
  %v2286 = vld [vmem:[%s2263 + $0xb0] sm:$0xff]
  %v2287 = vld [vmem:[%s2263 + $0xb8] sm:$0xff]
  %v2288 = vld [vmem:[%s2263 + $0xc0] sm:$0xff]
  %v2289 = vld [vmem:[%s2263 + $0xc8] sm:$0xff]
  %v2290 = vld [vmem:[%s2263 + $0xd0] sm:$0xff]
  %v2291 = vld [vmem:[%s2263 + $0xd8] sm:$0xff]
  %v2292 = vld [vmem:[%s2263 + $0xe0] sm:$0xff]
  %v2293 = vld [vmem:[%s2263 + $0xe8] sm:$0xff]
  %v2294 = vld [vmem:[%s2263 + $0xf0] sm:$0xff]
  %v2295 = vld [vmem:[%s2263 + $0xf8] sm:$0xff]
  %v2296 = vld [vmem:[%s2263 + $0x100] sm:$0xff]
  %v2297 = vld [vmem:[%s2263 + $0x108] sm:$0xff]
  %v2298 = vld [vmem:[%s2263 + $0x110] sm:$0xff]
  %v2299 = vld [vmem:[%s2263 + $0x118] sm:$0xff]
  %v2300 = vld [vmem:[%s2263 + $0x120] sm:$0xff]
  %v2301 = vld [vmem:[%s2263 + $0x128] sm:$0xff]
  %v2302 = vld [vmem:[%s2263 + $0x130] sm:$0xff]
  %v2303 = vld [vmem:[%s2263 + $0x138] sm:$0xff]
  %v2304 = vld [vmem:[%s2263 + $0x140] sm:$0xff]
  %v2305 = vld [vmem:[%s2263 + $0x148] sm:$0xff]
  %v2306 = vld [vmem:[%s2263 + $0x150] sm:$0xff]
  %v2307 = vld [vmem:[%s2263 + $0x158] sm:$0xff]
  %v2308 = vld [vmem:[%s2263 + $0x160] sm:$0xff]
  %v2309 = vld [vmem:[%s2263 + $0x168] sm:$0xff]
  %v2310 = vld [vmem:[%s2263 + $0x170] sm:$0xff]
  %v2311 = vld [vmem:[%s2263 + $0x178] sm:$0xff]
  %v2312 = vld [vmem:[%s2263 + $0x180] sm:$0xff]
  %v2313 = vld [vmem:[%s2263 + $0x188] sm:$0xff]
  %v2314 = vld [vmem:[%s2263 + $0x190] sm:$0xff]
  %v2315 = vld [vmem:[%s2263 + $0x198] sm:$0xff]
  %v2316 = vld [vmem:[%s2263 + $0x1a0] sm:$0xff]
  %v2317 = vld [vmem:[%s2263 + $0x1a8] sm:$0xff]
  %v2318 = vld [vmem:[%s2263 + $0x1b0] sm:$0xff]
  %v2319 = vld [vmem:[%s2263 + $0x1b8] sm:$0xff]
  %v2320 = vld [vmem:[%s2263 + $0x1c0] sm:$0xff]
  %v2321 = vld [vmem:[%s2263 + $0x1c8] sm:$0xff]
  %v2322 = vld [vmem:[%s2263 + $0x1d0] sm:$0xff]
  %v2323 = vld [vmem:[%s2263 + $0x1d8] sm:$0xff]
  %v2324 = vld [vmem:[%s2263 + $0x1e0] sm:$0xff]
  %v2325 = vld [vmem:[%s2263 + $0x1e8] sm:$0xff]
  %v2326 = vld [vmem:[%s2263 + $0x1f0] sm:$0xff]
  %v2327 = vld [vmem:[%s2263 + $0x1f8] sm:$0xff]
  %v2328 = vld [vmem:[%s2263 + $0x200] sm:$0xff]
  %v2329 = vld [vmem:[%s2263 + $0x208] sm:$0xff]
  %v2330 = vld [vmem:[%s2263 + $0x210] sm:$0xff]
  %v2331 = vld [vmem:[%s2263 + $0x218] sm:$0xff]
  %v2332 = vld [vmem:[%s2263 + $0x220] sm:$0xff]
  %v2333 = vld [vmem:[%s2263 + $0x228] sm:$0xff]
  %v2334 = vld [vmem:[%s2263 + $0x230] sm:$0xff]
  %v2335 = vld [vmem:[%s2263 + $0x238] sm:$0xff]
  %v2336 = vld [vmem:[%s2263 + $0x240] sm:$0xff]
  %v2337 = vld [vmem:[%s2263 + $0x248] sm:$0xff]
  %v2338 = vld [vmem:[%s2263 + $0x250] sm:$0xff]
  %v2339 = vld [vmem:[%s2263 + $0x258] sm:$0xff]
  %v2340 = vld [vmem:[%s2263 + $0x260] sm:$0xff]
  %v2341 = vld [vmem:[%s2263 + $0x268] sm:$0xff]
  %v2342 = vld [vmem:[%s2263 + $0x270] sm:$0xff]
  %v2343 = vld [vmem:[%s2263 + $0x278] sm:$0xff]
  %v2344 = vld [vmem:[%s2263 + $0x280] sm:$0xff]
  %v2345 = vld [vmem:[%s2263 + $0x288] sm:$0xff]
  %v2346 = vld [vmem:[%s2263 + $0x290] sm:$0xff]
  %v2347 = vld [vmem:[%s2263 + $0x298] sm:$0xff]
  %v2348 = vld [vmem:[%s2263 + $0x2a0] sm:$0xff]
  %v2349 = vld [vmem:[%s2263 + $0x2a8] sm:$0xff]
  %v2350 = vld [vmem:[%s2263 + $0x2b0] sm:$0xff]
  %v2351 = vld [vmem:[%s2263 + $0x2b8] sm:$0xff]
  %v2352 = vld [vmem:[%s2263 + $0x2c0] sm:$0xff]
  %v2353 = vld [vmem:[%s2263 + $0x2c8] sm:$0xff]
  %v2354 = vld [vmem:[%s2263 + $0x2d0] sm:$0xff]
  %v2355 = vld [vmem:[%s2263 + $0x2d8] sm:$0xff]
  %v2356 = vld [vmem:[%s2263 + $0x2e0] sm:$0xff]
  %v2357 = vld [vmem:[%s2263 + $0x2e8] sm:$0xff]
  %v2358 = vld [vmem:[%s2263 + $0x2f0] sm:$0xff]
  %v2359 = vld [vmem:[%s2263 + $0x2f8] sm:$0xff]
  %v2360 = vld [vmem:[%s2263 + $0x300] sm:$0xff]
  %v2361 = vld [vmem:[%s2263 + $0x308] sm:$0xff]
  %v2362 = vld [vmem:[%s2263 + $0x310] sm:$0xff]
  %v2363 = vld [vmem:[%s2263 + $0x318] sm:$0xff]
  %v2364 = vld [vmem:[%s2263 + $0x320] sm:$0xff]
  %v2365 = vld [vmem:[%s2263 + $0x328] sm:$0xff]
  %v2366 = vld [vmem:[%s2263 + $0x330] sm:$0xff]
  %v2367 = vld [vmem:[%s2263 + $0x338] sm:$0xff]
  %v2368 = vld [vmem:[%s2263 + $0x340] sm:$0xff]
  %v2369 = vld [vmem:[%s2263 + $0x348] sm:$0xff]
  %v2370 = vld [vmem:[%s2263 + $0x350] sm:$0xff]
  %v2371 = vld [vmem:[%s2263 + $0x358] sm:$0xff]
  %v2372 = vld [vmem:[%s2263 + $0x360] sm:$0xff]
  %v2373 = vld [vmem:[%s2263 + $0x368] sm:$0xff]
  %v2374 = vld [vmem:[%s2263 + $0x370] sm:$0xff]
  %v2375 = vld [vmem:[%s2263 + $0x378] sm:$0xff]
  %v2376 = vld [vmem:[%s2263 + $0x380] sm:$0xff]
  %v2377 = vld [vmem:[%s2263 + $0x388] sm:$0xff]
  %v2378 = vld [vmem:[%s2263 + $0x390] sm:$0xff]
  %v2379 = vld [vmem:[%s2263 + $0x398] sm:$0xff]
  %v2380 = vld [vmem:[%s2263 + $0x3a0] sm:$0xff]
  %v2381 = vld [vmem:[%s2263 + $0x3a8] sm:$0xff]
  %v2382 = vld [vmem:[%s2263 + $0x3b0] sm:$0xff]
  %v2383 = vld [vmem:[%s2263 + $0x3b8] sm:$0xff]
  %v2384 = vld [vmem:[%s2263 + $0x3c0] sm:$0xff]
  %v2385 = vld [vmem:[%s2263 + $0x3c8] sm:$0xff]
  %v2386 = vld [vmem:[%s2263 + $0x3d0] sm:$0xff]
  %v2387 = vld [vmem:[%s2263 + $0x3d8] sm:$0xff]
  %v2388 = vld [vmem:[%s2263 + $0x3e0] sm:$0xff]
  %v2389 = vld [vmem:[%s2263 + $0x3e8] sm:$0xff]
  %v2390 = vld [vmem:[%s2263 + $0x3f0] sm:$0xff]
  %v2391 = vld [vmem:[%s2263 + $0x3f8] sm:$0xff]
  %v2392 = vld [vmem:[%s2263 + $0x400] sm:$0xff]
  %v2393 = vld [vmem:[%s2263 + $0x408] sm:$0xff]
  %v2394 = vld [vmem:[%s2263 + $0x410] sm:$0xff]
  %v2395 = vld [vmem:[%s2263 + $0x418] sm:$0xff]
  %v2396 = vld [vmem:[%s2263 + $0x420] sm:$0xff]
  %v2397 = vld [vmem:[%s2263 + $0x428] sm:$0xff]
  %v2398 = vld [vmem:[%s2263 + $0x430] sm:$0xff]
  %v2399 = vld [vmem:[%s2263 + $0x438] sm:$0xff]
  %v2400 = vld [vmem:[%s2263 + $0x440] sm:$0xff]
  %v2401 = vld [vmem:[%s2263 + $0x448] sm:$0xff]
  %v2402 = vld [vmem:[%s2263 + $0x450] sm:$0xff]
  %v2403 = vld [vmem:[%s2263 + $0x458] sm:$0xff]
  %v2404 = vld [vmem:[%s2263 + $0x460] sm:$0xff]
  %v2405 = vld [vmem:[%s2263 + $0x468] sm:$0xff]
  %v2406 = vld [vmem:[%s2263 + $0x470] sm:$0xff]
  %v2407 = vld [vmem:[%s2263 + $0x478] sm:$0xff]
  %v2408 = vld [vmem:[%s2263 + $0x480] sm:$0xff]
  %v2409 = vld [vmem:[%s2263 + $0x488] sm:$0xff]
  %v2410 = vld [vmem:[%s2263 + $0x490] sm:$0xff]
  %v2411 = vld [vmem:[%s2263 + $0x498] sm:$0xff]
  %v2412 = vld [vmem:[%s2263 + $0x4a0] sm:$0xff]
  %v2413 = vld [vmem:[%s2263 + $0x4a8] sm:$0xff]
  %v2414 = vld [vmem:[%s2263 + $0x4b0] sm:$0xff]
  %v2415 = vld [vmem:[%s2263 + $0x4b8] sm:$0xff]
  %v2416 = vld [vmem:[%s2263 + $0x4c0] sm:$0xff]
  %v2417 = vld [vmem:[%s2263 + $0x4c8] sm:$0xff]
  %v2418 = vld [vmem:[%s2263 + $0x4d0] sm:$0xff]
  %v2419 = vld [vmem:[%s2263 + $0x4d8] sm:$0xff]
  %v2420 = vld [vmem:[%s2263 + $0x4e0] sm:$0xff]
  %v2421 = vld [vmem:[%s2263 + $0x4e8] sm:$0xff]
  %v2422 = vld [vmem:[%s2263 + $0x4f0] sm:$0xff]
  %v2423 = vld [vmem:[%s2263 + $0x4f8] sm:$0xff]
  %v2424 = vld [vmem:[%s2263 + $0x500] sm:$0xff]
  %v2425 = vld [vmem:[%s2263 + $0x508] sm:$0xff]
  %v2426 = vld [vmem:[%s2263 + $0x510] sm:$0xff]
  %v2427 = vld [vmem:[%s2263 + $0x518] sm:$0xff]
  %v2428 = vld [vmem:[%s2263 + $0x520] sm:$0xff]
  %v2429 = vld [vmem:[%s2263 + $0x528] sm:$0xff]
  %v2430 = vld [vmem:[%s2263 + $0x530] sm:$0xff]
  %v2431 = vld [vmem:[%s2263 + $0x538] sm:$0xff]
  %v2432 = vld [vmem:[%s2263 + $0x540] sm:$0xff]
  %v2433 = vld [vmem:[%s2263 + $0x548] sm:$0xff]
  %v2434 = vld [vmem:[%s2263 + $0x550] sm:$0xff]
  %v2435 = vld [vmem:[%s2263 + $0x558] sm:$0xff]
  %v2436 = vld [vmem:[%s2263 + $0x560] sm:$0xff]
  %v2437 = vld [vmem:[%s2263 + $0x568] sm:$0xff]
  %v2438 = vld [vmem:[%s2263 + $0x570] sm:$0xff]
  %v2439 = vld [vmem:[%s2263 + $0x578] sm:$0xff]
  %v2440 = vld [vmem:[%s2263 + $0x580] sm:$0xff]
  %v2441 = vld [vmem:[%s2263 + $0x588] sm:$0xff]
  %v2442 = vld [vmem:[%s2263 + $0x590] sm:$0xff]
  %v2443 = vld [vmem:[%s2263 + $0x598] sm:$0xff]
  %v2444 = vld [vmem:[%s2263 + $0x5a0] sm:$0xff]
  %v2445 = vld [vmem:[%s2263 + $0x5a8] sm:$0xff]
  %v2446 = vld [vmem:[%s2263 + $0x5b0] sm:$0xff]
  %v2447 = vld [vmem:[%s2263 + $0x5b8] sm:$0xff]
  %v2448 = vld [vmem:[%s2263 + $0x5c0] sm:$0xff]
  %v2449 = vld [vmem:[%s2263 + $0x5c8] sm:$0xff]
  %v2450 = vld [vmem:[%s2263 + $0x5d0] sm:$0xff]
  %v2451 = vld [vmem:[%s2263 + $0x5d8] sm:$0xff]
  %v2452 = vld [vmem:[%s2263 + $0x5e0] sm:$0xff]
  %v2453 = vld [vmem:[%s2263 + $0x5e8] sm:$0xff]
  %v2454 = vld [vmem:[%s2263 + $0x5f0] sm:$0xff]
  %v2455 = vld [vmem:[%s2263 + $0x5f8] sm:$0xff]
  %v2456 = vld [vmem:[%s2263 + $0x600] sm:$0xff]
  %v2457 = vld [vmem:[%s2263 + $0x608] sm:$0xff]
  %v2458 = vld [vmem:[%s2263 + $0x610] sm:$0xff]
  %v2459 = vld [vmem:[%s2263 + $0x618] sm:$0xff]
  %v2460 = vld [vmem:[%s2263 + $0x620] sm:$0xff]
  %v2461 = vld [vmem:[%s2263 + $0x628] sm:$0xff]
  %v2462 = vld [vmem:[%s2263 + $0x630] sm:$0xff]
  %v2463 = vld [vmem:[%s2263 + $0x638] sm:$0xff]
  %v2464 = vld [vmem:[%s2263 + $0x640] sm:$0xff]
  %v2465 = vld [vmem:[%s2263 + $0x648] sm:$0xff]
  %v2466 = vld [vmem:[%s2263 + $0x650] sm:$0xff]
  %v2467 = vld [vmem:[%s2263 + $0x658] sm:$0xff]
  %v2468 = vld [vmem:[%s2263 + $0x660] sm:$0xff]
  %v2469 = vld [vmem:[%s2263 + $0x668] sm:$0xff]
  %v2470 = vld [vmem:[%s2263 + $0x670] sm:$0xff]
  %v2471 = vld [vmem:[%s2263 + $0x678] sm:$0xff]
  %v2472 = vld [vmem:[%s2263 + $0x680] sm:$0xff]
  %v2473 = vld [vmem:[%s2263 + $0x688] sm:$0xff]
  %v2474 = vld [vmem:[%s2263 + $0x690] sm:$0xff]
  %v2475 = vld [vmem:[%s2263 + $0x698] sm:$0xff]
  %v2476 = vld [vmem:[%s2263 + $0x6a0] sm:$0xff]
  %v2477 = vld [vmem:[%s2263 + $0x6a8] sm:$0xff]
  %v2478 = vld [vmem:[%s2263 + $0x6b0] sm:$0xff]
  %v2479 = vld [vmem:[%s2263 + $0x6b8] sm:$0xff]
  %v2480 = vld [vmem:[%s2263 + $0x6c0] sm:$0xff]
  %v2481 = vld [vmem:[%s2263 + $0x6c8] sm:$0xff]
  %v2482 = vld [vmem:[%s2263 + $0x6d0] sm:$0xff]
  %v2483 = vld [vmem:[%s2263 + $0x6d8] sm:$0xff]
  %v2484 = vld [vmem:[%s2263 + $0x6e0] sm:$0xff]
  %v2485 = vld [vmem:[%s2263 + $0x6e8] sm:$0xff]
  %v2486 = vld [vmem:[%s2263 + $0x6f0] sm:$0xff]
  %v2487 = vld [vmem:[%s2263 + $0x6f8] sm:$0xff]
  %v2488 = vld [vmem:[%s2263 + $0x700] sm:$0xff]
  %v2489 = vld [vmem:[%s2263 + $0x708] sm:$0xff]
  %v2490 = vld [vmem:[%s2263 + $0x710] sm:$0xff]
  %v2491 = vld [vmem:[%s2263 + $0x718] sm:$0xff]
  %v2492 = vld [vmem:[%s2263 + $0x720] sm:$0xff]
  %v2493 = vld [vmem:[%s2263 + $0x728] sm:$0xff]
  %v2494 = vld [vmem:[%s2263 + $0x730] sm:$0xff]
  %v2495 = vld [vmem:[%s2263 + $0x738] sm:$0xff]
  %v2496 = vld [vmem:[%s2263 + $0x740] sm:$0xff]
  %v2497 = vld [vmem:[%s2263 + $0x748] sm:$0xff]
  %v2498 = vld [vmem:[%s2263 + $0x750] sm:$0xff]
  %v2499 = vld [vmem:[%s2263 + $0x758] sm:$0xff]
  %v2500 = vld [vmem:[%s2263 + $0x760] sm:$0xff]
  %v2501 = vld [vmem:[%s2263 + $0x768] sm:$0xff]
  %v2502 = vld [vmem:[%s2263 + $0x770] sm:$0xff]
  %v2503 = vld [vmem:[%s2263 + $0x778] sm:$0xff]
  %v2504 = vld [vmem:[%s2263 + $0x780] sm:$0xff]
  %v2505 = vld [vmem:[%s2263 + $0x788] sm:$0xff]
  %v2506 = vld [vmem:[%s2263 + $0x790] sm:$0xff]
  %v2507 = vld [vmem:[%s2263 + $0x798] sm:$0xff]
  %v2508 = vld [vmem:[%s2263 + $0x7a0] sm:$0xff]
  %v2509 = vld [vmem:[%s2263 + $0x7a8] sm:$0xff]
  %v2510 = vld [vmem:[%s2263 + $0x7b0] sm:$0xff]
  %v2511 = vld [vmem:[%s2263 + $0x7b8] sm:$0xff]
  %v2512 = vld [vmem:[%s2263 + $0x7c0] sm:$0xff]
  %v2513 = vld [vmem:[%s2263 + $0x7c8] sm:$0xff]
  %v2514 = vld [vmem:[%s2263 + $0x7d0] sm:$0xff]
  %v2515 = vld [vmem:[%s2263 + $0x7d8] sm:$0xff]
  %v2516 = vld [vmem:[%s2263 + $0x7e0] sm:$0xff]
  %v2517 = vld [vmem:[%s2263 + $0x7e8] sm:$0xff]
  %v2518 = vld [vmem:[%s2263 + $0x7f0] sm:$0xff]
  %v2519 = vld [vmem:[%s2263 + $0x7f8] sm:$0xff]
  %v2520 = vld [vmem:[%s2263 + $0x800] sm:$0xff]
  %v2521 = vld [vmem:[%s2263 + $0x808] sm:$0xff]
  %v2522 = vld [vmem:[%s2263 + $0x810] sm:$0xff]
  %v2523 = vld [vmem:[%s2263 + $0x818] sm:$0xff]
  %v2524 = vld [vmem:[%s2263 + $0x820] sm:$0xff]
  %v2525 = vld [vmem:[%s2263 + $0x828] sm:$0xff]
  %v2526 = vld [vmem:[%s2263 + $0x830] sm:$0xff]
  %v2527 = vld [vmem:[%s2263 + $0x838] sm:$0xff]
  %v2528 = vld [vmem:[%s2263 + $0x840] sm:$0xff]
  %v2529 = vld [vmem:[%s2263 + $0x848] sm:$0xff]
  %v2530 = vld [vmem:[%s2263 + $0x850] sm:$0xff]
  %v2531 = vld [vmem:[%s2263 + $0x858] sm:$0xff]
  %v2532 = vld [vmem:[%s2263 + $0x860] sm:$0xff]
  %v2533 = vld [vmem:[%s2263 + $0x868] sm:$0xff]
  %v2534 = vld [vmem:[%s2263 + $0x870] sm:$0xff]
  %v2535 = vld [vmem:[%s2263 + $0x878] sm:$0xff]
  %v2536 = vld [vmem:[%s2263 + $0x880] sm:$0xff]
  %v2537 = vld [vmem:[%s2263 + $0x888] sm:$0xff]
  %v2538 = vld [vmem:[%s2263 + $0x890] sm:$0xff]
  %v2539 = vld [vmem:[%s2263 + $0x898] sm:$0xff]
  %v2540 = vld [vmem:[%s2263 + $0x8a0] sm:$0xff]
  %v2541 = vld [vmem:[%s2263 + $0x8a8] sm:$0xff]
  %v2542 = vld [vmem:[%s2263 + $0x8b0] sm:$0xff]
  %v2543 = vld [vmem:[%s2263 + $0x8b8] sm:$0xff]
  %v2544 = vld [vmem:[%s2263 + $0x8c0] sm:$0xff]
  %v2545 = vld [vmem:[%s2263 + $0x8c8] sm:$0xff]
  %v2546 = vld [vmem:[%s2263 + $0x8d0] sm:$0xff]
  %v2547 = vld [vmem:[%s2263 + $0x8d8] sm:$0xff]
  %v2548 = vld [vmem:[%s2263 + $0x8e0] sm:$0xff]
  %v2549 = vld [vmem:[%s2263 + $0x8e8] sm:$0xff]
  %v2550 = vld [vmem:[%s2263 + $0x8f0] sm:$0xff]
  %v2551 = vld [vmem:[%s2263 + $0x8f8] sm:$0xff]
  %v2552 = vld [vmem:[%s2263 + $0x900] sm:$0xff]
  %v2553 = vld [vmem:[%s2263 + $0x908] sm:$0xff]
  %v2554 = vld [vmem:[%s2263 + $0x910] sm:$0xff]
  %v2555 = vld [vmem:[%s2263 + $0x918] sm:$0xff]
  %v2556 = vld [vmem:[%s2263 + $0x920] sm:$0xff]
  %v2557 = vld [vmem:[%s2263 + $0x928] sm:$0xff]
  %v2852 = vunpack.c.l.b16 %v2264
  %v2853 = vunpack.c.h.b16 %v2264
  %v2854 = vunpack.c.l.b16 %v2265
  %v2855 = vunpack.c.h.b16 %v2265
  %v2856 = vunpack.c.l.b16 %v2266
  %v2857 = vunpack.c.h.b16 %v2266
  %v2858 = vunpack.c.l.b16 %v2267
  %v2859 = vunpack.c.h.b16 %v2267
  %v2860 = vunpack.c.l.b16 %v2268
  %v2861 = vunpack.c.h.b16 %v2268
  %v2862 = vunpack.c.l.b16 %v2269
  %v2863 = vunpack.c.h.b16 %v2269
  %v2864 = vunpack.c.l.b16 %v2270
  %v2865 = vunpack.c.h.b16 %v2270
  %v2866 = vunpack.c.l.b16 %v2271
  %v2867 = vunpack.c.h.b16 %v2271
  %v2868 = vunpack.c.l.b16 %v2272
  %v2869 = vunpack.c.h.b16 %v2272
  %v2870 = vunpack.c.l.b16 %v2273
  %v2871 = vunpack.c.h.b16 %v2273
  %v2872 = vunpack.c.l.b16 %v2274
  %v2873 = vunpack.c.h.b16 %v2274
  %v2874 = vunpack.c.l.b16 %v2275
  %v2875 = vunpack.c.h.b16 %v2275
  %v2876 = vunpack.c.l.b16 %v2276
  %v2877 = vunpack.c.h.b16 %v2276
  %v2878 = vunpack.c.l.b16 %v2277
  %v2879 = vunpack.c.h.b16 %v2277
  %v2880 = vunpack.c.l.b16 %v2278
  %v2881 = vunpack.c.h.b16 %v2278
  %v2882 = vunpack.c.l.b16 %v2279
  %v2883 = vunpack.c.h.b16 %v2279
  %v2884 = vunpack.c.l.b16 %v2280
  %v2885 = vunpack.c.h.b16 %v2280
  %v2886 = vunpack.c.l.b16 %v2281
  %v2887 = vunpack.c.h.b16 %v2281
  %v2888 = vunpack.c.l.b16 %v2282
  %v2889 = vunpack.c.h.b16 %v2282
  %v2890 = vunpack.c.l.b16 %v2283
  %v2891 = vunpack.c.h.b16 %v2283
  %v2892 = vunpack.c.l.b16 %v2284
  %v2893 = vunpack.c.h.b16 %v2284
  %v2894 = vunpack.c.l.b16 %v2285
  %v2895 = vunpack.c.h.b16 %v2285
  %v2896 = vunpack.c.l.b16 %v2286
  %v2897 = vunpack.c.h.b16 %v2286
  %v2898 = vunpack.c.l.b16 %v2287
  %v2899 = vunpack.c.h.b16 %v2287
  %v2900 = vunpack.c.l.b16 %v2288
  %v2901 = vunpack.c.h.b16 %v2288
  %v2902 = vunpack.c.l.b16 %v2289
  %v2903 = vunpack.c.h.b16 %v2289
  %v2904 = vunpack.c.l.b16 %v2290
  %v2905 = vunpack.c.h.b16 %v2290
  %v2906 = vunpack.c.l.b16 %v2291
  %v2907 = vunpack.c.h.b16 %v2291
  %v2908 = vunpack.c.l.b16 %v2292
  %v2909 = vunpack.c.h.b16 %v2292
  %v2910 = vunpack.c.l.b16 %v2293
  %v2911 = vunpack.c.h.b16 %v2293
  %v2912 = vunpack.c.l.b16 %v2294
  %v2913 = vunpack.c.h.b16 %v2294
  %v2914 = vunpack.c.l.b16 %v2295
  %v2915 = vunpack.c.h.b16 %v2295
  %v2916 = vunpack.c.l.b16 %v2296
  %v2917 = vunpack.c.h.b16 %v2296
  %v2918 = vunpack.c.l.b16 %v2297
  %v2919 = vunpack.c.h.b16 %v2297
  %v2920 = vunpack.c.l.b16 %v2298
  %v2921 = vunpack.c.h.b16 %v2298
  %v2922 = vunpack.c.l.b16 %v2299
  %v2923 = vunpack.c.h.b16 %v2299
  %v2924 = vunpack.c.l.b16 %v2300
  %v2925 = vunpack.c.h.b16 %v2300
  %v2926 = vunpack.c.l.b16 %v2301
  %v2927 = vunpack.c.h.b16 %v2301
  %v2928 = vunpack.c.l.b16 %v2302
  %v2929 = vunpack.c.h.b16 %v2302
  %v2930 = vunpack.c.l.b16 %v2303
  %v2931 = vunpack.c.h.b16 %v2303
  %v2932 = vunpack.c.l.b16 %v2304
  %v2933 = vunpack.c.h.b16 %v2304
  %v2934 = vunpack.c.l.b16 %v2305
  %v2935 = vunpack.c.h.b16 %v2305
  %v2936 = vunpack.c.l.b16 %v2306
  %v2937 = vunpack.c.h.b16 %v2306
  %v2938 = vunpack.c.l.b16 %v2307
  %v2939 = vunpack.c.h.b16 %v2307
  %v2940 = vunpack.c.l.b16 %v2308
  %v2941 = vunpack.c.h.b16 %v2308
  %v2942 = vunpack.c.l.b16 %v2309
  %v2943 = vunpack.c.h.b16 %v2309
  %v2944 = vunpack.c.l.b16 %v2310
  %v2945 = vunpack.c.h.b16 %v2310
  %v2946 = vunpack.c.l.b16 %v2311
  %v2947 = vunpack.c.h.b16 %v2311
  %v2948 = vunpack.c.l.b16 %v2312
  %v2949 = vunpack.c.h.b16 %v2312
  %v2950 = vunpack.c.l.b16 %v2313
  %v2951 = vunpack.c.h.b16 %v2313
  %v2952 = vunpack.c.l.b16 %v2314
  %v2953 = vunpack.c.h.b16 %v2314
  %v2954 = vunpack.c.l.b16 %v2315
  %v2955 = vunpack.c.h.b16 %v2315
  %v2956 = vunpack.c.l.b16 %v2316
  %v2957 = vunpack.c.h.b16 %v2316
  %v2958 = vunpack.c.l.b16 %v2317
  %v2959 = vunpack.c.h.b16 %v2317
  %v2960 = vunpack.c.l.b16 %v2318
  %v2961 = vunpack.c.h.b16 %v2318
  %v2962 = vunpack.c.l.b16 %v2319
  %v2963 = vunpack.c.h.b16 %v2319
  %v2964 = vunpack.c.l.b16 %v2320
  %v2965 = vunpack.c.h.b16 %v2320
  %v2966 = vunpack.c.l.b16 %v2321
  %v2967 = vunpack.c.h.b16 %v2321
  %v2968 = vunpack.c.l.b16 %v2322
  %v2969 = vunpack.c.h.b16 %v2322
  %v2970 = vunpack.c.l.b16 %v2323
  %v2971 = vunpack.c.h.b16 %v2323
  %v2972 = vunpack.c.l.b16 %v2324
  %v2973 = vunpack.c.h.b16 %v2324
  %v2974 = vunpack.c.l.b16 %v2325
  %v2975 = vunpack.c.h.b16 %v2325
  %v2976 = vunpack.c.l.b16 %v2326
  %v2977 = vunpack.c.h.b16 %v2326
  %v2978 = vunpack.c.l.b16 %v2327
  %v2979 = vunpack.c.h.b16 %v2327
  %v2980 = vunpack.c.l.b16 %v2328
  %v2981 = vunpack.c.h.b16 %v2328
  %v2982 = vunpack.c.l.b16 %v2329
  %v2983 = vunpack.c.h.b16 %v2329
  %v2984 = vunpack.c.l.b16 %v2330
  %v2985 = vunpack.c.h.b16 %v2330
  %v2986 = vunpack.c.l.b16 %v2331
  %v2987 = vunpack.c.h.b16 %v2331
  %v2988 = vunpack.c.l.b16 %v2332
  %v2989 = vunpack.c.h.b16 %v2332
  %v2990 = vunpack.c.l.b16 %v2333
  %v2991 = vunpack.c.h.b16 %v2333
  %v2992 = vunpack.c.l.b16 %v2334
  %v2993 = vunpack.c.h.b16 %v2334
  %v2994 = vunpack.c.l.b16 %v2335
  %v2995 = vunpack.c.h.b16 %v2335
  %v2996 = vunpack.c.l.b16 %v2336
  %v2997 = vunpack.c.h.b16 %v2336
  %v2998 = vunpack.c.l.b16 %v2337
  %v2999 = vunpack.c.h.b16 %v2337
  %v3000 = vunpack.c.l.b16 %v2338
  %v3001 = vunpack.c.h.b16 %v2338
  %v3002 = vunpack.c.l.b16 %v2339
  %v3003 = vunpack.c.h.b16 %v2339
  %v3004 = vunpack.c.l.b16 %v2340
  %v3005 = vunpack.c.h.b16 %v2340
  %v3006 = vunpack.c.l.b16 %v2341
  %v3007 = vunpack.c.h.b16 %v2341
  %v3008 = vunpack.c.l.b16 %v2342
  %v3009 = vunpack.c.h.b16 %v2342
  %v3010 = vunpack.c.l.b16 %v2343
  %v3011 = vunpack.c.h.b16 %v2343
  %v3012 = vunpack.c.l.b16 %v2344
  %v3013 = vunpack.c.h.b16 %v2344
  %v3014 = vunpack.c.l.b16 %v2345
  %v3015 = vunpack.c.h.b16 %v2345
  %v3016 = vunpack.c.l.b16 %v2346
  %v3017 = vunpack.c.h.b16 %v2346
  %v3018 = vunpack.c.l.b16 %v2347
  %v3019 = vunpack.c.h.b16 %v2347
  %v3020 = vunpack.c.l.b16 %v2348
  %v3021 = vunpack.c.h.b16 %v2348
  %v3022 = vunpack.c.l.b16 %v2349
  %v3023 = vunpack.c.h.b16 %v2349
  %v3024 = vunpack.c.l.b16 %v2350
  %v3025 = vunpack.c.h.b16 %v2350
  %v3026 = vunpack.c.l.b16 %v2351
  %v3027 = vunpack.c.h.b16 %v2351
  %v3028 = vunpack.c.l.b16 %v2352
  %v3029 = vunpack.c.h.b16 %v2352
  %v3030 = vunpack.c.l.b16 %v2353
  %v3031 = vunpack.c.h.b16 %v2353
  %v3032 = vunpack.c.l.b16 %v2354
  %v3033 = vunpack.c.h.b16 %v2354
  %v3034 = vunpack.c.l.b16 %v2355
  %v3035 = vunpack.c.h.b16 %v2355
  %v3036 = vunpack.c.l.b16 %v2356
  %v3037 = vunpack.c.h.b16 %v2356
  %v3038 = vunpack.c.l.b16 %v2357
  %v3039 = vunpack.c.h.b16 %v2357
  %v3040 = vunpack.c.l.b16 %v2358
  %v3041 = vunpack.c.h.b16 %v2358
  %v3042 = vunpack.c.l.b16 %v2359
  %v3043 = vunpack.c.h.b16 %v2359
  %v3044 = vunpack.c.l.b16 %v2360
  %v3045 = vunpack.c.h.b16 %v2360
  %v3046 = vunpack.c.l.b16 %v2361
  %v3047 = vunpack.c.h.b16 %v2361
  %v3048 = vunpack.c.l.b16 %v2362
  %v3049 = vunpack.c.h.b16 %v2362
  %v3050 = vunpack.c.l.b16 %v2363
  %v3051 = vunpack.c.h.b16 %v2363
  %v3052 = vunpack.c.l.b16 %v2364
  %v3053 = vunpack.c.h.b16 %v2364
  %v3054 = vunpack.c.l.b16 %v2365
  %v3055 = vunpack.c.h.b16 %v2365
  %v3056 = vunpack.c.l.b16 %v2366
  %v3057 = vunpack.c.h.b16 %v2366
  %v3058 = vunpack.c.l.b16 %v2367
  %v3059 = vunpack.c.h.b16 %v2367
  %v3060 = vunpack.c.l.b16 %v2368
  %v3061 = vunpack.c.h.b16 %v2368
  %v3062 = vunpack.c.l.b16 %v2369
  %v3063 = vunpack.c.h.b16 %v2369
  %v3064 = vunpack.c.l.b16 %v2370
  %v3065 = vunpack.c.h.b16 %v2370
  %v3066 = vunpack.c.l.b16 %v2371
  %v3067 = vunpack.c.h.b16 %v2371
  %v3068 = vunpack.c.l.b16 %v2372
  %v3069 = vunpack.c.h.b16 %v2372
  %v3070 = vunpack.c.l.b16 %v2373
  %v3071 = vunpack.c.h.b16 %v2373
  %v3072 = vunpack.c.l.b16 %v2374
  %v3073 = vunpack.c.h.b16 %v2374
  %v3074 = vunpack.c.l.b16 %v2375
  %v3075 = vunpack.c.h.b16 %v2375
  %v3076 = vunpack.c.l.b16 %v2376
  %v3077 = vunpack.c.h.b16 %v2376
  %v3078 = vunpack.c.l.b16 %v2377
  %v3079 = vunpack.c.h.b16 %v2377
  %v3080 = vunpack.c.l.b16 %v2378
  %v3081 = vunpack.c.h.b16 %v2378
  %v3082 = vunpack.c.l.b16 %v2379
  %v3083 = vunpack.c.h.b16 %v2379
  %v3084 = vunpack.c.l.b16 %v2380
  %v3085 = vunpack.c.h.b16 %v2380
  %v3086 = vunpack.c.l.b16 %v2381
  %v3087 = vunpack.c.h.b16 %v2381
  %v3088 = vunpack.c.l.b16 %v2382
  %v3089 = vunpack.c.h.b16 %v2382
  %v3090 = vunpack.c.l.b16 %v2383
  %v3091 = vunpack.c.h.b16 %v2383
  %v3092 = vunpack.c.l.b16 %v2384
  %v3093 = vunpack.c.h.b16 %v2384
  %v3094 = vunpack.c.l.b16 %v2385
  %v3095 = vunpack.c.h.b16 %v2385
  %v3096 = vunpack.c.l.b16 %v2386
  %v3097 = vunpack.c.h.b16 %v2386
  %v3098 = vunpack.c.l.b16 %v2387
  %v3099 = vunpack.c.h.b16 %v2387
  %v3100 = vunpack.c.l.b16 %v2388
  %v3101 = vunpack.c.h.b16 %v2388
  %v3102 = vunpack.c.l.b16 %v2389
  %v3103 = vunpack.c.h.b16 %v2389
  %v3104 = vunpack.c.l.b16 %v2390
  %v3105 = vunpack.c.h.b16 %v2390
  %v3106 = vunpack.c.l.b16 %v2391
  %v3107 = vunpack.c.h.b16 %v2391
  %v3108 = vunpack.c.l.b16 %v2392
  %v3109 = vunpack.c.h.b16 %v2392
  %v3110 = vunpack.c.l.b16 %v2393
  %v3111 = vunpack.c.h.b16 %v2393
  %v3112 = vunpack.c.l.b16 %v2394
  %v3113 = vunpack.c.h.b16 %v2394
  %v3114 = vunpack.c.l.b16 %v2395
  %v3115 = vunpack.c.h.b16 %v2395
  %v3116 = vunpack.c.l.b16 %v2396
  %v3117 = vunpack.c.h.b16 %v2396
  %v3118 = vunpack.c.l.b16 %v2397
  %v3119 = vunpack.c.h.b16 %v2397
  %v3120 = vunpack.c.l.b16 %v2398
  %v3121 = vunpack.c.h.b16 %v2398
  %v3122 = vunpack.c.l.b16 %v2399
  %v3123 = vunpack.c.h.b16 %v2399
  %v3124 = vunpack.c.l.b16 %v2400
  %v3125 = vunpack.c.h.b16 %v2400
  %v3126 = vunpack.c.l.b16 %v2401
  %v3127 = vunpack.c.h.b16 %v2401
  %v3128 = vunpack.c.l.b16 %v2402
  %v3129 = vunpack.c.h.b16 %v2402
  %v3130 = vunpack.c.l.b16 %v2403
  %v3131 = vunpack.c.h.b16 %v2403
  %v3132 = vunpack.c.l.b16 %v2404
  %v3133 = vunpack.c.h.b16 %v2404
  %v3134 = vunpack.c.l.b16 %v2405
  %v3135 = vunpack.c.h.b16 %v2405
  %v3136 = vunpack.c.l.b16 %v2406
  %v3137 = vunpack.c.h.b16 %v2406
  %v3138 = vunpack.c.l.b16 %v2407
  %v3139 = vunpack.c.h.b16 %v2407
  %v3140 = vunpack.c.l.b16 %v2408
  %v3141 = vunpack.c.h.b16 %v2408
  %v3142 = vunpack.c.l.b16 %v2409
  %v3143 = vunpack.c.h.b16 %v2409
  %v3144 = vunpack.c.l.b16 %v2410
  %v3145 = vunpack.c.h.b16 %v2410
  %v3146 = vunpack.c.l.b16 %v2411
  %v3147 = vunpack.c.h.b16 %v2411
  %v3148 = vunpack.c.l.b16 %v2412
  %v3149 = vunpack.c.h.b16 %v2412
  %v3150 = vunpack.c.l.b16 %v2413
  %v3151 = vunpack.c.h.b16 %v2413
  %v3152 = vunpack.c.l.b16 %v2414
  %v3153 = vunpack.c.h.b16 %v2414
  %v3154 = vunpack.c.l.b16 %v2415
  %v3155 = vunpack.c.h.b16 %v2415
  %v3156 = vunpack.c.l.b16 %v2416
  %v3157 = vunpack.c.h.b16 %v2416
  %v3158 = vunpack.c.l.b16 %v2417
  %v3159 = vunpack.c.h.b16 %v2417
  %v3160 = vunpack.c.l.b16 %v2418
  %v3161 = vunpack.c.h.b16 %v2418
  %v3162 = vunpack.c.l.b16 %v2419
  %v3163 = vunpack.c.h.b16 %v2419
  %v3164 = vunpack.c.l.b16 %v2420
  %v3165 = vunpack.c.h.b16 %v2420
  %v3166 = vunpack.c.l.b16 %v2421
  %v3167 = vunpack.c.h.b16 %v2421
  %v3168 = vunpack.c.l.b16 %v2422
  %v3169 = vunpack.c.h.b16 %v2422
  %v3170 = vunpack.c.l.b16 %v2423
  %v3171 = vunpack.c.h.b16 %v2423
  %v3172 = vunpack.c.l.b16 %v2424
  %v3173 = vunpack.c.h.b16 %v2424
  %v3174 = vunpack.c.l.b16 %v2425
  %v3175 = vunpack.c.h.b16 %v2425
  %v3176 = vunpack.c.l.b16 %v2426
  %v3177 = vunpack.c.h.b16 %v2426
  %v3178 = vunpack.c.l.b16 %v2427
  %v3179 = vunpack.c.h.b16 %v2427
  %v3180 = vunpack.c.l.b16 %v2428
  %v3181 = vunpack.c.h.b16 %v2428
  %v3182 = vunpack.c.l.b16 %v2429
  %v3183 = vunpack.c.h.b16 %v2429
  %v3184 = vunpack.c.l.b16 %v2430
  %v3185 = vunpack.c.h.b16 %v2430
  %v3186 = vunpack.c.l.b16 %v2431
  %v3187 = vunpack.c.h.b16 %v2431
  %v3188 = vunpack.c.l.b16 %v2432
  %v3189 = vunpack.c.h.b16 %v2432
  %v3190 = vunpack.c.l.b16 %v2433
  %v3191 = vunpack.c.h.b16 %v2433
  %v3192 = vunpack.c.l.b16 %v2434
  %v3193 = vunpack.c.h.b16 %v2434
  %v3194 = vunpack.c.l.b16 %v2435
  %v3195 = vunpack.c.h.b16 %v2435
  %v3196 = vunpack.c.l.b16 %v2436
  %v3197 = vunpack.c.h.b16 %v2436
  %v3198 = vunpack.c.l.b16 %v2437
  %v3199 = vunpack.c.h.b16 %v2437
  %v3200 = vunpack.c.l.b16 %v2438
  %v3201 = vunpack.c.h.b16 %v2438
  %v3202 = vunpack.c.l.b16 %v2439
  %v3203 = vunpack.c.h.b16 %v2439
  %v3204 = vunpack.c.l.b16 %v2440
  %v3205 = vunpack.c.h.b16 %v2440
  %v3206 = vunpack.c.l.b16 %v2441
  %v3207 = vunpack.c.h.b16 %v2441
  %v3208 = vunpack.c.l.b16 %v2442
  %v3209 = vunpack.c.h.b16 %v2442
  %v3210 = vunpack.c.l.b16 %v2443
  %v3211 = vunpack.c.h.b16 %v2443
  %v3212 = vunpack.c.l.b16 %v2444
  %v3213 = vunpack.c.h.b16 %v2444
  %v3214 = vunpack.c.l.b16 %v2445
  %v3215 = vunpack.c.h.b16 %v2445
  %v3216 = vunpack.c.l.b16 %v2446
  %v3217 = vunpack.c.h.b16 %v2446
  %v3218 = vunpack.c.l.b16 %v2447
  %v3219 = vunpack.c.h.b16 %v2447
  %v3220 = vunpack.c.l.b16 %v2448
  %v3221 = vunpack.c.h.b16 %v2448
  %v3222 = vunpack.c.l.b16 %v2449
  %v3223 = vunpack.c.h.b16 %v2449
  %v3224 = vunpack.c.l.b16 %v2450
  %v3225 = vunpack.c.h.b16 %v2450
  %v3226 = vunpack.c.l.b16 %v2451
  %v3227 = vunpack.c.h.b16 %v2451
  %v3228 = vunpack.c.l.b16 %v2452
  %v3229 = vunpack.c.h.b16 %v2452
  %v3230 = vunpack.c.l.b16 %v2453
  %v3231 = vunpack.c.h.b16 %v2453
  %v3232 = vunpack.c.l.b16 %v2454
  %v3233 = vunpack.c.h.b16 %v2454
  %v3234 = vunpack.c.l.b16 %v2455
  %v3235 = vunpack.c.h.b16 %v2455
  %v3236 = vunpack.c.l.b16 %v2456
  %v3237 = vunpack.c.h.b16 %v2456
  %v3238 = vunpack.c.l.b16 %v2457
  %v3239 = vunpack.c.h.b16 %v2457
  %v3240 = vunpack.c.l.b16 %v2458
  %v3241 = vunpack.c.h.b16 %v2458
  %v3242 = vunpack.c.l.b16 %v2459
  %v3243 = vunpack.c.h.b16 %v2459
  %v3244 = vunpack.c.l.b16 %v2460
  %v3245 = vunpack.c.h.b16 %v2460
  %v3246 = vunpack.c.l.b16 %v2461
  %v3247 = vunpack.c.h.b16 %v2461
  %v3248 = vunpack.c.l.b16 %v2462
  %v3249 = vunpack.c.h.b16 %v2462
  %v3250 = vunpack.c.l.b16 %v2463
  %v3251 = vunpack.c.h.b16 %v2463
  %v3252 = vunpack.c.l.b16 %v2464
  %v3253 = vunpack.c.h.b16 %v2464
  %v3254 = vunpack.c.l.b16 %v2465
  %v3255 = vunpack.c.h.b16 %v2465
  %v3256 = vunpack.c.l.b16 %v2466
  %v3257 = vunpack.c.h.b16 %v2466
  %v3258 = vunpack.c.l.b16 %v2467
  %v3259 = vunpack.c.h.b16 %v2467
  %v3260 = vunpack.c.l.b16 %v2468
  %v3261 = vunpack.c.h.b16 %v2468
  %v3262 = vunpack.c.l.b16 %v2469
  %v3263 = vunpack.c.h.b16 %v2469
  %v3264 = vunpack.c.l.b16 %v2470
  %v3265 = vunpack.c.h.b16 %v2470
  %v3266 = vunpack.c.l.b16 %v2471
  %v3267 = vunpack.c.h.b16 %v2471
  %v3268 = vunpack.c.l.b16 %v2472
  %v3269 = vunpack.c.h.b16 %v2472
  %v3270 = vunpack.c.l.b16 %v2473
  %v3271 = vunpack.c.h.b16 %v2473
  %v3272 = vunpack.c.l.b16 %v2474
  %v3273 = vunpack.c.h.b16 %v2474
  %v3274 = vunpack.c.l.b16 %v2475
  %v3275 = vunpack.c.h.b16 %v2475
  %v3276 = vunpack.c.l.b16 %v2476
  %v3277 = vunpack.c.h.b16 %v2476
  %v3278 = vunpack.c.l.b16 %v2477
  %v3279 = vunpack.c.h.b16 %v2477
  %v3280 = vunpack.c.l.b16 %v2478
  %v3281 = vunpack.c.h.b16 %v2478
  %v3282 = vunpack.c.l.b16 %v2479
  %v3283 = vunpack.c.h.b16 %v2479
  %v3284 = vunpack.c.l.b16 %v2480
  %v3285 = vunpack.c.h.b16 %v2480
  %v3286 = vunpack.c.l.b16 %v2481
  %v3287 = vunpack.c.h.b16 %v2481
  %v3288 = vunpack.c.l.b16 %v2482
  %v3289 = vunpack.c.h.b16 %v2482
  %v3290 = vunpack.c.l.b16 %v2483
  %v3291 = vunpack.c.h.b16 %v2483
  %v3292 = vunpack.c.l.b16 %v2484
  %v3293 = vunpack.c.h.b16 %v2484
  %v3294 = vunpack.c.l.b16 %v2485
  %v3295 = vunpack.c.h.b16 %v2485
  %v3296 = vunpack.c.l.b16 %v2486
  %v3297 = vunpack.c.h.b16 %v2486
  %v3298 = vunpack.c.l.b16 %v2487
  %v3299 = vunpack.c.h.b16 %v2487
  %v3300 = vunpack.c.l.b16 %v2488
  %v3301 = vunpack.c.h.b16 %v2488
  %v3302 = vunpack.c.l.b16 %v2489
  %v3303 = vunpack.c.h.b16 %v2489
  %v3304 = vunpack.c.l.b16 %v2490
  %v3305 = vunpack.c.h.b16 %v2490
  %v3306 = vunpack.c.l.b16 %v2491
  %v3307 = vunpack.c.h.b16 %v2491
  %v3308 = vunpack.c.l.b16 %v2492
  %v3309 = vunpack.c.h.b16 %v2492
  %v3310 = vunpack.c.l.b16 %v2493
  %v3311 = vunpack.c.h.b16 %v2493
  %v3312 = vunpack.c.l.b16 %v2494
  %v3313 = vunpack.c.h.b16 %v2494
  %v3314 = vunpack.c.l.b16 %v2495
  %v3315 = vunpack.c.h.b16 %v2495
  %v3316 = vunpack.c.l.b16 %v2496
  %v3317 = vunpack.c.h.b16 %v2496
  %v3318 = vunpack.c.l.b16 %v2497
  %v3319 = vunpack.c.h.b16 %v2497
  %v3320 = vunpack.c.l.b16 %v2498
  %v3321 = vunpack.c.h.b16 %v2498
  %v3322 = vunpack.c.l.b16 %v2499
  %v3323 = vunpack.c.h.b16 %v2499
  %v3324 = vunpack.c.l.b16 %v2500
  %v3325 = vunpack.c.h.b16 %v2500
  %v3326 = vunpack.c.l.b16 %v2501
  %v3327 = vunpack.c.h.b16 %v2501
  %v3328 = vunpack.c.l.b16 %v2502
  %v3329 = vunpack.c.h.b16 %v2502
  %v3330 = vunpack.c.l.b16 %v2503
  %v3331 = vunpack.c.h.b16 %v2503
  %v3332 = vunpack.c.l.b16 %v2504
  %v3333 = vunpack.c.h.b16 %v2504
  %v3334 = vunpack.c.l.b16 %v2505
  %v3335 = vunpack.c.h.b16 %v2505
  %v3336 = vunpack.c.l.b16 %v2506
  %v3337 = vunpack.c.h.b16 %v2506
  %v3338 = vunpack.c.l.b16 %v2507
  %v3339 = vunpack.c.h.b16 %v2507
  %v3340 = vunpack.c.l.b16 %v2508
  %v3341 = vunpack.c.h.b16 %v2508
  %v3342 = vunpack.c.l.b16 %v2509
  %v3343 = vunpack.c.h.b16 %v2509
  %v3344 = vunpack.c.l.b16 %v2510
  %v3345 = vunpack.c.h.b16 %v2510
  %v3346 = vunpack.c.l.b16 %v2511
  %v3347 = vunpack.c.h.b16 %v2511
  %v3348 = vunpack.c.l.b16 %v2512
  %v3349 = vunpack.c.h.b16 %v2512
  %v3350 = vunpack.c.l.b16 %v2513
  %v3351 = vunpack.c.h.b16 %v2513
  %v3352 = vunpack.c.l.b16 %v2514
  %v3353 = vunpack.c.h.b16 %v2514
  %v3354 = vunpack.c.l.b16 %v2515
  %v3355 = vunpack.c.h.b16 %v2515
  %v3356 = vunpack.c.l.b16 %v2516
  %v3357 = vunpack.c.h.b16 %v2516
  %v3358 = vunpack.c.l.b16 %v2517
  %v3359 = vunpack.c.h.b16 %v2517
  %v3360 = vunpack.c.l.b16 %v2518
  %v3361 = vunpack.c.h.b16 %v2518
  %v3362 = vunpack.c.l.b16 %v2519
  %v3363 = vunpack.c.h.b16 %v2519
  %v3364 = vunpack.c.l.b16 %v2520
  %v3365 = vunpack.c.h.b16 %v2520
  %v3366 = vunpack.c.l.b16 %v2521
  %v3367 = vunpack.c.h.b16 %v2521
  %v3368 = vunpack.c.l.b16 %v2522
  %v3369 = vunpack.c.h.b16 %v2522
  %v3370 = vunpack.c.l.b16 %v2523
  %v3371 = vunpack.c.h.b16 %v2523
  %v3372 = vunpack.c.l.b16 %v2524
  %v3373 = vunpack.c.h.b16 %v2524
  %v3374 = vunpack.c.l.b16 %v2525
  %v3375 = vunpack.c.h.b16 %v2525
  %v3376 = vunpack.c.l.b16 %v2526
  %v3377 = vunpack.c.h.b16 %v2526
  %v3378 = vunpack.c.l.b16 %v2527
  %v3379 = vunpack.c.h.b16 %v2527
  %v3380 = vunpack.c.l.b16 %v2528
  %v3381 = vunpack.c.h.b16 %v2528
  %v3382 = vunpack.c.l.b16 %v2529
  %v3383 = vunpack.c.h.b16 %v2529
  %v3384 = vunpack.c.l.b16 %v2530
  %v3385 = vunpack.c.h.b16 %v2530
  %v3386 = vunpack.c.l.b16 %v2531
  %v3387 = vunpack.c.h.b16 %v2531
  %v3388 = vunpack.c.l.b16 %v2532
  %v3389 = vunpack.c.h.b16 %v2532
  %v3390 = vunpack.c.l.b16 %v2533
  %v3391 = vunpack.c.h.b16 %v2533
  %v3392 = vunpack.c.l.b16 %v2534
  %v3393 = vunpack.c.h.b16 %v2534
  %v3394 = vunpack.c.l.b16 %v2535
  %v3395 = vunpack.c.h.b16 %v2535
  %v3396 = vunpack.c.l.b16 %v2536
  %v3397 = vunpack.c.h.b16 %v2536
  %v3398 = vunpack.c.l.b16 %v2537
  %v3399 = vunpack.c.h.b16 %v2537
  %v3400 = vunpack.c.l.b16 %v2538
  %v3401 = vunpack.c.h.b16 %v2538
  %v3402 = vunpack.c.l.b16 %v2539
  %v3403 = vunpack.c.h.b16 %v2539
  %v3404 = vunpack.c.l.b16 %v2540
  %v3405 = vunpack.c.h.b16 %v2540
  %v3406 = vunpack.c.l.b16 %v2541
  %v3407 = vunpack.c.h.b16 %v2541
  %v3408 = vunpack.c.l.b16 %v2542
  %v3409 = vunpack.c.h.b16 %v2542
  %v3410 = vunpack.c.l.b16 %v2543
  %v3411 = vunpack.c.h.b16 %v2543
  %v3412 = vunpack.c.l.b16 %v2544
  %v3413 = vunpack.c.h.b16 %v2544
  %v3414 = vunpack.c.l.b16 %v2545
  %v3415 = vunpack.c.h.b16 %v2545
  %v3416 = vunpack.c.l.b16 %v2546
  %v3417 = vunpack.c.h.b16 %v2546
  %v3418 = vunpack.c.l.b16 %v2547
  %v3419 = vunpack.c.h.b16 %v2547
  %v3420 = vunpack.c.l.b16 %v2548
  %v3421 = vunpack.c.h.b16 %v2548
  %v3422 = vunpack.c.l.b16 %v2549
  %v3423 = vunpack.c.h.b16 %v2549
  %v3424 = vunpack.c.l.b16 %v2550
  %v3425 = vunpack.c.h.b16 %v2550
  %v3426 = vunpack.c.l.b16 %v2551
  %v3427 = vunpack.c.h.b16 %v2551
  %v3428 = vunpack.c.l.b16 %v2552
  %v3429 = vunpack.c.h.b16 %v2552
  %v3430 = vunpack.c.l.b16 %v2553
  %v3431 = vunpack.c.h.b16 %v2553
  %v3432 = vunpack.c.l.b16 %v2554
  %v3433 = vunpack.c.h.b16 %v2554
  %v3434 = vunpack.c.l.b16 %v2555
  %v3435 = vunpack.c.h.b16 %v2555
  %v3436 = vunpack.c.l.b16 %v2556
  %v3437 = vunpack.c.h.b16 %v2556
  %v3438 = vunpack.c.l.b16 %v2557
  %v3439 = vunpack.c.h.b16 %v2557
  %v3440 = vpack.c.b16 %v2856, %v2852
  %v3441 = vpack.c.b16 %v2857, %v2853
  %v3442 = vpack.c.b16 %v2858, %v2854
  %v3443 = vpack.c.b16 %v2859, %v2855
  %v3444 = vpack.c.b16 %v2864, %v2860
  %v3445 = vpack.c.b16 %v2865, %v2861
  %v3446 = vpack.c.b16 %v2866, %v2862
  %v3447 = vpack.c.b16 %v2867, %v2863
  %v3448 = vpack.c.b16 %v2872, %v2868
  %v3449 = vpack.c.b16 %v2873, %v2869
  %v3450 = vpack.c.b16 %v2874, %v2870
  %v3451 = vpack.c.b16 %v2875, %v2871
  %v3452 = vpack.c.b16 %v2880, %v2876
  %v3453 = vpack.c.b16 %v2881, %v2877
  %v3454 = vpack.c.b16 %v2882, %v2878
  %v3455 = vpack.c.b16 %v2883, %v2879
  %v3456 = vpack.c.b16 %v2888, %v2884
  %v3457 = vpack.c.b16 %v2889, %v2885
  %v3458 = vpack.c.b16 %v2890, %v2886
  %v3459 = vpack.c.b16 %v2891, %v2887
  %v3460 = vpack.c.b16 %v2896, %v2892
  %v3461 = vpack.c.b16 %v2897, %v2893
  %v3462 = vpack.c.b16 %v2898, %v2894
  %v3463 = vpack.c.b16 %v2899, %v2895
  %v3464 = vpack.c.b16 %v2904, %v2900
  %v3465 = vpack.c.b16 %v2905, %v2901
  %v3466 = vpack.c.b16 %v2906, %v2902
  %v3467 = vpack.c.b16 %v2907, %v2903
  %v3468 = vpack.c.b16 %v2912, %v2908
  %v3469 = vpack.c.b16 %v2913, %v2909
  %v3470 = vpack.c.b16 %v2914, %v2910
  %v3471 = vpack.c.b16 %v2915, %v2911
  %v3472 = vpack.c.b16 %v2920, %v2916
  %v3473 = vpack.c.b16 %v2921, %v2917
  %v3474 = vpack.c.b16 %v2922, %v2918
  %v3475 = vpack.c.b16 %v2923, %v2919
  %v3476 = vpack.c.b16 %v2928, %v2924
  %v3477 = vpack.c.b16 %v2929, %v2925
  %v3478 = vpack.c.b16 %v2930, %v2926
  %v3479 = vpack.c.b16 %v2931, %v2927
  %v3480 = vpack.c.b16 %v2936, %v2932
  %v3481 = vpack.c.b16 %v2937, %v2933
  %v3482 = vpack.c.b16 %v2938, %v2934
  %v3483 = vpack.c.b16 %v2939, %v2935
  %v3484 = vpack.c.b16 %v2944, %v2940
  %v3485 = vpack.c.b16 %v2945, %v2941
  %v3486 = vpack.c.b16 %v2946, %v2942
  %v3487 = vpack.c.b16 %v2947, %v2943
  %v3488 = vpack.c.b16 %v2952, %v2948
  %v3489 = vpack.c.b16 %v2953, %v2949
  %v3490 = vpack.c.b16 %v2954, %v2950
  %v3491 = vpack.c.b16 %v2955, %v2951
  %v3492 = vpack.c.b16 %v2960, %v2956
  %v3493 = vpack.c.b16 %v2961, %v2957
  %v3494 = vpack.c.b16 %v2962, %v2958
  %v3495 = vpack.c.b16 %v2963, %v2959
  %v3496 = vpack.c.b16 %v2968, %v2964
  %v3497 = vpack.c.b16 %v2969, %v2965
  %v3498 = vpack.c.b16 %v2970, %v2966
  %v3499 = vpack.c.b16 %v2971, %v2967
  %v3500 = vpack.c.b16 %v2976, %v2972
  %v3501 = vpack.c.b16 %v2977, %v2973
  %v3502 = vpack.c.b16 %v2978, %v2974
  %v3503 = vpack.c.b16 %v2979, %v2975
  %v3504 = vpack.c.b16 %v2984, %v2980
  %v3505 = vpack.c.b16 %v2985, %v2981
  %v3506 = vpack.c.b16 %v2986, %v2982
  %v3507 = vpack.c.b16 %v2987, %v2983
  %v3508 = vpack.c.b16 %v2992, %v2988
  %v3509 = vpack.c.b16 %v2993, %v2989
  %v3510 = vpack.c.b16 %v2994, %v2990
  %v3511 = vpack.c.b16 %v2995, %v2991
  %v3512 = vpack.c.b16 %v3000, %v2996
  %v3513 = vpack.c.b16 %v3001, %v2997
  %v3514 = vpack.c.b16 %v3002, %v2998
  %v3515 = vpack.c.b16 %v3003, %v2999
  %v3516 = vpack.c.b16 %v3008, %v3004
  %v3517 = vpack.c.b16 %v3009, %v3005
  %v3518 = vpack.c.b16 %v3010, %v3006
  %v3519 = vpack.c.b16 %v3011, %v3007
  %v3520 = vpack.c.b16 %v3016, %v3012
  %v3521 = vpack.c.b16 %v3017, %v3013
  %v3522 = vpack.c.b16 %v3018, %v3014
  %v3523 = vpack.c.b16 %v3019, %v3015
  %v3524 = vpack.c.b16 %v3024, %v3020
  %v3525 = vpack.c.b16 %v3025, %v3021
  %v3526 = vpack.c.b16 %v3026, %v3022
  %v3527 = vpack.c.b16 %v3027, %v3023
  %v3528 = vpack.c.b16 %v3032, %v3028
  %v3529 = vpack.c.b16 %v3033, %v3029
  %v3530 = vpack.c.b16 %v3034, %v3030
  %v3531 = vpack.c.b16 %v3035, %v3031
  %v3532 = vpack.c.b16 %v3040, %v3036
  %v3533 = vpack.c.b16 %v3041, %v3037
  %v3534 = vpack.c.b16 %v3042, %v3038
  %v3535 = vpack.c.b16 %v3043, %v3039
  %v3536 = vpack.c.b16 %v3048, %v3044
  %v3537 = vpack.c.b16 %v3049, %v3045
  %v3538 = vpack.c.b16 %v3050, %v3046
  %v3539 = vpack.c.b16 %v3051, %v3047
  %v3540 = vpack.c.b16 %v3056, %v3052
  %v3541 = vpack.c.b16 %v3057, %v3053
  %v3542 = vpack.c.b16 %v3058, %v3054
  %v3543 = vpack.c.b16 %v3059, %v3055
  %v3544 = vpack.c.b16 %v3064, %v3060
  %v3545 = vpack.c.b16 %v3065, %v3061
  %v3546 = vpack.c.b16 %v3066, %v3062
  %v3547 = vpack.c.b16 %v3067, %v3063
  %v3548 = vpack.c.b16 %v3072, %v3068
  %v3549 = vpack.c.b16 %v3073, %v3069
  %v3550 = vpack.c.b16 %v3074, %v3070
  %v3551 = vpack.c.b16 %v3075, %v3071
  %v3552 = vpack.c.b16 %v3080, %v3076
  %v3553 = vpack.c.b16 %v3081, %v3077
  %v3554 = vpack.c.b16 %v3082, %v3078
  %v3555 = vpack.c.b16 %v3083, %v3079
  %v3556 = vpack.c.b16 %v3088, %v3084
  %v3557 = vpack.c.b16 %v3089, %v3085
  %v3558 = vpack.c.b16 %v3090, %v3086
  %v3559 = vpack.c.b16 %v3091, %v3087
  %v3560 = vpack.c.b16 %v3096, %v3092
  %v3561 = vpack.c.b16 %v3097, %v3093
  %v3562 = vpack.c.b16 %v3098, %v3094
  %v3563 = vpack.c.b16 %v3099, %v3095
  %v3564 = vpack.c.b16 %v3104, %v3100
  %v3565 = vpack.c.b16 %v3105, %v3101
  %v3566 = vpack.c.b16 %v3106, %v3102
  %v3567 = vpack.c.b16 %v3107, %v3103
  %v3568 = vpack.c.b16 %v3112, %v3108
  %v3569 = vpack.c.b16 %v3113, %v3109
  %v3570 = vpack.c.b16 %v3114, %v3110
  %v3571 = vpack.c.b16 %v3115, %v3111
  %v3572 = vpack.c.b16 %v3120, %v3116
  %v3573 = vpack.c.b16 %v3121, %v3117
  %v3574 = vpack.c.b16 %v3122, %v3118
  %v3575 = vpack.c.b16 %v3123, %v3119
  %v3576 = vpack.c.b16 %v3128, %v3124
  %v3577 = vpack.c.b16 %v3129, %v3125
  %v3578 = vpack.c.b16 %v3130, %v3126
  %v3579 = vpack.c.b16 %v3131, %v3127
  %v3580 = vpack.c.b16 %v3136, %v3132
  %v3581 = vpack.c.b16 %v3137, %v3133
  %v3582 = vpack.c.b16 %v3138, %v3134
  %v3583 = vpack.c.b16 %v3139, %v3135
  %v3584 = vpack.c.b16 %v3144, %v3140
  %v3585 = vpack.c.b16 %v3145, %v3141
  %v3586 = vpack.c.b16 %v3146, %v3142
  %v3587 = vpack.c.b16 %v3147, %v3143
  %v3588 = vpack.c.b16 %v3152, %v3148
  %v3589 = vpack.c.b16 %v3153, %v3149
  %v3590 = vpack.c.b16 %v3154, %v3150
  %v3591 = vpack.c.b16 %v3155, %v3151
  %v3592 = vpack.c.b16 %v3160, %v3156
  %v3593 = vpack.c.b16 %v3161, %v3157
  %v3594 = vpack.c.b16 %v3162, %v3158
  %v3595 = vpack.c.b16 %v3163, %v3159
  %v3596 = vpack.c.b16 %v3168, %v3164
  %v3597 = vpack.c.b16 %v3169, %v3165
  %v3598 = vpack.c.b16 %v3170, %v3166
  %v3599 = vpack.c.b16 %v3171, %v3167
  %v3600 = vpack.c.b16 %v3176, %v3172
  %v3601 = vpack.c.b16 %v3177, %v3173
  %v3602 = vpack.c.b16 %v3178, %v3174
  %v3603 = vpack.c.b16 %v3179, %v3175
  %v3604 = vpack.c.b16 %v3184, %v3180
  %v3605 = vpack.c.b16 %v3185, %v3181
  %v3606 = vpack.c.b16 %v3186, %v3182
  %v3607 = vpack.c.b16 %v3187, %v3183
  %v3608 = vpack.c.b16 %v3192, %v3188
  %v3609 = vpack.c.b16 %v3193, %v3189
  %v3610 = vpack.c.b16 %v3194, %v3190
  %v3611 = vpack.c.b16 %v3195, %v3191
  %v3612 = vpack.c.b16 %v3200, %v3196
  %v3613 = vpack.c.b16 %v3201, %v3197
  %v3614 = vpack.c.b16 %v3202, %v3198
  %v3615 = vpack.c.b16 %v3203, %v3199
  %v3616 = vpack.c.b16 %v3208, %v3204
  %v3617 = vpack.c.b16 %v3209, %v3205
  %v3618 = vpack.c.b16 %v3210, %v3206
  %v3619 = vpack.c.b16 %v3211, %v3207
  %v3620 = vpack.c.b16 %v3216, %v3212
  %v3621 = vpack.c.b16 %v3217, %v3213
  %v3622 = vpack.c.b16 %v3218, %v3214
  %v3623 = vpack.c.b16 %v3219, %v3215
  %v3624 = vpack.c.b16 %v3224, %v3220
  %v3625 = vpack.c.b16 %v3225, %v3221
  %v3626 = vpack.c.b16 %v3226, %v3222
  %v3627 = vpack.c.b16 %v3227, %v3223
  %v3628 = vpack.c.b16 %v3232, %v3228
  %v3629 = vpack.c.b16 %v3233, %v3229
  %v3630 = vpack.c.b16 %v3234, %v3230
  %v3631 = vpack.c.b16 %v3235, %v3231
  %v3632 = vpack.c.b16 %v3240, %v3236
  %v3633 = vpack.c.b16 %v3241, %v3237
  %v3634 = vpack.c.b16 %v3242, %v3238
  %v3635 = vpack.c.b16 %v3243, %v3239
  %v3636 = vpack.c.b16 %v3248, %v3244
  %v3637 = vpack.c.b16 %v3249, %v3245
  %v3638 = vpack.c.b16 %v3250, %v3246
  %v3639 = vpack.c.b16 %v3251, %v3247
  %v3640 = vpack.c.b16 %v3256, %v3252
  %v3641 = vpack.c.b16 %v3257, %v3253
  %v3642 = vpack.c.b16 %v3258, %v3254
  %v3643 = vpack.c.b16 %v3259, %v3255
  %v3644 = vpack.c.b16 %v3264, %v3260
  %v3645 = vpack.c.b16 %v3265, %v3261
  %v3646 = vpack.c.b16 %v3266, %v3262
  %v3647 = vpack.c.b16 %v3267, %v3263
  %v3648 = vpack.c.b16 %v3272, %v3268
  %v3649 = vpack.c.b16 %v3273, %v3269
  %v3650 = vpack.c.b16 %v3274, %v3270
  %v3651 = vpack.c.b16 %v3275, %v3271
  %v3652 = vpack.c.b16 %v3280, %v3276
  %v3653 = vpack.c.b16 %v3281, %v3277
  %v3654 = vpack.c.b16 %v3282, %v3278
  %v3655 = vpack.c.b16 %v3283, %v3279
  %v3656 = vpack.c.b16 %v3288, %v3284
  %v3657 = vpack.c.b16 %v3289, %v3285
  %v3658 = vpack.c.b16 %v3290, %v3286
  %v3659 = vpack.c.b16 %v3291, %v3287
  %v3660 = vpack.c.b16 %v3296, %v3292
  %v3661 = vpack.c.b16 %v3297, %v3293
  %v3662 = vpack.c.b16 %v3298, %v3294
  %v3663 = vpack.c.b16 %v3299, %v3295
  %v3664 = vpack.c.b16 %v3304, %v3300
  %v3665 = vpack.c.b16 %v3305, %v3301
  %v3666 = vpack.c.b16 %v3306, %v3302
  %v3667 = vpack.c.b16 %v3307, %v3303
  %v3668 = vpack.c.b16 %v3312, %v3308
  %v3669 = vpack.c.b16 %v3313, %v3309
  %v3670 = vpack.c.b16 %v3314, %v3310
  %v3671 = vpack.c.b16 %v3315, %v3311
  %v3672 = vpack.c.b16 %v3320, %v3316
  %v3673 = vpack.c.b16 %v3321, %v3317
  %v3674 = vpack.c.b16 %v3322, %v3318
  %v3675 = vpack.c.b16 %v3323, %v3319
  %v3676 = vpack.c.b16 %v3328, %v3324
  %v3677 = vpack.c.b16 %v3329, %v3325
  %v3678 = vpack.c.b16 %v3330, %v3326
  %v3679 = vpack.c.b16 %v3331, %v3327
  %v3680 = vpack.c.b16 %v3336, %v3332
  %v3681 = vpack.c.b16 %v3337, %v3333
  %v3682 = vpack.c.b16 %v3338, %v3334
  %v3683 = vpack.c.b16 %v3339, %v3335
  %v3684 = vpack.c.b16 %v3344, %v3340
  %v3685 = vpack.c.b16 %v3345, %v3341
  %v3686 = vpack.c.b16 %v3346, %v3342
  %v3687 = vpack.c.b16 %v3347, %v3343
  %v3688 = vpack.c.b16 %v3352, %v3348
  %v3689 = vpack.c.b16 %v3353, %v3349
  %v3690 = vpack.c.b16 %v3354, %v3350
  %v3691 = vpack.c.b16 %v3355, %v3351
  %v3692 = vpack.c.b16 %v3360, %v3356
  %v3693 = vpack.c.b16 %v3361, %v3357
  %v3694 = vpack.c.b16 %v3362, %v3358
  %v3695 = vpack.c.b16 %v3363, %v3359
  %v3696 = vpack.c.b16 %v3368, %v3364
  %v3697 = vpack.c.b16 %v3369, %v3365
  %v3698 = vpack.c.b16 %v3370, %v3366
  %v3699 = vpack.c.b16 %v3371, %v3367
  %v3700 = vpack.c.b16 %v3376, %v3372
  %v3701 = vpack.c.b16 %v3377, %v3373
  %v3702 = vpack.c.b16 %v3378, %v3374
  %v3703 = vpack.c.b16 %v3379, %v3375
  %v3704 = vpack.c.b16 %v3384, %v3380
  %v3705 = vpack.c.b16 %v3385, %v3381
  %v3706 = vpack.c.b16 %v3386, %v3382
  %v3707 = vpack.c.b16 %v3387, %v3383
  %v3708 = vpack.c.b16 %v3392, %v3388
  %v3709 = vpack.c.b16 %v3393, %v3389
  %v3710 = vpack.c.b16 %v3394, %v3390
  %v3711 = vpack.c.b16 %v3395, %v3391
  %v3712 = vpack.c.b16 %v3400, %v3396
  %v3713 = vpack.c.b16 %v3401, %v3397
  %v3714 = vpack.c.b16 %v3402, %v3398
  %v3715 = vpack.c.b16 %v3403, %v3399
  %v3716 = vpack.c.b16 %v3408, %v3404
  %v3717 = vpack.c.b16 %v3409, %v3405
  %v3718 = vpack.c.b16 %v3410, %v3406
  %v3719 = vpack.c.b16 %v3411, %v3407
  %v3720 = vpack.c.b16 %v3416, %v3412
  %v3721 = vpack.c.b16 %v3417, %v3413
  %v3722 = vpack.c.b16 %v3418, %v3414
  %v3723 = vpack.c.b16 %v3419, %v3415
  %v3724 = vpack.c.b16 %v3424, %v3420
  %v3725 = vpack.c.b16 %v3425, %v3421
  %v3726 = vpack.c.b16 %v3426, %v3422
  %v3727 = vpack.c.b16 %v3427, %v3423
  %v3728 = vpack.c.b16 %v3432, %v3428
  %v3729 = vpack.c.b16 %v3433, %v3429
  %v3730 = vpack.c.b16 %v3434, %v3430
  %v3731 = vpack.c.b16 %v3435, %v3431
  %v3732 = vpack.c.b16 %v3436, %v3436
  %v3733 = vpack.c.b16 %v3437, %v3437
  %v3734 = vpack.c.b16 %v3438, %v3438
  %v3735 = vpack.c.b16 %v3439, %v3439
  %v4029 = vsel %vm1840, %v3732, 0
  %v4032 = vsel %vm1840, %v3733, 0
  %v4035 = vsel %vm1840, %v3734, 0
  %v4038 = vsel %vm1840, %v3735, 0
  %4040 = vmatprep.subr.bf16.mxu0 %v3441
  %4041 = vmatpush1.bf16.msra.mxu0 %v3440
  %4042 = vmatprep.subr.bf16.mxu0 %v3445
  %4043 = vmatpush1.bf16.msra.mxu0 %v3444
  %4044 = vmatprep.subr.bf16.mxu0 %v3449
  %4045 = vmatpush1.bf16.msra.mxu0 %v3448
  %4046 = vmatprep.subr.bf16.mxu0 %v3453
  %4047 = vmatpush1.bf16.msra.mxu0 %v3452
  %4048 = vmatprep.subr.bf16.mxu0 %v3457
  %4049 = vmatpush1.bf16.msra.mxu0 %v3456
  %4050 = vmatprep.subr.bf16.mxu0 %v3461
  %4051 = vmatpush1.bf16.msra.mxu0 %v3460
  %4052 = vmatprep.subr.bf16.mxu0 %v3465
  %4053 = vmatpush1.bf16.msra.mxu0 %v3464
  %4054 = vmatprep.subr.bf16.mxu0 %v3469
  %4055 = vmatpush1.bf16.msra.mxu0 %v3468
  %4056 = vmatprep.subr.bf16.mxu0 %v3473
  %4057 = vmatpush1.bf16.msra.mxu0 %v3472
  %4058 = vmatprep.subr.bf16.mxu0 %v3477
  %4059 = vmatpush1.bf16.msra.mxu0 %v3476
  %4060 = vmatprep.subr.bf16.mxu0 %v3481
  %4061 = vmatpush1.bf16.msra.mxu0 %v3480
  %4062 = vmatprep.subr.bf16.mxu0 %v3485
  %4063 = vmatpush1.bf16.msra.mxu0 %v3484
  %4064 = vmatprep.subr.bf16.mxu0 %v3489
  %4065 = vmatpush1.bf16.msra.mxu0 %v3488
  %4066 = vmatprep.subr.bf16.mxu0 %v3493
  %4067 = vmatpush1.bf16.msra.mxu0 %v3492
  %4068 = vmatprep.subr.bf16.mxu0 %v3497
  %4069 = vmatpush1.bf16.msra.mxu0 %v3496
  %4070 = vmatprep.subr.bf16.mxu0 %v3501
  %4071 = vmatpush1.bf16.msra.mxu0 %v3500
  %4072 = vmatprep.mubr.bf16.mxu0 %v348
  %4073 = vmatmul.mubr.bf16.gmra.mrb[0].mxu0 %v347
  %v4074 = vpop.f32.mrb[0].mxu0
  %v4075 = vadd.f32 0.0, %v4074
  %v4076 = vpop.f32.mrb[0].mxu0
  %v4077 = vadd.f32 0.0, %v4076
  %v4078 = vpop.f32.mrb[0].mxu0
  %v4079 = vpop.f32.mrb[0].mxu0
  %4080 = vdwg.mxu0
  %4081 = vmatprep.subr.bf16.mxu0 %v3505
  %4082 = vmatpush1.bf16.msra.mxu0 %v3504
  %4083 = vmatprep.subr.bf16.mxu0 %v3509
  %4084 = vmatpush1.bf16.msra.mxu0 %v3508
  %4085 = vmatprep.subr.bf16.mxu0 %v3513
  %4086 = vmatpush1.bf16.msra.mxu0 %v3512
  %4087 = vmatprep.subr.bf16.mxu0 %v3517
  %4088 = vmatpush1.bf16.msra.mxu0 %v3516
  %4089 = vmatprep.subr.bf16.mxu0 %v3521
  %4090 = vmatpush1.bf16.msra.mxu0 %v3520
  %4091 = vmatprep.subr.bf16.mxu0 %v3525
  %4092 = vmatpush1.bf16.msra.mxu0 %v3524
  %4093 = vmatprep.subr.bf16.mxu0 %v3529
  %4094 = vmatpush1.bf16.msra.mxu0 %v3528
  %4095 = vmatprep.subr.bf16.mxu0 %v3533
  %4096 = vmatpush1.bf16.msra.mxu0 %v3532
  %4097 = vmatprep.subr.bf16.mxu0 %v3537
  %4098 = vmatpush1.bf16.msra.mxu0 %v3536
  %4099 = vmatprep.subr.bf16.mxu0 %v3541
  %4100 = vmatpush1.bf16.msra.mxu0 %v3540
  %4101 = vmatprep.subr.bf16.mxu0 %v3545
  %4102 = vmatpush1.bf16.msra.mxu0 %v3544
  %4103 = vmatprep.subr.bf16.mxu0 %v3549
  %4104 = vmatpush1.bf16.msra.mxu0 %v3548
  %4105 = vmatprep.subr.bf16.mxu0 %v3553
  %4106 = vmatpush1.bf16.msra.mxu0 %v3552
  %4107 = vmatprep.subr.bf16.mxu0 %v3557
  %4108 = vmatpush1.bf16.msra.mxu0 %v3556
  %4109 = vmatprep.subr.bf16.mxu0 %v3561
  %4110 = vmatpush1.bf16.msra.mxu0 %v3560
  %4111 = vmatprep.subr.bf16.mxu0 %v3565
  %4112 = vmatpush1.bf16.msra.mxu0 %v3564
  %4113 = vmatprep.mubr.bf16.mxu0 %v350
  %4114 = vmatmul.mubr.bf16.gmra.mrb[0].mxu0 %v349
  %v4115 = vpop.f32.mrb[0].mxu0
  %v4116 = vadd.f32 %v4075, %v4115
  %v4117 = vpop.f32.mrb[0].mxu0
  %v4118 = vadd.f32 %v4077, %v4117
  %v4119 = vpop.f32.mrb[0].mxu0
  %v4120 = vpop.f32.mrb[0].mxu0
  %4121 = vdwg.mxu0
  %4122 = vmatprep.subr.bf16.mxu0 %v3569
  %4123 = vmatpush1.bf16.msra.mxu0 %v3568
  %4124 = vmatprep.subr.bf16.mxu0 %v3573
  %4125 = vmatpush1.bf16.msra.mxu0 %v3572
  %4126 = vmatprep.subr.bf16.mxu0 %v3577
  %4127 = vmatpush1.bf16.msra.mxu0 %v3576
  %4128 = vmatprep.subr.bf16.mxu0 %v3581
  %4129 = vmatpush1.bf16.msra.mxu0 %v3580
  %4130 = vmatprep.subr.bf16.mxu0 %v3585
  %4131 = vmatpush1.bf16.msra.mxu0 %v3584
  %4132 = vmatprep.subr.bf16.mxu0 %v3589
  %4133 = vmatpush1.bf16.msra.mxu0 %v3588
  %4134 = vmatprep.subr.bf16.mxu0 %v3593
  %4135 = vmatpush1.bf16.msra.mxu0 %v3592
  %4136 = vmatprep.subr.bf16.mxu0 %v3597
  %4137 = vmatpush1.bf16.msra.mxu0 %v3596
  %4138 = vmatprep.subr.bf16.mxu0 %v3601
  %4139 = vmatpush1.bf16.msra.mxu0 %v3600
  %4140 = vmatprep.subr.bf16.mxu0 %v3605
  %4141 = vmatpush1.bf16.msra.mxu0 %v3604
  %4142 = vmatprep.subr.bf16.mxu0 %v3609
  %4143 = vmatpush1.bf16.msra.mxu0 %v3608
  %4144 = vmatprep.subr.bf16.mxu0 %v3613
  %4145 = vmatpush1.bf16.msra.mxu0 %v3612
  %4146 = vmatprep.subr.bf16.mxu0 %v3617
  %4147 = vmatpush1.bf16.msra.mxu0 %v3616
  %4148 = vmatprep.subr.bf16.mxu0 %v3621
  %4149 = vmatpush1.bf16.msra.mxu0 %v3620
  %4150 = vmatprep.subr.bf16.mxu0 %v3625
  %4151 = vmatpush1.bf16.msra.mxu0 %v3624
  %4152 = vmatprep.subr.bf16.mxu0 %v3629
  %4153 = vmatpush1.bf16.msra.mxu0 %v3628
  %4154 = vmatprep.mubr.bf16.mxu0 %v352
  %4155 = vmatmul.mubr.bf16.gmra.mrb[0].mxu0 %v351
  %v4156 = vpop.f32.mrb[0].mxu0
  %v4157 = vadd.f32 %v4116, %v4156
  %v4158 = vpop.f32.mrb[0].mxu0
  %v4159 = vadd.f32 %v4118, %v4158
  %v4160 = vpop.f32.mrb[0].mxu0
  %v4161 = vpop.f32.mrb[0].mxu0
  %4162 = vdwg.mxu0
  %4163 = vmatprep.subr.bf16.mxu0 %v3633
  %4164 = vmatpush1.bf16.msra.mxu0 %v3632
  %4165 = vmatprep.subr.bf16.mxu0 %v3637
  %4166 = vmatpush1.bf16.msra.mxu0 %v3636
  %4167 = vmatprep.subr.bf16.mxu0 %v3641
  %4168 = vmatpush1.bf16.msra.mxu0 %v3640
  %4169 = vmatprep.subr.bf16.mxu0 %v3645
  %4170 = vmatpush1.bf16.msra.mxu0 %v3644
  %4171 = vmatprep.subr.bf16.mxu0 %v3649
  %4172 = vmatpush1.bf16.msra.mxu0 %v3648
  %4173 = vmatprep.subr.bf16.mxu0 %v3653
  %4174 = vmatpush1.bf16.msra.mxu0 %v3652
  %4175 = vmatprep.subr.bf16.mxu0 %v3657
  %4176 = vmatpush1.bf16.msra.mxu0 %v3656
  %4177 = vmatprep.subr.bf16.mxu0 %v3661
  %4178 = vmatpush1.bf16.msra.mxu0 %v3660
  %4179 = vmatprep.subr.bf16.mxu0 %v3665
  %4180 = vmatpush1.bf16.msra.mxu0 %v3664
  %4181 = vmatprep.subr.bf16.mxu0 %v3669
  %4182 = vmatpush1.bf16.msra.mxu0 %v3668
  %4183 = vmatprep.subr.bf16.mxu0 %v3673
  %4184 = vmatpush1.bf16.msra.mxu0 %v3672
  %4185 = vmatprep.subr.bf16.mxu0 %v3677
  %4186 = vmatpush1.bf16.msra.mxu0 %v3676
  %4187 = vmatprep.subr.bf16.mxu0 %v3681
  %4188 = vmatpush1.bf16.msra.mxu0 %v3680
  %4189 = vmatprep.subr.bf16.mxu0 %v3685
  %4190 = vmatpush1.bf16.msra.mxu0 %v3684
  %4191 = vmatprep.subr.bf16.mxu0 %v3689
  %4192 = vmatpush1.bf16.msra.mxu0 %v3688
  %4193 = vmatprep.subr.bf16.mxu0 %v3693
  %4194 = vmatpush1.bf16.msra.mxu0 %v3692
  %4195 = vmatprep.mubr.bf16.mxu0 %v354
  %4196 = vmatmul.mubr.bf16.gmra.mrb[0].mxu0 %v353
  %v4197 = vpop.f32.mrb[0].mxu0
  %v4198 = vadd.f32 %v4157, %v4197
  %v4199 = vpop.f32.mrb[0].mxu0
  %v4200 = vadd.f32 %v4159, %v4199
  %v4201 = vpop.f32.mrb[0].mxu0
  %v4202 = vpop.f32.mrb[0].mxu0
  %4203 = vdwg.mxu0
  %4204 = vmatprep.subr.bf16.mxu0 %v3697
  %4205 = vmatpush1.bf16.msra.mxu0 %v3696
  %4206 = vmatprep.subr.bf16.mxu0 %v3701
  %4207 = vmatpush1.bf16.msra.mxu0 %v3700
  %4208 = vmatprep.subr.bf16.mxu0 %v3705
  %4209 = vmatpush1.bf16.msra.mxu0 %v3704
  %4210 = vmatprep.subr.bf16.mxu0 %v3709
  %4211 = vmatpush1.bf16.msra.mxu0 %v3708
  %4212 = vmatprep.subr.bf16.mxu0 %v3713
  %4213 = vmatpush1.bf16.msra.mxu0 %v3712
  %4214 = vmatprep.subr.bf16.mxu0 %v3717
  %4215 = vmatpush1.bf16.msra.mxu0 %v3716
  %4216 = vmatprep.subr.bf16.mxu0 %v3721
  %4217 = vmatpush1.bf16.msra.mxu0 %v3720
  %4218 = vmatprep.subr.bf16.mxu0 %v3725
  %4219 = vmatpush1.bf16.msra.mxu0 %v3724
  %4220 = vmatprep.subr.bf16.mxu0 %v3729
  %4221 = vmatpush1.bf16.msra.mxu0 %v3728
  %4222 = vmatprep.subr.bf16.mxu0 %v4032
  %4223 = vmatpush1.bf16.msra.mxu0 %v4029
  %4224 = vmatprep.subr.bf16.mxu0 0
  %4225 = vmatpush1.bf16.msra.mxu0 0
  %4226 = vmatprep.subr.bf16.mxu0 0
  %4227 = vmatpush1.bf16.msra.mxu0 0
  %4228 = vmatprep.subr.bf16.mxu0 0
  %4229 = vmatpush1.bf16.msra.mxu0 0
  %4230 = vmatprep.subr.bf16.mxu0 0
  %4231 = vmatpush1.bf16.msra.mxu0 0
  %4232 = vmatprep.subr.bf16.mxu0 0
  %4233 = vmatpush1.bf16.msra.mxu0 0
  %4234 = vmatprep.subr.bf16.mxu0 0
  %4235 = vmatpush1.bf16.msra.mxu0 0
  %4236 = vmatprep.mubr.bf16.mxu0 %v1838
  %4237 = vmatmul.mubr.bf16.gmra.mrb[0].mxu0 %v355
  %v4238 = vpop.f32.mrb[0].mxu0
  %v4239 = vadd.f32 %v4198, %v4238
  %v4240 = vpop.f32.mrb[0].mxu0
  %v4241 = vadd.f32 %v4200, %v4240
  %v4242 = vpop.f32.mrb[0].mxu0
  %v4243 = vpop.f32.mrb[0].mxu0
  %4244 = vdwg.mxu0
  %4245 = vmatprep.subr.bf16.mxu0 %v3443
  %4246 = vmatpush1.bf16.msra.mxu0 %v3442
  %4247 = vmatprep.subr.bf16.mxu0 %v3447
  %4248 = vmatpush1.bf16.msra.mxu0 %v3446
  %4249 = vmatprep.subr.bf16.mxu0 %v3451
  %4250 = vmatpush1.bf16.msra.mxu0 %v3450
  %4251 = vmatprep.subr.bf16.mxu0 %v3455
  %4252 = vmatpush1.bf16.msra.mxu0 %v3454
  %4253 = vmatprep.subr.bf16.mxu0 %v3459
  %4254 = vmatpush1.bf16.msra.mxu0 %v3458
  %4255 = vmatprep.subr.bf16.mxu0 %v3463
  %4256 = vmatpush1.bf16.msra.mxu0 %v3462
  %4257 = vmatprep.subr.bf16.mxu0 %v3467
  %4258 = vmatpush1.bf16.msra.mxu0 %v3466
  %4259 = vmatprep.subr.bf16.mxu0 %v3471
  %4260 = vmatpush1.bf16.msra.mxu0 %v3470
  %4261 = vmatprep.subr.bf16.mxu0 %v3475
  %4262 = vmatpush1.bf16.msra.mxu0 %v3474
  %4263 = vmatprep.subr.bf16.mxu0 %v3479
  %4264 = vmatpush1.bf16.msra.mxu0 %v3478
  %4265 = vmatprep.subr.bf16.mxu0 %v3483
  %4266 = vmatpush1.bf16.msra.mxu0 %v3482
  %4267 = vmatprep.subr.bf16.mxu0 %v3487
  %4268 = vmatpush1.bf16.msra.mxu0 %v3486
  %4269 = vmatprep.subr.bf16.mxu0 %v3491
  %4270 = vmatpush1.bf16.msra.mxu0 %v3490
  %4271 = vmatprep.subr.bf16.mxu0 %v3495
  %4272 = vmatpush1.bf16.msra.mxu0 %v3494
  %4273 = vmatprep.subr.bf16.mxu0 %v3499
  %4274 = vmatpush1.bf16.msra.mxu0 %v3498
  %4275 = vmatprep.subr.bf16.mxu0 %v3503
  %4276 = vmatpush1.bf16.msra.mxu0 %v3502
  %4277 = vmatprep.mubr.bf16.mxu0 %v348
  %4278 = vmatmul.mubr.bf16.gmra.mrb[0].mxu0 %v347
  %v4279 = vpop.f32.mrb[0].mxu0
  %v4280 = vadd.f32 0.0, %v4279
  %v4281 = vpop.f32.mrb[0].mxu0
  %v4282 = vadd.f32 0.0, %v4281
  %v4283 = vpop.f32.mrb[0].mxu0
  %v4284 = vpop.f32.mrb[0].mxu0
  %4285 = vdwg.mxu0
  %4286 = vmatprep.subr.bf16.mxu0 %v3507
  %4287 = vmatpush1.bf16.msra.mxu0 %v3506
  %4288 = vmatprep.subr.bf16.mxu0 %v3511
  %4289 = vmatpush1.bf16.msra.mxu0 %v3510
  %4290 = vmatprep.subr.bf16.mxu0 %v3515
  %4291 = vmatpush1.bf16.msra.mxu0 %v3514
  %4292 = vmatprep.subr.bf16.mxu0 %v3519
  %4293 = vmatpush1.bf16.msra.mxu0 %v3518
  %4294 = vmatprep.subr.bf16.mxu0 %v3523
  %4295 = vmatpush1.bf16.msra.mxu0 %v3522
  %4296 = vmatprep.subr.bf16.mxu0 %v3527
  %4297 = vmatpush1.bf16.msra.mxu0 %v3526
  %4298 = vmatprep.subr.bf16.mxu0 %v3531
  %4299 = vmatpush1.bf16.msra.mxu0 %v3530
  %4300 = vmatprep.subr.bf16.mxu0 %v3535
  %4301 = vmatpush1.bf16.msra.mxu0 %v3534
  %4302 = vmatprep.subr.bf16.mxu0 %v3539
  %4303 = vmatpush1.bf16.msra.mxu0 %v3538
  %4304 = vmatprep.subr.bf16.mxu0 %v3543
  %4305 = vmatpush1.bf16.msra.mxu0 %v3542
  %4306 = vmatprep.subr.bf16.mxu0 %v3547
  %4307 = vmatpush1.bf16.msra.mxu0 %v3546
  %4308 = vmatprep.subr.bf16.mxu0 %v3551
  %4309 = vmatpush1.bf16.msra.mxu0 %v3550
  %4310 = vmatprep.subr.bf16.mxu0 %v3555
  %4311 = vmatpush1.bf16.msra.mxu0 %v3554
  %4312 = vmatprep.subr.bf16.mxu0 %v3559
  %4313 = vmatpush1.bf16.msra.mxu0 %v3558
  %4314 = vmatprep.subr.bf16.mxu0 %v3563
  %4315 = vmatpush1.bf16.msra.mxu0 %v3562
  %4316 = vmatprep.subr.bf16.mxu0 %v3567
  %4317 = vmatpush1.bf16.msra.mxu0 %v3566
  %4318 = vmatprep.mubr.bf16.mxu0 %v350
  %4319 = vmatmul.mubr.bf16.gmra.mrb[0].mxu0 %v349
  %v4320 = vpop.f32.mrb[0].mxu0
  %v4321 = vadd.f32 %v4280, %v4320
  %v4322 = vpop.f32.mrb[0].mxu0
  %v4323 = vadd.f32 %v4282, %v4322
  %v4324 = vpop.f32.mrb[0].mxu0
  %v4325 = vpop.f32.mrb[0].mxu0
  %4326 = vdwg.mxu0
  %4327 = vmatprep.subr.bf16.mxu0 %v3571
  %4328 = vmatpush1.bf16.msra.mxu0 %v3570
  %4329 = vmatprep.subr.bf16.mxu0 %v3575
  %4330 = vmatpush1.bf16.msra.mxu0 %v3574
  %4331 = vmatprep.subr.bf16.mxu0 %v3579
  %4332 = vmatpush1.bf16.msra.mxu0 %v3578
  %4333 = vmatprep.subr.bf16.mxu0 %v3583
  %4334 = vmatpush1.bf16.msra.mxu0 %v3582
  %4335 = vmatprep.subr.bf16.mxu0 %v3587
  %4336 = vmatpush1.bf16.msra.mxu0 %v3586
  %4337 = vmatprep.subr.bf16.mxu0 %v3591
  %4338 = vmatpush1.bf16.msra.mxu0 %v3590
  %4339 = vmatprep.subr.bf16.mxu0 %v3595
  %4340 = vmatpush1.bf16.msra.mxu0 %v3594
  %4341 = vmatprep.subr.bf16.mxu0 %v3599
  %4342 = vmatpush1.bf16.msra.mxu0 %v3598
  %4343 = vmatprep.subr.bf16.mxu0 %v3603
  %4344 = vmatpush1.bf16.msra.mxu0 %v3602
  %4345 = vmatprep.subr.bf16.mxu0 %v3607
  %4346 = vmatpush1.bf16.msra.mxu0 %v3606
  %4347 = vmatprep.subr.bf16.mxu0 %v3611
  %4348 = vmatpush1.bf16.msra.mxu0 %v3610
  %4349 = vmatprep.subr.bf16.mxu0 %v3615
  %4350 = vmatpush1.bf16.msra.mxu0 %v3614
  %4351 = vmatprep.subr.bf16.mxu0 %v3619
  %4352 = vmatpush1.bf16.msra.mxu0 %v3618
  %4353 = vmatprep.subr.bf16.mxu0 %v3623
  %4354 = vmatpush1.bf16.msra.mxu0 %v3622
  %4355 = vmatprep.subr.bf16.mxu0 %v3627
  %4356 = vmatpush1.bf16.msra.mxu0 %v3626
  %4357 = vmatprep.subr.bf16.mxu0 %v3631
  %4358 = vmatpush1.bf16.msra.mxu0 %v3630
  %4359 = vmatprep.mubr.bf16.mxu0 %v352
  %4360 = vmatmul.mubr.bf16.gmra.mrb[0].mxu0 %v351
  %v4361 = vpop.f32.mrb[0].mxu0
  %v4362 = vadd.f32 %v4321, %v4361
  %v4363 = vpop.f32.mrb[0].mxu0
  %v4364 = vadd.f32 %v4323, %v4363
  %v4365 = vpop.f32.mrb[0].mxu0
  %v4366 = vpop.f32.mrb[0].mxu0
  %4367 = vdwg.mxu0
  %4368 = vmatprep.subr.bf16.mxu0 %v3635
  %4369 = vmatpush1.bf16.msra.mxu0 %v3634
  %4370 = vmatprep.subr.bf16.mxu0 %v3639
  %4371 = vmatpush1.bf16.msra.mxu0 %v3638
  %4372 = vmatprep.subr.bf16.mxu0 %v3643
  %4373 = vmatpush1.bf16.msra.mxu0 %v3642
  %4374 = vmatprep.subr.bf16.mxu0 %v3647
  %4375 = vmatpush1.bf16.msra.mxu0 %v3646
  %4376 = vmatprep.subr.bf16.mxu0 %v3651
  %4377 = vmatpush1.bf16.msra.mxu0 %v3650
  %4378 = vmatprep.subr.bf16.mxu0 %v3655
  %4379 = vmatpush1.bf16.msra.mxu0 %v3654
  %4380 = vmatprep.subr.bf16.mxu0 %v3659
  %4381 = vmatpush1.bf16.msra.mxu0 %v3658
  %4382 = vmatprep.subr.bf16.mxu0 %v3663
  %4383 = vmatpush1.bf16.msra.mxu0 %v3662
  %4384 = vmatprep.subr.bf16.mxu0 %v3667
  %4385 = vmatpush1.bf16.msra.mxu0 %v3666
  %4386 = vmatprep.subr.bf16.mxu0 %v3671
  %4387 = vmatpush1.bf16.msra.mxu0 %v3670
  %4388 = vmatprep.subr.bf16.mxu0 %v3675
  %4389 = vmatpush1.bf16.msra.mxu0 %v3674
  %4390 = vmatprep.subr.bf16.mxu0 %v3679
  %4391 = vmatpush1.bf16.msra.mxu0 %v3678
  %4392 = vmatprep.subr.bf16.mxu0 %v3683
  %4393 = vmatpush1.bf16.msra.mxu0 %v3682
  %4394 = vmatprep.subr.bf16.mxu0 %v3687
  %4395 = vmatpush1.bf16.msra.mxu0 %v3686
  %4396 = vmatprep.subr.bf16.mxu0 %v3691
  %4397 = vmatpush1.bf16.msra.mxu0 %v3690
  %4398 = vmatprep.subr.bf16.mxu0 %v3695
  %4399 = vmatpush1.bf16.msra.mxu0 %v3694
  %4400 = vmatprep.mubr.bf16.mxu0 %v354
  %4401 = vmatmul.mubr.bf16.gmra.mrb[0].mxu0 %v353
  %v4402 = vpop.f32.mrb[0].mxu0
  %v4403 = vadd.f32 %v4362, %v4402
  %v4404 = vpop.f32.mrb[0].mxu0
  %v4405 = vadd.f32 %v4364, %v4404
  %v4406 = vpop.f32.mrb[0].mxu0
  %v4407 = vpop.f32.mrb[0].mxu0
  %4408 = vdwg.mxu0
  %4409 = vmatprep.subr.bf16.mxu0 %v3699
  %4410 = vmatpush1.bf16.msra.mxu0 %v3698
  %4411 = vmatprep.subr.bf16.mxu0 %v3703
  %4412 = vmatpush1.bf16.msra.mxu0 %v3702
  %4413 = vmatprep.subr.bf16.mxu0 %v3707
  %4414 = vmatpush1.bf16.msra.mxu0 %v3706
  %4415 = vmatprep.subr.bf16.mxu0 %v3711
  %4416 = vmatpush1.bf16.msra.mxu0 %v3710
  %4417 = vmatprep.subr.bf16.mxu0 %v3715
  %4418 = vmatpush1.bf16.msra.mxu0 %v3714
  %4419 = vmatprep.subr.bf16.mxu0 %v3719
  %4420 = vmatpush1.bf16.msra.mxu0 %v3718
  %4421 = vmatprep.subr.bf16.mxu0 %v3723
  %4422 = vmatpush1.bf16.msra.mxu0 %v3722
  %4423 = vmatprep.subr.bf16.mxu0 %v3727
  %4424 = vmatpush1.bf16.msra.mxu0 %v3726
  %4425 = vmatprep.subr.bf16.mxu0 %v3731
  %4426 = vmatpush1.bf16.msra.mxu0 %v3730
  %4427 = vmatprep.subr.bf16.mxu0 %v4038
  %4428 = vmatpush1.bf16.msra.mxu0 %v4035
  %4429 = vmatprep.subr.bf16.mxu0 0
  %4430 = vmatpush1.bf16.msra.mxu0 0
  %4431 = vmatprep.subr.bf16.mxu0 0
  %4432 = vmatpush1.bf16.msra.mxu0 0
  %4433 = vmatprep.subr.bf16.mxu0 0
  %4434 = vmatpush1.bf16.msra.mxu0 0
  %4435 = vmatprep.subr.bf16.mxu0 0
  %4436 = vmatpush1.bf16.msra.mxu0 0
  %4437 = vmatprep.subr.bf16.mxu0 0
  %4438 = vmatpush1.bf16.msra.mxu0 0
  %4439 = vmatprep.subr.bf16.mxu0 0
  %4440 = vmatpush1.bf16.msra.mxu0 0
  %4441 = vmatprep.mubr.bf16.mxu0 %v1838
  %4442 = vmatmul.mubr.bf16.gmra.mrb[0].mxu0 %v355
  %v4443 = vpop.f32.mrb[0].mxu0
  %v4444 = vadd.f32 %v4403, %v4443
  %v4445 = vpop.f32.mrb[0].mxu0
  %v4446 = vadd.f32 %v4405, %v4445
  %v4447 = vpop.f32.mrb[0].mxu0
  %v4448 = vpop.f32.mrb[0].mxu0
  %4449 = vdwg.mxu0
  %v4450 = vmax.f32 %v2052, %v4239
  %v4451 = vmax.f32 %v2054, %v4241
  %v4452 = vmax.f32 %v2257, %v4444
  %v4453 = vmax.f32 %v2259, %v4446
  %s4454 = scalar_lea.vmem %s1, 4704
  %v4455 = vld [vmem:[%s4454] sm:$0xff]
  %v4456 = vld [vmem:[%s4454 + $0x8] sm:$0xff]
  %v4457 = vld [vmem:[%s4454 + $0x10] sm:$0xff]
  %v4458 = vld [vmem:[%s4454 + $0x18] sm:$0xff]
  %v4459 = vld [vmem:[%s4454 + $0x20] sm:$0xff]
  %v4460 = vld [vmem:[%s4454 + $0x28] sm:$0xff]
  %v4461 = vld [vmem:[%s4454 + $0x30] sm:$0xff]
  %v4462 = vld [vmem:[%s4454 + $0x38] sm:$0xff]
  %v4463 = vld [vmem:[%s4454 + $0x40] sm:$0xff]
  %v4464 = vld [vmem:[%s4454 + $0x48] sm:$0xff]
  %v4465 = vld [vmem:[%s4454 + $0x50] sm:$0xff]
  %v4466 = vld [vmem:[%s4454 + $0x58] sm:$0xff]
  %v4467 = vld [vmem:[%s4454 + $0x60] sm:$0xff]
  %v4468 = vld [vmem:[%s4454 + $0x68] sm:$0xff]
  %v4469 = vld [vmem:[%s4454 + $0x70] sm:$0xff]
  %v4470 = vld [vmem:[%s4454 + $0x78] sm:$0xff]
  %v4471 = vld [vmem:[%s4454 + $0x80] sm:$0xff]
  %v4472 = vld [vmem:[%s4454 + $0x88] sm:$0xff]
  %v4473 = vld [vmem:[%s4454 + $0x90] sm:$0xff]
  %v4474 = vld [vmem:[%s4454 + $0x98] sm:$0xff]
  %v4475 = vld [vmem:[%s4454 + $0xa0] sm:$0xff]
  %v4476 = vld [vmem:[%s4454 + $0xa8] sm:$0xff]
  %v4477 = vld [vmem:[%s4454 + $0xb0] sm:$0xff]
  %v4478 = vld [vmem:[%s4454 + $0xb8] sm:$0xff]
  %v4479 = vld [vmem:[%s4454 + $0xc0] sm:$0xff]
  %v4480 = vld [vmem:[%s4454 + $0xc8] sm:$0xff]
  %v4481 = vld [vmem:[%s4454 + $0xd0] sm:$0xff]
  %v4482 = vld [vmem:[%s4454 + $0xd8] sm:$0xff]
  %v4483 = vld [vmem:[%s4454 + $0xe0] sm:$0xff]
  %v4484 = vld [vmem:[%s4454 + $0xe8] sm:$0xff]
  %v4485 = vld [vmem:[%s4454 + $0xf0] sm:$0xff]
  %v4486 = vld [vmem:[%s4454 + $0xf8] sm:$0xff]
  %v4487 = vld [vmem:[%s4454 + $0x100] sm:$0xff]
  %v4488 = vld [vmem:[%s4454 + $0x108] sm:$0xff]
  %v4489 = vld [vmem:[%s4454 + $0x110] sm:$0xff]
  %v4490 = vld [vmem:[%s4454 + $0x118] sm:$0xff]
  %v4491 = vld [vmem:[%s4454 + $0x120] sm:$0xff]
  %v4492 = vld [vmem:[%s4454 + $0x128] sm:$0xff]
  %v4493 = vld [vmem:[%s4454 + $0x130] sm:$0xff]
  %v4494 = vld [vmem:[%s4454 + $0x138] sm:$0xff]
  %v4495 = vld [vmem:[%s4454 + $0x140] sm:$0xff]
  %v4496 = vld [vmem:[%s4454 + $0x148] sm:$0xff]
  %v4497 = vld [vmem:[%s4454 + $0x150] sm:$0xff]
  %v4498 = vld [vmem:[%s4454 + $0x158] sm:$0xff]
  %v4499 = vld [vmem:[%s4454 + $0x160] sm:$0xff]
  %v4500 = vld [vmem:[%s4454 + $0x168] sm:$0xff]
  %v4501 = vld [vmem:[%s4454 + $0x170] sm:$0xff]
  %v4502 = vld [vmem:[%s4454 + $0x178] sm:$0xff]
  %v4503 = vld [vmem:[%s4454 + $0x180] sm:$0xff]
  %v4504 = vld [vmem:[%s4454 + $0x188] sm:$0xff]
  %v4505 = vld [vmem:[%s4454 + $0x190] sm:$0xff]
  %v4506 = vld [vmem:[%s4454 + $0x198] sm:$0xff]
  %v4507 = vld [vmem:[%s4454 + $0x1a0] sm:$0xff]
  %v4508 = vld [vmem:[%s4454 + $0x1a8] sm:$0xff]
  %v4509 = vld [vmem:[%s4454 + $0x1b0] sm:$0xff]
  %v4510 = vld [vmem:[%s4454 + $0x1b8] sm:$0xff]
  %v4511 = vld [vmem:[%s4454 + $0x1c0] sm:$0xff]
  %v4512 = vld [vmem:[%s4454 + $0x1c8] sm:$0xff]
  %v4513 = vld [vmem:[%s4454 + $0x1d0] sm:$0xff]
  %v4514 = vld [vmem:[%s4454 + $0x1d8] sm:$0xff]
  %v4515 = vld [vmem:[%s4454 + $0x1e0] sm:$0xff]
  %v4516 = vld [vmem:[%s4454 + $0x1e8] sm:$0xff]
  %v4517 = vld [vmem:[%s4454 + $0x1f0] sm:$0xff]
  %v4518 = vld [vmem:[%s4454 + $0x1f8] sm:$0xff]
  %v4519 = vld [vmem:[%s4454 + $0x200] sm:$0xff]
  %v4520 = vld [vmem:[%s4454 + $0x208] sm:$0xff]
  %v4521 = vld [vmem:[%s4454 + $0x210] sm:$0xff]
  %v4522 = vld [vmem:[%s4454 + $0x218] sm:$0xff]
  %v4523 = vld [vmem:[%s4454 + $0x220] sm:$0xff]
  %v4524 = vld [vmem:[%s4454 + $0x228] sm:$0xff]
  %v4525 = vld [vmem:[%s4454 + $0x230] sm:$0xff]
  %v4526 = vld [vmem:[%s4454 + $0x238] sm:$0xff]
  %v4527 = vld [vmem:[%s4454 + $0x240] sm:$0xff]
  %v4528 = vld [vmem:[%s4454 + $0x248] sm:$0xff]
  %v4529 = vld [vmem:[%s4454 + $0x250] sm:$0xff]
  %v4530 = vld [vmem:[%s4454 + $0x258] sm:$0xff]
  %v4531 = vld [vmem:[%s4454 + $0x260] sm:$0xff]
  %v4532 = vld [vmem:[%s4454 + $0x268] sm:$0xff]
  %v4533 = vld [vmem:[%s4454 + $0x270] sm:$0xff]
  %v4534 = vld [vmem:[%s4454 + $0x278] sm:$0xff]
  %v4535 = vld [vmem:[%s4454 + $0x280] sm:$0xff]
  %v4536 = vld [vmem:[%s4454 + $0x288] sm:$0xff]
  %v4537 = vld [vmem:[%s4454 + $0x290] sm:$0xff]
  %v4538 = vld [vmem:[%s4454 + $0x298] sm:$0xff]
  %v4539 = vld [vmem:[%s4454 + $0x2a0] sm:$0xff]
  %v4540 = vld [vmem:[%s4454 + $0x2a8] sm:$0xff]
  %v4541 = vld [vmem:[%s4454 + $0x2b0] sm:$0xff]
  %v4542 = vld [vmem:[%s4454 + $0x2b8] sm:$0xff]
  %v4543 = vld [vmem:[%s4454 + $0x2c0] sm:$0xff]
  %v4544 = vld [vmem:[%s4454 + $0x2c8] sm:$0xff]
  %v4545 = vld [vmem:[%s4454 + $0x2d0] sm:$0xff]
  %v4546 = vld [vmem:[%s4454 + $0x2d8] sm:$0xff]
  %v4547 = vld [vmem:[%s4454 + $0x2e0] sm:$0xff]
  %v4548 = vld [vmem:[%s4454 + $0x2e8] sm:$0xff]
  %v4549 = vld [vmem:[%s4454 + $0x2f0] sm:$0xff]
  %v4550 = vld [vmem:[%s4454 + $0x2f8] sm:$0xff]
  %v4551 = vld [vmem:[%s4454 + $0x300] sm:$0xff]
  %v4552 = vld [vmem:[%s4454 + $0x308] sm:$0xff]
  %v4553 = vld [vmem:[%s4454 + $0x310] sm:$0xff]
  %v4554 = vld [vmem:[%s4454 + $0x318] sm:$0xff]
  %v4555 = vld [vmem:[%s4454 + $0x320] sm:$0xff]
  %v4556 = vld [vmem:[%s4454 + $0x328] sm:$0xff]
  %v4557 = vld [vmem:[%s4454 + $0x330] sm:$0xff]
  %v4558 = vld [vmem:[%s4454 + $0x338] sm:$0xff]
  %v4559 = vld [vmem:[%s4454 + $0x340] sm:$0xff]
  %v4560 = vld [vmem:[%s4454 + $0x348] sm:$0xff]
  %v4561 = vld [vmem:[%s4454 + $0x350] sm:$0xff]
  %v4562 = vld [vmem:[%s4454 + $0x358] sm:$0xff]
  %v4563 = vld [vmem:[%s4454 + $0x360] sm:$0xff]
  %v4564 = vld [vmem:[%s4454 + $0x368] sm:$0xff]
  %v4565 = vld [vmem:[%s4454 + $0x370] sm:$0xff]
  %v4566 = vld [vmem:[%s4454 + $0x378] sm:$0xff]
  %v4567 = vld [vmem:[%s4454 + $0x380] sm:$0xff]
  %v4568 = vld [vmem:[%s4454 + $0x388] sm:$0xff]
  %v4569 = vld [vmem:[%s4454 + $0x390] sm:$0xff]
  %v4570 = vld [vmem:[%s4454 + $0x398] sm:$0xff]
  %v4571 = vld [vmem:[%s4454 + $0x3a0] sm:$0xff]
  %v4572 = vld [vmem:[%s4454 + $0x3a8] sm:$0xff]
  %v4573 = vld [vmem:[%s4454 + $0x3b0] sm:$0xff]
  %v4574 = vld [vmem:[%s4454 + $0x3b8] sm:$0xff]
  %v4575 = vld [vmem:[%s4454 + $0x3c0] sm:$0xff]
  %v4576 = vld [vmem:[%s4454 + $0x3c8] sm:$0xff]
  %v4577 = vld [vmem:[%s4454 + $0x3d0] sm:$0xff]
  %v4578 = vld [vmem:[%s4454 + $0x3d8] sm:$0xff]
  %v4579 = vld [vmem:[%s4454 + $0x3e0] sm:$0xff]
  %v4580 = vld [vmem:[%s4454 + $0x3e8] sm:$0xff]
  %v4581 = vld [vmem:[%s4454 + $0x3f0] sm:$0xff]
  %v4582 = vld [vmem:[%s4454 + $0x3f8] sm:$0xff]
  %v4583 = vld [vmem:[%s4454 + $0x400] sm:$0xff]
  %v4584 = vld [vmem:[%s4454 + $0x408] sm:$0xff]
  %v4585 = vld [vmem:[%s4454 + $0x410] sm:$0xff]
  %v4586 = vld [vmem:[%s4454 + $0x418] sm:$0xff]
  %v4587 = vld [vmem:[%s4454 + $0x420] sm:$0xff]
  %v4588 = vld [vmem:[%s4454 + $0x428] sm:$0xff]
  %v4589 = vld [vmem:[%s4454 + $0x430] sm:$0xff]
  %v4590 = vld [vmem:[%s4454 + $0x438] sm:$0xff]
  %v4591 = vld [vmem:[%s4454 + $0x440] sm:$0xff]
  %v4592 = vld [vmem:[%s4454 + $0x448] sm:$0xff]
  %v4593 = vld [vmem:[%s4454 + $0x450] sm:$0xff]
  %v4594 = vld [vmem:[%s4454 + $0x458] sm:$0xff]
  %v4595 = vld [vmem:[%s4454 + $0x460] sm:$0xff]
  %v4596 = vld [vmem:[%s4454 + $0x468] sm:$0xff]
  %v4597 = vld [vmem:[%s4454 + $0x470] sm:$0xff]
  %v4598 = vld [vmem:[%s4454 + $0x478] sm:$0xff]
  %v4599 = vld [vmem:[%s4454 + $0x480] sm:$0xff]
  %v4600 = vld [vmem:[%s4454 + $0x488] sm:$0xff]
  %v4601 = vld [vmem:[%s4454 + $0x490] sm:$0xff]
  %v4602 = vld [vmem:[%s4454 + $0x498] sm:$0xff]
  %v4603 = vld [vmem:[%s4454 + $0x4a0] sm:$0xff]
  %v4604 = vld [vmem:[%s4454 + $0x4a8] sm:$0xff]
  %v4605 = vld [vmem:[%s4454 + $0x4b0] sm:$0xff]
  %v4606 = vld [vmem:[%s4454 + $0x4b8] sm:$0xff]
  %v4607 = vld [vmem:[%s4454 + $0x4c0] sm:$0xff]
  %v4608 = vld [vmem:[%s4454 + $0x4c8] sm:$0xff]
  %v4609 = vld [vmem:[%s4454 + $0x4d0] sm:$0xff]
  %v4610 = vld [vmem:[%s4454 + $0x4d8] sm:$0xff]
  %v4611 = vld [vmem:[%s4454 + $0x4e0] sm:$0xff]
  %v4612 = vld [vmem:[%s4454 + $0x4e8] sm:$0xff]
  %v4613 = vld [vmem:[%s4454 + $0x4f0] sm:$0xff]
  %v4614 = vld [vmem:[%s4454 + $0x4f8] sm:$0xff]
  %v4615 = vld [vmem:[%s4454 + $0x500] sm:$0xff]
  %v4616 = vld [vmem:[%s4454 + $0x508] sm:$0xff]
  %v4617 = vld [vmem:[%s4454 + $0x510] sm:$0xff]
  %v4618 = vld [vmem:[%s4454 + $0x518] sm:$0xff]
  %v4619 = vld [vmem:[%s4454 + $0x520] sm:$0xff]
  %v4620 = vld [vmem:[%s4454 + $0x528] sm:$0xff]
  %v4621 = vld [vmem:[%s4454 + $0x530] sm:$0xff]
  %v4622 = vld [vmem:[%s4454 + $0x538] sm:$0xff]
  %v4623 = vld [vmem:[%s4454 + $0x540] sm:$0xff]
  %v4624 = vld [vmem:[%s4454 + $0x548] sm:$0xff]
  %v4625 = vld [vmem:[%s4454 + $0x550] sm:$0xff]
  %v4626 = vld [vmem:[%s4454 + $0x558] sm:$0xff]
  %v4627 = vld [vmem:[%s4454 + $0x560] sm:$0xff]
  %v4628 = vld [vmem:[%s4454 + $0x568] sm:$0xff]
  %v4629 = vld [vmem:[%s4454 + $0x570] sm:$0xff]
  %v4630 = vld [vmem:[%s4454 + $0x578] sm:$0xff]
  %v4631 = vld [vmem:[%s4454 + $0x580] sm:$0xff]
  %v4632 = vld [vmem:[%s4454 + $0x588] sm:$0xff]
  %v4633 = vld [vmem:[%s4454 + $0x590] sm:$0xff]
  %v4634 = vld [vmem:[%s4454 + $0x598] sm:$0xff]
  %v4635 = vld [vmem:[%s4454 + $0x5a0] sm:$0xff]
  %v4636 = vld [vmem:[%s4454 + $0x5a8] sm:$0xff]
  %v4637 = vld [vmem:[%s4454 + $0x5b0] sm:$0xff]
  %v4638 = vld [vmem:[%s4454 + $0x5b8] sm:$0xff]
  %v4639 = vld [vmem:[%s4454 + $0x5c0] sm:$0xff]
  %v4640 = vld [vmem:[%s4454 + $0x5c8] sm:$0xff]
  %v4641 = vld [vmem:[%s4454 + $0x5d0] sm:$0xff]
  %v4642 = vld [vmem:[%s4454 + $0x5d8] sm:$0xff]
  %v4643 = vld [vmem:[%s4454 + $0x5e0] sm:$0xff]
  %v4644 = vld [vmem:[%s4454 + $0x5e8] sm:$0xff]
  %v4645 = vld [vmem:[%s4454 + $0x5f0] sm:$0xff]
  %v4646 = vld [vmem:[%s4454 + $0x5f8] sm:$0xff]
  %v4647 = vld [vmem:[%s4454 + $0x600] sm:$0xff]
  %v4648 = vld [vmem:[%s4454 + $0x608] sm:$0xff]
  %v4649 = vld [vmem:[%s4454 + $0x610] sm:$0xff]
  %v4650 = vld [vmem:[%s4454 + $0x618] sm:$0xff]
  %v4651 = vld [vmem:[%s4454 + $0x620] sm:$0xff]
  %v4652 = vld [vmem:[%s4454 + $0x628] sm:$0xff]
  %v4653 = vld [vmem:[%s4454 + $0x630] sm:$0xff]
  %v4654 = vld [vmem:[%s4454 + $0x638] sm:$0xff]
  %v4655 = vld [vmem:[%s4454 + $0x640] sm:$0xff]
  %v4656 = vld [vmem:[%s4454 + $0x648] sm:$0xff]
  %v4657 = vld [vmem:[%s4454 + $0x650] sm:$0xff]
  %v4658 = vld [vmem:[%s4454 + $0x658] sm:$0xff]
  %v4659 = vld [vmem:[%s4454 + $0x660] sm:$0xff]
  %v4660 = vld [vmem:[%s4454 + $0x668] sm:$0xff]
  %v4661 = vld [vmem:[%s4454 + $0x670] sm:$0xff]
  %v4662 = vld [vmem:[%s4454 + $0x678] sm:$0xff]
  %v4663 = vld [vmem:[%s4454 + $0x680] sm:$0xff]
  %v4664 = vld [vmem:[%s4454 + $0x688] sm:$0xff]
  %v4665 = vld [vmem:[%s4454 + $0x690] sm:$0xff]
  %v4666 = vld [vmem:[%s4454 + $0x698] sm:$0xff]
  %v4667 = vld [vmem:[%s4454 + $0x6a0] sm:$0xff]
  %v4668 = vld [vmem:[%s4454 + $0x6a8] sm:$0xff]
  %v4669 = vld [vmem:[%s4454 + $0x6b0] sm:$0xff]
  %v4670 = vld [vmem:[%s4454 + $0x6b8] sm:$0xff]
  %v4671 = vld [vmem:[%s4454 + $0x6c0] sm:$0xff]
  %v4672 = vld [vmem:[%s4454 + $0x6c8] sm:$0xff]
  %v4673 = vld [vmem:[%s4454 + $0x6d0] sm:$0xff]
  %v4674 = vld [vmem:[%s4454 + $0x6d8] sm:$0xff]
  %v4675 = vld [vmem:[%s4454 + $0x6e0] sm:$0xff]
  %v4676 = vld [vmem:[%s4454 + $0x6e8] sm:$0xff]
  %v4677 = vld [vmem:[%s4454 + $0x6f0] sm:$0xff]
  %v4678 = vld [vmem:[%s4454 + $0x6f8] sm:$0xff]
  %v4679 = vld [vmem:[%s4454 + $0x700] sm:$0xff]
  %v4680 = vld [vmem:[%s4454 + $0x708] sm:$0xff]
  %v4681 = vld [vmem:[%s4454 + $0x710] sm:$0xff]
  %v4682 = vld [vmem:[%s4454 + $0x718] sm:$0xff]
  %v4683 = vld [vmem:[%s4454 + $0x720] sm:$0xff]
  %v4684 = vld [vmem:[%s4454 + $0x728] sm:$0xff]
  %v4685 = vld [vmem:[%s4454 + $0x730] sm:$0xff]
  %v4686 = vld [vmem:[%s4454 + $0x738] sm:$0xff]
  %v4687 = vld [vmem:[%s4454 + $0x740] sm:$0xff]
  %v4688 = vld [vmem:[%s4454 + $0x748] sm:$0xff]
  %v4689 = vld [vmem:[%s4454 + $0x750] sm:$0xff]
  %v4690 = vld [vmem:[%s4454 + $0x758] sm:$0xff]
  %v4691 = vld [vmem:[%s4454 + $0x760] sm:$0xff]
  %v4692 = vld [vmem:[%s4454 + $0x768] sm:$0xff]
  %v4693 = vld [vmem:[%s4454 + $0x770] sm:$0xff]
  %v4694 = vld [vmem:[%s4454 + $0x778] sm:$0xff]
  %v4695 = vld [vmem:[%s4454 + $0x780] sm:$0xff]
  %v4696 = vld [vmem:[%s4454 + $0x788] sm:$0xff]
  %v4697 = vld [vmem:[%s4454 + $0x790] sm:$0xff]
  %v4698 = vld [vmem:[%s4454 + $0x798] sm:$0xff]
  %v4699 = vld [vmem:[%s4454 + $0x7a0] sm:$0xff]
  %v4700 = vld [vmem:[%s4454 + $0x7a8] sm:$0xff]
  %v4701 = vld [vmem:[%s4454 + $0x7b0] sm:$0xff]
  %v4702 = vld [vmem:[%s4454 + $0x7b8] sm:$0xff]
  %v4703 = vld [vmem:[%s4454 + $0x7c0] sm:$0xff]
  %v4704 = vld [vmem:[%s4454 + $0x7c8] sm:$0xff]
  %v4705 = vld [vmem:[%s4454 + $0x7d0] sm:$0xff]
  %v4706 = vld [vmem:[%s4454 + $0x7d8] sm:$0xff]
  %v4707 = vld [vmem:[%s4454 + $0x7e0] sm:$0xff]
  %v4708 = vld [vmem:[%s4454 + $0x7e8] sm:$0xff]
  %v4709 = vld [vmem:[%s4454 + $0x7f0] sm:$0xff]
  %v4710 = vld [vmem:[%s4454 + $0x7f8] sm:$0xff]
  %v4711 = vld [vmem:[%s4454 + $0x800] sm:$0xff]
  %v4712 = vld [vmem:[%s4454 + $0x808] sm:$0xff]
  %v4713 = vld [vmem:[%s4454 + $0x810] sm:$0xff]
  %v4714 = vld [vmem:[%s4454 + $0x818] sm:$0xff]
  %v4715 = vld [vmem:[%s4454 + $0x820] sm:$0xff]
  %v4716 = vld [vmem:[%s4454 + $0x828] sm:$0xff]
  %v4717 = vld [vmem:[%s4454 + $0x830] sm:$0xff]
  %v4718 = vld [vmem:[%s4454 + $0x838] sm:$0xff]
  %v4719 = vld [vmem:[%s4454 + $0x840] sm:$0xff]
  %v4720 = vld [vmem:[%s4454 + $0x848] sm:$0xff]
  %v4721 = vld [vmem:[%s4454 + $0x850] sm:$0xff]
  %v4722 = vld [vmem:[%s4454 + $0x858] sm:$0xff]
  %v4723 = vld [vmem:[%s4454 + $0x860] sm:$0xff]
  %v4724 = vld [vmem:[%s4454 + $0x868] sm:$0xff]
  %v4725 = vld [vmem:[%s4454 + $0x870] sm:$0xff]
  %v4726 = vld [vmem:[%s4454 + $0x878] sm:$0xff]
  %v4727 = vld [vmem:[%s4454 + $0x880] sm:$0xff]
  %v4728 = vld [vmem:[%s4454 + $0x888] sm:$0xff]
  %v4729 = vld [vmem:[%s4454 + $0x890] sm:$0xff]
  %v4730 = vld [vmem:[%s4454 + $0x898] sm:$0xff]
  %v4731 = vld [vmem:[%s4454 + $0x8a0] sm:$0xff]
  %v4732 = vld [vmem:[%s4454 + $0x8a8] sm:$0xff]
  %v4733 = vld [vmem:[%s4454 + $0x8b0] sm:$0xff]
  %v4734 = vld [vmem:[%s4454 + $0x8b8] sm:$0xff]
  %v4735 = vld [vmem:[%s4454 + $0x8c0] sm:$0xff]
  %v4736 = vld [vmem:[%s4454 + $0x8c8] sm:$0xff]
  %v4737 = vld [vmem:[%s4454 + $0x8d0] sm:$0xff]
  %v4738 = vld [vmem:[%s4454 + $0x8d8] sm:$0xff]
  %v4739 = vld [vmem:[%s4454 + $0x8e0] sm:$0xff]
  %v4740 = vld [vmem:[%s4454 + $0x8e8] sm:$0xff]
  %v4741 = vld [vmem:[%s4454 + $0x8f0] sm:$0xff]
  %v4742 = vld [vmem:[%s4454 + $0x8f8] sm:$0xff]
  %v4743 = vld [vmem:[%s4454 + $0x900] sm:$0xff]
  %v4744 = vld [vmem:[%s4454 + $0x908] sm:$0xff]
  %v4745 = vld [vmem:[%s4454 + $0x910] sm:$0xff]
  %v4746 = vld [vmem:[%s4454 + $0x918] sm:$0xff]
  %v4747 = vld [vmem:[%s4454 + $0x920] sm:$0xff]
  %v4748 = vld [vmem:[%s4454 + $0x928] sm:$0xff]
  %v5043 = vunpack.c.l.b16 %v4455
  %v5044 = vunpack.c.h.b16 %v4455
  %v5045 = vunpack.c.l.b16 %v4456
  %v5046 = vunpack.c.h.b16 %v4456
  %v5047 = vunpack.c.l.b16 %v4457
  %v5048 = vunpack.c.h.b16 %v4457
  %v5049 = vunpack.c.l.b16 %v4458
  %v5050 = vunpack.c.h.b16 %v4458
  %v5051 = vunpack.c.l.b16 %v4459
  %v5052 = vunpack.c.h.b16 %v4459
  %v5053 = vunpack.c.l.b16 %v4460
  %v5054 = vunpack.c.h.b16 %v4460
  %v5055 = vunpack.c.l.b16 %v4461
  %v5056 = vunpack.c.h.b16 %v4461
  %v5057 = vunpack.c.l.b16 %v4462
  %v5058 = vunpack.c.h.b16 %v4462
  %v5059 = vunpack.c.l.b16 %v4463
  %v5060 = vunpack.c.h.b16 %v4463
  %v5061 = vunpack.c.l.b16 %v4464
  %v5062 = vunpack.c.h.b16 %v4464
  %v5063 = vunpack.c.l.b16 %v4465
  %v5064 = vunpack.c.h.b16 %v4465
  %v5065 = vunpack.c.l.b16 %v4466
  %v5066 = vunpack.c.h.b16 %v4466
  %v5067 = vunpack.c.l.b16 %v4467
  %v5068 = vunpack.c.h.b16 %v4467
  %v5069 = vunpack.c.l.b16 %v4468
  %v5070 = vunpack.c.h.b16 %v4468
  %v5071 = vunpack.c.l.b16 %v4469
  %v5072 = vunpack.c.h.b16 %v4469
  %v5073 = vunpack.c.l.b16 %v4470
  %v5074 = vunpack.c.h.b16 %v4470
  %v5075 = vunpack.c.l.b16 %v4471
  %v5076 = vunpack.c.h.b16 %v4471
  %v5077 = vunpack.c.l.b16 %v4472
  %v5078 = vunpack.c.h.b16 %v4472
  %v5079 = vunpack.c.l.b16 %v4473
  %v5080 = vunpack.c.h.b16 %v4473
  %v5081 = vunpack.c.l.b16 %v4474
  %v5082 = vunpack.c.h.b16 %v4474
  %v5083 = vunpack.c.l.b16 %v4475
  %v5084 = vunpack.c.h.b16 %v4475
  %v5085 = vunpack.c.l.b16 %v4476
  %v5086 = vunpack.c.h.b16 %v4476
  %v5087 = vunpack.c.l.b16 %v4477
  %v5088 = vunpack.c.h.b16 %v4477
  %v5089 = vunpack.c.l.b16 %v4478
  %v5090 = vunpack.c.h.b16 %v4478
  %v5091 = vunpack.c.l.b16 %v4479
  %v5092 = vunpack.c.h.b16 %v4479
  %v5093 = vunpack.c.l.b16 %v4480
  %v5094 = vunpack.c.h.b16 %v4480
  %v5095 = vunpack.c.l.b16 %v4481
  %v5096 = vunpack.c.h.b16 %v4481
  %v5097 = vunpack.c.l.b16 %v4482
  %v5098 = vunpack.c.h.b16 %v4482
  %v5099 = vunpack.c.l.b16 %v4483
  %v5100 = vunpack.c.h.b16 %v4483
  %v5101 = vunpack.c.l.b16 %v4484
  %v5102 = vunpack.c.h.b16 %v4484
  %v5103 = vunpack.c.l.b16 %v4485
  %v5104 = vunpack.c.h.b16 %v4485
  %v5105 = vunpack.c.l.b16 %v4486
  %v5106 = vunpack.c.h.b16 %v4486
  %v5107 = vunpack.c.l.b16 %v4487
  %v5108 = vunpack.c.h.b16 %v4487
  %v5109 = vunpack.c.l.b16 %v4488
  %v5110 = vunpack.c.h.b16 %v4488
  %v5111 = vunpack.c.l.b16 %v4489
  %v5112 = vunpack.c.h.b16 %v4489
  %v5113 = vunpack.c.l.b16 %v4490
  %v5114 = vunpack.c.h.b16 %v4490
  %v5115 = vunpack.c.l.b16 %v4491
  %v5116 = vunpack.c.h.b16 %v4491
  %v5117 = vunpack.c.l.b16 %v4492
  %v5118 = vunpack.c.h.b16 %v4492
  %v5119 = vunpack.c.l.b16 %v4493
  %v5120 = vunpack.c.h.b16 %v4493
  %v5121 = vunpack.c.l.b16 %v4494
  %v5122 = vunpack.c.h.b16 %v4494
  %v5123 = vunpack.c.l.b16 %v4495
  %v5124 = vunpack.c.h.b16 %v4495
  %v5125 = vunpack.c.l.b16 %v4496
  %v5126 = vunpack.c.h.b16 %v4496
  %v5127 = vunpack.c.l.b16 %v4497
  %v5128 = vunpack.c.h.b16 %v4497
  %v5129 = vunpack.c.l.b16 %v4498
  %v5130 = vunpack.c.h.b16 %v4498
  %v5131 = vunpack.c.l.b16 %v4499
  %v5132 = vunpack.c.h.b16 %v4499
  %v5133 = vunpack.c.l.b16 %v4500
  %v5134 = vunpack.c.h.b16 %v4500
  %v5135 = vunpack.c.l.b16 %v4501
  %v5136 = vunpack.c.h.b16 %v4501
  %v5137 = vunpack.c.l.b16 %v4502
  %v5138 = vunpack.c.h.b16 %v4502
  %v5139 = vunpack.c.l.b16 %v4503
  %v5140 = vunpack.c.h.b16 %v4503
  %v5141 = vunpack.c.l.b16 %v4504
  %v5142 = vunpack.c.h.b16 %v4504
  %v5143 = vunpack.c.l.b16 %v4505
  %v5144 = vunpack.c.h.b16 %v4505
  %v5145 = vunpack.c.l.b16 %v4506
  %v5146 = vunpack.c.h.b16 %v4506
  %v5147 = vunpack.c.l.b16 %v4507
  %v5148 = vunpack.c.h.b16 %v4507
  %v5149 = vunpack.c.l.b16 %v4508
  %v5150 = vunpack.c.h.b16 %v4508
  %v5151 = vunpack.c.l.b16 %v4509
  %v5152 = vunpack.c.h.b16 %v4509
  %v5153 = vunpack.c.l.b16 %v4510
  %v5154 = vunpack.c.h.b16 %v4510
  %v5155 = vunpack.c.l.b16 %v4511
  %v5156 = vunpack.c.h.b16 %v4511
  %v5157 = vunpack.c.l.b16 %v4512
  %v5158 = vunpack.c.h.b16 %v4512
  %v5159 = vunpack.c.l.b16 %v4513
  %v5160 = vunpack.c.h.b16 %v4513
  %v5161 = vunpack.c.l.b16 %v4514
  %v5162 = vunpack.c.h.b16 %v4514
  %v5163 = vunpack.c.l.b16 %v4515
  %v5164 = vunpack.c.h.b16 %v4515
  %v5165 = vunpack.c.l.b16 %v4516
  %v5166 = vunpack.c.h.b16 %v4516
  %v5167 = vunpack.c.l.b16 %v4517
  %v5168 = vunpack.c.h.b16 %v4517
  %v5169 = vunpack.c.l.b16 %v4518
  %v5170 = vunpack.c.h.b16 %v4518
  %v5171 = vunpack.c.l.b16 %v4519
  %v5172 = vunpack.c.h.b16 %v4519
  %v5173 = vunpack.c.l.b16 %v4520
  %v5174 = vunpack.c.h.b16 %v4520
  %v5175 = vunpack.c.l.b16 %v4521
  %v5176 = vunpack.c.h.b16 %v4521
  %v5177 = vunpack.c.l.b16 %v4522
  %v5178 = vunpack.c.h.b16 %v4522
  %v5179 = vunpack.c.l.b16 %v4523
  %v5180 = vunpack.c.h.b16 %v4523
  %v5181 = vunpack.c.l.b16 %v4524
  %v5182 = vunpack.c.h.b16 %v4524
  %v5183 = vunpack.c.l.b16 %v4525
  %v5184 = vunpack.c.h.b16 %v4525
  %v5185 = vunpack.c.l.b16 %v4526
  %v5186 = vunpack.c.h.b16 %v4526
  %v5187 = vunpack.c.l.b16 %v4527
  %v5188 = vunpack.c.h.b16 %v4527
  %v5189 = vunpack.c.l.b16 %v4528
  %v5190 = vunpack.c.h.b16 %v4528
  %v5191 = vunpack.c.l.b16 %v4529
  %v5192 = vunpack.c.h.b16 %v4529
  %v5193 = vunpack.c.l.b16 %v4530
  %v5194 = vunpack.c.h.b16 %v4530
  %v5195 = vunpack.c.l.b16 %v4531
  %v5196 = vunpack.c.h.b16 %v4531
  %v5197 = vunpack.c.l.b16 %v4532
  %v5198 = vunpack.c.h.b16 %v4532
  %v5199 = vunpack.c.l.b16 %v4533
  %v5200 = vunpack.c.h.b16 %v4533
  %v5201 = vunpack.c.l.b16 %v4534
  %v5202 = vunpack.c.h.b16 %v4534
  %v5203 = vunpack.c.l.b16 %v4535
  %v5204 = vunpack.c.h.b16 %v4535
  %v5205 = vunpack.c.l.b16 %v4536
  %v5206 = vunpack.c.h.b16 %v4536
  %v5207 = vunpack.c.l.b16 %v4537
  %v5208 = vunpack.c.h.b16 %v4537
  %v5209 = vunpack.c.l.b16 %v4538
  %v5210 = vunpack.c.h.b16 %v4538
  %v5211 = vunpack.c.l.b16 %v4539
  %v5212 = vunpack.c.h.b16 %v4539
  %v5213 = vunpack.c.l.b16 %v4540
  %v5214 = vunpack.c.h.b16 %v4540
  %v5215 = vunpack.c.l.b16 %v4541
  %v5216 = vunpack.c.h.b16 %v4541
  %v5217 = vunpack.c.l.b16 %v4542
  %v5218 = vunpack.c.h.b16 %v4542
  %v5219 = vunpack.c.l.b16 %v4543
  %v5220 = vunpack.c.h.b16 %v4543
  %v5221 = vunpack.c.l.b16 %v4544
  %v5222 = vunpack.c.h.b16 %v4544
  %v5223 = vunpack.c.l.b16 %v4545
  %v5224 = vunpack.c.h.b16 %v4545
  %v5225 = vunpack.c.l.b16 %v4546
  %v5226 = vunpack.c.h.b16 %v4546
  %v5227 = vunpack.c.l.b16 %v4547
  %v5228 = vunpack.c.h.b16 %v4547
  %v5229 = vunpack.c.l.b16 %v4548
  %v5230 = vunpack.c.h.b16 %v4548
  %v5231 = vunpack.c.l.b16 %v4549
  %v5232 = vunpack.c.h.b16 %v4549
  %v5233 = vunpack.c.l.b16 %v4550
  %v5234 = vunpack.c.h.b16 %v4550
  %v5235 = vunpack.c.l.b16 %v4551
  %v5236 = vunpack.c.h.b16 %v4551
  %v5237 = vunpack.c.l.b16 %v4552
  %v5238 = vunpack.c.h.b16 %v4552
  %v5239 = vunpack.c.l.b16 %v4553
  %v5240 = vunpack.c.h.b16 %v4553
  %v5241 = vunpack.c.l.b16 %v4554
  %v5242 = vunpack.c.h.b16 %v4554
  %v5243 = vunpack.c.l.b16 %v4555
  %v5244 = vunpack.c.h.b16 %v4555
  %v5245 = vunpack.c.l.b16 %v4556
  %v5246 = vunpack.c.h.b16 %v4556
  %v5247 = vunpack.c.l.b16 %v4557
  %v5248 = vunpack.c.h.b16 %v4557
  %v5249 = vunpack.c.l.b16 %v4558
  %v5250 = vunpack.c.h.b16 %v4558
  %v5251 = vunpack.c.l.b16 %v4559
  %v5252 = vunpack.c.h.b16 %v4559
  %v5253 = vunpack.c.l.b16 %v4560
  %v5254 = vunpack.c.h.b16 %v4560
  %v5255 = vunpack.c.l.b16 %v4561
  %v5256 = vunpack.c.h.b16 %v4561
  %v5257 = vunpack.c.l.b16 %v4562
  %v5258 = vunpack.c.h.b16 %v4562
  %v5259 = vunpack.c.l.b16 %v4563
  %v5260 = vunpack.c.h.b16 %v4563
  %v5261 = vunpack.c.l.b16 %v4564
  %v5262 = vunpack.c.h.b16 %v4564
  %v5263 = vunpack.c.l.b16 %v4565
  %v5264 = vunpack.c.h.b16 %v4565
  %v5265 = vunpack.c.l.b16 %v4566
  %v5266 = vunpack.c.h.b16 %v4566
  %v5267 = vunpack.c.l.b16 %v4567
  %v5268 = vunpack.c.h.b16 %v4567
  %v5269 = vunpack.c.l.b16 %v4568
  %v5270 = vunpack.c.h.b16 %v4568
  %v5271 = vunpack.c.l.b16 %v4569
  %v5272 = vunpack.c.h.b16 %v4569
  %v5273 = vunpack.c.l.b16 %v4570
  %v5274 = vunpack.c.h.b16 %v4570
  %v5275 = vunpack.c.l.b16 %v4571
  %v5276 = vunpack.c.h.b16 %v4571
  %v5277 = vunpack.c.l.b16 %v4572
  %v5278 = vunpack.c.h.b16 %v4572
  %v5279 = vunpack.c.l.b16 %v4573
  %v5280 = vunpack.c.h.b16 %v4573
  %v5281 = vunpack.c.l.b16 %v4574
  %v5282 = vunpack.c.h.b16 %v4574
  %v5283 = vunpack.c.l.b16 %v4575
  %v5284 = vunpack.c.h.b16 %v4575
  %v5285 = vunpack.c.l.b16 %v4576
  %v5286 = vunpack.c.h.b16 %v4576
  %v5287 = vunpack.c.l.b16 %v4577
  %v5288 = vunpack.c.h.b16 %v4577
  %v5289 = vunpack.c.l.b16 %v4578
  %v5290 = vunpack.c.h.b16 %v4578
  %v5291 = vunpack.c.l.b16 %v4579
  %v5292 = vunpack.c.h.b16 %v4579
  %v5293 = vunpack.c.l.b16 %v4580
  %v5294 = vunpack.c.h.b16 %v4580
  %v5295 = vunpack.c.l.b16 %v4581
  %v5296 = vunpack.c.h.b16 %v4581
  %v5297 = vunpack.c.l.b16 %v4582
  %v5298 = vunpack.c.h.b16 %v4582
  %v5299 = vunpack.c.l.b16 %v4583
  %v5300 = vunpack.c.h.b16 %v4583
  %v5301 = vunpack.c.l.b16 %v4584
  %v5302 = vunpack.c.h.b16 %v4584
  %v5303 = vunpack.c.l.b16 %v4585
  %v5304 = vunpack.c.h.b16 %v4585
  %v5305 = vunpack.c.l.b16 %v4586
  %v5306 = vunpack.c.h.b16 %v4586
  %v5307 = vunpack.c.l.b16 %v4587
  %v5308 = vunpack.c.h.b16 %v4587
  %v5309 = vunpack.c.l.b16 %v4588
  %v5310 = vunpack.c.h.b16 %v4588
  %v5311 = vunpack.c.l.b16 %v4589
  %v5312 = vunpack.c.h.b16 %v4589
  %v5313 = vunpack.c.l.b16 %v4590
  %v5314 = vunpack.c.h.b16 %v4590
  %v5315 = vunpack.c.l.b16 %v4591
  %v5316 = vunpack.c.h.b16 %v4591
  %v5317 = vunpack.c.l.b16 %v4592
  %v5318 = vunpack.c.h.b16 %v4592
  %v5319 = vunpack.c.l.b16 %v4593
  %v5320 = vunpack.c.h.b16 %v4593
  %v5321 = vunpack.c.l.b16 %v4594
  %v5322 = vunpack.c.h.b16 %v4594
  %v5323 = vunpack.c.l.b16 %v4595
  %v5324 = vunpack.c.h.b16 %v4595
  %v5325 = vunpack.c.l.b16 %v4596
  %v5326 = vunpack.c.h.b16 %v4596
  %v5327 = vunpack.c.l.b16 %v4597
  %v5328 = vunpack.c.h.b16 %v4597
  %v5329 = vunpack.c.l.b16 %v4598
  %v5330 = vunpack.c.h.b16 %v4598
  %v5331 = vunpack.c.l.b16 %v4599
  %v5332 = vunpack.c.h.b16 %v4599
  %v5333 = vunpack.c.l.b16 %v4600
  %v5334 = vunpack.c.h.b16 %v4600
  %v5335 = vunpack.c.l.b16 %v4601
  %v5336 = vunpack.c.h.b16 %v4601
  %v5337 = vunpack.c.l.b16 %v4602
  %v5338 = vunpack.c.h.b16 %v4602
  %v5339 = vunpack.c.l.b16 %v4603
  %v5340 = vunpack.c.h.b16 %v4603
  %v5341 = vunpack.c.l.b16 %v4604
  %v5342 = vunpack.c.h.b16 %v4604
  %v5343 = vunpack.c.l.b16 %v4605
  %v5344 = vunpack.c.h.b16 %v4605
  %v5345 = vunpack.c.l.b16 %v4606
  %v5346 = vunpack.c.h.b16 %v4606
  %v5347 = vunpack.c.l.b16 %v4607
  %v5348 = vunpack.c.h.b16 %v4607
  %v5349 = vunpack.c.l.b16 %v4608
  %v5350 = vunpack.c.h.b16 %v4608
  %v5351 = vunpack.c.l.b16 %v4609
  %v5352 = vunpack.c.h.b16 %v4609
  %v5353 = vunpack.c.l.b16 %v4610
  %v5354 = vunpack.c.h.b16 %v4610
  %v5355 = vunpack.c.l.b16 %v4611
  %v5356 = vunpack.c.h.b16 %v4611
  %v5357 = vunpack.c.l.b16 %v4612
  %v5358 = vunpack.c.h.b16 %v4612
  %v5359 = vunpack.c.l.b16 %v4613
  %v5360 = vunpack.c.h.b16 %v4613
  %v5361 = vunpack.c.l.b16 %v4614
  %v5362 = vunpack.c.h.b16 %v4614
  %v5363 = vunpack.c.l.b16 %v4615
  %v5364 = vunpack.c.h.b16 %v4615
  %v5365 = vunpack.c.l.b16 %v4616
  %v5366 = vunpack.c.h.b16 %v4616
  %v5367 = vunpack.c.l.b16 %v4617
  %v5368 = vunpack.c.h.b16 %v4617
  %v5369 = vunpack.c.l.b16 %v4618
  %v5370 = vunpack.c.h.b16 %v4618
  %v5371 = vunpack.c.l.b16 %v4619
  %v5372 = vunpack.c.h.b16 %v4619
  %v5373 = vunpack.c.l.b16 %v4620
  %v5374 = vunpack.c.h.b16 %v4620
  %v5375 = vunpack.c.l.b16 %v4621
  %v5376 = vunpack.c.h.b16 %v4621
  %v5377 = vunpack.c.l.b16 %v4622
  %v5378 = vunpack.c.h.b16 %v4622
  %v5379 = vunpack.c.l.b16 %v4623
  %v5380 = vunpack.c.h.b16 %v4623
  %v5381 = vunpack.c.l.b16 %v4624
  %v5382 = vunpack.c.h.b16 %v4624
  %v5383 = vunpack.c.l.b16 %v4625
  %v5384 = vunpack.c.h.b16 %v4625
  %v5385 = vunpack.c.l.b16 %v4626
  %v5386 = vunpack.c.h.b16 %v4626
  %v5387 = vunpack.c.l.b16 %v4627
  %v5388 = vunpack.c.h.b16 %v4627
  %v5389 = vunpack.c.l.b16 %v4628
  %v5390 = vunpack.c.h.b16 %v4628
  %v5391 = vunpack.c.l.b16 %v4629
  %v5392 = vunpack.c.h.b16 %v4629
  %v5393 = vunpack.c.l.b16 %v4630
  %v5394 = vunpack.c.h.b16 %v4630
  %v5395 = vunpack.c.l.b16 %v4631
  %v5396 = vunpack.c.h.b16 %v4631
  %v5397 = vunpack.c.l.b16 %v4632
  %v5398 = vunpack.c.h.b16 %v4632
  %v5399 = vunpack.c.l.b16 %v4633
  %v5400 = vunpack.c.h.b16 %v4633
  %v5401 = vunpack.c.l.b16 %v4634
  %v5402 = vunpack.c.h.b16 %v4634
  %v5403 = vunpack.c.l.b16 %v4635
  %v5404 = vunpack.c.h.b16 %v4635
  %v5405 = vunpack.c.l.b16 %v4636
  %v5406 = vunpack.c.h.b16 %v4636
  %v5407 = vunpack.c.l.b16 %v4637
  %v5408 = vunpack.c.h.b16 %v4637
  %v5409 = vunpack.c.l.b16 %v4638
  %v5410 = vunpack.c.h.b16 %v4638
  %v5411 = vunpack.c.l.b16 %v4639
  %v5412 = vunpack.c.h.b16 %v4639
  %v5413 = vunpack.c.l.b16 %v4640
  %v5414 = vunpack.c.h.b16 %v4640
  %v5415 = vunpack.c.l.b16 %v4641
  %v5416 = vunpack.c.h.b16 %v4641
  %v5417 = vunpack.c.l.b16 %v4642
  %v5418 = vunpack.c.h.b16 %v4642
  %v5419 = vunpack.c.l.b16 %v4643
  %v5420 = vunpack.c.h.b16 %v4643
  %v5421 = vunpack.c.l.b16 %v4644
  %v5422 = vunpack.c.h.b16 %v4644
  %v5423 = vunpack.c.l.b16 %v4645
  %v5424 = vunpack.c.h.b16 %v4645
  %v5425 = vunpack.c.l.b16 %v4646
  %v5426 = vunpack.c.h.b16 %v4646
  %v5427 = vunpack.c.l.b16 %v4647
  %v5428 = vunpack.c.h.b16 %v4647
  %v5429 = vunpack.c.l.b16 %v4648
  %v5430 = vunpack.c.h.b16 %v4648
  %v5431 = vunpack.c.l.b16 %v4649
  %v5432 = vunpack.c.h.b16 %v4649
  %v5433 = vunpack.c.l.b16 %v4650
  %v5434 = vunpack.c.h.b16 %v4650
  %v5435 = vunpack.c.l.b16 %v4651
  %v5436 = vunpack.c.h.b16 %v4651
  %v5437 = vunpack.c.l.b16 %v4652
  %v5438 = vunpack.c.h.b16 %v4652
  %v5439 = vunpack.c.l.b16 %v4653
  %v5440 = vunpack.c.h.b16 %v4653
  %v5441 = vunpack.c.l.b16 %v4654
  %v5442 = vunpack.c.h.b16 %v4654
  %v5443 = vunpack.c.l.b16 %v4655
  %v5444 = vunpack.c.h.b16 %v4655
  %v5445 = vunpack.c.l.b16 %v4656
  %v5446 = vunpack.c.h.b16 %v4656
  %v5447 = vunpack.c.l.b16 %v4657
  %v5448 = vunpack.c.h.b16 %v4657
  %v5449 = vunpack.c.l.b16 %v4658
  %v5450 = vunpack.c.h.b16 %v4658
  %v5451 = vunpack.c.l.b16 %v4659
  %v5452 = vunpack.c.h.b16 %v4659
  %v5453 = vunpack.c.l.b16 %v4660
  %v5454 = vunpack.c.h.b16 %v4660
  %v5455 = vunpack.c.l.b16 %v4661
  %v5456 = vunpack.c.h.b16 %v4661
  %v5457 = vunpack.c.l.b16 %v4662
  %v5458 = vunpack.c.h.b16 %v4662
  %v5459 = vunpack.c.l.b16 %v4663
  %v5460 = vunpack.c.h.b16 %v4663
  %v5461 = vunpack.c.l.b16 %v4664
  %v5462 = vunpack.c.h.b16 %v4664
  %v5463 = vunpack.c.l.b16 %v4665
  %v5464 = vunpack.c.h.b16 %v4665
  %v5465 = vunpack.c.l.b16 %v4666
  %v5466 = vunpack.c.h.b16 %v4666
  %v5467 = vunpack.c.l.b16 %v4667
  %v5468 = vunpack.c.h.b16 %v4667
  %v5469 = vunpack.c.l.b16 %v4668
  %v5470 = vunpack.c.h.b16 %v4668
  %v5471 = vunpack.c.l.b16 %v4669
  %v5472 = vunpack.c.h.b16 %v4669
  %v5473 = vunpack.c.l.b16 %v4670
  %v5474 = vunpack.c.h.b16 %v4670
  %v5475 = vunpack.c.l.b16 %v4671
  %v5476 = vunpack.c.h.b16 %v4671
  %v5477 = vunpack.c.l.b16 %v4672
  %v5478 = vunpack.c.h.b16 %v4672
  %v5479 = vunpack.c.l.b16 %v4673
  %v5480 = vunpack.c.h.b16 %v4673
  %v5481 = vunpack.c.l.b16 %v4674
  %v5482 = vunpack.c.h.b16 %v4674
  %v5483 = vunpack.c.l.b16 %v4675
  %v5484 = vunpack.c.h.b16 %v4675
  %v5485 = vunpack.c.l.b16 %v4676
  %v5486 = vunpack.c.h.b16 %v4676
  %v5487 = vunpack.c.l.b16 %v4677
  %v5488 = vunpack.c.h.b16 %v4677
  %v5489 = vunpack.c.l.b16 %v4678
  %v5490 = vunpack.c.h.b16 %v4678
  %v5491 = vunpack.c.l.b16 %v4679
  %v5492 = vunpack.c.h.b16 %v4679
  %v5493 = vunpack.c.l.b16 %v4680
  %v5494 = vunpack.c.h.b16 %v4680
  %v5495 = vunpack.c.l.b16 %v4681
  %v5496 = vunpack.c.h.b16 %v4681
  %v5497 = vunpack.c.l.b16 %v4682
  %v5498 = vunpack.c.h.b16 %v4682
  %v5499 = vunpack.c.l.b16 %v4683
  %v5500 = vunpack.c.h.b16 %v4683
  %v5501 = vunpack.c.l.b16 %v4684
  %v5502 = vunpack.c.h.b16 %v4684
  %v5503 = vunpack.c.l.b16 %v4685
  %v5504 = vunpack.c.h.b16 %v4685
  %v5505 = vunpack.c.l.b16 %v4686
  %v5506 = vunpack.c.h.b16 %v4686
  %v5507 = vunpack.c.l.b16 %v4687
  %v5508 = vunpack.c.h.b16 %v4687
  %v5509 = vunpack.c.l.b16 %v4688
  %v5510 = vunpack.c.h.b16 %v4688
  %v5511 = vunpack.c.l.b16 %v4689
  %v5512 = vunpack.c.h.b16 %v4689
  %v5513 = vunpack.c.l.b16 %v4690
  %v5514 = vunpack.c.h.b16 %v4690
  %v5515 = vunpack.c.l.b16 %v4691
  %v5516 = vunpack.c.h.b16 %v4691
  %v5517 = vunpack.c.l.b16 %v4692
  %v5518 = vunpack.c.h.b16 %v4692
  %v5519 = vunpack.c.l.b16 %v4693
  %v5520 = vunpack.c.h.b16 %v4693
  %v5521 = vunpack.c.l.b16 %v4694
  %v5522 = vunpack.c.h.b16 %v4694
  %v5523 = vunpack.c.l.b16 %v4695
  %v5524 = vunpack.c.h.b16 %v4695
  %v5525 = vunpack.c.l.b16 %v4696
  %v5526 = vunpack.c.h.b16 %v4696
  %v5527 = vunpack.c.l.b16 %v4697
  %v5528 = vunpack.c.h.b16 %v4697
  %v5529 = vunpack.c.l.b16 %v4698
  %v5530 = vunpack.c.h.b16 %v4698
  %v5531 = vunpack.c.l.b16 %v4699
  %v5532 = vunpack.c.h.b16 %v4699
  %v5533 = vunpack.c.l.b16 %v4700
  %v5534 = vunpack.c.h.b16 %v4700
  %v5535 = vunpack.c.l.b16 %v4701
  %v5536 = vunpack.c.h.b16 %v4701
  %v5537 = vunpack.c.l.b16 %v4702
  %v5538 = vunpack.c.h.b16 %v4702
  %v5539 = vunpack.c.l.b16 %v4703
  %v5540 = vunpack.c.h.b16 %v4703
  %v5541 = vunpack.c.l.b16 %v4704
  %v5542 = vunpack.c.h.b16 %v4704
  %v5543 = vunpack.c.l.b16 %v4705
  %v5544 = vunpack.c.h.b16 %v4705
  %v5545 = vunpack.c.l.b16 %v4706
  %v5546 = vunpack.c.h.b16 %v4706
  %v5547 = vunpack.c.l.b16 %v4707
  %v5548 = vunpack.c.h.b16 %v4707
  %v5549 = vunpack.c.l.b16 %v4708
  %v5550 = vunpack.c.h.b16 %v4708
  %v5551 = vunpack.c.l.b16 %v4709
  %v5552 = vunpack.c.h.b16 %v4709
  %v5553 = vunpack.c.l.b16 %v4710
  %v5554 = vunpack.c.h.b16 %v4710
  %v5555 = vunpack.c.l.b16 %v4711
  %v5556 = vunpack.c.h.b16 %v4711
  %v5557 = vunpack.c.l.b16 %v4712
  %v5558 = vunpack.c.h.b16 %v4712
  %v5559 = vunpack.c.l.b16 %v4713
  %v5560 = vunpack.c.h.b16 %v4713
  %v5561 = vunpack.c.l.b16 %v4714
  %v5562 = vunpack.c.h.b16 %v4714
  %v5563 = vunpack.c.l.b16 %v4715
  %v5564 = vunpack.c.h.b16 %v4715
  %v5565 = vunpack.c.l.b16 %v4716
  %v5566 = vunpack.c.h.b16 %v4716
  %v5567 = vunpack.c.l.b16 %v4717
  %v5568 = vunpack.c.h.b16 %v4717
  %v5569 = vunpack.c.l.b16 %v4718
  %v5570 = vunpack.c.h.b16 %v4718
  %v5571 = vunpack.c.l.b16 %v4719
  %v5572 = vunpack.c.h.b16 %v4719
  %v5573 = vunpack.c.l.b16 %v4720
  %v5574 = vunpack.c.h.b16 %v4720
  %v5575 = vunpack.c.l.b16 %v4721
  %v5576 = vunpack.c.h.b16 %v4721
  %v5577 = vunpack.c.l.b16 %v4722
  %v5578 = vunpack.c.h.b16 %v4722
  %v5579 = vunpack.c.l.b16 %v4723
  %v5580 = vunpack.c.h.b16 %v4723
  %v5581 = vunpack.c.l.b16 %v4724
  %v5582 = vunpack.c.h.b16 %v4724
  %v5583 = vunpack.c.l.b16 %v4725
  %v5584 = vunpack.c.h.b16 %v4725
  %v5585 = vunpack.c.l.b16 %v4726
  %v5586 = vunpack.c.h.b16 %v4726
  %v5587 = vunpack.c.l.b16 %v4727
  %v5588 = vunpack.c.h.b16 %v4727
  %v5589 = vunpack.c.l.b16 %v4728
  %v5590 = vunpack.c.h.b16 %v4728
  %v5591 = vunpack.c.l.b16 %v4729
  %v5592 = vunpack.c.h.b16 %v4729
  %v5593 = vunpack.c.l.b16 %v4730
  %v5594 = vunpack.c.h.b16 %v4730
  %v5595 = vunpack.c.l.b16 %v4731
  %v5596 = vunpack.c.h.b16 %v4731
  %v5597 = vunpack.c.l.b16 %v4732
  %v5598 = vunpack.c.h.b16 %v4732
  %v5599 = vunpack.c.l.b16 %v4733
  %v5600 = vunpack.c.h.b16 %v4733
  %v5601 = vunpack.c.l.b16 %v4734
  %v5602 = vunpack.c.h.b16 %v4734
  %v5603 = vunpack.c.l.b16 %v4735
  %v5604 = vunpack.c.h.b16 %v4735
  %v5605 = vunpack.c.l.b16 %v4736
  %v5606 = vunpack.c.h.b16 %v4736
  %v5607 = vunpack.c.l.b16 %v4737
  %v5608 = vunpack.c.h.b16 %v4737
  %v5609 = vunpack.c.l.b16 %v4738
  %v5610 = vunpack.c.h.b16 %v4738
  %v5611 = vunpack.c.l.b16 %v4739
  %v5612 = vunpack.c.h.b16 %v4739
  %v5613 = vunpack.c.l.b16 %v4740
  %v5614 = vunpack.c.h.b16 %v4740
  %v5615 = vunpack.c.l.b16 %v4741
  %v5616 = vunpack.c.h.b16 %v4741
  %v5617 = vunpack.c.l.b16 %v4742
  %v5618 = vunpack.c.h.b16 %v4742
  %v5619 = vunpack.c.l.b16 %v4743
  %v5620 = vunpack.c.h.b16 %v4743
  %v5621 = vunpack.c.l.b16 %v4744
  %v5622 = vunpack.c.h.b16 %v4744
  %v5623 = vunpack.c.l.b16 %v4745
  %v5624 = vunpack.c.h.b16 %v4745
  %v5625 = vunpack.c.l.b16 %v4746
  %v5626 = vunpack.c.h.b16 %v4746
  %v5627 = vunpack.c.l.b16 %v4747
  %v5628 = vunpack.c.h.b16 %v4747
  %v5629 = vunpack.c.l.b16 %v4748
  %v5630 = vunpack.c.h.b16 %v4748
  %v5631 = vpack.c.b16 %v5047, %v5043
  %v5632 = vpack.c.b16 %v5048, %v5044
  %v5633 = vpack.c.b16 %v5049, %v5045
  %v5634 = vpack.c.b16 %v5050, %v5046
  %v5635 = vpack.c.b16 %v5055, %v5051
  %v5636 = vpack.c.b16 %v5056, %v5052
  %v5637 = vpack.c.b16 %v5057, %v5053
  %v5638 = vpack.c.b16 %v5058, %v5054
  %v5639 = vpack.c.b16 %v5063, %v5059
  %v5640 = vpack.c.b16 %v5064, %v5060
  %v5641 = vpack.c.b16 %v5065, %v5061
  %v5642 = vpack.c.b16 %v5066, %v5062
  %v5643 = vpack.c.b16 %v5071, %v5067
  %v5644 = vpack.c.b16 %v5072, %v5068
  %v5645 = vpack.c.b16 %v5073, %v5069
  %v5646 = vpack.c.b16 %v5074, %v5070
  %v5647 = vpack.c.b16 %v5079, %v5075
  %v5648 = vpack.c.b16 %v5080, %v5076
  %v5649 = vpack.c.b16 %v5081, %v5077
  %v5650 = vpack.c.b16 %v5082, %v5078
  %v5651 = vpack.c.b16 %v5087, %v5083
  %v5652 = vpack.c.b16 %v5088, %v5084
  %v5653 = vpack.c.b16 %v5089, %v5085
  %v5654 = vpack.c.b16 %v5090, %v5086
  %v5655 = vpack.c.b16 %v5095, %v5091
  %v5656 = vpack.c.b16 %v5096, %v5092
  %v5657 = vpack.c.b16 %v5097, %v5093
  %v5658 = vpack.c.b16 %v5098, %v5094
  %v5659 = vpack.c.b16 %v5103, %v5099
  %v5660 = vpack.c.b16 %v5104, %v5100
  %v5661 = vpack.c.b16 %v5105, %v5101
  %v5662 = vpack.c.b16 %v5106, %v5102
  %v5663 = vpack.c.b16 %v5111, %v5107
  %v5664 = vpack.c.b16 %v5112, %v5108
  %v5665 = vpack.c.b16 %v5113, %v5109
  %v5666 = vpack.c.b16 %v5114, %v5110
  %v5667 = vpack.c.b16 %v5119, %v5115
  %v5668 = vpack.c.b16 %v5120, %v5116
  %v5669 = vpack.c.b16 %v5121, %v5117
  %v5670 = vpack.c.b16 %v5122, %v5118
  %v5671 = vpack.c.b16 %v5127, %v5123
  %v5672 = vpack.c.b16 %v5128, %v5124
  %v5673 = vpack.c.b16 %v5129, %v5125
  %v5674 = vpack.c.b16 %v5130, %v5126
  %v5675 = vpack.c.b16 %v5135, %v5131
  %v5676 = vpack.c.b16 %v5136, %v5132
  %v5677 = vpack.c.b16 %v5137, %v5133
  %v5678 = vpack.c.b16 %v5138, %v5134
  %v5679 = vpack.c.b16 %v5143, %v5139
  %v5680 = vpack.c.b16 %v5144, %v5140
  %v5681 = vpack.c.b16 %v5145, %v5141
  %v5682 = vpack.c.b16 %v5146, %v5142
  %v5683 = vpack.c.b16 %v5151, %v5147
  %v5684 = vpack.c.b16 %v5152, %v5148
  %v5685 = vpack.c.b16 %v5153, %v5149
  %v5686 = vpack.c.b16 %v5154, %v5150
  %v5687 = vpack.c.b16 %v5159, %v5155
  %v5688 = vpack.c.b16 %v5160, %v5156
  %v5689 = vpack.c.b16 %v5161, %v5157
  %v5690 = vpack.c.b16 %v5162, %v5158
  %v5691 = vpack.c.b16 %v5167, %v5163
  %v5692 = vpack.c.b16 %v5168, %v5164
  %v5693 = vpack.c.b16 %v5169, %v5165
  %v5694 = vpack.c.b16 %v5170, %v5166
  %v5695 = vpack.c.b16 %v5175, %v5171
  %v5696 = vpack.c.b16 %v5176, %v5172
  %v5697 = vpack.c.b16 %v5177, %v5173
  %v5698 = vpack.c.b16 %v5178, %v5174
  %v5699 = vpack.c.b16 %v5183, %v5179
  %v5700 = vpack.c.b16 %v5184, %v5180
  %v5701 = vpack.c.b16 %v5185, %v5181
  %v5702 = vpack.c.b16 %v5186, %v5182
  %v5703 = vpack.c.b16 %v5191, %v5187
  %v5704 = vpack.c.b16 %v5192, %v5188
  %v5705 = vpack.c.b16 %v5193, %v5189
  %v5706 = vpack.c.b16 %v5194, %v5190
  %v5707 = vpack.c.b16 %v5199, %v5195
  %v5708 = vpack.c.b16 %v5200, %v5196
  %v5709 = vpack.c.b16 %v5201, %v5197
  %v5710 = vpack.c.b16 %v5202, %v5198
  %v5711 = vpack.c.b16 %v5207, %v5203
  %v5712 = vpack.c.b16 %v5208, %v5204
  %v5713 = vpack.c.b16 %v5209, %v5205
  %v5714 = vpack.c.b16 %v5210, %v5206
  %v5715 = vpack.c.b16 %v5215, %v5211
  %v5716 = vpack.c.b16 %v5216, %v5212
  %v5717 = vpack.c.b16 %v5217, %v5213
  %v5718 = vpack.c.b16 %v5218, %v5214
  %v5719 = vpack.c.b16 %v5223, %v5219
  %v5720 = vpack.c.b16 %v5224, %v5220
  %v5721 = vpack.c.b16 %v5225, %v5221
  %v5722 = vpack.c.b16 %v5226, %v5222
  %v5723 = vpack.c.b16 %v5231, %v5227
  %v5724 = vpack.c.b16 %v5232, %v5228
  %v5725 = vpack.c.b16 %v5233, %v5229
  %v5726 = vpack.c.b16 %v5234, %v5230
  %v5727 = vpack.c.b16 %v5239, %v5235
  %v5728 = vpack.c.b16 %v5240, %v5236
  %v5729 = vpack.c.b16 %v5241, %v5237
  %v5730 = vpack.c.b16 %v5242, %v5238
  %v5731 = vpack.c.b16 %v5247, %v5243
  %v5732 = vpack.c.b16 %v5248, %v5244
  %v5733 = vpack.c.b16 %v5249, %v5245
  %v5734 = vpack.c.b16 %v5250, %v5246
  %v5735 = vpack.c.b16 %v5255, %v5251
  %v5736 = vpack.c.b16 %v5256, %v5252
  %v5737 = vpack.c.b16 %v5257, %v5253
  %v5738 = vpack.c.b16 %v5258, %v5254
  %v5739 = vpack.c.b16 %v5263, %v5259
  %v5740 = vpack.c.b16 %v5264, %v5260
  %v5741 = vpack.c.b16 %v5265, %v5261
  %v5742 = vpack.c.b16 %v5266, %v5262
  %v5743 = vpack.c.b16 %v5271, %v5267
  %v5744 = vpack.c.b16 %v5272, %v5268
  %v5745 = vpack.c.b16 %v5273, %v5269
  %v5746 = vpack.c.b16 %v5274, %v5270
  %v5747 = vpack.c.b16 %v5279, %v5275
  %v5748 = vpack.c.b16 %v5280, %v5276
  %v5749 = vpack.c.b16 %v5281, %v5277
  %v5750 = vpack.c.b16 %v5282, %v5278
  %v5751 = vpack.c.b16 %v5287, %v5283
  %v5752 = vpack.c.b16 %v5288, %v5284
  %v5753 = vpack.c.b16 %v5289, %v5285
  %v5754 = vpack.c.b16 %v5290, %v5286
  %v5755 = vpack.c.b16 %v5295, %v5291
  %v5756 = vpack.c.b16 %v5296, %v5292
  %v5757 = vpack.c.b16 %v5297, %v5293
  %v5758 = vpack.c.b16 %v5298, %v5294
  %v5759 = vpack.c.b16 %v5303, %v5299
  %v5760 = vpack.c.b16 %v5304, %v5300
  %v5761 = vpack.c.b16 %v5305, %v5301
  %v5762 = vpack.c.b16 %v5306, %v5302
  %v5763 = vpack.c.b16 %v5311, %v5307
  %v5764 = vpack.c.b16 %v5312, %v5308
  %v5765 = vpack.c.b16 %v5313, %v5309
  %v5766 = vpack.c.b16 %v5314, %v5310
  %v5767 = vpack.c.b16 %v5319, %v5315
  %v5768 = vpack.c.b16 %v5320, %v5316
  %v5769 = vpack.c.b16 %v5321, %v5317
  %v5770 = vpack.c.b16 %v5322, %v5318
  %v5771 = vpack.c.b16 %v5327, %v5323
  %v5772 = vpack.c.b16 %v5328, %v5324
  %v5773 = vpack.c.b16 %v5329, %v5325
  %v5774 = vpack.c.b16 %v5330, %v5326
  %v5775 = vpack.c.b16 %v5335, %v5331
  %v5776 = vpack.c.b16 %v5336, %v5332
  %v5777 = vpack.c.b16 %v5337, %v5333
  %v5778 = vpack.c.b16 %v5338, %v5334
  %v5779 = vpack.c.b16 %v5343, %v5339
  %v5780 = vpack.c.b16 %v5344, %v5340
  %v5781 = vpack.c.b16 %v5345, %v5341
  %v5782 = vpack.c.b16 %v5346, %v5342
  %v5783 = vpack.c.b16 %v5351, %v5347
  %v5784 = vpack.c.b16 %v5352, %v5348
  %v5785 = vpack.c.b16 %v5353, %v5349
  %v5786 = vpack.c.b16 %v5354, %v5350
  %v5787 = vpack.c.b16 %v5359, %v5355
  %v5788 = vpack.c.b16 %v5360, %v5356
  %v5789 = vpack.c.b16 %v5361, %v5357
  %v5790 = vpack.c.b16 %v5362, %v5358
  %v5791 = vpack.c.b16 %v5367, %v5363
  %v5792 = vpack.c.b16 %v5368, %v5364
  %v5793 = vpack.c.b16 %v5369, %v5365
  %v5794 = vpack.c.b16 %v5370, %v5366
  %v5795 = vpack.c.b16 %v5375, %v5371
  %v5796 = vpack.c.b16 %v5376, %v5372
  %v5797 = vpack.c.b16 %v5377, %v5373
  %v5798 = vpack.c.b16 %v5378, %v5374
  %v5799 = vpack.c.b16 %v5383, %v5379
  %v5800 = vpack.c.b16 %v5384, %v5380
  %v5801 = vpack.c.b16 %v5385, %v5381
  %v5802 = vpack.c.b16 %v5386, %v5382
  %v5803 = vpack.c.b16 %v5391, %v5387
  %v5804 = vpack.c.b16 %v5392, %v5388
  %v5805 = vpack.c.b16 %v5393, %v5389
  %v5806 = vpack.c.b16 %v5394, %v5390
  %v5807 = vpack.c.b16 %v5399, %v5395
  %v5808 = vpack.c.b16 %v5400, %v5396
  %v5809 = vpack.c.b16 %v5401, %v5397
  %v5810 = vpack.c.b16 %v5402, %v5398
  %v5811 = vpack.c.b16 %v5407, %v5403
  %v5812 = vpack.c.b16 %v5408, %v5404
  %v5813 = vpack.c.b16 %v5409, %v5405
  %v5814 = vpack.c.b16 %v5410, %v5406
  %v5815 = vpack.c.b16 %v5415, %v5411
  %v5816 = vpack.c.b16 %v5416, %v5412
  %v5817 = vpack.c.b16 %v5417, %v5413
  %v5818 = vpack.c.b16 %v5418, %v5414
  %v5819 = vpack.c.b16 %v5423, %v5419
  %v5820 = vpack.c.b16 %v5424, %v5420
  %v5821 = vpack.c.b16 %v5425, %v5421
  %v5822 = vpack.c.b16 %v5426, %v5422
  %v5823 = vpack.c.b16 %v5431, %v5427
  %v5824 = vpack.c.b16 %v5432, %v5428
  %v5825 = vpack.c.b16 %v5433, %v5429
  %v5826 = vpack.c.b16 %v5434, %v5430
  %v5827 = vpack.c.b16 %v5439, %v5435
  %v5828 = vpack.c.b16 %v5440, %v5436
  %v5829 = vpack.c.b16 %v5441, %v5437
  %v5830 = vpack.c.b16 %v5442, %v5438
  %v5831 = vpack.c.b16 %v5447, %v5443
  %v5832 = vpack.c.b16 %v5448, %v5444
  %v5833 = vpack.c.b16 %v5449, %v5445
  %v5834 = vpack.c.b16 %v5450, %v5446
  %v5835 = vpack.c.b16 %v5455, %v5451
  %v5836 = vpack.c.b16 %v5456, %v5452
  %v5837 = vpack.c.b16 %v5457, %v5453
  %v5838 = vpack.c.b16 %v5458, %v5454
  %v5839 = vpack.c.b16 %v5463, %v5459
  %v5840 = vpack.c.b16 %v5464, %v5460
  %v5841 = vpack.c.b16 %v5465, %v5461
  %v5842 = vpack.c.b16 %v5466, %v5462
  %v5843 = vpack.c.b16 %v5471, %v5467
  %v5844 = vpack.c.b16 %v5472, %v5468
  %v5845 = vpack.c.b16 %v5473, %v5469
  %v5846 = vpack.c.b16 %v5474, %v5470
  %v5847 = vpack.c.b16 %v5479, %v5475
  %v5848 = vpack.c.b16 %v5480, %v5476
  %v5849 = vpack.c.b16 %v5481, %v5477
  %v5850 = vpack.c.b16 %v5482, %v5478
  %v5851 = vpack.c.b16 %v5487, %v5483
  %v5852 = vpack.c.b16 %v5488, %v5484
  %v5853 = vpack.c.b16 %v5489, %v5485
  %v5854 = vpack.c.b16 %v5490, %v5486
  %v5855 = vpack.c.b16 %v5495, %v5491
  %v5856 = vpack.c.b16 %v5496, %v5492
  %v5857 = vpack.c.b16 %v5497, %v5493
  %v5858 = vpack.c.b16 %v5498, %v5494
  %v5859 = vpack.c.b16 %v5503, %v5499
  %v5860 = vpack.c.b16 %v5504, %v5500
  %v5861 = vpack.c.b16 %v5505, %v5501
  %v5862 = vpack.c.b16 %v5506, %v5502
  %v5863 = vpack.c.b16 %v5511, %v5507
  %v5864 = vpack.c.b16 %v5512, %v5508
  %v5865 = vpack.c.b16 %v5513, %v5509
  %v5866 = vpack.c.b16 %v5514, %v5510
  %v5867 = vpack.c.b16 %v5519, %v5515
  %v5868 = vpack.c.b16 %v5520, %v5516
  %v5869 = vpack.c.b16 %v5521, %v5517
  %v5870 = vpack.c.b16 %v5522, %v5518
  %v5871 = vpack.c.b16 %v5527, %v5523
  %v5872 = vpack.c.b16 %v5528, %v5524
  %v5873 = vpack.c.b16 %v5529, %v5525
  %v5874 = vpack.c.b16 %v5530, %v5526
  %v5875 = vpack.c.b16 %v5535, %v5531
  %v5876 = vpack.c.b16 %v5536, %v5532
  %v5877 = vpack.c.b16 %v5537, %v5533
  %v5878 = vpack.c.b16 %v5538, %v5534
  %v5879 = vpack.c.b16 %v5543, %v5539
  %v5880 = vpack.c.b16 %v5544, %v5540
  %v5881 = vpack.c.b16 %v5545, %v5541
  %v5882 = vpack.c.b16 %v5546, %v5542
  %v5883 = vpack.c.b16 %v5551, %v5547
  %v5884 = vpack.c.b16 %v5552, %v5548
  %v5885 = vpack.c.b16 %v5553, %v5549
  %v5886 = vpack.c.b16 %v5554, %v5550
  %v5887 = vpack.c.b16 %v5559, %v5555
  %v5888 = vpack.c.b16 %v5560, %v5556
  %v5889 = vpack.c.b16 %v5561, %v5557
  %v5890 = vpack.c.b16 %v5562, %v5558
  %v5891 = vpack.c.b16 %v5567, %v5563
  %v5892 = vpack.c.b16 %v5568, %v5564
  %v5893 = vpack.c.b16 %v5569, %v5565
  %v5894 = vpack.c.b16 %v5570, %v5566
  %v5895 = vpack.c.b16 %v5575, %v5571
  %v5896 = vpack.c.b16 %v5576, %v5572
  %v5897 = vpack.c.b16 %v5577, %v5573
  %v5898 = vpack.c.b16 %v5578, %v5574
  %v5899 = vpack.c.b16 %v5583, %v5579
  %v5900 = vpack.c.b16 %v5584, %v5580
  %v5901 = vpack.c.b16 %v5585, %v5581
  %v5902 = vpack.c.b16 %v5586, %v5582
  %v5903 = vpack.c.b16 %v5591, %v5587
  %v5904 = vpack.c.b16 %v5592, %v5588
  %v5905 = vpack.c.b16 %v5593, %v5589
  %v5906 = vpack.c.b16 %v5594, %v5590
  %v5907 = vpack.c.b16 %v5599, %v5595
  %v5908 = vpack.c.b16 %v5600, %v5596
  %v5909 = vpack.c.b16 %v5601, %v5597
  %v5910 = vpack.c.b16 %v5602, %v5598
  %v5911 = vpack.c.b16 %v5607, %v5603
  %v5912 = vpack.c.b16 %v5608, %v5604
  %v5913 = vpack.c.b16 %v5609, %v5605
  %v5914 = vpack.c.b16 %v5610, %v5606
  %v5915 = vpack.c.b16 %v5615, %v5611
  %v5916 = vpack.c.b16 %v5616, %v5612
  %v5917 = vpack.c.b16 %v5617, %v5613
  %v5918 = vpack.c.b16 %v5618, %v5614
  %v5919 = vpack.c.b16 %v5623, %v5619
  %v5920 = vpack.c.b16 %v5624, %v5620
  %v5921 = vpack.c.b16 %v5625, %v5621
  %v5922 = vpack.c.b16 %v5626, %v5622
  %v5923 = vpack.c.b16 %v5627, %v5627
  %v5924 = vpack.c.b16 %v5628, %v5628
  %v5925 = vpack.c.b16 %v5629, %v5629
  %v5926 = vpack.c.b16 %v5630, %v5630
  %v6220 = vsel %vm1840, %v5923, 0
  %v6223 = vsel %vm1840, %v5924, 0
  %v6226 = vsel %vm1840, %v5925, 0
  %v6229 = vsel %vm1840, %v5926, 0
  %6231 = vmatprep.subr.bf16.mxu0 %v5632
  %6232 = vmatpush1.bf16.msra.mxu0 %v5631
  %6233 = vmatprep.subr.bf16.mxu0 %v5636
  %6234 = vmatpush1.bf16.msra.mxu0 %v5635
  %6235 = vmatprep.subr.bf16.mxu0 %v5640
  %6236 = vmatpush1.bf16.msra.mxu0 %v5639
  %6237 = vmatprep.subr.bf16.mxu0 %v5644
  %6238 = vmatpush1.bf16.msra.mxu0 %v5643
  %6239 = vmatprep.subr.bf16.mxu0 %v5648
  %6240 = vmatpush1.bf16.msra.mxu0 %v5647
  %6241 = vmatprep.subr.bf16.mxu0 %v5652
  %6242 = vmatpush1.bf16.msra.mxu0 %v5651
  %6243 = vmatprep.subr.bf16.mxu0 %v5656
  %6244 = vmatpush1.bf16.msra.mxu0 %v5655
  %6245 = vmatprep.subr.bf16.mxu0 %v5660
  %6246 = vmatpush1.bf16.msra.mxu0 %v5659
  %6247 = vmatprep.subr.bf16.mxu0 %v5664
  %6248 = vmatpush1.bf16.msra.mxu0 %v5663
  %6249 = vmatprep.subr.bf16.mxu0 %v5668
  %6250 = vmatpush1.bf16.msra.mxu0 %v5667
  %6251 = vmatprep.subr.bf16.mxu0 %v5672
  %6252 = vmatpush1.bf16.msra.mxu0 %v5671
  %6253 = vmatprep.subr.bf16.mxu0 %v5676
  %6254 = vmatpush1.bf16.msra.mxu0 %v5675
  %6255 = vmatprep.subr.bf16.mxu0 %v5680
  %6256 = vmatpush1.bf16.msra.mxu0 %v5679
  %6257 = vmatprep.subr.bf16.mxu0 %v5684
  %6258 = vmatpush1.bf16.msra.mxu0 %v5683
  %6259 = vmatprep.subr.bf16.mxu0 %v5688
  %6260 = vmatpush1.bf16.msra.mxu0 %v5687
  %6261 = vmatprep.subr.bf16.mxu0 %v5692
  %6262 = vmatpush1.bf16.msra.mxu0 %v5691
  %6263 = vmatprep.mubr.bf16.mxu0 %v348
  %6264 = vmatmul.mubr.bf16.gmra.mrb[0].mxu0 %v347
  %v6265 = vpop.f32.mrb[0].mxu0
  %v6266 = vadd.f32 0.0, %v6265
  %v6267 = vpop.f32.mrb[0].mxu0
  %v6268 = vadd.f32 0.0, %v6267
  %v6269 = vpop.f32.mrb[0].mxu0
  %v6270 = vpop.f32.mrb[0].mxu0
  %6271 = vdwg.mxu0
  %6272 = vmatprep.subr.bf16.mxu0 %v5696
  %6273 = vmatpush1.bf16.msra.mxu0 %v5695
  %6274 = vmatprep.subr.bf16.mxu0 %v5700
  %6275 = vmatpush1.bf16.msra.mxu0 %v5699
  %6276 = vmatprep.subr.bf16.mxu0 %v5704
  %6277 = vmatpush1.bf16.msra.mxu0 %v5703
  %6278 = vmatprep.subr.bf16.mxu0 %v5708
  %6279 = vmatpush1.bf16.msra.mxu0 %v5707
  %6280 = vmatprep.subr.bf16.mxu0 %v5712
  %6281 = vmatpush1.bf16.msra.mxu0 %v5711
  %6282 = vmatprep.subr.bf16.mxu0 %v5716
  %6283 = vmatpush1.bf16.msra.mxu0 %v5715
  %6284 = vmatprep.subr.bf16.mxu0 %v5720
  %6285 = vmatpush1.bf16.msra.mxu0 %v5719
  %6286 = vmatprep.subr.bf16.mxu0 %v5724
  %6287 = vmatpush1.bf16.msra.mxu0 %v5723
  %6288 = vmatprep.subr.bf16.mxu0 %v5728
  %6289 = vmatpush1.bf16.msra.mxu0 %v5727
  %6290 = vmatprep.subr.bf16.mxu0 %v5732
  %6291 = vmatpush1.bf16.msra.mxu0 %v5731
  %6292 = vmatprep.subr.bf16.mxu0 %v5736
  %6293 = vmatpush1.bf16.msra.mxu0 %v5735
  %6294 = vmatprep.subr.bf16.mxu0 %v5740
  %6295 = vmatpush1.bf16.msra.mxu0 %v5739
  %6296 = vmatprep.subr.bf16.mxu0 %v5744
  %6297 = vmatpush1.bf16.msra.mxu0 %v5743
  %6298 = vmatprep.subr.bf16.mxu0 %v5748
  %6299 = vmatpush1.bf16.msra.mxu0 %v5747
  %6300 = vmatprep.subr.bf16.mxu0 %v5752
  %6301 = vmatpush1.bf16.msra.mxu0 %v5751
  %6302 = vmatprep.subr.bf16.mxu0 %v5756
  %6303 = vmatpush1.bf16.msra.mxu0 %v5755
  %6304 = vmatprep.mubr.bf16.mxu0 %v350
  %6305 = vmatmul.mubr.bf16.gmra.mrb[0].mxu0 %v349
  %v6306 = vpop.f32.mrb[0].mxu0
  %v6307 = vadd.f32 %v6266, %v6306
  %v6308 = vpop.f32.mrb[0].mxu0
  %v6309 = vadd.f32 %v6268, %v6308
  %v6310 = vpop.f32.mrb[0].mxu0
  %v6311 = vpop.f32.mrb[0].mxu0
  %6312 = vdwg.mxu0
  %6313 = vmatprep.subr.bf16.mxu0 %v5760
  %6314 = vmatpush1.bf16.msra.mxu0 %v5759
  %6315 = vmatprep.subr.bf16.mxu0 %v5764
  %6316 = vmatpush1.bf16.msra.mxu0 %v5763
  %6317 = vmatprep.subr.bf16.mxu0 %v5768
  %6318 = vmatpush1.bf16.msra.mxu0 %v5767
  %6319 = vmatprep.subr.bf16.mxu0 %v5772
  %6320 = vmatpush1.bf16.msra.mxu0 %v5771
  %6321 = vmatprep.subr.bf16.mxu0 %v5776
  %6322 = vmatpush1.bf16.msra.mxu0 %v5775
  %6323 = vmatprep.subr.bf16.mxu0 %v5780
  %6324 = vmatpush1.bf16.msra.mxu0 %v5779
  %6325 = vmatprep.subr.bf16.mxu0 %v5784
  %6326 = vmatpush1.bf16.msra.mxu0 %v5783
  %6327 = vmatprep.subr.bf16.mxu0 %v5788
  %6328 = vmatpush1.bf16.msra.mxu0 %v5787
  %6329 = vmatprep.subr.bf16.mxu0 %v5792
  %6330 = vmatpush1.bf16.msra.mxu0 %v5791
  %6331 = vmatprep.subr.bf16.mxu0 %v5796
  %6332 = vmatpush1.bf16.msra.mxu0 %v5795
  %6333 = vmatprep.subr.bf16.mxu0 %v5800
  %6334 = vmatpush1.bf16.msra.mxu0 %v5799
  %6335 = vmatprep.subr.bf16.mxu0 %v5804
  %6336 = vmatpush1.bf16.msra.mxu0 %v5803
  %6337 = vmatprep.subr.bf16.mxu0 %v5808
  %6338 = vmatpush1.bf16.msra.mxu0 %v5807
  %6339 = vmatprep.subr.bf16.mxu0 %v5812
  %6340 = vmatpush1.bf16.msra.mxu0 %v5811
  %6341 = vmatprep.subr.bf16.mxu0 %v5816
  %6342 = vmatpush1.bf16.msra.mxu0 %v5815
  %6343 = vmatprep.subr.bf16.mxu0 %v5820
  %6344 = vmatpush1.bf16.msra.mxu0 %v5819
  %6345 = vmatprep.mubr.bf16.mxu0 %v352
  %6346 = vmatmul.mubr.bf16.gmra.mrb[0].mxu0 %v351
  %v6347 = vpop.f32.mrb[0].mxu0
  %v6348 = vadd.f32 %v6307, %v6347
  %v6349 = vpop.f32.mrb[0].mxu0
  %v6350 = vadd.f32 %v6309, %v6349
  %v6351 = vpop.f32.mrb[0].mxu0
  %v6352 = vpop.f32.mrb[0].mxu0
  %6353 = vdwg.mxu0
  %6354 = vmatprep.subr.bf16.mxu0 %v5824
  %6355 = vmatpush1.bf16.msra.mxu0 %v5823
  %6356 = vmatprep.subr.bf16.mxu0 %v5828
  %6357 = vmatpush1.bf16.msra.mxu0 %v5827
  %6358 = vmatprep.subr.bf16.mxu0 %v5832
  %6359 = vmatpush1.bf16.msra.mxu0 %v5831
  %6360 = vmatprep.subr.bf16.mxu0 %v5836
  %6361 = vmatpush1.bf16.msra.mxu0 %v5835
  %6362 = vmatprep.subr.bf16.mxu0 %v5840
  %6363 = vmatpush1.bf16.msra.mxu0 %v5839
  %6364 = vmatprep.subr.bf16.mxu0 %v5844
  %6365 = vmatpush1.bf16.msra.mxu0 %v5843
  %6366 = vmatprep.subr.bf16.mxu0 %v5848
  %6367 = vmatpush1.bf16.msra.mxu0 %v5847
  %6368 = vmatprep.subr.bf16.mxu0 %v5852
  %6369 = vmatpush1.bf16.msra.mxu0 %v5851
  %6370 = vmatprep.subr.bf16.mxu0 %v5856
  %6371 = vmatpush1.bf16.msra.mxu0 %v5855
  %6372 = vmatprep.subr.bf16.mxu0 %v5860
  %6373 = vmatpush1.bf16.msra.mxu0 %v5859
  %6374 = vmatprep.subr.bf16.mxu0 %v5864
  %6375 = vmatpush1.bf16.msra.mxu0 %v5863
  %6376 = vmatprep.subr.bf16.mxu0 %v5868
  %6377 = vmatpush1.bf16.msra.mxu0 %v5867
  %6378 = vmatprep.subr.bf16.mxu0 %v5872
  %6379 = vmatpush1.bf16.msra.mxu0 %v5871
  %6380 = vmatprep.subr.bf16.mxu0 %v5876
  %6381 = vmatpush1.bf16.msra.mxu0 %v5875
  %6382 = vmatprep.subr.bf16.mxu0 %v5880
  %6383 = vmatpush1.bf16.msra.mxu0 %v5879
  %6384 = vmatprep.subr.bf16.mxu0 %v5884
  %6385 = vmatpush1.bf16.msra.mxu0 %v5883
  %6386 = vmatprep.mubr.bf16.mxu0 %v354
  %6387 = vmatmul.mubr.bf16.gmra.mrb[0].mxu0 %v353
  %v6388 = vpop.f32.mrb[0].mxu0
  %v6389 = vadd.f32 %v6348, %v6388
  %v6390 = vpop.f32.mrb[0].mxu0
  %v6391 = vadd.f32 %v6350, %v6390
  %v6392 = vpop.f32.mrb[0].mxu0
  %v6393 = vpop.f32.mrb[0].mxu0
  %6394 = vdwg.mxu0
  %6395 = vmatprep.subr.bf16.mxu0 %v5888
  %6396 = vmatpush1.bf16.msra.mxu0 %v5887
  %6397 = vmatprep.subr.bf16.mxu0 %v5892
  %6398 = vmatpush1.bf16.msra.mxu0 %v5891
  %6399 = vmatprep.subr.bf16.mxu0 %v5896
  %6400 = vmatpush1.bf16.msra.mxu0 %v5895
  %6401 = vmatprep.subr.bf16.mxu0 %v5900
  %6402 = vmatpush1.bf16.msra.mxu0 %v5899
  %6403 = vmatprep.subr.bf16.mxu0 %v5904
  %6404 = vmatpush1.bf16.msra.mxu0 %v5903
  %6405 = vmatprep.subr.bf16.mxu0 %v5908
  %6406 = vmatpush1.bf16.msra.mxu0 %v5907
  %6407 = vmatprep.subr.bf16.mxu0 %v5912
  %6408 = vmatpush1.bf16.msra.mxu0 %v5911
  %6409 = vmatprep.subr.bf16.mxu0 %v5916
  %6410 = vmatpush1.bf16.msra.mxu0 %v5915
  %6411 = vmatprep.subr.bf16.mxu0 %v5920
  %6412 = vmatpush1.bf16.msra.mxu0 %v5919
  %6413 = vmatprep.subr.bf16.mxu0 %v6223
  %6414 = vmatpush1.bf16.msra.mxu0 %v6220
  %6415 = vmatprep.subr.bf16.mxu0 0
  %6416 = vmatpush1.bf16.msra.mxu0 0
  %6417 = vmatprep.subr.bf16.mxu0 0
  %6418 = vmatpush1.bf16.msra.mxu0 0
  %6419 = vmatprep.subr.bf16.mxu0 0
  %6420 = vmatpush1.bf16.msra.mxu0 0
  %6421 = vmatprep.subr.bf16.mxu0 0
  %6422 = vmatpush1.bf16.msra.mxu0 0
  %6423 = vmatprep.subr.bf16.mxu0 0
  %6424 = vmatpush1.bf16.msra.mxu0 0
  %6425 = vmatprep.subr.bf16.mxu0 0
  %6426 = vmatpush1.bf16.msra.mxu0 0
  %6427 = vmatprep.mubr.bf16.mxu0 %v1838
  %6428 = vmatmul.mubr.bf16.gmra.mrb[0].mxu0 %v355
  %v6429 = vpop.f32.mrb[0].mxu0
  %v6430 = vadd.f32 %v6389, %v6429
  %v6431 = vpop.f32.mrb[0].mxu0
  %v6432 = vadd.f32 %v6391, %v6431
  %v6433 = vpop.f32.mrb[0].mxu0
  %v6434 = vpop.f32.mrb[0].mxu0
  %6435 = vdwg.mxu0
  %6436 = vmatprep.subr.bf16.mxu0 %v5634
  %6437 = vmatpush1.bf16.msra.mxu0 %v5633
  %6438 = vmatprep.subr.bf16.mxu0 %v5638
  %6439 = vmatpush1.bf16.msra.mxu0 %v5637
  %6440 = vmatprep.subr.bf16.mxu0 %v5642
  %6441 = vmatpush1.bf16.msra.mxu0 %v5641
  %6442 = vmatprep.subr.bf16.mxu0 %v5646
  %6443 = vmatpush1.bf16.msra.mxu0 %v5645
  %6444 = vmatprep.subr.bf16.mxu0 %v5650
  %6445 = vmatpush1.bf16.msra.mxu0 %v5649
  %6446 = vmatprep.subr.bf16.mxu0 %v5654
  %6447 = vmatpush1.bf16.msra.mxu0 %v5653
  %6448 = vmatprep.subr.bf16.mxu0 %v5658
  %6449 = vmatpush1.bf16.msra.mxu0 %v5657
  %6450 = vmatprep.subr.bf16.mxu0 %v5662
  %6451 = vmatpush1.bf16.msra.mxu0 %v5661
  %6452 = vmatprep.subr.bf16.mxu0 %v5666
  %6453 = vmatpush1.bf16.msra.mxu0 %v5665
  %6454 = vmatprep.subr.bf16.mxu0 %v5670
  %6455 = vmatpush1.bf16.msra.mxu0 %v5669
  %6456 = vmatprep.subr.bf16.mxu0 %v5674
  %6457 = vmatpush1.bf16.msra.mxu0 %v5673
  %6458 = vmatprep.subr.bf16.mxu0 %v5678
  %6459 = vmatpush1.bf16.msra.mxu0 %v5677
  %6460 = vmatprep.subr.bf16.mxu0 %v5682
  %6461 = vmatpush1.bf16.msra.mxu0 %v5681
  %6462 = vmatprep.subr.bf16.mxu0 %v5686
  %6463 = vmatpush1.bf16.msra.mxu0 %v5685
  %6464 = vmatprep.subr.bf16.mxu0 %v5690
  %6465 = vmatpush1.bf16.msra.mxu0 %v5689
  %6466 = vmatprep.subr.bf16.mxu0 %v5694
  %6467 = vmatpush1.bf16.msra.mxu0 %v5693
  %6468 = vmatprep.mubr.bf16.mxu0 %v348
  %6469 = vmatmul.mubr.bf16.gmra.mrb[0].mxu0 %v347
  %v6470 = vpop.f32.mrb[0].mxu0
  %v6471 = vadd.f32 0.0, %v6470
  %v6472 = vpop.f32.mrb[0].mxu0
  %v6473 = vadd.f32 0.0, %v6472
  %v6474 = vpop.f32.mrb[0].mxu0
  %v6475 = vpop.f32.mrb[0].mxu0
  %6476 = vdwg.mxu0
  %6477 = vmatprep.subr.bf16.mxu0 %v5698
  %6478 = vmatpush1.bf16.msra.mxu0 %v5697
  %6479 = vmatprep.subr.bf16.mxu0 %v5702
  %6480 = vmatpush1.bf16.msra.mxu0 %v5701
  %6481 = vmatprep.subr.bf16.mxu0 %v5706
  %6482 = vmatpush1.bf16.msra.mxu0 %v5705
  %6483 = vmatprep.subr.bf16.mxu0 %v5710
  %6484 = vmatpush1.bf16.msra.mxu0 %v5709
  %6485 = vmatprep.subr.bf16.mxu0 %v5714
  %6486 = vmatpush1.bf16.msra.mxu0 %v5713
  %6487 = vmatprep.subr.bf16.mxu0 %v5718
  %6488 = vmatpush1.bf16.msra.mxu0 %v5717
  %6489 = vmatprep.subr.bf16.mxu0 %v5722
  %6490 = vmatpush1.bf16.msra.mxu0 %v5721
  %6491 = vmatprep.subr.bf16.mxu0 %v5726
  %6492 = vmatpush1.bf16.msra.mxu0 %v5725
  %6493 = vmatprep.subr.bf16.mxu0 %v5730
  %6494 = vmatpush1.bf16.msra.mxu0 %v5729
  %6495 = vmatprep.subr.bf16.mxu0 %v5734
  %6496 = vmatpush1.bf16.msra.mxu0 %v5733
  %6497 = vmatprep.subr.bf16.mxu0 %v5738
  %6498 = vmatpush1.bf16.msra.mxu0 %v5737
  %6499 = vmatprep.subr.bf16.mxu0 %v5742
  %6500 = vmatpush1.bf16.msra.mxu0 %v5741
  %6501 = vmatprep.subr.bf16.mxu0 %v5746
  %6502 = vmatpush1.bf16.msra.mxu0 %v5745
  %6503 = vmatprep.subr.bf16.mxu0 %v5750
  %6504 = vmatpush1.bf16.msra.mxu0 %v5749
  %6505 = vmatprep.subr.bf16.mxu0 %v5754
  %6506 = vmatpush1.bf16.msra.mxu0 %v5753
  %6507 = vmatprep.subr.bf16.mxu0 %v5758
  %6508 = vmatpush1.bf16.msra.mxu0 %v5757
  %6509 = vmatprep.mubr.bf16.mxu0 %v350
  %6510 = vmatmul.mubr.bf16.gmra.mrb[0].mxu0 %v349
  %v6511 = vpop.f32.mrb[0].mxu0
  %v6512 = vadd.f32 %v6471, %v6511
  %v6513 = vpop.f32.mrb[0].mxu0
  %v6514 = vadd.f32 %v6473, %v6513
  %v6515 = vpop.f32.mrb[0].mxu0
  %v6516 = vpop.f32.mrb[0].mxu0
  %6517 = vdwg.mxu0
  %6518 = vmatprep.subr.bf16.mxu0 %v5762
  %6519 = vmatpush1.bf16.msra.mxu0 %v5761
  %6520 = vmatprep.subr.bf16.mxu0 %v5766
  %6521 = vmatpush1.bf16.msra.mxu0 %v5765
  %6522 = vmatprep.subr.bf16.mxu0 %v5770
  %6523 = vmatpush1.bf16.msra.mxu0 %v5769
  %6524 = vmatprep.subr.bf16.mxu0 %v5774
  %6525 = vmatpush1.bf16.msra.mxu0 %v5773
  %6526 = vmatprep.subr.bf16.mxu0 %v5778
  %6527 = vmatpush1.bf16.msra.mxu0 %v5777
  %6528 = vmatprep.subr.bf16.mxu0 %v5782
  %6529 = vmatpush1.bf16.msra.mxu0 %v5781
  %6530 = vmatprep.subr.bf16.mxu0 %v5786
  %6531 = vmatpush1.bf16.msra.mxu0 %v5785
  %6532 = vmatprep.subr.bf16.mxu0 %v5790
  %6533 = vmatpush1.bf16.msra.mxu0 %v5789
  %6534 = vmatprep.subr.bf16.mxu0 %v5794
  %6535 = vmatpush1.bf16.msra.mxu0 %v5793
  %6536 = vmatprep.subr.bf16.mxu0 %v5798
  %6537 = vmatpush1.bf16.msra.mxu0 %v5797
  %6538 = vmatprep.subr.bf16.mxu0 %v5802
  %6539 = vmatpush1.bf16.msra.mxu0 %v5801
  %6540 = vmatprep.subr.bf16.mxu0 %v5806
  %6541 = vmatpush1.bf16.msra.mxu0 %v5805
  %6542 = vmatprep.subr.bf16.mxu0 %v5810
  %6543 = vmatpush1.bf16.msra.mxu0 %v5809
  %6544 = vmatprep.subr.bf16.mxu0 %v5814
  %6545 = vmatpush1.bf16.msra.mxu0 %v5813
  %6546 = vmatprep.subr.bf16.mxu0 %v5818
  %6547 = vmatpush1.bf16.msra.mxu0 %v5817
  %6548 = vmatprep.subr.bf16.mxu0 %v5822
  %6549 = vmatpush1.bf16.msra.mxu0 %v5821
  %6550 = vmatprep.mubr.bf16.mxu0 %v352
  %6551 = vmatmul.mubr.bf16.gmra.mrb[0].mxu0 %v351
  %v6552 = vpop.f32.mrb[0].mxu0
  %v6553 = vadd.f32 %v6512, %v6552
  %v6554 = vpop.f32.mrb[0].mxu0
  %v6555 = vadd.f32 %v6514, %v6554
  %v6556 = vpop.f32.mrb[0].mxu0
  %v6557 = vpop.f32.mrb[0].mxu0
  %6558 = vdwg.mxu0
  %6559 = vmatprep.subr.bf16.mxu0 %v5826
  %6560 = vmatpush1.bf16.msra.mxu0 %v5825
  %6561 = vmatprep.subr.bf16.mxu0 %v5830
  %6562 = vmatpush1.bf16.msra.mxu0 %v5829
  %6563 = vmatprep.subr.bf16.mxu0 %v5834
  %6564 = vmatpush1.bf16.msra.mxu0 %v5833
  %6565 = vmatprep.subr.bf16.mxu0 %v5838
  %6566 = vmatpush1.bf16.msra.mxu0 %v5837
  %6567 = vmatprep.subr.bf16.mxu0 %v5842
  %6568 = vmatpush1.bf16.msra.mxu0 %v5841
  %6569 = vmatprep.subr.bf16.mxu0 %v5846
  %6570 = vmatpush1.bf16.msra.mxu0 %v5845
  %6571 = vmatprep.subr.bf16.mxu0 %v5850
  %6572 = vmatpush1.bf16.msra.mxu0 %v5849
  %6573 = vmatprep.subr.bf16.mxu0 %v5854
  %6574 = vmatpush1.bf16.msra.mxu0 %v5853
  %6575 = vmatprep.subr.bf16.mxu0 %v5858
  %6576 = vmatpush1.bf16.msra.mxu0 %v5857
  %6577 = vmatprep.subr.bf16.mxu0 %v5862
  %6578 = vmatpush1.bf16.msra.mxu0 %v5861
  %6579 = vmatprep.subr.bf16.mxu0 %v5866
  %6580 = vmatpush1.bf16.msra.mxu0 %v5865
  %6581 = vmatprep.subr.bf16.mxu0 %v5870
  %6582 = vmatpush1.bf16.msra.mxu0 %v5869
  %6583 = vmatprep.subr.bf16.mxu0 %v5874
  %6584 = vmatpush1.bf16.msra.mxu0 %v5873
  %6585 = vmatprep.subr.bf16.mxu0 %v5878
  %6586 = vmatpush1.bf16.msra.mxu0 %v5877
  %6587 = vmatprep.subr.bf16.mxu0 %v5882
  %6588 = vmatpush1.bf16.msra.mxu0 %v5881
  %6589 = vmatprep.subr.bf16.mxu0 %v5886
  %6590 = vmatpush1.bf16.msra.mxu0 %v5885
  %6591 = vmatprep.mubr.bf16.mxu0 %v354
  %6592 = vmatmul.mubr.bf16.gmra.mrb[0].mxu0 %v353
  %v6593 = vpop.f32.mrb[0].mxu0
  %v6594 = vadd.f32 %v6553, %v6593
  %v6595 = vpop.f32.mrb[0].mxu0
  %v6596 = vadd.f32 %v6555, %v6595
  %v6597 = vpop.f32.mrb[0].mxu0
  %v6598 = vpop.f32.mrb[0].mxu0
  %6599 = vdwg.mxu0
  %6600 = vmatprep.subr.bf16.mxu0 %v5890
  %6601 = vmatpush1.bf16.msra.mxu0 %v5889
  %6602 = vmatprep.subr.bf16.mxu0 %v5894
  %6603 = vmatpush1.bf16.msra.mxu0 %v5893
  %6604 = vmatprep.subr.bf16.mxu0 %v5898
  %6605 = vmatpush1.bf16.msra.mxu0 %v5897
  %6606 = vmatprep.subr.bf16.mxu0 %v5902
  %6607 = vmatpush1.bf16.msra.mxu0 %v5901
  %6608 = vmatprep.subr.bf16.mxu0 %v5906
  %6609 = vmatpush1.bf16.msra.mxu0 %v5905
  %6610 = vmatprep.subr.bf16.mxu0 %v5910
  %6611 = vmatpush1.bf16.msra.mxu0 %v5909
  %6612 = vmatprep.subr.bf16.mxu0 %v5914
  %6613 = vmatpush1.bf16.msra.mxu0 %v5913
  %6614 = vmatprep.subr.bf16.mxu0 %v5918
  %6615 = vmatpush1.bf16.msra.mxu0 %v5917
  %6616 = vmatprep.subr.bf16.mxu0 %v5922
  %6617 = vmatpush1.bf16.msra.mxu0 %v5921
  %6618 = vmatprep.subr.bf16.mxu0 %v6229
  %6619 = vmatpush1.bf16.msra.mxu0 %v6226
  %6620 = vmatprep.subr.bf16.mxu0 0
  %6621 = vmatpush1.bf16.msra.mxu0 0
  %6622 = vmatprep.subr.bf16.mxu0 0
  %6623 = vmatpush1.bf16.msra.mxu0 0
  %6624 = vmatprep.subr.bf16.mxu0 0
  %6625 = vmatpush1.bf16.msra.mxu0 0
  %6626 = vmatprep.subr.bf16.mxu0 0
  %6627 = vmatpush1.bf16.msra.mxu0 0
  %6628 = vmatprep.subr.bf16.mxu0 0
  %6629 = vmatpush1.bf16.msra.mxu0 0
  %6630 = vmatprep.subr.bf16.mxu0 0
  %6631 = vmatpush1.bf16.msra.mxu0 0
  %6632 = vmatprep.mubr.bf16.mxu0 %v1838
  %6633 = vmatmul.mubr.bf16.gmra.mrb[0].mxu0 %v355
  %v6634 = vpop.f32.mrb[0].mxu0
  %v6635 = vadd.f32 %v6594, %v6634
  %v6636 = vpop.f32.mrb[0].mxu0
  %v6637 = vadd.f32 %v6596, %v6636
  %v6638 = vpop.f32.mrb[0].mxu0
  %v6639 = vpop.f32.mrb[0].mxu0
  %6640 = vdwg.mxu0
  %v6641 = vmax.f32 %v4450, %v6430
  %v6642 = vmax.f32 %v4451, %v6432
  %v6643 = vmax.f32 %v4452, %v6635
  %v6644 = vmax.f32 %v4453, %v6637
  %s6645 = scalar_lea.vmem %s1, 7056
  %v6646 = vld [vmem:[%s6645] sm:$0xff]
  %v6647 = vld [vmem:[%s6645 + $0x8] sm:$0xff]
  %v6648 = vld [vmem:[%s6645 + $0x10] sm:$0xff]
  %v6649 = vld [vmem:[%s6645 + $0x18] sm:$0xff]
  %v6650 = vld [vmem:[%s6645 + $0x20] sm:$0xff]
  %v6651 = vld [vmem:[%s6645 + $0x28] sm:$0xff]
  %v6652 = vld [vmem:[%s6645 + $0x30] sm:$0xff]
  %v6653 = vld [vmem:[%s6645 + $0x38] sm:$0xff]
  %v6654 = vld [vmem:[%s6645 + $0x40] sm:$0xff]
  %v6655 = vld [vmem:[%s6645 + $0x48] sm:$0xff]
  %v6656 = vld [vmem:[%s6645 + $0x50] sm:$0xff]
  %v6657 = vld [vmem:[%s6645 + $0x58] sm:$0xff]
  %v6658 = vld [vmem:[%s6645 + $0x60] sm:$0xff]
  %v6659 = vld [vmem:[%s6645 + $0x68] sm:$0xff]
  %v6660 = vld [vmem:[%s6645 + $0x70] sm:$0xff]
  %v6661 = vld [vmem:[%s6645 + $0x78] sm:$0xff]
  %v6662 = vld [vmem:[%s6645 + $0x80] sm:$0xff]
  %v6663 = vld [vmem:[%s6645 + $0x88] sm:$0xff]
  %v6664 = vld [vmem:[%s6645 + $0x90] sm:$0xff]
  %v6665 = vld [vmem:[%s6645 + $0x98] sm:$0xff]
  %v6666 = vld [vmem:[%s6645 + $0xa0] sm:$0xff]
  %v6667 = vld [vmem:[%s6645 + $0xa8] sm:$0xff]
  %v6668 = vld [vmem:[%s6645 + $0xb0] sm:$0xff]
  %v6669 = vld [vmem:[%s6645 + $0xb8] sm:$0xff]
  %v6670 = vld [vmem:[%s6645 + $0xc0] sm:$0xff]
  %v6671 = vld [vmem:[%s6645 + $0xc8] sm:$0xff]
  %v6672 = vld [vmem:[%s6645 + $0xd0] sm:$0xff]
  %v6673 = vld [vmem:[%s6645 + $0xd8] sm:$0xff]
  %v6674 = vld [vmem:[%s6645 + $0xe0] sm:$0xff]
  %v6675 = vld [vmem:[%s6645 + $0xe8] sm:$0xff]
  %v6676 = vld [vmem:[%s6645 + $0xf0] sm:$0xff]
  %v6677 = vld [vmem:[%s6645 + $0xf8] sm:$0xff]
  %v6678 = vld [vmem:[%s6645 + $0x100] sm:$0xff]
  %v6679 = vld [vmem:[%s6645 + $0x108] sm:$0xff]
  %v6680 = vld [vmem:[%s6645 + $0x110] sm:$0xff]
  %v6681 = vld [vmem:[%s6645 + $0x118] sm:$0xff]
  %v6682 = vld [vmem:[%s6645 + $0x120] sm:$0xff]
  %v6683 = vld [vmem:[%s6645 + $0x128] sm:$0xff]
  %v6684 = vld [vmem:[%s6645 + $0x130] sm:$0xff]
  %v6685 = vld [vmem:[%s6645 + $0x138] sm:$0xff]
  %v6686 = vld [vmem:[%s6645 + $0x140] sm:$0xff]
  %v6687 = vld [vmem:[%s6645 + $0x148] sm:$0xff]
  %v6688 = vld [vmem:[%s6645 + $0x150] sm:$0xff]
  %v6689 = vld [vmem:[%s6645 + $0x158] sm:$0xff]
  %v6690 = vld [vmem:[%s6645 + $0x160] sm:$0xff]
  %v6691 = vld [vmem:[%s6645 + $0x168] sm:$0xff]
  %v6692 = vld [vmem:[%s6645 + $0x170] sm:$0xff]
  %v6693 = vld [vmem:[%s6645 + $0x178] sm:$0xff]
  %v6694 = vld [vmem:[%s6645 + $0x180] sm:$0xff]
  %v6695 = vld [vmem:[%s6645 + $0x188] sm:$0xff]
  %v6696 = vld [vmem:[%s6645 + $0x190] sm:$0xff]
  %v6697 = vld [vmem:[%s6645 + $0x198] sm:$0xff]
  %v6698 = vld [vmem:[%s6645 + $0x1a0] sm:$0xff]
  %v6699 = vld [vmem:[%s6645 + $0x1a8] sm:$0xff]
  %v6700 = vld [vmem:[%s6645 + $0x1b0] sm:$0xff]
  %v6701 = vld [vmem:[%s6645 + $0x1b8] sm:$0xff]
  %v6702 = vld [vmem:[%s6645 + $0x1c0] sm:$0xff]
  %v6703 = vld [vmem:[%s6645 + $0x1c8] sm:$0xff]
  %v6704 = vld [vmem:[%s6645 + $0x1d0] sm:$0xff]
  %v6705 = vld [vmem:[%s6645 + $0x1d8] sm:$0xff]
  %v6706 = vld [vmem:[%s6645 + $0x1e0] sm:$0xff]
  %v6707 = vld [vmem:[%s6645 + $0x1e8] sm:$0xff]
  %v6708 = vld [vmem:[%s6645 + $0x1f0] sm:$0xff]
  %v6709 = vld [vmem:[%s6645 + $0x1f8] sm:$0xff]
  %v6710 = vld [vmem:[%s6645 + $0x200] sm:$0xff]
  %v6711 = vld [vmem:[%s6645 + $0x208] sm:$0xff]
  %v6712 = vld [vmem:[%s6645 + $0x210] sm:$0xff]
  %v6713 = vld [vmem:[%s6645 + $0x218] sm:$0xff]
  %v6714 = vld [vmem:[%s6645 + $0x220] sm:$0xff]
  %v6715 = vld [vmem:[%s6645 + $0x228] sm:$0xff]
  %v6716 = vld [vmem:[%s6645 + $0x230] sm:$0xff]
  %v6717 = vld [vmem:[%s6645 + $0x238] sm:$0xff]
  %v6718 = vld [vmem:[%s6645 + $0x240] sm:$0xff]
  %v6719 = vld [vmem:[%s6645 + $0x248] sm:$0xff]
  %v6720 = vld [vmem:[%s6645 + $0x250] sm:$0xff]
  %v6721 = vld [vmem:[%s6645 + $0x258] sm:$0xff]
  %v6722 = vld [vmem:[%s6645 + $0x260] sm:$0xff]
  %v6723 = vld [vmem:[%s6645 + $0x268] sm:$0xff]
  %v6724 = vld [vmem:[%s6645 + $0x270] sm:$0xff]
  %v6725 = vld [vmem:[%s6645 + $0x278] sm:$0xff]
  %v6726 = vld [vmem:[%s6645 + $0x280] sm:$0xff]
  %v6727 = vld [vmem:[%s6645 + $0x288] sm:$0xff]
  %v6728 = vld [vmem:[%s6645 + $0x290] sm:$0xff]
  %v6729 = vld [vmem:[%s6645 + $0x298] sm:$0xff]
  %v6730 = vld [vmem:[%s6645 + $0x2a0] sm:$0xff]
  %v6731 = vld [vmem:[%s6645 + $0x2a8] sm:$0xff]
  %v6732 = vld [vmem:[%s6645 + $0x2b0] sm:$0xff]
  %v6733 = vld [vmem:[%s6645 + $0x2b8] sm:$0xff]
  %v6734 = vld [vmem:[%s6645 + $0x2c0] sm:$0xff]
  %v6735 = vld [vmem:[%s6645 + $0x2c8] sm:$0xff]
  %v6736 = vld [vmem:[%s6645 + $0x2d0] sm:$0xff]
  %v6737 = vld [vmem:[%s6645 + $0x2d8] sm:$0xff]
  %v6738 = vld [vmem:[%s6645 + $0x2e0] sm:$0xff]
  %v6739 = vld [vmem:[%s6645 + $0x2e8] sm:$0xff]
  %v6740 = vld [vmem:[%s6645 + $0x2f0] sm:$0xff]
  %v6741 = vld [vmem:[%s6645 + $0x2f8] sm:$0xff]
  %v6742 = vld [vmem:[%s6645 + $0x300] sm:$0xff]
  %v6743 = vld [vmem:[%s6645 + $0x308] sm:$0xff]
  %v6744 = vld [vmem:[%s6645 + $0x310] sm:$0xff]
  %v6745 = vld [vmem:[%s6645 + $0x318] sm:$0xff]
  %v6746 = vld [vmem:[%s6645 + $0x320] sm:$0xff]
  %v6747 = vld [vmem:[%s6645 + $0x328] sm:$0xff]
  %v6748 = vld [vmem:[%s6645 + $0x330] sm:$0xff]
  %v6749 = vld [vmem:[%s6645 + $0x338] sm:$0xff]
  %v6750 = vld [vmem:[%s6645 + $0x340] sm:$0xff]
  %v6751 = vld [vmem:[%s6645 + $0x348] sm:$0xff]
  %v6752 = vld [vmem:[%s6645 + $0x350] sm:$0xff]
  %v6753 = vld [vmem:[%s6645 + $0x358] sm:$0xff]
  %v6754 = vld [vmem:[%s6645 + $0x360] sm:$0xff]
  %v6755 = vld [vmem:[%s6645 + $0x368] sm:$0xff]
  %v6756 = vld [vmem:[%s6645 + $0x370] sm:$0xff]
  %v6757 = vld [vmem:[%s6645 + $0x378] sm:$0xff]
  %v6758 = vld [vmem:[%s6645 + $0x380] sm:$0xff]
  %v6759 = vld [vmem:[%s6645 + $0x388] sm:$0xff]
  %v6760 = vld [vmem:[%s6645 + $0x390] sm:$0xff]
  %v6761 = vld [vmem:[%s6645 + $0x398] sm:$0xff]
  %v6762 = vld [vmem:[%s6645 + $0x3a0] sm:$0xff]
  %v6763 = vld [vmem:[%s6645 + $0x3a8] sm:$0xff]
  %v6764 = vld [vmem:[%s6645 + $0x3b0] sm:$0xff]
  %v6765 = vld [vmem:[%s6645 + $0x3b8] sm:$0xff]
  %v6766 = vld [vmem:[%s6645 + $0x3c0] sm:$0xff]
  %v6767 = vld [vmem:[%s6645 + $0x3c8] sm:$0xff]
  %v6768 = vld [vmem:[%s6645 + $0x3d0] sm:$0xff]
  %v6769 = vld [vmem:[%s6645 + $0x3d8] sm:$0xff]
  %v6770 = vld [vmem:[%s6645 + $0x3e0] sm:$0xff]
  %v6771 = vld [vmem:[%s6645 + $0x3e8] sm:$0xff]
  %v6772 = vld [vmem:[%s6645 + $0x3f0] sm:$0xff]
  %v6773 = vld [vmem:[%s6645 + $0x3f8] sm:$0xff]
  %v6774 = vld [vmem:[%s6645 + $0x400] sm:$0xff]
  %v6775 = vld [vmem:[%s6645 + $0x408] sm:$0xff]
  %v6776 = vld [vmem:[%s6645 + $0x410] sm:$0xff]
  %v6777 = vld [vmem:[%s6645 + $0x418] sm:$0xff]
  %v6778 = vld [vmem:[%s6645 + $0x420] sm:$0xff]
  %v6779 = vld [vmem:[%s6645 + $0x428] sm:$0xff]
  %v6780 = vld [vmem:[%s6645 + $0x430] sm:$0xff]
  %v6781 = vld [vmem:[%s6645 + $0x438] sm:$0xff]
  %v6782 = vld [vmem:[%s6645 + $0x440] sm:$0xff]
  %v6783 = vld [vmem:[%s6645 + $0x448] sm:$0xff]
  %v6784 = vld [vmem:[%s6645 + $0x450] sm:$0xff]
  %v6785 = vld [vmem:[%s6645 + $0x458] sm:$0xff]
  %v6786 = vld [vmem:[%s6645 + $0x460] sm:$0xff]
  %v6787 = vld [vmem:[%s6645 + $0x468] sm:$0xff]
  %v6788 = vld [vmem:[%s6645 + $0x470] sm:$0xff]
  %v6789 = vld [vmem:[%s6645 + $0x478] sm:$0xff]
  %v6790 = vld [vmem:[%s6645 + $0x480] sm:$0xff]
  %v6791 = vld [vmem:[%s6645 + $0x488] sm:$0xff]
  %v6792 = vld [vmem:[%s6645 + $0x490] sm:$0xff]
  %v6793 = vld [vmem:[%s6645 + $0x498] sm:$0xff]
  %v6794 = vld [vmem:[%s6645 + $0x4a0] sm:$0xff]
  %v6795 = vld [vmem:[%s6645 + $0x4a8] sm:$0xff]
  %v6796 = vld [vmem:[%s6645 + $0x4b0] sm:$0xff]
  %v6797 = vld [vmem:[%s6645 + $0x4b8] sm:$0xff]
  %v6798 = vld [vmem:[%s6645 + $0x4c0] sm:$0xff]
  %v6799 = vld [vmem:[%s6645 + $0x4c8] sm:$0xff]
  %v6800 = vld [vmem:[%s6645 + $0x4d0] sm:$0xff]
  %v6801 = vld [vmem:[%s6645 + $0x4d8] sm:$0xff]
  %v6802 = vld [vmem:[%s6645 + $0x4e0] sm:$0xff]
  %v6803 = vld [vmem:[%s6645 + $0x4e8] sm:$0xff]
  %v6804 = vld [vmem:[%s6645 + $0x4f0] sm:$0xff]
  %v6805 = vld [vmem:[%s6645 + $0x4f8] sm:$0xff]
  %v6806 = vld [vmem:[%s6645 + $0x500] sm:$0xff]
  %v6807 = vld [vmem:[%s6645 + $0x508] sm:$0xff]
  %v6808 = vld [vmem:[%s6645 + $0x510] sm:$0xff]
  %v6809 = vld [vmem:[%s6645 + $0x518] sm:$0xff]
  %v6810 = vld [vmem:[%s6645 + $0x520] sm:$0xff]
  %v6811 = vld [vmem:[%s6645 + $0x528] sm:$0xff]
  %v6812 = vld [vmem:[%s6645 + $0x530] sm:$0xff]
  %v6813 = vld [vmem:[%s6645 + $0x538] sm:$0xff]
  %v6814 = vld [vmem:[%s6645 + $0x540] sm:$0xff]
  %v6815 = vld [vmem:[%s6645 + $0x548] sm:$0xff]
  %v6816 = vld [vmem:[%s6645 + $0x550] sm:$0xff]
  %v6817 = vld [vmem:[%s6645 + $0x558] sm:$0xff]
  %v6818 = vld [vmem:[%s6645 + $0x560] sm:$0xff]
  %v6819 = vld [vmem:[%s6645 + $0x568] sm:$0xff]
  %v6820 = vld [vmem:[%s6645 + $0x570] sm:$0xff]
  %v6821 = vld [vmem:[%s6645 + $0x578] sm:$0xff]
  %v6822 = vld [vmem:[%s6645 + $0x580] sm:$0xff]
  %v6823 = vld [vmem:[%s6645 + $0x588] sm:$0xff]
  %v6824 = vld [vmem:[%s6645 + $0x590] sm:$0xff]
  %v6825 = vld [vmem:[%s6645 + $0x598] sm:$0xff]
  %v6826 = vld [vmem:[%s6645 + $0x5a0] sm:$0xff]
  %v6827 = vld [vmem:[%s6645 + $0x5a8] sm:$0xff]
  %v6828 = vld [vmem:[%s6645 + $0x5b0] sm:$0xff]
  %v6829 = vld [vmem:[%s6645 + $0x5b8] sm:$0xff]
  %v6830 = vld [vmem:[%s6645 + $0x5c0] sm:$0xff]
  %v6831 = vld [vmem:[%s6645 + $0x5c8] sm:$0xff]
  %v6832 = vld [vmem:[%s6645 + $0x5d0] sm:$0xff]
  %v6833 = vld [vmem:[%s6645 + $0x5d8] sm:$0xff]
  %v6834 = vld [vmem:[%s6645 + $0x5e0] sm:$0xff]
  %v6835 = vld [vmem:[%s6645 + $0x5e8] sm:$0xff]
  %v6836 = vld [vmem:[%s6645 + $0x5f0] sm:$0xff]
  %v6837 = vld [vmem:[%s6645 + $0x5f8] sm:$0xff]
  %v6838 = vld [vmem:[%s6645 + $0x600] sm:$0xff]
  %v6839 = vld [vmem:[%s6645 + $0x608] sm:$0xff]
  %v6840 = vld [vmem:[%s6645 + $0x610] sm:$0xff]
  %v6841 = vld [vmem:[%s6645 + $0x618] sm:$0xff]
  %v6842 = vld [vmem:[%s6645 + $0x620] sm:$0xff]
  %v6843 = vld [vmem:[%s6645 + $0x628] sm:$0xff]
  %v6844 = vld [vmem:[%s6645 + $0x630] sm:$0xff]
  %v6845 = vld [vmem:[%s6645 + $0x638] sm:$0xff]
  %v6846 = vld [vmem:[%s6645 + $0x640] sm:$0xff]
  %v6847 = vld [vmem:[%s6645 + $0x648] sm:$0xff]
  %v6848 = vld [vmem:[%s6645 + $0x650] sm:$0xff]
  %v6849 = vld [vmem:[%s6645 + $0x658] sm:$0xff]
  %v6850 = vld [vmem:[%s6645 + $0x660] sm:$0xff]
  %v6851 = vld [vmem:[%s6645 + $0x668] sm:$0xff]
  %v6852 = vld [vmem:[%s6645 + $0x670] sm:$0xff]
  %v6853 = vld [vmem:[%s6645 + $0x678] sm:$0xff]
  %v6854 = vld [vmem:[%s6645 + $0x680] sm:$0xff]
  %v6855 = vld [vmem:[%s6645 + $0x688] sm:$0xff]
  %v6856 = vld [vmem:[%s6645 + $0x690] sm:$0xff]
  %v6857 = vld [vmem:[%s6645 + $0x698] sm:$0xff]
  %v6858 = vld [vmem:[%s6645 + $0x6a0] sm:$0xff]
  %v6859 = vld [vmem:[%s6645 + $0x6a8] sm:$0xff]
  %v6860 = vld [vmem:[%s6645 + $0x6b0] sm:$0xff]
  %v6861 = vld [vmem:[%s6645 + $0x6b8] sm:$0xff]
  %v6862 = vld [vmem:[%s6645 + $0x6c0] sm:$0xff]
  %v6863 = vld [vmem:[%s6645 + $0x6c8] sm:$0xff]
  %v6864 = vld [vmem:[%s6645 + $0x6d0] sm:$0xff]
  %v6865 = vld [vmem:[%s6645 + $0x6d8] sm:$0xff]
  %v6866 = vld [vmem:[%s6645 + $0x6e0] sm:$0xff]
  %v6867 = vld [vmem:[%s6645 + $0x6e8] sm:$0xff]
  %v6868 = vld [vmem:[%s6645 + $0x6f0] sm:$0xff]
  %v6869 = vld [vmem:[%s6645 + $0x6f8] sm:$0xff]
  %v6870 = vld [vmem:[%s6645 + $0x700] sm:$0xff]
  %v6871 = vld [vmem:[%s6645 + $0x708] sm:$0xff]
  %v6872 = vld [vmem:[%s6645 + $0x710] sm:$0xff]
  %v6873 = vld [vmem:[%s6645 + $0x718] sm:$0xff]
  %v6874 = vld [vmem:[%s6645 + $0x720] sm:$0xff]
  %v6875 = vld [vmem:[%s6645 + $0x728] sm:$0xff]
  %v6876 = vld [vmem:[%s6645 + $0x730] sm:$0xff]
  %v6877 = vld [vmem:[%s6645 + $0x738] sm:$0xff]
  %v6878 = vld [vmem:[%s6645 + $0x740] sm:$0xff]
  %v6879 = vld [vmem:[%s6645 + $0x748] sm:$0xff]
  %v6880 = vld [vmem:[%s6645 + $0x750] sm:$0xff]
  %v6881 = vld [vmem:[%s6645 + $0x758] sm:$0xff]
  %v6882 = vld [vmem:[%s6645 + $0x760] sm:$0xff]
  %v6883 = vld [vmem:[%s6645 + $0x768] sm:$0xff]
  %v6884 = vld [vmem:[%s6645 + $0x770] sm:$0xff]
  %v6885 = vld [vmem:[%s6645 + $0x778] sm:$0xff]
  %v6886 = vld [vmem:[%s6645 + $0x780] sm:$0xff]
  %v6887 = vld [vmem:[%s6645 + $0x788] sm:$0xff]
  %v6888 = vld [vmem:[%s6645 + $0x790] sm:$0xff]
  %v6889 = vld [vmem:[%s6645 + $0x798] sm:$0xff]
  %v6890 = vld [vmem:[%s6645 + $0x7a0] sm:$0xff]
  %v6891 = vld [vmem:[%s6645 + $0x7a8] sm:$0xff]
  %v6892 = vld [vmem:[%s6645 + $0x7b0] sm:$0xff]
  %v6893 = vld [vmem:[%s6645 + $0x7b8] sm:$0xff]
  %v6894 = vld [vmem:[%s6645 + $0x7c0] sm:$0xff]
  %v6895 = vld [vmem:[%s6645 + $0x7c8] sm:$0xff]
  %v6896 = vld [vmem:[%s6645 + $0x7d0] sm:$0xff]
  %v6897 = vld [vmem:[%s6645 + $0x7d8] sm:$0xff]
  %v6898 = vld [vmem:[%s6645 + $0x7e0] sm:$0xff]
  %v6899 = vld [vmem:[%s6645 + $0x7e8] sm:$0xff]
  %v6900 = vld [vmem:[%s6645 + $0x7f0] sm:$0xff]
  %v6901 = vld [vmem:[%s6645 + $0x7f8] sm:$0xff]
  %v6902 = vld [vmem:[%s6645 + $0x800] sm:$0xff]
  %v6903 = vld [vmem:[%s6645 + $0x808] sm:$0xff]
  %v6904 = vld [vmem:[%s6645 + $0x810] sm:$0xff]
  %v6905 = vld [vmem:[%s6645 + $0x818] sm:$0xff]
  %v6906 = vld [vmem:[%s6645 + $0x820] sm:$0xff]
  %v6907 = vld [vmem:[%s6645 + $0x828] sm:$0xff]
  %v6908 = vld [vmem:[%s6645 + $0x830] sm:$0xff]
  %v6909 = vld [vmem:[%s6645 + $0x838] sm:$0xff]
  %v6910 = vld [vmem:[%s6645 + $0x840] sm:$0xff]
  %v6911 = vld [vmem:[%s6645 + $0x848] sm:$0xff]
  %v6912 = vld [vmem:[%s6645 + $0x850] sm:$0xff]
  %v6913 = vld [vmem:[%s6645 + $0x858] sm:$0xff]
  %v6914 = vld [vmem:[%s6645 + $0x860] sm:$0xff]
  %v6915 = vld [vmem:[%s6645 + $0x868] sm:$0xff]
  %v6916 = vld [vmem:[%s6645 + $0x870] sm:$0xff]
  %v6917 = vld [vmem:[%s6645 + $0x878] sm:$0xff]
  %v6918 = vld [vmem:[%s6645 + $0x880] sm:$0xff]
  %v6919 = vld [vmem:[%s6645 + $0x888] sm:$0xff]
  %v6920 = vld [vmem:[%s6645 + $0x890] sm:$0xff]
  %v6921 = vld [vmem:[%s6645 + $0x898] sm:$0xff]
  %v6922 = vld [vmem:[%s6645 + $0x8a0] sm:$0xff]
  %v6923 = vld [vmem:[%s6645 + $0x8a8] sm:$0xff]
  %v6924 = vld [vmem:[%s6645 + $0x8b0] sm:$0xff]
  %v6925 = vld [vmem:[%s6645 + $0x8b8] sm:$0xff]
  %v6926 = vld [vmem:[%s6645 + $0x8c0] sm:$0xff]
  %v6927 = vld [vmem:[%s6645 + $0x8c8] sm:$0xff]
  %v6928 = vld [vmem:[%s6645 + $0x8d0] sm:$0xff]
  %v6929 = vld [vmem:[%s6645 + $0x8d8] sm:$0xff]
  %v6930 = vld [vmem:[%s6645 + $0x8e0] sm:$0xff]
  %v6931 = vld [vmem:[%s6645 + $0x8e8] sm:$0xff]
  %v6932 = vld [vmem:[%s6645 + $0x8f0] sm:$0xff]
  %v6933 = vld [vmem:[%s6645 + $0x8f8] sm:$0xff]
  %v6934 = vld [vmem:[%s6645 + $0x900] sm:$0xff]
  %v6935 = vld [vmem:[%s6645 + $0x908] sm:$0xff]
  %v6936 = vld [vmem:[%s6645 + $0x910] sm:$0xff]
  %v6937 = vld [vmem:[%s6645 + $0x918] sm:$0xff]
  %v6938 = vld [vmem:[%s6645 + $0x920] sm:$0xff]
  %v6939 = vld [vmem:[%s6645 + $0x928] sm:$0xff]
  %v7234 = vunpack.c.l.b16 %v6646
  %v7235 = vunpack.c.h.b16 %v6646
  %v7236 = vunpack.c.l.b16 %v6647
  %v7237 = vunpack.c.h.b16 %v6647
  %v7238 = vunpack.c.l.b16 %v6648
  %v7239 = vunpack.c.h.b16 %v6648
  %v7240 = vunpack.c.l.b16 %v6649
  %v7241 = vunpack.c.h.b16 %v6649
  %v7242 = vunpack.c.l.b16 %v6650
  %v7243 = vunpack.c.h.b16 %v6650
  %v7244 = vunpack.c.l.b16 %v6651
  %v7245 = vunpack.c.h.b16 %v6651
  %v7246 = vunpack.c.l.b16 %v6652
  %v7247 = vunpack.c.h.b16 %v6652
  %v7248 = vunpack.c.l.b16 %v6653
  %v7249 = vunpack.c.h.b16 %v6653
  %v7250 = vunpack.c.l.b16 %v6654
  %v7251 = vunpack.c.h.b16 %v6654
  %v7252 = vunpack.c.l.b16 %v6655
  %v7253 = vunpack.c.h.b16 %v6655
  %v7254 = vunpack.c.l.b16 %v6656
  %v7255 = vunpack.c.h.b16 %v6656
  %v7256 = vunpack.c.l.b16 %v6657
  %v7257 = vunpack.c.h.b16 %v6657
  %v7258 = vunpack.c.l.b16 %v6658
  %v7259 = vunpack.c.h.b16 %v6658
  %v7260 = vunpack.c.l.b16 %v6659
  %v7261 = vunpack.c.h.b16 %v6659
  %v7262 = vunpack.c.l.b16 %v6660
  %v7263 = vunpack.c.h.b16 %v6660
  %v7264 = vunpack.c.l.b16 %v6661
  %v7265 = vunpack.c.h.b16 %v6661
  %v7266 = vunpack.c.l.b16 %v6662
  %v7267 = vunpack.c.h.b16 %v6662
  %v7268 = vunpack.c.l.b16 %v6663
  %v7269 = vunpack.c.h.b16 %v6663
  %v7270 = vunpack.c.l.b16 %v6664
  %v7271 = vunpack.c.h.b16 %v6664
  %v7272 = vunpack.c.l.b16 %v6665
  %v7273 = vunpack.c.h.b16 %v6665
  %v7274 = vunpack.c.l.b16 %v6666
  %v7275 = vunpack.c.h.b16 %v6666
  %v7276 = vunpack.c.l.b16 %v6667
  %v7277 = vunpack.c.h.b16 %v6667
  %v7278 = vunpack.c.l.b16 %v6668
  %v7279 = vunpack.c.h.b16 %v6668
  %v7280 = vunpack.c.l.b16 %v6669
  %v7281 = vunpack.c.h.b16 %v6669
  %v7282 = vunpack.c.l.b16 %v6670
  %v7283 = vunpack.c.h.b16 %v6670
  %v7284 = vunpack.c.l.b16 %v6671
  %v7285 = vunpack.c.h.b16 %v6671
  %v7286 = vunpack.c.l.b16 %v6672
  %v7287 = vunpack.c.h.b16 %v6672
  %v7288 = vunpack.c.l.b16 %v6673
  %v7289 = vunpack.c.h.b16 %v6673
  %v7290 = vunpack.c.l.b16 %v6674
  %v7291 = vunpack.c.h.b16 %v6674
  %v7292 = vunpack.c.l.b16 %v6675
  %v7293 = vunpack.c.h.b16 %v6675
  %v7294 = vunpack.c.l.b16 %v6676
  %v7295 = vunpack.c.h.b16 %v6676
  %v7296 = vunpack.c.l.b16 %v6677
  %v7297 = vunpack.c.h.b16 %v6677
  %v7298 = vunpack.c.l.b16 %v6678
  %v7299 = vunpack.c.h.b16 %v6678
  %v7300 = vunpack.c.l.b16 %v6679
  %v7301 = vunpack.c.h.b16 %v6679
  %v7302 = vunpack.c.l.b16 %v6680
  %v7303 = vunpack.c.h.b16 %v6680
  %v7304 = vunpack.c.l.b16 %v6681
  %v7305 = vunpack.c.h.b16 %v6681
  %v7306 = vunpack.c.l.b16 %v6682
  %v7307 = vunpack.c.h.b16 %v6682
  %v7308 = vunpack.c.l.b16 %v6683
  %v7309 = vunpack.c.h.b16 %v6683
  %v7310 = vunpack.c.l.b16 %v6684
  %v7311 = vunpack.c.h.b16 %v6684
  %v7312 = vunpack.c.l.b16 %v6685
  %v7313 = vunpack.c.h.b16 %v6685
  %v7314 = vunpack.c.l.b16 %v6686
  %v7315 = vunpack.c.h.b16 %v6686
  %v7316 = vunpack.c.l.b16 %v6687
  %v7317 = vunpack.c.h.b16 %v6687
  %v7318 = vunpack.c.l.b16 %v6688
  %v7319 = vunpack.c.h.b16 %v6688
  %v7320 = vunpack.c.l.b16 %v6689
  %v7321 = vunpack.c.h.b16 %v6689
  %v7322 = vunpack.c.l.b16 %v6690
  %v7323 = vunpack.c.h.b16 %v6690
  %v7324 = vunpack.c.l.b16 %v6691
  %v7325 = vunpack.c.h.b16 %v6691
  %v7326 = vunpack.c.l.b16 %v6692
  %v7327 = vunpack.c.h.b16 %v6692
  %v7328 = vunpack.c.l.b16 %v6693
  %v7329 = vunpack.c.h.b16 %v6693
  %v7330 = vunpack.c.l.b16 %v6694
  %v7331 = vunpack.c.h.b16 %v6694
  %v7332 = vunpack.c.l.b16 %v6695
  %v7333 = vunpack.c.h.b16 %v6695
  %v7334 = vunpack.c.l.b16 %v6696
  %v7335 = vunpack.c.h.b16 %v6696
  %v7336 = vunpack.c.l.b16 %v6697
  %v7337 = vunpack.c.h.b16 %v6697
  %v7338 = vunpack.c.l.b16 %v6698
  %v7339 = vunpack.c.h.b16 %v6698
  %v7340 = vunpack.c.l.b16 %v6699
  %v7341 = vunpack.c.h.b16 %v6699
  %v7342 = vunpack.c.l.b16 %v6700
  %v7343 = vunpack.c.h.b16 %v6700
  %v7344 = vunpack.c.l.b16 %v6701
  %v7345 = vunpack.c.h.b16 %v6701
  %v7346 = vunpack.c.l.b16 %v6702
  %v7347 = vunpack.c.h.b16 %v6702
  %v7348 = vunpack.c.l.b16 %v6703
  %v7349 = vunpack.c.h.b16 %v6703
  %v7350 = vunpack.c.l.b16 %v6704
  %v7351 = vunpack.c.h.b16 %v6704
  %v7352 = vunpack.c.l.b16 %v6705
  %v7353 = vunpack.c.h.b16 %v6705
  %v7354 = vunpack.c.l.b16 %v6706
  %v7355 = vunpack.c.h.b16 %v6706
  %v7356 = vunpack.c.l.b16 %v6707
  %v7357 = vunpack.c.h.b16 %v6707
  %v7358 = vunpack.c.l.b16 %v6708
  %v7359 = vunpack.c.h.b16 %v6708
  %v7360 = vunpack.c.l.b16 %v6709
  %v7361 = vunpack.c.h.b16 %v6709
  %v7362 = vunpack.c.l.b16 %v6710
  %v7363 = vunpack.c.h.b16 %v6710
  %v7364 = vunpack.c.l.b16 %v6711
  %v7365 = vunpack.c.h.b16 %v6711
  %v7366 = vunpack.c.l.b16 %v6712
  %v7367 = vunpack.c.h.b16 %v6712
  %v7368 = vunpack.c.l.b16 %v6713
  %v7369 = vunpack.c.h.b16 %v6713
  %v7370 = vunpack.c.l.b16 %v6714
  %v7371 = vunpack.c.h.b16 %v6714
  %v7372 = vunpack.c.l.b16 %v6715
  %v7373 = vunpack.c.h.b16 %v6715
  %v7374 = vunpack.c.l.b16 %v6716
  %v7375 = vunpack.c.h.b16 %v6716
  %v7376 = vunpack.c.l.b16 %v6717
  %v7377 = vunpack.c.h.b16 %v6717
  %v7378 = vunpack.c.l.b16 %v6718
  %v7379 = vunpack.c.h.b16 %v6718
  %v7380 = vunpack.c.l.b16 %v6719
  %v7381 = vunpack.c.h.b16 %v6719
  %v7382 = vunpack.c.l.b16 %v6720
  %v7383 = vunpack.c.h.b16 %v6720
  %v7384 = vunpack.c.l.b16 %v6721
  %v7385 = vunpack.c.h.b16 %v6721
  %v7386 = vunpack.c.l.b16 %v6722
  %v7387 = vunpack.c.h.b16 %v6722
  %v7388 = vunpack.c.l.b16 %v6723
  %v7389 = vunpack.c.h.b16 %v6723
  %v7390 = vunpack.c.l.b16 %v6724
  %v7391 = vunpack.c.h.b16 %v6724
  %v7392 = vunpack.c.l.b16 %v6725
  %v7393 = vunpack.c.h.b16 %v6725
  %v7394 = vunpack.c.l.b16 %v6726
  %v7395 = vunpack.c.h.b16 %v6726
  %v7396 = vunpack.c.l.b16 %v6727
  %v7397 = vunpack.c.h.b16 %v6727
  %v7398 = vunpack.c.l.b16 %v6728
  %v7399 = vunpack.c.h.b16 %v6728
  %v7400 = vunpack.c.l.b16 %v6729
  %v7401 = vunpack.c.h.b16 %v6729
  %v7402 = vunpack.c.l.b16 %v6730
  %v7403 = vunpack.c.h.b16 %v6730
  %v7404 = vunpack.c.l.b16 %v6731
  %v7405 = vunpack.c.h.b16 %v6731
  %v7406 = vunpack.c.l.b16 %v6732
  %v7407 = vunpack.c.h.b16 %v6732
  %v7408 = vunpack.c.l.b16 %v6733
  %v7409 = vunpack.c.h.b16 %v6733
  %v7410 = vunpack.c.l.b16 %v6734
  %v7411 = vunpack.c.h.b16 %v6734
  %v7412 = vunpack.c.l.b16 %v6735
  %v7413 = vunpack.c.h.b16 %v6735
  %v7414 = vunpack.c.l.b16 %v6736
  %v7415 = vunpack.c.h.b16 %v6736
  %v7416 = vunpack.c.l.b16 %v6737
  %v7417 = vunpack.c.h.b16 %v6737
  %v7418 = vunpack.c.l.b16 %v6738
  %v7419 = vunpack.c.h.b16 %v6738
  %v7420 = vunpack.c.l.b16 %v6739
  %v7421 = vunpack.c.h.b16 %v6739
  %v7422 = vunpack.c.l.b16 %v6740
  %v7423 = vunpack.c.h.b16 %v6740
  %v7424 = vunpack.c.l.b16 %v6741
  %v7425 = vunpack.c.h.b16 %v6741
  %v7426 = vunpack.c.l.b16 %v6742
  %v7427 = vunpack.c.h.b16 %v6742
  %v7428 = vunpack.c.l.b16 %v6743
  %v7429 = vunpack.c.h.b16 %v6743
  %v7430 = vunpack.c.l.b16 %v6744
  %v7431 = vunpack.c.h.b16 %v6744
  %v7432 = vunpack.c.l.b16 %v6745
  %v7433 = vunpack.c.h.b16 %v6745
  %v7434 = vunpack.c.l.b16 %v6746
  %v7435 = vunpack.c.h.b16 %v6746
  %v7436 = vunpack.c.l.b16 %v6747
  %v7437 = vunpack.c.h.b16 %v6747
  %v7438 = vunpack.c.l.b16 %v6748
  %v7439 = vunpack.c.h.b16 %v6748
  %v7440 = vunpack.c.l.b16 %v6749
  %v7441 = vunpack.c.h.b16 %v6749
  %v7442 = vunpack.c.l.b16 %v6750
  %v7443 = vunpack.c.h.b16 %v6750
  %v7444 = vunpack.c.l.b16 %v6751
  %v7445 = vunpack.c.h.b16 %v6751
  %v7446 = vunpack.c.l.b16 %v6752
  %v7447 = vunpack.c.h.b16 %v6752
  %v7448 = vunpack.c.l.b16 %v6753
  %v7449 = vunpack.c.h.b16 %v6753
  %v7450 = vunpack.c.l.b16 %v6754
  %v7451 = vunpack.c.h.b16 %v6754
  %v7452 = vunpack.c.l.b16 %v6755
  %v7453 = vunpack.c.h.b16 %v6755
  %v7454 = vunpack.c.l.b16 %v6756
  %v7455 = vunpack.c.h.b16 %v6756
  %v7456 = vunpack.c.l.b16 %v6757
  %v7457 = vunpack.c.h.b16 %v6757
  %v7458 = vunpack.c.l.b16 %v6758
  %v7459 = vunpack.c.h.b16 %v6758
  %v7460 = vunpack.c.l.b16 %v6759
  %v7461 = vunpack.c.h.b16 %v6759
  %v7462 = vunpack.c.l.b16 %v6760
  %v7463 = vunpack.c.h.b16 %v6760
  %v7464 = vunpack.c.l.b16 %v6761
  %v7465 = vunpack.c.h.b16 %v6761
  %v7466 = vunpack.c.l.b16 %v6762
  %v7467 = vunpack.c.h.b16 %v6762
  %v7468 = vunpack.c.l.b16 %v6763
  %v7469 = vunpack.c.h.b16 %v6763
  %v7470 = vunpack.c.l.b16 %v6764
  %v7471 = vunpack.c.h.b16 %v6764
  %v7472 = vunpack.c.l.b16 %v6765
  %v7473 = vunpack.c.h.b16 %v6765
  %v7474 = vunpack.c.l.b16 %v6766
  %v7475 = vunpack.c.h.b16 %v6766
  %v7476 = vunpack.c.l.b16 %v6767
  %v7477 = vunpack.c.h.b16 %v6767
  %v7478 = vunpack.c.l.b16 %v6768
  %v7479 = vunpack.c.h.b16 %v6768
  %v7480 = vunpack.c.l.b16 %v6769
  %v7481 = vunpack.c.h.b16 %v6769
  %v7482 = vunpack.c.l.b16 %v6770
  %v7483 = vunpack.c.h.b16 %v6770
  %v7484 = vunpack.c.l.b16 %v6771
  %v7485 = vunpack.c.h.b16 %v6771
  %v7486 = vunpack.c.l.b16 %v6772
  %v7487 = vunpack.c.h.b16 %v6772
  %v7488 = vunpack.c.l.b16 %v6773
  %v7489 = vunpack.c.h.b16 %v6773
  %v7490 = vunpack.c.l.b16 %v6774
  %v7491 = vunpack.c.h.b16 %v6774
  %v7492 = vunpack.c.l.b16 %v6775
  %v7493 = vunpack.c.h.b16 %v6775
  %v7494 = vunpack.c.l.b16 %v6776
  %v7495 = vunpack.c.h.b16 %v6776
  %v7496 = vunpack.c.l.b16 %v6777
  %v7497 = vunpack.c.h.b16 %v6777
  %v7498 = vunpack.c.l.b16 %v6778
  %v7499 = vunpack.c.h.b16 %v6778
  %v7500 = vunpack.c.l.b16 %v6779
  %v7501 = vunpack.c.h.b16 %v6779
  %v7502 = vunpack.c.l.b16 %v6780
  %v7503 = vunpack.c.h.b16 %v6780
  %v7504 = vunpack.c.l.b16 %v6781
  %v7505 = vunpack.c.h.b16 %v6781
  %v7506 = vunpack.c.l.b16 %v6782
  %v7507 = vunpack.c.h.b16 %v6782
  %v7508 = vunpack.c.l.b16 %v6783
  %v7509 = vunpack.c.h.b16 %v6783
  %v7510 = vunpack.c.l.b16 %v6784
  %v7511 = vunpack.c.h.b16 %v6784
  %v7512 = vunpack.c.l.b16 %v6785
  %v7513 = vunpack.c.h.b16 %v6785
  %v7514 = vunpack.c.l.b16 %v6786
  %v7515 = vunpack.c.h.b16 %v6786
  %v7516 = vunpack.c.l.b16 %v6787
  %v7517 = vunpack.c.h.b16 %v6787
  %v7518 = vunpack.c.l.b16 %v6788
  %v7519 = vunpack.c.h.b16 %v6788
  %v7520 = vunpack.c.l.b16 %v6789
  %v7521 = vunpack.c.h.b16 %v6789
  %v7522 = vunpack.c.l.b16 %v6790
  %v7523 = vunpack.c.h.b16 %v6790
  %v7524 = vunpack.c.l.b16 %v6791
  %v7525 = vunpack.c.h.b16 %v6791
  %v7526 = vunpack.c.l.b16 %v6792
  %v7527 = vunpack.c.h.b16 %v6792
  %v7528 = vunpack.c.l.b16 %v6793
  %v7529 = vunpack.c.h.b16 %v6793
  %v7530 = vunpack.c.l.b16 %v6794
  %v7531 = vunpack.c.h.b16 %v6794
  %v7532 = vunpack.c.l.b16 %v6795
  %v7533 = vunpack.c.h.b16 %v6795
  %v7534 = vunpack.c.l.b16 %v6796
  %v7535 = vunpack.c.h.b16 %v6796
  %v7536 = vunpack.c.l.b16 %v6797
  %v7537 = vunpack.c.h.b16 %v6797
  %v7538 = vunpack.c.l.b16 %v6798
  %v7539 = vunpack.c.h.b16 %v6798
  %v7540 = vunpack.c.l.b16 %v6799
  %v7541 = vunpack.c.h.b16 %v6799
  %v7542 = vunpack.c.l.b16 %v6800
  %v7543 = vunpack.c.h.b16 %v6800
  %v7544 = vunpack.c.l.b16 %v6801
  %v7545 = vunpack.c.h.b16 %v6801
  %v7546 = vunpack.c.l.b16 %v6802
  %v7547 = vunpack.c.h.b16 %v6802
  %v7548 = vunpack.c.l.b16 %v6803
  %v7549 = vunpack.c.h.b16 %v6803
  %v7550 = vunpack.c.l.b16 %v6804
  %v7551 = vunpack.c.h.b16 %v6804
  %v7552 = vunpack.c.l.b16 %v6805
  %v7553 = vunpack.c.h.b16 %v6805
  %v7554 = vunpack.c.l.b16 %v6806
  %v7555 = vunpack.c.h.b16 %v6806
  %v7556 = vunpack.c.l.b16 %v6807
  %v7557 = vunpack.c.h.b16 %v6807
  %v7558 = vunpack.c.l.b16 %v6808
  %v7559 = vunpack.c.h.b16 %v6808
  %v7560 = vunpack.c.l.b16 %v6809
  %v7561 = vunpack.c.h.b16 %v6809
  %v7562 = vunpack.c.l.b16 %v6810
  %v7563 = vunpack.c.h.b16 %v6810
  %v7564 = vunpack.c.l.b16 %v6811
  %v7565 = vunpack.c.h.b16 %v6811
  %v7566 = vunpack.c.l.b16 %v6812
  %v7567 = vunpack.c.h.b16 %v6812
  %v7568 = vunpack.c.l.b16 %v6813
  %v7569 = vunpack.c.h.b16 %v6813
  %v7570 = vunpack.c.l.b16 %v6814
  %v7571 = vunpack.c.h.b16 %v6814
  %v7572 = vunpack.c.l.b16 %v6815
  %v7573 = vunpack.c.h.b16 %v6815
  %v7574 = vunpack.c.l.b16 %v6816
  %v7575 = vunpack.c.h.b16 %v6816
  %v7576 = vunpack.c.l.b16 %v6817
  %v7577 = vunpack.c.h.b16 %v6817
  %v7578 = vunpack.c.l.b16 %v6818
  %v7579 = vunpack.c.h.b16 %v6818
  %v7580 = vunpack.c.l.b16 %v6819
  %v7581 = vunpack.c.h.b16 %v6819
  %v7582 = vunpack.c.l.b16 %v6820
  %v7583 = vunpack.c.h.b16 %v6820
  %v7584 = vunpack.c.l.b16 %v6821
  %v7585 = vunpack.c.h.b16 %v6821
  %v7586 = vunpack.c.l.b16 %v6822
  %v7587 = vunpack.c.h.b16 %v6822
  %v7588 = vunpack.c.l.b16 %v6823
  %v7589 = vunpack.c.h.b16 %v6823
  %v7590 = vunpack.c.l.b16 %v6824
  %v7591 = vunpack.c.h.b16 %v6824
  %v7592 = vunpack.c.l.b16 %v6825
  %v7593 = vunpack.c.h.b16 %v6825
  %v7594 = vunpack.c.l.b16 %v6826
  %v7595 = vunpack.c.h.b16 %v6826
  %v7596 = vunpack.c.l.b16 %v6827
  %v7597 = vunpack.c.h.b16 %v6827
  %v7598 = vunpack.c.l.b16 %v6828
  %v7599 = vunpack.c.h.b16 %v6828
  %v7600 = vunpack.c.l.b16 %v6829
  %v7601 = vunpack.c.h.b16 %v6829
  %v7602 = vunpack.c.l.b16 %v6830
  %v7603 = vunpack.c.h.b16 %v6830
  %v7604 = vunpack.c.l.b16 %v6831
  %v7605 = vunpack.c.h.b16 %v6831
  %v7606 = vunpack.c.l.b16 %v6832
  %v7607 = vunpack.c.h.b16 %v6832
  %v7608 = vunpack.c.l.b16 %v6833
  %v7609 = vunpack.c.h.b16 %v6833
  %v7610 = vunpack.c.l.b16 %v6834
  %v7611 = vunpack.c.h.b16 %v6834
  %v7612 = vunpack.c.l.b16 %v6835
  %v7613 = vunpack.c.h.b16 %v6835
  %v7614 = vunpack.c.l.b16 %v6836
  %v7615 = vunpack.c.h.b16 %v6836
  %v7616 = vunpack.c.l.b16 %v6837
  %v7617 = vunpack.c.h.b16 %v6837
  %v7618 = vunpack.c.l.b16 %v6838
  %v7619 = vunpack.c.h.b16 %v6838
  %v7620 = vunpack.c.l.b16 %v6839
  %v7621 = vunpack.c.h.b16 %v6839
  %v7622 = vunpack.c.l.b16 %v6840
  %v7623 = vunpack.c.h.b16 %v6840
  %v7624 = vunpack.c.l.b16 %v6841
  %v7625 = vunpack.c.h.b16 %v6841
  %v7626 = vunpack.c.l.b16 %v6842
  %v7627 = vunpack.c.h.b16 %v6842
  %v7628 = vunpack.c.l.b16 %v6843
  %v7629 = vunpack.c.h.b16 %v6843
  %v7630 = vunpack.c.l.b16 %v6844
  %v7631 = vunpack.c.h.b16 %v6844
  %v7632 = vunpack.c.l.b16 %v6845
  %v7633 = vunpack.c.h.b16 %v6845
  %v7634 = vunpack.c.l.b16 %v6846
  %v7635 = vunpack.c.h.b16 %v6846
  %v7636 = vunpack.c.l.b16 %v6847
  %v7637 = vunpack.c.h.b16 %v6847
  %v7638 = vunpack.c.l.b16 %v6848
  %v7639 = vunpack.c.h.b16 %v6848
  %v7640 = vunpack.c.l.b16 %v6849
  %v7641 = vunpack.c.h.b16 %v6849
  %v7642 = vunpack.c.l.b16 %v6850
  %v7643 = vunpack.c.h.b16 %v6850
  %v7644 = vunpack.c.l.b16 %v6851
  %v7645 = vunpack.c.h.b16 %v6851
  %v7646 = vunpack.c.l.b16 %v6852
  %v7647 = vunpack.c.h.b16 %v6852
  %v7648 = vunpack.c.l.b16 %v6853
  %v7649 = vunpack.c.h.b16 %v6853
  %v7650 = vunpack.c.l.b16 %v6854
  %v7651 = vunpack.c.h.b16 %v6854
  %v7652 = vunpack.c.l.b16 %v6855
  %v7653 = vunpack.c.h.b16 %v6855
  %v7654 = vunpack.c.l.b16 %v6856
  %v7655 = vunpack.c.h.b16 %v6856
  %v7656 = vunpack.c.l.b16 %v6857
  %v7657 = vunpack.c.h.b16 %v6857
  %v7658 = vunpack.c.l.b16 %v6858
  %v7659 = vunpack.c.h.b16 %v6858
  %v7660 = vunpack.c.l.b16 %v6859
  %v7661 = vunpack.c.h.b16 %v6859
  %v7662 = vunpack.c.l.b16 %v6860
  %v7663 = vunpack.c.h.b16 %v6860
  %v7664 = vunpack.c.l.b16 %v6861
  %v7665 = vunpack.c.h.b16 %v6861
  %v7666 = vunpack.c.l.b16 %v6862
  %v7667 = vunpack.c.h.b16 %v6862
  %v7668 = vunpack.c.l.b16 %v6863
  %v7669 = vunpack.c.h.b16 %v6863
  %v7670 = vunpack.c.l.b16 %v6864
  %v7671 = vunpack.c.h.b16 %v6864
  %v7672 = vunpack.c.l.b16 %v6865
  %v7673 = vunpack.c.h.b16 %v6865
  %v7674 = vunpack.c.l.b16 %v6866
  %v7675 = vunpack.c.h.b16 %v6866
  %v7676 = vunpack.c.l.b16 %v6867
  %v7677 = vunpack.c.h.b16 %v6867
  %v7678 = vunpack.c.l.b16 %v6868
  %v7679 = vunpack.c.h.b16 %v6868
  %v7680 = vunpack.c.l.b16 %v6869
  %v7681 = vunpack.c.h.b16 %v6869
  %v7682 = vunpack.c.l.b16 %v6870
  %v7683 = vunpack.c.h.b16 %v6870
  %v7684 = vunpack.c.l.b16 %v6871
  %v7685 = vunpack.c.h.b16 %v6871
  %v7686 = vunpack.c.l.b16 %v6872
  %v7687 = vunpack.c.h.b16 %v6872
  %v7688 = vunpack.c.l.b16 %v6873
  %v7689 = vunpack.c.h.b16 %v6873
  %v7690 = vunpack.c.l.b16 %v6874
  %v7691 = vunpack.c.h.b16 %v6874
  %v7692 = vunpack.c.l.b16 %v6875
  %v7693 = vunpack.c.h.b16 %v6875
  %v7694 = vunpack.c.l.b16 %v6876
  %v7695 = vunpack.c.h.b16 %v6876
  %v7696 = vunpack.c.l.b16 %v6877
  %v7697 = vunpack.c.h.b16 %v6877
  %v7698 = vunpack.c.l.b16 %v6878
  %v7699 = vunpack.c.h.b16 %v6878
  %v7700 = vunpack.c.l.b16 %v6879
  %v7701 = vunpack.c.h.b16 %v6879
  %v7702 = vunpack.c.l.b16 %v6880
  %v7703 = vunpack.c.h.b16 %v6880
  %v7704 = vunpack.c.l.b16 %v6881
  %v7705 = vunpack.c.h.b16 %v6881
  %v7706 = vunpack.c.l.b16 %v6882
  %v7707 = vunpack.c.h.b16 %v6882
  %v7708 = vunpack.c.l.b16 %v6883
  %v7709 = vunpack.c.h.b16 %v6883
  %v7710 = vunpack.c.l.b16 %v6884
  %v7711 = vunpack.c.h.b16 %v6884
  %v7712 = vunpack.c.l.b16 %v6885
  %v7713 = vunpack.c.h.b16 %v6885
  %v7714 = vunpack.c.l.b16 %v6886
  %v7715 = vunpack.c.h.b16 %v6886
  %v7716 = vunpack.c.l.b16 %v6887
  %v7717 = vunpack.c.h.b16 %v6887
  %v7718 = vunpack.c.l.b16 %v6888
  %v7719 = vunpack.c.h.b16 %v6888
  %v7720 = vunpack.c.l.b16 %v6889
  %v7721 = vunpack.c.h.b16 %v6889
  %v7722 = vunpack.c.l.b16 %v6890
  %v7723 = vunpack.c.h.b16 %v6890
  %v7724 = vunpack.c.l.b16 %v6891
  %v7725 = vunpack.c.h.b16 %v6891
  %v7726 = vunpack.c.l.b16 %v6892
  %v7727 = vunpack.c.h.b16 %v6892
  %v7728 = vunpack.c.l.b16 %v6893
  %v7729 = vunpack.c.h.b16 %v6893
  %v7730 = vunpack.c.l.b16 %v6894
  %v7731 = vunpack.c.h.b16 %v6894
  %v7732 = vunpack.c.l.b16 %v6895
  %v7733 = vunpack.c.h.b16 %v6895
  %v7734 = vunpack.c.l.b16 %v6896
  %v7735 = vunpack.c.h.b16 %v6896
  %v7736 = vunpack.c.l.b16 %v6897
  %v7737 = vunpack.c.h.b16 %v6897
  %v7738 = vunpack.c.l.b16 %v6898
  %v7739 = vunpack.c.h.b16 %v6898
  %v7740 = vunpack.c.l.b16 %v6899
  %v7741 = vunpack.c.h.b16 %v6899
  %v7742 = vunpack.c.l.b16 %v6900
  %v7743 = vunpack.c.h.b16 %v6900
  %v7744 = vunpack.c.l.b16 %v6901
  %v7745 = vunpack.c.h.b16 %v6901
  %v7746 = vunpack.c.l.b16 %v6902
  %v7747 = vunpack.c.h.b16 %v6902
  %v7748 = vunpack.c.l.b16 %v6903
  %v7749 = vunpack.c.h.b16 %v6903
  %v7750 = vunpack.c.l.b16 %v6904
  %v7751 = vunpack.c.h.b16 %v6904
  %v7752 = vunpack.c.l.b16 %v6905
  %v7753 = vunpack.c.h.b16 %v6905
  %v7754 = vunpack.c.l.b16 %v6906
  %v7755 = vunpack.c.h.b16 %v6906
  %v7756 = vunpack.c.l.b16 %v6907
  %v7757 = vunpack.c.h.b16 %v6907
  %v7758 = vunpack.c.l.b16 %v6908
  %v7759 = vunpack.c.h.b16 %v6908
  %v7760 = vunpack.c.l.b16 %v6909
  %v7761 = vunpack.c.h.b16 %v6909
  %v7762 = vunpack.c.l.b16 %v6910
  %v7763 = vunpack.c.h.b16 %v6910
  %v7764 = vunpack.c.l.b16 %v6911
  %v7765 = vunpack.c.h.b16 %v6911
  %v7766 = vunpack.c.l.b16 %v6912
  %v7767 = vunpack.c.h.b16 %v6912
  %v7768 = vunpack.c.l.b16 %v6913
  %v7769 = vunpack.c.h.b16 %v6913
  %v7770 = vunpack.c.l.b16 %v6914
  %v7771 = vunpack.c.h.b16 %v6914
  %v7772 = vunpack.c.l.b16 %v6915
  %v7773 = vunpack.c.h.b16 %v6915
  %v7774 = vunpack.c.l.b16 %v6916
  %v7775 = vunpack.c.h.b16 %v6916
  %v7776 = vunpack.c.l.b16 %v6917
  %v7777 = vunpack.c.h.b16 %v6917
  %v7778 = vunpack.c.l.b16 %v6918
  %v7779 = vunpack.c.h.b16 %v6918
  %v7780 = vunpack.c.l.b16 %v6919
  %v7781 = vunpack.c.h.b16 %v6919
  %v7782 = vunpack.c.l.b16 %v6920
  %v7783 = vunpack.c.h.b16 %v6920
  %v7784 = vunpack.c.l.b16 %v6921
  %v7785 = vunpack.c.h.b16 %v6921
  %v7786 = vunpack.c.l.b16 %v6922
  %v7787 = vunpack.c.h.b16 %v6922
  %v7788 = vunpack.c.l.b16 %v6923
  %v7789 = vunpack.c.h.b16 %v6923
  %v7790 = vunpack.c.l.b16 %v6924
  %v7791 = vunpack.c.h.b16 %v6924
  %v7792 = vunpack.c.l.b16 %v6925
  %v7793 = vunpack.c.h.b16 %v6925
  %v7794 = vunpack.c.l.b16 %v6926
  %v7795 = vunpack.c.h.b16 %v6926
  %v7796 = vunpack.c.l.b16 %v6927
  %v7797 = vunpack.c.h.b16 %v6927
  %v7798 = vunpack.c.l.b16 %v6928
  %v7799 = vunpack.c.h.b16 %v6928
  %v7800 = vunpack.c.l.b16 %v6929
  %v7801 = vunpack.c.h.b16 %v6929
  %v7802 = vunpack.c.l.b16 %v6930
  %v7803 = vunpack.c.h.b16 %v6930
  %v7804 = vunpack.c.l.b16 %v6931
  %v7805 = vunpack.c.h.b16 %v6931
  %v7806 = vunpack.c.l.b16 %v6932
  %v7807 = vunpack.c.h.b16 %v6932
  %v7808 = vunpack.c.l.b16 %v6933
  %v7809 = vunpack.c.h.b16 %v6933
  %v7810 = vunpack.c.l.b16 %v6934
  %v7811 = vunpack.c.h.b16 %v6934
  %v7812 = vunpack.c.l.b16 %v6935
  %v7813 = vunpack.c.h.b16 %v6935
  %v7814 = vunpack.c.l.b16 %v6936
  %v7815 = vunpack.c.h.b16 %v6936
  %v7816 = vunpack.c.l.b16 %v6937
  %v7817 = vunpack.c.h.b16 %v6937
  %v7818 = vunpack.c.l.b16 %v6938
  %v7819 = vunpack.c.h.b16 %v6938
  %v7820 = vunpack.c.l.b16 %v6939
  %v7821 = vunpack.c.h.b16 %v6939
  %v7822 = vpack.c.b16 %v7238, %v7234
  %v7823 = vpack.c.b16 %v7239, %v7235
  %v7824 = vpack.c.b16 %v7240, %v7236
  %v7825 = vpack.c.b16 %v7241, %v7237
  %v7826 = vpack.c.b16 %v7246, %v7242
  %v7827 = vpack.c.b16 %v7247, %v7243
  %v7828 = vpack.c.b16 %v7248, %v7244
  %v7829 = vpack.c.b16 %v7249, %v7245
  %v7830 = vpack.c.b16 %v7254, %v7250
  %v7831 = vpack.c.b16 %v7255, %v7251
  %v7832 = vpack.c.b16 %v7256, %v7252
  %v7833 = vpack.c.b16 %v7257, %v7253
  %v7834 = vpack.c.b16 %v7262, %v7258
  %v7835 = vpack.c.b16 %v7263, %v7259
  %v7836 = vpack.c.b16 %v7264, %v7260
  %v7837 = vpack.c.b16 %v7265, %v7261
  %v7838 = vpack.c.b16 %v7270, %v7266
  %v7839 = vpack.c.b16 %v7271, %v7267
  %v7840 = vpack.c.b16 %v7272, %v7268
  %v7841 = vpack.c.b16 %v7273, %v7269
  %v7842 = vpack.c.b16 %v7278, %v7274
  %v7843 = vpack.c.b16 %v7279, %v7275
  %v7844 = vpack.c.b16 %v7280, %v7276
  %v7845 = vpack.c.b16 %v7281, %v7277
  %v7846 = vpack.c.b16 %v7286, %v7282
  %v7847 = vpack.c.b16 %v7287, %v7283
  %v7848 = vpack.c.b16 %v7288, %v7284
  %v7849 = vpack.c.b16 %v7289, %v7285
  %v7850 = vpack.c.b16 %v7294, %v7290
  %v7851 = vpack.c.b16 %v7295, %v7291
  %v7852 = vpack.c.b16 %v7296, %v7292
  %v7853 = vpack.c.b16 %v7297, %v7293
  %v7854 = vpack.c.b16 %v7302, %v7298
  %v7855 = vpack.c.b16 %v7303, %v7299
  %v7856 = vpack.c.b16 %v7304, %v7300
  %v7857 = vpack.c.b16 %v7305, %v7301
  %v7858 = vpack.c.b16 %v7310, %v7306
  %v7859 = vpack.c.b16 %v7311, %v7307
  %v7860 = vpack.c.b16 %v7312, %v7308
  %v7861 = vpack.c.b16 %v7313, %v7309
  %v7862 = vpack.c.b16 %v7318, %v7314
  %v7863 = vpack.c.b16 %v7319, %v7315
  %v7864 = vpack.c.b16 %v7320, %v7316
  %v7865 = vpack.c.b16 %v7321, %v7317
  %v7866 = vpack.c.b16 %v7326, %v7322
  %v7867 = vpack.c.b16 %v7327, %v7323
  %v7868 = vpack.c.b16 %v7328, %v7324
  %v7869 = vpack.c.b16 %v7329, %v7325
  %v7870 = vpack.c.b16 %v7334, %v7330
  %v7871 = vpack.c.b16 %v7335, %v7331
  %v7872 = vpack.c.b16 %v7336, %v7332
  %v7873 = vpack.c.b16 %v7337, %v7333
  %v7874 = vpack.c.b16 %v7342, %v7338
  %v7875 = vpack.c.b16 %v7343, %v7339
  %v7876 = vpack.c.b16 %v7344, %v7340
  %v7877 = vpack.c.b16 %v7345, %v7341
  %v7878 = vpack.c.b16 %v7350, %v7346
  %v7879 = vpack.c.b16 %v7351, %v7347
  %v7880 = vpack.c.b16 %v7352, %v7348
  %v7881 = vpack.c.b16 %v7353, %v7349
  %v7882 = vpack.c.b16 %v7358, %v7354
  %v7883 = vpack.c.b16 %v7359, %v7355
  %v7884 = vpack.c.b16 %v7360, %v7356
  %v7885 = vpack.c.b16 %v7361, %v7357
  %v7886 = vpack.c.b16 %v7366, %v7362
  %v7887 = vpack.c.b16 %v7367, %v7363
  %v7888 = vpack.c.b16 %v7368, %v7364
  %v7889 = vpack.c.b16 %v7369, %v7365
  %v7890 = vpack.c.b16 %v7374, %v7370
  %v7891 = vpack.c.b16 %v7375, %v7371
  %v7892 = vpack.c.b16 %v7376, %v7372
  %v7893 = vpack.c.b16 %v7377, %v7373
  %v7894 = vpack.c.b16 %v7382, %v7378
  %v7895 = vpack.c.b16 %v7383, %v7379
  %v7896 = vpack.c.b16 %v7384, %v7380
  %v7897 = vpack.c.b16 %v7385, %v7381
  %v7898 = vpack.c.b16 %v7390, %v7386
  %v7899 = vpack.c.b16 %v7391, %v7387
  %v7900 = vpack.c.b16 %v7392, %v7388
  %v7901 = vpack.c.b16 %v7393, %v7389
  %v7902 = vpack.c.b16 %v7398, %v7394
  %v7903 = vpack.c.b16 %v7399, %v7395
  %v7904 = vpack.c.b16 %v7400, %v7396
  %v7905 = vpack.c.b16 %v7401, %v7397
  %v7906 = vpack.c.b16 %v7406, %v7402
  %v7907 = vpack.c.b16 %v7407, %v7403
  %v7908 = vpack.c.b16 %v7408, %v7404
  %v7909 = vpack.c.b16 %v7409, %v7405
  %v7910 = vpack.c.b16 %v7414, %v7410
  %v7911 = vpack.c.b16 %v7415, %v7411
  %v7912 = vpack.c.b16 %v7416, %v7412
  %v7913 = vpack.c.b16 %v7417, %v7413
  %v7914 = vpack.c.b16 %v7422, %v7418
  %v7915 = vpack.c.b16 %v7423, %v7419
  %v7916 = vpack.c.b16 %v7424, %v7420
  %v7917 = vpack.c.b16 %v7425, %v7421
  %v7918 = vpack.c.b16 %v7430, %v7426
  %v7919 = vpack.c.b16 %v7431, %v7427
  %v7920 = vpack.c.b16 %v7432, %v7428
  %v7921 = vpack.c.b16 %v7433, %v7429
  %v7922 = vpack.c.b16 %v7438, %v7434
  %v7923 = vpack.c.b16 %v7439, %v7435
  %v7924 = vpack.c.b16 %v7440, %v7436
  %v7925 = vpack.c.b16 %v7441, %v7437
  %v7926 = vpack.c.b16 %v7446, %v7442
  %v7927 = vpack.c.b16 %v7447, %v7443
  %v7928 = vpack.c.b16 %v7448, %v7444
  %v7929 = vpack.c.b16 %v7449, %v7445
  %v7930 = vpack.c.b16 %v7454, %v7450
  %v7931 = vpack.c.b16 %v7455, %v7451
  %v7932 = vpack.c.b16 %v7456, %v7452
  %v7933 = vpack.c.b16 %v7457, %v7453
  %v7934 = vpack.c.b16 %v7462, %v7458
  %v7935 = vpack.c.b16 %v7463, %v7459
  %v7936 = vpack.c.b16 %v7464, %v7460
  %v7937 = vpack.c.b16 %v7465, %v7461
  %v7938 = vpack.c.b16 %v7470, %v7466
  %v7939 = vpack.c.b16 %v7471, %v7467
  %v7940 = vpack.c.b16 %v7472, %v7468
  %v7941 = vpack.c.b16 %v7473, %v7469
  %v7942 = vpack.c.b16 %v7478, %v7474
  %v7943 = vpack.c.b16 %v7479, %v7475
  %v7944 = vpack.c.b16 %v7480, %v7476
  %v7945 = vpack.c.b16 %v7481, %v7477
  %v7946 = vpack.c.b16 %v7486, %v7482
  %v7947 = vpack.c.b16 %v7487, %v7483
  %v7948 = vpack.c.b16 %v7488, %v7484
  %v7949 = vpack.c.b16 %v7489, %v7485
  %v7950 = vpack.c.b16 %v7494, %v7490
  %v7951 = vpack.c.b16 %v7495, %v7491
  %v7952 = vpack.c.b16 %v7496, %v7492
  %v7953 = vpack.c.b16 %v7497, %v7493
  %v7954 = vpack.c.b16 %v7502, %v7498
  %v7955 = vpack.c.b16 %v7503, %v7499
  %v7956 = vpack.c.b16 %v7504, %v7500
  %v7957 = vpack.c.b16 %v7505, %v7501
  %v7958 = vpack.c.b16 %v7510, %v7506
  %v7959 = vpack.c.b16 %v7511, %v7507
  %v7960 = vpack.c.b16 %v7512, %v7508
  %v7961 = vpack.c.b16 %v7513, %v7509
  %v7962 = vpack.c.b16 %v7518, %v7514
  %v7963 = vpack.c.b16 %v7519, %v7515
  %v7964 = vpack.c.b16 %v7520, %v7516
  %v7965 = vpack.c.b16 %v7521, %v7517
  %v7966 = vpack.c.b16 %v7526, %v7522
  %v7967 = vpack.c.b16 %v7527, %v7523
  %v7968 = vpack.c.b16 %v7528, %v7524
  %v7969 = vpack.c.b16 %v7529, %v7525
  %v7970 = vpack.c.b16 %v7534, %v7530
  %v7971 = vpack.c.b16 %v7535, %v7531
  %v7972 = vpack.c.b16 %v7536, %v7532
  %v7973 = vpack.c.b16 %v7537, %v7533
  %v7974 = vpack.c.b16 %v7542, %v7538
  %v7975 = vpack.c.b16 %v7543, %v7539
  %v7976 = vpack.c.b16 %v7544, %v7540
  %v7977 = vpack.c.b16 %v7545, %v7541
  %v7978 = vpack.c.b16 %v7550, %v7546
  %v7979 = vpack.c.b16 %v7551, %v7547
  %v7980 = vpack.c.b16 %v7552, %v7548
  %v7981 = vpack.c.b16 %v7553, %v7549
  %v7982 = vpack.c.b16 %v7558, %v7554
  %v7983 = vpack.c.b16 %v7559, %v7555
  %v7984 = vpack.c.b16 %v7560, %v7556
  %v7985 = vpack.c.b16 %v7561, %v7557
  %v7986 = vpack.c.b16 %v7566, %v7562
  %v7987 = vpack.c.b16 %v7567, %v7563
  %v7988 = vpack.c.b16 %v7568, %v7564
  %v7989 = vpack.c.b16 %v7569, %v7565
  %v7990 = vpack.c.b16 %v7574, %v7570
  %v7991 = vpack.c.b16 %v7575, %v7571
  %v7992 = vpack.c.b16 %v7576, %v7572
  %v7993 = vpack.c.b16 %v7577, %v7573
  %v7994 = vpack.c.b16 %v7582, %v7578
  %v7995 = vpack.c.b16 %v7583, %v7579
  %v7996 = vpack.c.b16 %v7584, %v7580
  %v7997 = vpack.c.b16 %v7585, %v7581
  %v7998 = vpack.c.b16 %v7590, %v7586
  %v7999 = vpack.c.b16 %v7591, %v7587
  %v8000 = vpack.c.b16 %v7592, %v7588
  %v8001 = vpack.c.b16 %v7593, %v7589
  %v8002 = vpack.c.b16 %v7598, %v7594
  %v8003 = vpack.c.b16 %v7599, %v7595
  %v8004 = vpack.c.b16 %v7600, %v7596
  %v8005 = vpack.c.b16 %v7601, %v7597
  %v8006 = vpack.c.b16 %v7606, %v7602
  %v8007 = vpack.c.b16 %v7607, %v7603
  %v8008 = vpack.c.b16 %v7608, %v7604
  %v8009 = vpack.c.b16 %v7609, %v7605
  %v8010 = vpack.c.b16 %v7614, %v7610
  %v8011 = vpack.c.b16 %v7615, %v7611
  %v8012 = vpack.c.b16 %v7616, %v7612
  %v8013 = vpack.c.b16 %v7617, %v7613
  %v8014 = vpack.c.b16 %v7622, %v7618
  %v8015 = vpack.c.b16 %v7623, %v7619
  %v8016 = vpack.c.b16 %v7624, %v7620
  %v8017 = vpack.c.b16 %v7625, %v7621
  %v8018 = vpack.c.b16 %v7630, %v7626
  %v8019 = vpack.c.b16 %v7631, %v7627
  %v8020 = vpack.c.b16 %v7632, %v7628
  %v8021 = vpack.c.b16 %v7633, %v7629
  %v8022 = vpack.c.b16 %v7638, %v7634
  %v8023 = vpack.c.b16 %v7639, %v7635
  %v8024 = vpack.c.b16 %v7640, %v7636
  %v8025 = vpack.c.b16 %v7641, %v7637
  %v8026 = vpack.c.b16 %v7646, %v7642
  %v8027 = vpack.c.b16 %v7647, %v7643
  %v8028 = vpack.c.b16 %v7648, %v7644
  %v8029 = vpack.c.b16 %v7649, %v7645
  %v8030 = vpack.c.b16 %v7654, %v7650
  %v8031 = vpack.c.b16 %v7655, %v7651
  %v8032 = vpack.c.b16 %v7656, %v7652
  %v8033 = vpack.c.b16 %v7657, %v7653
  %v8034 = vpack.c.b16 %v7662, %v7658
  %v8035 = vpack.c.b16 %v7663, %v7659
  %v8036 = vpack.c.b16 %v7664, %v7660
  %v8037 = vpack.c.b16 %v7665, %v7661
  %v8038 = vpack.c.b16 %v7670, %v7666
  %v8039 = vpack.c.b16 %v7671, %v7667
  %v8040 = vpack.c.b16 %v7672, %v7668
  %v8041 = vpack.c.b16 %v7673, %v7669
  %v8042 = vpack.c.b16 %v7678, %v7674
  %v8043 = vpack.c.b16 %v7679, %v7675
  %v8044 = vpack.c.b16 %v7680, %v7676
  %v8045 = vpack.c.b16 %v7681, %v7677
  %v8046 = vpack.c.b16 %v7686, %v7682
  %v8047 = vpack.c.b16 %v7687, %v7683
  %v8048 = vpack.c.b16 %v7688, %v7684
  %v8049 = vpack.c.b16 %v7689, %v7685
  %v8050 = vpack.c.b16 %v7694, %v7690
  %v8051 = vpack.c.b16 %v7695, %v7691
  %v8052 = vpack.c.b16 %v7696, %v7692
  %v8053 = vpack.c.b16 %v7697, %v7693
  %v8054 = vpack.c.b16 %v7702, %v7698
  %v8055 = vpack.c.b16 %v7703, %v7699
  %v8056 = vpack.c.b16 %v7704, %v7700
  %v8057 = vpack.c.b16 %v7705, %v7701
  %v8058 = vpack.c.b16 %v7710, %v7706
  %v8059 = vpack.c.b16 %v7711, %v7707
  %v8060 = vpack.c.b16 %v7712, %v7708
  %v8061 = vpack.c.b16 %v7713, %v7709
  %v8062 = vpack.c.b16 %v7718, %v7714
  %v8063 = vpack.c.b16 %v7719, %v7715
  %v8064 = vpack.c.b16 %v7720, %v7716
  %v8065 = vpack.c.b16 %v7721, %v7717
  %v8066 = vpack.c.b16 %v7726, %v7722
  %v8067 = vpack.c.b16 %v7727, %v7723
  %v8068 = vpack.c.b16 %v7728, %v7724
  %v8069 = vpack.c.b16 %v7729, %v7725
  %v8070 = vpack.c.b16 %v7734, %v7730
  %v8071 = vpack.c.b16 %v7735, %v7731
  %v8072 = vpack.c.b16 %v7736, %v7732
  %v8073 = vpack.c.b16 %v7737, %v7733
  %v8074 = vpack.c.b16 %v7742, %v7738
  %v8075 = vpack.c.b16 %v7743, %v7739
  %v8076 = vpack.c.b16 %v7744, %v7740
  %v8077 = vpack.c.b16 %v7745, %v7741
  %v8078 = vpack.c.b16 %v7750, %v7746
  %v8079 = vpack.c.b16 %v7751, %v7747
  %v8080 = vpack.c.b16 %v7752, %v7748
  %v8081 = vpack.c.b16 %v7753, %v7749
  %v8082 = vpack.c.b16 %v7758, %v7754
  %v8083 = vpack.c.b16 %v7759, %v7755
  %v8084 = vpack.c.b16 %v7760, %v7756
  %v8085 = vpack.c.b16 %v7761, %v7757
  %v8086 = vpack.c.b16 %v7766, %v7762
  %v8087 = vpack.c.b16 %v7767, %v7763
  %v8088 = vpack.c.b16 %v7768, %v7764
  %v8089 = vpack.c.b16 %v7769, %v7765
  %v8090 = vpack.c.b16 %v7774, %v7770
  %v8091 = vpack.c.b16 %v7775, %v7771
  %v8092 = vpack.c.b16 %v7776, %v7772
  %v8093 = vpack.c.b16 %v7777, %v7773
  %v8094 = vpack.c.b16 %v7782, %v7778
  %v8095 = vpack.c.b16 %v7783, %v7779
  %v8096 = vpack.c.b16 %v7784, %v7780
  %v8097 = vpack.c.b16 %v7785, %v7781
  %v8098 = vpack.c.b16 %v7790, %v7786
  %v8099 = vpack.c.b16 %v7791, %v7787
  %v8100 = vpack.c.b16 %v7792, %v7788
  %v8101 = vpack.c.b16 %v7793, %v7789
  %v8102 = vpack.c.b16 %v7798, %v7794
  %v8103 = vpack.c.b16 %v7799, %v7795
  %v8104 = vpack.c.b16 %v7800, %v7796
  %v8105 = vpack.c.b16 %v7801, %v7797
  %v8106 = vpack.c.b16 %v7806, %v7802
  %v8107 = vpack.c.b16 %v7807, %v7803
  %v8108 = vpack.c.b16 %v7808, %v7804
  %v8109 = vpack.c.b16 %v7809, %v7805
  %v8110 = vpack.c.b16 %v7814, %v7810
  %v8111 = vpack.c.b16 %v7815, %v7811
  %v8112 = vpack.c.b16 %v7816, %v7812
  %v8113 = vpack.c.b16 %v7817, %v7813
  %v8114 = vpack.c.b16 %v7818, %v7818
  %v8115 = vpack.c.b16 %v7819, %v7819
  %v8116 = vpack.c.b16 %v7820, %v7820
  %v8117 = vpack.c.b16 %v7821, %v7821
  %v8411 = vsel %vm1840, %v8114, 0
  %v8414 = vsel %vm1840, %v8115, 0
  %v8417 = vsel %vm1840, %v8116, 0
  %v8420 = vsel %vm1840, %v8117, 0
  %8422 = vmatprep.subr.bf16.mxu0 %v7823
  %8423 = vmatpush1.bf16.msra.mxu0 %v7822
  %8424 = vmatprep.subr.bf16.mxu0 %v7827
  %8425 = vmatpush1.bf16.msra.mxu0 %v7826
  %8426 = vmatprep.subr.bf16.mxu0 %v7831
  %8427 = vmatpush1.bf16.msra.mxu0 %v7830
  %8428 = vmatprep.subr.bf16.mxu0 %v7835
  %8429 = vmatpush1.bf16.msra.mxu0 %v7834
  %8430 = vmatprep.subr.bf16.mxu0 %v7839
  %8431 = vmatpush1.bf16.msra.mxu0 %v7838
  %8432 = vmatprep.subr.bf16.mxu0 %v7843
  %8433 = vmatpush1.bf16.msra.mxu0 %v7842
  %8434 = vmatprep.subr.bf16.mxu0 %v7847
  %8435 = vmatpush1.bf16.msra.mxu0 %v7846
  %8436 = vmatprep.subr.bf16.mxu0 %v7851
  %8437 = vmatpush1.bf16.msra.mxu0 %v7850
  %8438 = vmatprep.subr.bf16.mxu0 %v7855
  %8439 = vmatpush1.bf16.msra.mxu0 %v7854
  %8440 = vmatprep.subr.bf16.mxu0 %v7859
  %8441 = vmatpush1.bf16.msra.mxu0 %v7858
  %8442 = vmatprep.subr.bf16.mxu0 %v7863
  %8443 = vmatpush1.bf16.msra.mxu0 %v7862
  %8444 = vmatprep.subr.bf16.mxu0 %v7867
  %8445 = vmatpush1.bf16.msra.mxu0 %v7866
  %8446 = vmatprep.subr.bf16.mxu0 %v7871
  %8447 = vmatpush1.bf16.msra.mxu0 %v7870
  %8448 = vmatprep.subr.bf16.mxu0 %v7875
  %8449 = vmatpush1.bf16.msra.mxu0 %v7874
  %8450 = vmatprep.subr.bf16.mxu0 %v7879
  %8451 = vmatpush1.bf16.msra.mxu0 %v7878
  %8452 = vmatprep.subr.bf16.mxu0 %v7883
  %8453 = vmatpush1.bf16.msra.mxu0 %v7882
  %8454 = vmatprep.mubr.bf16.mxu0 %v348
  %8455 = vmatmul.mubr.bf16.gmra.mrb[0].mxu0 %v347
  %v8456 = vpop.f32.mrb[0].mxu0
  %v8457 = vadd.f32 0.0, %v8456
  %v8458 = vpop.f32.mrb[0].mxu0
  %v8459 = vadd.f32 0.0, %v8458
  %v8460 = vpop.f32.mrb[0].mxu0
  %v8461 = vpop.f32.mrb[0].mxu0
  %8462 = vdwg.mxu0
  %8463 = vmatprep.subr.bf16.mxu0 %v7887
  %8464 = vmatpush1.bf16.msra.mxu0 %v7886
  %8465 = vmatprep.subr.bf16.mxu0 %v7891
  %8466 = vmatpush1.bf16.msra.mxu0 %v7890
  %8467 = vmatprep.subr.bf16.mxu0 %v7895
  %8468 = vmatpush1.bf16.msra.mxu0 %v7894
  %8469 = vmatprep.subr.bf16.mxu0 %v7899
  %8470 = vmatpush1.bf16.msra.mxu0 %v7898
  %8471 = vmatprep.subr.bf16.mxu0 %v7903
  %8472 = vmatpush1.bf16.msra.mxu0 %v7902
  %8473 = vmatprep.subr.bf16.mxu0 %v7907
  %8474 = vmatpush1.bf16.msra.mxu0 %v7906
  %8475 = vmatprep.subr.bf16.mxu0 %v7911
  %8476 = vmatpush1.bf16.msra.mxu0 %v7910
  %8477 = vmatprep.subr.bf16.mxu0 %v7915
  %8478 = vmatpush1.bf16.msra.mxu0 %v7914
  %8479 = vmatprep.subr.bf16.mxu0 %v7919
  %8480 = vmatpush1.bf16.msra.mxu0 %v7918
  %8481 = vmatprep.subr.bf16.mxu0 %v7923
  %8482 = vmatpush1.bf16.msra.mxu0 %v7922
  %8483 = vmatprep.subr.bf16.mxu0 %v7927
  %8484 = vmatpush1.bf16.msra.mxu0 %v7926
  %8485 = vmatprep.subr.bf16.mxu0 %v7931
  %8486 = vmatpush1.bf16.msra.mxu0 %v7930
  %8487 = vmatprep.subr.bf16.mxu0 %v7935
  %8488 = vmatpush1.bf16.msra.mxu0 %v7934
  %8489 = vmatprep.subr.bf16.mxu0 %v7939
  %8490 = vmatpush1.bf16.msra.mxu0 %v7938
  %8491 = vmatprep.subr.bf16.mxu0 %v7943
  %8492 = vmatpush1.bf16.msra.mxu0 %v7942
  %8493 = vmatprep.subr.bf16.mxu0 %v7947
  %8494 = vmatpush1.bf16.msra.mxu0 %v7946
  %8495 = vmatprep.mubr.bf16.mxu0 %v350
  %8496 = vmatmul.mubr.bf16.gmra.mrb[0].mxu0 %v349
  %v8497 = vpop.f32.mrb[0].mxu0
  %v8498 = vadd.f32 %v8457, %v8497
  %v8499 = vpop.f32.mrb[0].mxu0
  %v8500 = vadd.f32 %v8459, %v8499
  %v8501 = vpop.f32.mrb[0].mxu0
  %v8502 = vpop.f32.mrb[0].mxu0
  %8503 = vdwg.mxu0
  %8504 = vmatprep.subr.bf16.mxu0 %v7951
  %8505 = vmatpush1.bf16.msra.mxu0 %v7950
  %8506 = vmatprep.subr.bf16.mxu0 %v7955
  %8507 = vmatpush1.bf16.msra.mxu0 %v7954
  %8508 = vmatprep.subr.bf16.mxu0 %v7959
  %8509 = vmatpush1.bf16.msra.mxu0 %v7958
  %8510 = vmatprep.subr.bf16.mxu0 %v7963
  %8511 = vmatpush1.bf16.msra.mxu0 %v7962
  %8512 = vmatprep.subr.bf16.mxu0 %v7967
  %8513 = vmatpush1.bf16.msra.mxu0 %v7966
  %8514 = vmatprep.subr.bf16.mxu0 %v7971
  %8515 = vmatpush1.bf16.msra.mxu0 %v7970
  %8516 = vmatprep.subr.bf16.mxu0 %v7975
  %8517 = vmatpush1.bf16.msra.mxu0 %v7974
  %8518 = vmatprep.subr.bf16.mxu0 %v7979
  %8519 = vmatpush1.bf16.msra.mxu0 %v7978
  %8520 = vmatprep.subr.bf16.mxu0 %v7983
  %8521 = vmatpush1.bf16.msra.mxu0 %v7982
  %8522 = vmatprep.subr.bf16.mxu0 %v7987
  %8523 = vmatpush1.bf16.msra.mxu0 %v7986
  %8524 = vmatprep.subr.bf16.mxu0 %v7991
  %8525 = vmatpush1.bf16.msra.mxu0 %v7990
  %8526 = vmatprep.subr.bf16.mxu0 %v7995
  %8527 = vmatpush1.bf16.msra.mxu0 %v7994
  %8528 = vmatprep.subr.bf16.mxu0 %v7999
  %8529 = vmatpush1.bf16.msra.mxu0 %v7998
  %8530 = vmatprep.subr.bf16.mxu0 %v8003
  %8531 = vmatpush1.bf16.msra.mxu0 %v8002
  %8532 = vmatprep.subr.bf16.mxu0 %v8007
  %8533 = vmatpush1.bf16.msra.mxu0 %v8006
  %8534 = vmatprep.subr.bf16.mxu0 %v8011
  %8535 = vmatpush1.bf16.msra.mxu0 %v8010
  %8536 = vmatprep.mubr.bf16.mxu0 %v352
  %8537 = vmatmul.mubr.bf16.gmra.mrb[0].mxu0 %v351
  %v8538 = vpop.f32.mrb[0].mxu0
  %v8539 = vadd.f32 %v8498, %v8538
  %v8540 = vpop.f32.mrb[0].mxu0
  %v8541 = vadd.f32 %v8500, %v8540
  %v8542 = vpop.f32.mrb[0].mxu0
  %v8543 = vpop.f32.mrb[0].mxu0
  %8544 = vdwg.mxu0
  %8545 = vmatprep.subr.bf16.mxu0 %v8015
  %8546 = vmatpush1.bf16.msra.mxu0 %v8014
  %8547 = vmatprep.subr.bf16.mxu0 %v8019
  %8548 = vmatpush1.bf16.msra.mxu0 %v8018
  %8549 = vmatprep.subr.bf16.mxu0 %v8023
  %8550 = vmatpush1.bf16.msra.mxu0 %v8022
  %8551 = vmatprep.subr.bf16.mxu0 %v8027
  %8552 = vmatpush1.bf16.msra.mxu0 %v8026
  %8553 = vmatprep.subr.bf16.mxu0 %v8031
  %8554 = vmatpush1.bf16.msra.mxu0 %v8030
  %8555 = vmatprep.subr.bf16.mxu0 %v8035
  %8556 = vmatpush1.bf16.msra.mxu0 %v8034
  %8557 = vmatprep.subr.bf16.mxu0 %v8039
  %8558 = vmatpush1.bf16.msra.mxu0 %v8038
  %8559 = vmatprep.subr.bf16.mxu0 %v8043
  %8560 = vmatpush1.bf16.msra.mxu0 %v8042
  %8561 = vmatprep.subr.bf16.mxu0 %v8047
  %8562 = vmatpush1.bf16.msra.mxu0 %v8046
  %8563 = vmatprep.subr.bf16.mxu0 %v8051
  %8564 = vmatpush1.bf16.msra.mxu0 %v8050
  %8565 = vmatprep.subr.bf16.mxu0 %v8055
  %8566 = vmatpush1.bf16.msra.mxu0 %v8054
  %8567 = vmatprep.subr.bf16.mxu0 %v8059
  %8568 = vmatpush1.bf16.msra.mxu0 %v8058
  %8569 = vmatprep.subr.bf16.mxu0 %v8063
  %8570 = vmatpush1.bf16.msra.mxu0 %v8062
  %8571 = vmatprep.subr.bf16.mxu0 %v8067
  %8572 = vmatpush1.bf16.msra.mxu0 %v8066
  %8573 = vmatprep.subr.bf16.mxu0 %v8071
  %8574 = vmatpush1.bf16.msra.mxu0 %v8070
  %8575 = vmatprep.subr.bf16.mxu0 %v8075
  %8576 = vmatpush1.bf16.msra.mxu0 %v8074
  %8577 = vmatprep.mubr.bf16.mxu0 %v354
  %8578 = vmatmul.mubr.bf16.gmra.mrb[0].mxu0 %v353
  %v8579 = vpop.f32.mrb[0].mxu0
  %v8580 = vadd.f32 %v8539, %v8579
  %v8581 = vpop.f32.mrb[0].mxu0
  %v8582 = vadd.f32 %v8541, %v8581
  %v8583 = vpop.f32.mrb[0].mxu0
  %v8584 = vpop.f32.mrb[0].mxu0
  %8585 = vdwg.mxu0
  %8586 = vmatprep.subr.bf16.mxu0 %v8079
  %8587 = vmatpush1.bf16.msra.mxu0 %v8078
  %8588 = vmatprep.subr.bf16.mxu0 %v8083
  %8589 = vmatpush1.bf16.msra.mxu0 %v8082
  %8590 = vmatprep.subr.bf16.mxu0 %v8087
  %8591 = vmatpush1.bf16.msra.mxu0 %v8086
  %8592 = vmatprep.subr.bf16.mxu0 %v8091
  %8593 = vmatpush1.bf16.msra.mxu0 %v8090
  %8594 = vmatprep.subr.bf16.mxu0 %v8095
  %8595 = vmatpush1.bf16.msra.mxu0 %v8094
  %8596 = vmatprep.subr.bf16.mxu0 %v8099
  %8597 = vmatpush1.bf16.msra.mxu0 %v8098
  %8598 = vmatprep.subr.bf16.mxu0 %v8103
  %8599 = vmatpush1.bf16.msra.mxu0 %v8102
  %8600 = vmatprep.subr.bf16.mxu0 %v8107
  %8601 = vmatpush1.bf16.msra.mxu0 %v8106
  %8602 = vmatprep.subr.bf16.mxu0 %v8111
  %8603 = vmatpush1.bf16.msra.mxu0 %v8110
  %8604 = vmatprep.subr.bf16.mxu0 %v8414
  %8605 = vmatpush1.bf16.msra.mxu0 %v8411
  %8606 = vmatprep.subr.bf16.mxu0 0
  %8607 = vmatpush1.bf16.msra.mxu0 0
  %8608 = vmatprep.subr.bf16.mxu0 0
  %8609 = vmatpush1.bf16.msra.mxu0 0
  %8610 = vmatprep.subr.bf16.mxu0 0
  %8611 = vmatpush1.bf16.msra.mxu0 0
  %8612 = vmatprep.subr.bf16.mxu0 0
  %8613 = vmatpush1.bf16.msra.mxu0 0
  %8614 = vmatprep.subr.bf16.mxu0 0
  %8615 = vmatpush1.bf16.msra.mxu0 0
  %8616 = vmatprep.subr.bf16.mxu0 0
  %8617 = vmatpush1.bf16.msra.mxu0 0
  %8618 = vmatprep.mubr.bf16.mxu0 %v1838
  %8619 = vmatmul.mubr.bf16.gmra.mrb[0].mxu0 %v355
  %v8620 = vpop.f32.mrb[0].mxu0
  %v8621 = vadd.f32 %v8580, %v8620
  %v8622 = vpop.f32.mrb[0].mxu0
  %v8623 = vadd.f32 %v8582, %v8622
  %v8624 = vpop.f32.mrb[0].mxu0
  %v8625 = vpop.f32.mrb[0].mxu0
  %8626 = vdwg.mxu0
  %8627 = vmatprep.subr.bf16.mxu0 %v7825
  %8628 = vmatpush1.bf16.msra.mxu0 %v7824
  %8629 = vmatprep.subr.bf16.mxu0 %v7829
  %8630 = vmatpush1.bf16.msra.mxu0 %v7828
  %8631 = vmatprep.subr.bf16.mxu0 %v7833
  %8632 = vmatpush1.bf16.msra.mxu0 %v7832
  %8633 = vmatprep.subr.bf16.mxu0 %v7837
  %8634 = vmatpush1.bf16.msra.mxu0 %v7836
  %8635 = vmatprep.subr.bf16.mxu0 %v7841
  %8636 = vmatpush1.bf16.msra.mxu0 %v7840
  %8637 = vmatprep.subr.bf16.mxu0 %v7845
  %8638 = vmatpush1.bf16.msra.mxu0 %v7844
  %8639 = vmatprep.subr.bf16.mxu0 %v7849
  %8640 = vmatpush1.bf16.msra.mxu0 %v7848
  %8641 = vmatprep.subr.bf16.mxu0 %v7853
  %8642 = vmatpush1.bf16.msra.mxu0 %v7852
  %8643 = vmatprep.subr.bf16.mxu0 %v7857
  %8644 = vmatpush1.bf16.msra.mxu0 %v7856
  %8645 = vmatprep.subr.bf16.mxu0 %v7861
  %8646 = vmatpush1.bf16.msra.mxu0 %v7860
  %8647 = vmatprep.subr.bf16.mxu0 %v7865
  %8648 = vmatpush1.bf16.msra.mxu0 %v7864
  %8649 = vmatprep.subr.bf16.mxu0 %v7869
  %8650 = vmatpush1.bf16.msra.mxu0 %v7868
  %8651 = vmatprep.subr.bf16.mxu0 %v7873
  %8652 = vmatpush1.bf16.msra.mxu0 %v7872
  %8653 = vmatprep.subr.bf16.mxu0 %v7877
  %8654 = vmatpush1.bf16.msra.mxu0 %v7876
  %8655 = vmatprep.subr.bf16.mxu0 %v7881
  %8656 = vmatpush1.bf16.msra.mxu0 %v7880
  %8657 = vmatprep.subr.bf16.mxu0 %v7885
  %8658 = vmatpush1.bf16.msra.mxu0 %v7884
  %8659 = vmatprep.mubr.bf16.mxu0 %v348
  %8660 = vmatmul.mubr.bf16.gmra.mrb[0].mxu0 %v347
  %v8661 = vpop.f32.mrb[0].mxu0
  %v8662 = vadd.f32 0.0, %v8661
  %v8663 = vpop.f32.mrb[0].mxu0
  %v8664 = vadd.f32 0.0, %v8663
  %v8665 = vpop.f32.mrb[0].mxu0
  %v8666 = vpop.f32.mrb[0].mxu0
  %8667 = vdwg.mxu0
  %8668 = vmatprep.subr.bf16.mxu0 %v7889
  %8669 = vmatpush1.bf16.msra.mxu0 %v7888
  %8670 = vmatprep.subr.bf16.mxu0 %v7893
  %8671 = vmatpush1.bf16.msra.mxu0 %v7892
  %8672 = vmatprep.subr.bf16.mxu0 %v7897
  %8673 = vmatpush1.bf16.msra.mxu0 %v7896
  %8674 = vmatprep.subr.bf16.mxu0 %v7901
  %8675 = vmatpush1.bf16.msra.mxu0 %v7900
  %8676 = vmatprep.subr.bf16.mxu0 %v7905
  %8677 = vmatpush1.bf16.msra.mxu0 %v7904
  %8678 = vmatprep.subr.bf16.mxu0 %v7909
  %8679 = vmatpush1.bf16.msra.mxu0 %v7908
  %8680 = vmatprep.subr.bf16.mxu0 %v7913
  %8681 = vmatpush1.bf16.msra.mxu0 %v7912
  %8682 = vmatprep.subr.bf16.mxu0 %v7917
  %8683 = vmatpush1.bf16.msra.mxu0 %v7916
  %8684 = vmatprep.subr.bf16.mxu0 %v7921
  %8685 = vmatpush1.bf16.msra.mxu0 %v7920
  %8686 = vmatprep.subr.bf16.mxu0 %v7925
  %8687 = vmatpush1.bf16.msra.mxu0 %v7924
  %8688 = vmatprep.subr.bf16.mxu0 %v7929
  %8689 = vmatpush1.bf16.msra.mxu0 %v7928
  %8690 = vmatprep.subr.bf16.mxu0 %v7933
  %8691 = vmatpush1.bf16.msra.mxu0 %v7932
  %8692 = vmatprep.subr.bf16.mxu0 %v7937
  %8693 = vmatpush1.bf16.msra.mxu0 %v7936
  %8694 = vmatprep.subr.bf16.mxu0 %v7941
  %8695 = vmatpush1.bf16.msra.mxu0 %v7940
  %8696 = vmatprep.subr.bf16.mxu0 %v7945
  %8697 = vmatpush1.bf16.msra.mxu0 %v7944
  %8698 = vmatprep.subr.bf16.mxu0 %v7949
  %8699 = vmatpush1.bf16.msra.mxu0 %v7948
  %8700 = vmatprep.mubr.bf16.mxu0 %v350
  %8701 = vmatmul.mubr.bf16.gmra.mrb[0].mxu0 %v349
  %v8702 = vpop.f32.mrb[0].mxu0
  %v8703 = vadd.f32 %v8662, %v8702
  %v8704 = vpop.f32.mrb[0].mxu0
  %v8705 = vadd.f32 %v8664, %v8704
  %v8706 = vpop.f32.mrb[0].mxu0
  %v8707 = vpop.f32.mrb[0].mxu0
  %8708 = vdwg.mxu0
  %8709 = vmatprep.subr.bf16.mxu0 %v7953
  %8710 = vmatpush1.bf16.msra.mxu0 %v7952
  %8711 = vmatprep.subr.bf16.mxu0 %v7957
  %8712 = vmatpush1.bf16.msra.mxu0 %v7956
  %8713 = vmatprep.subr.bf16.mxu0 %v7961
  %8714 = vmatpush1.bf16.msra.mxu0 %v7960
  %8715 = vmatprep.subr.bf16.mxu0 %v7965
  %8716 = vmatpush1.bf16.msra.mxu0 %v7964
  %8717 = vmatprep.subr.bf16.mxu0 %v7969
  %8718 = vmatpush1.bf16.msra.mxu0 %v7968
  %8719 = vmatprep.subr.bf16.mxu0 %v7973
  %8720 = vmatpush1.bf16.msra.mxu0 %v7972
  %8721 = vmatprep.subr.bf16.mxu0 %v7977
  %8722 = vmatpush1.bf16.msra.mxu0 %v7976
  %8723 = vmatprep.subr.bf16.mxu0 %v7981
  %8724 = vmatpush1.bf16.msra.mxu0 %v7980
  %8725 = vmatprep.subr.bf16.mxu0 %v7985
  %8726 = vmatpush1.bf16.msra.mxu0 %v7984
  %8727 = vmatprep.subr.bf16.mxu0 %v7989
  %8728 = vmatpush1.bf16.msra.mxu0 %v7988
  %8729 = vmatprep.subr.bf16.mxu0 %v7993
  %8730 = vmatpush1.bf16.msra.mxu0 %v7992
  %8731 = vmatprep.subr.bf16.mxu0 %v7997
  %8732 = vmatpush1.bf16.msra.mxu0 %v7996
  %8733 = vmatprep.subr.bf16.mxu0 %v8001
  %8734 = vmatpush1.bf16.msra.mxu0 %v8000
  %8735 = vmatprep.subr.bf16.mxu0 %v8005
  %8736 = vmatpush1.bf16.msra.mxu0 %v8004
  %8737 = vmatprep.subr.bf16.mxu0 %v8009
  %8738 = vmatpush1.bf16.msra.mxu0 %v8008
  %8739 = vmatprep.subr.bf16.mxu0 %v8013
  %8740 = vmatpush1.bf16.msra.mxu0 %v8012
  %8741 = vmatprep.mubr.bf16.mxu0 %v352
  %8742 = vmatmul.mubr.bf16.gmra.mrb[0].mxu0 %v351
  %v8743 = vpop.f32.mrb[0].mxu0
  %v8744 = vadd.f32 %v8703, %v8743
  %v8745 = vpop.f32.mrb[0].mxu0
  %v8746 = vadd.f32 %v8705, %v8745
  %v8747 = vpop.f32.mrb[0].mxu0
  %v8748 = vpop.f32.mrb[0].mxu0
  %8749 = vdwg.mxu0
  %8750 = vmatprep.subr.bf16.mxu0 %v8017
  %8751 = vmatpush1.bf16.msra.mxu0 %v8016
  %8752 = vmatprep.subr.bf16.mxu0 %v8021
  %8753 = vmatpush1.bf16.msra.mxu0 %v8020
  %8754 = vmatprep.subr.bf16.mxu0 %v8025
  %8755 = vmatpush1.bf16.msra.mxu0 %v8024
  %8756 = vmatprep.subr.bf16.mxu0 %v8029
  %8757 = vmatpush1.bf16.msra.mxu0 %v8028
  %8758 = vmatprep.subr.bf16.mxu0 %v8033
  %8759 = vmatpush1.bf16.msra.mxu0 %v8032
  %8760 = vmatprep.subr.bf16.mxu0 %v8037
  %8761 = vmatpush1.bf16.msra.mxu0 %v8036
  %8762 = vmatprep.subr.bf16.mxu0 %v8041
  %8763 = vmatpush1.bf16.msra.mxu0 %v8040
  %8764 = vmatprep.subr.bf16.mxu0 %v8045
  %8765 = vmatpush1.bf16.msra.mxu0 %v8044
  %8766 = vmatprep.subr.bf16.mxu0 %v8049
  %8767 = vmatpush1.bf16.msra.mxu0 %v8048
  %8768 = vmatprep.subr.bf16.mxu0 %v8053
  %8769 = vmatpush1.bf16.msra.mxu0 %v8052
  %8770 = vmatprep.subr.bf16.mxu0 %v8057
  %8771 = vmatpush1.bf16.msra.mxu0 %v8056
  %8772 = vmatprep.subr.bf16.mxu0 %v8061
  %8773 = vmatpush1.bf16.msra.mxu0 %v8060
  %8774 = vmatprep.subr.bf16.mxu0 %v8065
  %8775 = vmatpush1.bf16.msra.mxu0 %v8064
  %8776 = vmatprep.subr.bf16.mxu0 %v8069
  %8777 = vmatpush1.bf16.msra.mxu0 %v8068
  %8778 = vmatprep.subr.bf16.mxu0 %v8073
  %8779 = vmatpush1.bf16.msra.mxu0 %v8072
  %8780 = vmatprep.subr.bf16.mxu0 %v8077
  %8781 = vmatpush1.bf16.msra.mxu0 %v8076
  %8782 = vmatprep.mubr.bf16.mxu0 %v354
  %8783 = vmatmul.mubr.bf16.gmra.mrb[0].mxu0 %v353
  %v8784 = vpop.f32.mrb[0].mxu0
  %v8785 = vadd.f32 %v8744, %v8784
  %v8786 = vpop.f32.mrb[0].mxu0
  %v8787 = vadd.f32 %v8746, %v8786
  %v8788 = vpop.f32.mrb[0].mxu0
  %v8789 = vpop.f32.mrb[0].mxu0
  %8790 = vdwg.mxu0
  %8791 = vmatprep.subr.bf16.mxu0 %v8081
  %8792 = vmatpush1.bf16.msra.mxu0 %v8080
  %8793 = vmatprep.subr.bf16.mxu0 %v8085
  %8794 = vmatpush1.bf16.msra.mxu0 %v8084
  %8795 = vmatprep.subr.bf16.mxu0 %v8089
  %8796 = vmatpush1.bf16.msra.mxu0 %v8088
  %8797 = vmatprep.subr.bf16.mxu0 %v8093
  %8798 = vmatpush1.bf16.msra.mxu0 %v8092
  %8799 = vmatprep.subr.bf16.mxu0 %v8097
  %8800 = vmatpush1.bf16.msra.mxu0 %v8096
  %8801 = vmatprep.subr.bf16.mxu0 %v8101
  %8802 = vmatpush1.bf16.msra.mxu0 %v8100
  %8803 = vmatprep.subr.bf16.mxu0 %v8105
  %8804 = vmatpush1.bf16.msra.mxu0 %v8104
  %8805 = vmatprep.subr.bf16.mxu0 %v8109
  %8806 = vmatpush1.bf16.msra.mxu0 %v8108
  %8807 = vmatprep.subr.bf16.mxu0 %v8113
  %8808 = vmatpush1.bf16.msra.mxu0 %v8112
  %8809 = vmatprep.subr.bf16.mxu0 %v8420
  %8810 = vmatpush1.bf16.msra.mxu0 %v8417
  %8811 = vmatprep.subr.bf16.mxu0 0
  %8812 = vmatpush1.bf16.msra.mxu0 0
  %8813 = vmatprep.subr.bf16.mxu0 0
  %8814 = vmatpush1.bf16.msra.mxu0 0
  %8815 = vmatprep.subr.bf16.mxu0 0
  %8816 = vmatpush1.bf16.msra.mxu0 0
  %8817 = vmatprep.subr.bf16.mxu0 0
  %8818 = vmatpush1.bf16.msra.mxu0 0
  %8819 = vmatprep.subr.bf16.mxu0 0
  %8820 = vmatpush1.bf16.msra.mxu0 0
  %8821 = vmatprep.subr.bf16.mxu0 0
  %8822 = vmatpush1.bf16.msra.mxu0 0
  %8823 = vmatprep.mubr.bf16.mxu0 %v1838
  %8824 = vmatmul.mubr.bf16.gmra.mrb[0].mxu0 %v355
  %v8825 = vpop.f32.mrb[0].mxu0
  %v8826 = vadd.f32 %v8785, %v8825
  %v8827 = vpop.f32.mrb[0].mxu0
  %v8828 = vadd.f32 %v8787, %v8827
  %v8829 = vpop.f32.mrb[0].mxu0
  %v8830 = vpop.f32.mrb[0].mxu0
  %8831 = vdwg.mxu0
  %v8832 = vmax.f32 %v6641, %v8621
  %v8833 = vmax.f32 %v6642, %v8623
  %v8834 = vmax.f32 %v6643, %v8826
  %v8835 = vmax.f32 %v6644, %v8828
  %v8836 = vld [vmem:[%s2] sm:$0xf]
  %v8838 = vlaneseq
  %v8839 = vshrl.u32 %v8838, 7
  %v8840 = vsub.s32 0, %v8839
  %v8841 = vrot.slane %v8836, %v8840
  %v8842 = vlaneseq
  %v8843 = vshrl.u32 %v8842, 7
  %v8844 = vsub.s32 1, %v8843
  %v8845 = vrot.slane %v8836, %v8844
  %v8846 = vlaneseq
  %v8847 = vshrl.u32 %v8846, 7
  %v8848 = vsub.s32 2, %v8847
  %v8849 = vrot.slane %v8836, %v8848
  %v8850 = vlaneseq
  %v8851 = vshrl.u32 %v8850, 7
  %v8852 = vsub.s32 3, %v8851
  %v8853 = vrot.slane %v8836, %v8852
  %v8858 = vadd.f32 %v8832, %v8841
  %v8859 = vadd.f32 %v8833, %v8845
  %v8860 = vadd.f32 %v8834, %v8849
  %v8861 = vadd.f32 %v8835, %v8853
  %v8862 = vmax.f32 %v8858, 0.0
  %v8863 = vmax.f32 %v8859, 0.0
  %v8864 = vmax.f32 %v8860, 0.0
  %v8865 = vmax.f32 %v8861, 0.0
  %v8866 = vpack.c.bf16 %v8862, %v8862
  %v8867 = vpack.c.bf16 %v8863, %v8863
  %v8868 = vpack.c.bf16 %v8864, %v8864
  %v8869 = vpack.c.bf16 %v8865, %v8865
  %v8870 = vld [vmem:[%s3] sm:$0xff]
  %v8871 = vld [vmem:[%s3 + $0x8] sm:$0xff]
  %v8872 = vld [vmem:[%s3 + $0x10] sm:$0xff]
  %v8873 = vld [vmem:[%s3 + $0x18] sm:$0xff]
  %v8874 = vld [vmem:[%s3 + $0x20] sm:$0xff]
  %v8875 = vld [vmem:[%s3 + $0x28] sm:$0xff]
  %v8876 = vld [vmem:[%s3 + $0x30] sm:$0xff]
  %v8877 = vld [vmem:[%s3 + $0x38] sm:$0xff]
  %v8878 = vld [vmem:[%s3 + $0x40] sm:$0xff]
  %v8879 = vld [vmem:[%s3 + $0x48] sm:$0xff]
  %v8880 = vld [vmem:[%s3 + $0x50] sm:$0xff]
  %v8881 = vld [vmem:[%s3 + $0x58] sm:$0xff]
  %v8882 = vld [vmem:[%s3 + $0x60] sm:$0xff]
  %v8883 = vld [vmem:[%s3 + $0x68] sm:$0xff]
  %v8884 = vld [vmem:[%s3 + $0x70] sm:$0xff]
  %v8885 = vld [vmem:[%s3 + $0x78] sm:$0xff]
  %v8886 = vld [vmem:[%s3 + $0x80] sm:$0xff]
  %v8887 = vld [vmem:[%s3 + $0x88] sm:$0xff]
  %v8888 = vld [vmem:[%s3 + $0x90] sm:$0xff]
  %v8889 = vld [vmem:[%s3 + $0x98] sm:$0xff]
  %v8890 = vld [vmem:[%s3 + $0xa0] sm:$0xff]
  %v8891 = vld [vmem:[%s3 + $0xa8] sm:$0xff]
  %v8892 = vld [vmem:[%s3 + $0xb0] sm:$0xff]
  %v8893 = vld [vmem:[%s3 + $0xb8] sm:$0xff]
  %v8894 = vld [vmem:[%s3 + $0xc0] sm:$0xff]
  %v8895 = vld [vmem:[%s3 + $0xc8] sm:$0xff]
  %v8896 = vld [vmem:[%s3 + $0xd0] sm:$0xff]
  %v8897 = vld [vmem:[%s3 + $0xd8] sm:$0xff]
  %v8898 = vld [vmem:[%s3 + $0xe0] sm:$0xff]
  %v8899 = vld [vmem:[%s3 + $0xe8] sm:$0xff]
  %v8900 = vld [vmem:[%s3 + $0xf0] sm:$0xff]
  %v8901 = vld [vmem:[%s3 + $0xf8] sm:$0xff]
  %v8902 = vld [vmem:[%s3 + $0x100] sm:$0xff]
  %v8903 = vld [vmem:[%s3 + $0x108] sm:$0xff]
  %v8904 = vld [vmem:[%s3 + $0x110] sm:$0xff]
  %v8905 = vld [vmem:[%s3 + $0x118] sm:$0xff]
  %v8906 = vld [vmem:[%s3 + $0x120] sm:$0xff]
  %v8907 = vld [vmem:[%s3 + $0x128] sm:$0xff]
  %v8908 = vld [vmem:[%s3 + $0x130] sm:$0xff]
  %v8909 = vld [vmem:[%s3 + $0x138] sm:$0xff]
  %v8910 = vld [vmem:[%s3 + $0x140] sm:$0xff]
  %v8911 = vld [vmem:[%s3 + $0x148] sm:$0xff]
  %v8912 = vld [vmem:[%s3 + $0x150] sm:$0xff]
  %v8913 = vld [vmem:[%s3 + $0x158] sm:$0xff]
  %v8914 = vld [vmem:[%s3 + $0x160] sm:$0xff]
  %v8915 = vld [vmem:[%s3 + $0x168] sm:$0xff]
  %v8916 = vld [vmem:[%s3 + $0x170] sm:$0xff]
  %v8917 = vld [vmem:[%s3 + $0x178] sm:$0xff]
  %v8918 = vld [vmem:[%s3 + $0x180] sm:$0xff]
  %v8919 = vld [vmem:[%s3 + $0x188] sm:$0xff]
  %v8920 = vld [vmem:[%s3 + $0x190] sm:$0xff]
  %v8921 = vld [vmem:[%s3 + $0x198] sm:$0xff]
  %v8922 = vld [vmem:[%s3 + $0x1a0] sm:$0xff]
  %v8923 = vld [vmem:[%s3 + $0x1a8] sm:$0xff]
  %v8924 = vld [vmem:[%s3 + $0x1b0] sm:$0xff]
  %v8925 = vld [vmem:[%s3 + $0x1b8] sm:$0xff]
  %v8926 = vld [vmem:[%s3 + $0x1c0] sm:$0xff]
  %v8927 = vld [vmem:[%s3 + $0x1c8] sm:$0xff]
  %v8928 = vld [vmem:[%s3 + $0x1d0] sm:$0xff]
  %v8929 = vld [vmem:[%s3 + $0x1d8] sm:$0xff]
  %v8930 = vld [vmem:[%s3 + $0x1e0] sm:$0xff]
  %v8931 = vld [vmem:[%s3 + $0x1e8] sm:$0xff]
  %v8932 = vld [vmem:[%s3 + $0x1f0] sm:$0xff]
  %v8933 = vld [vmem:[%s3 + $0x1f8] sm:$0xff]
  %v8934 = vld [vmem:[%s3 + $0x200] sm:$0xff]
  %v8935 = vld [vmem:[%s3 + $0x208] sm:$0xff]
  %v8936 = vld [vmem:[%s3 + $0x210] sm:$0xff]
  %v8937 = vld [vmem:[%s3 + $0x218] sm:$0xff]
  %v8938 = vld [vmem:[%s3 + $0x220] sm:$0xff]
  %v8939 = vld [vmem:[%s3 + $0x228] sm:$0xff]
  %v8940 = vld [vmem:[%s3 + $0x230] sm:$0xff]
  %v8941 = vld [vmem:[%s3 + $0x238] sm:$0xff]
  %v8942 = vld [vmem:[%s3 + $0x240] sm:$0xff]
  %v8943 = vld [vmem:[%s3 + $0x248] sm:$0xff]
  %v8944 = vld [vmem:[%s3 + $0x250] sm:$0xff]
  %v8945 = vld [vmem:[%s3 + $0x258] sm:$0xff]
  %v8946 = vld [vmem:[%s3 + $0x260] sm:$0xff]
  %v8947 = vld [vmem:[%s3 + $0x268] sm:$0xff]
  %v8948 = vld [vmem:[%s3 + $0x270] sm:$0xff]
  %v8949 = vld [vmem:[%s3 + $0x278] sm:$0xff]
  %v8950 = vld [vmem:[%s3 + $0x280] sm:$0xff]
  %v8951 = vld [vmem:[%s3 + $0x288] sm:$0xff]
  %v8952 = vld [vmem:[%s3 + $0x290] sm:$0xff]
  %v8953 = vld [vmem:[%s3 + $0x298] sm:$0xff]
  %v8954 = vld [vmem:[%s3 + $0x2a0] sm:$0xff]
  %v8955 = vld [vmem:[%s3 + $0x2a8] sm:$0xff]
  %v8956 = vld [vmem:[%s3 + $0x2b0] sm:$0xff]
  %v8957 = vld [vmem:[%s3 + $0x2b8] sm:$0xff]
  %v8958 = vld [vmem:[%s3 + $0x2c0] sm:$0xff]
  %v8959 = vld [vmem:[%s3 + $0x2c8] sm:$0xff]
  %v8960 = vld [vmem:[%s3 + $0x2d0] sm:$0xff]
  %v8961 = vld [vmem:[%s3 + $0x2d8] sm:$0xff]
  %v8962 = vld [vmem:[%s3 + $0x2e0] sm:$0xff]
  %v8963 = vld [vmem:[%s3 + $0x2e8] sm:$0xff]
  %v8964 = vld [vmem:[%s3 + $0x2f0] sm:$0xff]
  %v8965 = vld [vmem:[%s3 + $0x2f8] sm:$0xff]
  %v8966 = vld [vmem:[%s3 + $0x300] sm:$0xff]
  %v8967 = vld [vmem:[%s3 + $0x308] sm:$0xff]
  %v8968 = vld [vmem:[%s3 + $0x310] sm:$0xff]
  %v8969 = vld [vmem:[%s3 + $0x318] sm:$0xff]
  %v8970 = vld [vmem:[%s3 + $0x320] sm:$0xff]
  %v8971 = vld [vmem:[%s3 + $0x328] sm:$0xff]
  %v8972 = vld [vmem:[%s3 + $0x330] sm:$0xff]
  %v8973 = vld [vmem:[%s3 + $0x338] sm:$0xff]
  %v8974 = vld [vmem:[%s3 + $0x340] sm:$0xff]
  %v8975 = vld [vmem:[%s3 + $0x348] sm:$0xff]
  %v8976 = vld [vmem:[%s3 + $0x350] sm:$0xff]
  %v8977 = vld [vmem:[%s3 + $0x358] sm:$0xff]
  %v8978 = vld [vmem:[%s3 + $0x360] sm:$0xff]
  %v8979 = vld [vmem:[%s3 + $0x368] sm:$0xff]
  %v8980 = vld [vmem:[%s3 + $0x370] sm:$0xff]
  %v8981 = vld [vmem:[%s3 + $0x378] sm:$0xff]
  %v8982 = vld [vmem:[%s3 + $0x380] sm:$0xff]
  %v8983 = vld [vmem:[%s3 + $0x388] sm:$0xff]
  %v8984 = vld [vmem:[%s3 + $0x390] sm:$0xff]
  %v8985 = vld [vmem:[%s3 + $0x398] sm:$0xff]
  %v8986 = vld [vmem:[%s3 + $0x3a0] sm:$0xff]
  %v8987 = vld [vmem:[%s3 + $0x3a8] sm:$0xff]
  %v8988 = vld [vmem:[%s3 + $0x3b0] sm:$0xff]
  %v8989 = vld [vmem:[%s3 + $0x3b8] sm:$0xff]
  %v8990 = vld [vmem:[%s3 + $0x3c0] sm:$0xff]
  %v8991 = vld [vmem:[%s3 + $0x3c8] sm:$0xff]
  %v8992 = vld [vmem:[%s3 + $0x3d0] sm:$0xff]
  %v8993 = vld [vmem:[%s3 + $0x3d8] sm:$0xff]
  %v8994 = vld [vmem:[%s3 + $0x3e0] sm:$0xff]
  %v8995 = vld [vmem:[%s3 + $0x3e8] sm:$0xff]
  %v8996 = vld [vmem:[%s3 + $0x3f0] sm:$0xff]
  %v8997 = vld [vmem:[%s3 + $0x3f8] sm:$0xff]
  %v8998 = vld [vmem:[%s3 + $0x400] sm:$0xff]
  %v8999 = vld [vmem:[%s3 + $0x408] sm:$0xff]
  %v9000 = vld [vmem:[%s3 + $0x410] sm:$0xff]
  %v9001 = vld [vmem:[%s3 + $0x418] sm:$0xff]
  %v9002 = vld [vmem:[%s3 + $0x420] sm:$0xff]
  %v9003 = vld [vmem:[%s3 + $0x428] sm:$0xff]
  %v9004 = vld [vmem:[%s3 + $0x430] sm:$0xff]
  %v9005 = vld [vmem:[%s3 + $0x438] sm:$0xff]
  %v9006 = vld [vmem:[%s3 + $0x440] sm:$0xff]
  %v9007 = vld [vmem:[%s3 + $0x448] sm:$0xff]
  %v9008 = vld [vmem:[%s3 + $0x450] sm:$0xff]
  %v9009 = vld [vmem:[%s3 + $0x458] sm:$0xff]
  %v9010 = vld [vmem:[%s3 + $0x460] sm:$0xff]
  %v9011 = vld [vmem:[%s3 + $0x468] sm:$0xff]
  %v9012 = vld [vmem:[%s3 + $0x470] sm:$0xff]
  %v9013 = vld [vmem:[%s3 + $0x478] sm:$0xff]
  %v9014 = vld [vmem:[%s3 + $0x480] sm:$0xff]
  %v9015 = vld [vmem:[%s3 + $0x488] sm:$0xff]
  %v9016 = vld [vmem:[%s3 + $0x490] sm:$0xff]
  %v9017 = vld [vmem:[%s3 + $0x498] sm:$0xff]
  %v9018 = vld [vmem:[%s3 + $0x4a0] sm:$0xff]
  %v9019 = vld [vmem:[%s3 + $0x4a8] sm:$0xff]
  %v9020 = vld [vmem:[%s3 + $0x4b0] sm:$0xff]
  %v9021 = vld [vmem:[%s3 + $0x4b8] sm:$0xff]
  %v9022 = vld [vmem:[%s3 + $0x4c0] sm:$0xff]
  %v9023 = vld [vmem:[%s3 + $0x4c8] sm:$0xff]
  %v9024 = vld [vmem:[%s3 + $0x4d0] sm:$0xff]
  %v9025 = vld [vmem:[%s3 + $0x4d8] sm:$0xff]
  %v9026 = vld [vmem:[%s3 + $0x4e0] sm:$0xff]
  %v9027 = vld [vmem:[%s3 + $0x4e8] sm:$0xff]
  %v9028 = vld [vmem:[%s3 + $0x4f0] sm:$0xff]
  %v9029 = vld [vmem:[%s3 + $0x4f8] sm:$0xff]
  %v9030 = vld [vmem:[%s3 + $0x500] sm:$0xff]
  %v9031 = vld [vmem:[%s3 + $0x508] sm:$0xff]
  %v9032 = vld [vmem:[%s3 + $0x510] sm:$0xff]
  %v9033 = vld [vmem:[%s3 + $0x518] sm:$0xff]
  %v9034 = vld [vmem:[%s3 + $0x520] sm:$0xff]
  %v9035 = vld [vmem:[%s3 + $0x528] sm:$0xff]
  %v9036 = vld [vmem:[%s3 + $0x530] sm:$0xff]
  %v9037 = vld [vmem:[%s3 + $0x538] sm:$0xff]
  %v9038 = vld [vmem:[%s3 + $0x540] sm:$0xff]
  %v9039 = vld [vmem:[%s3 + $0x548] sm:$0xff]
  %v9040 = vld [vmem:[%s3 + $0x550] sm:$0xff]
  %v9041 = vld [vmem:[%s3 + $0x558] sm:$0xff]
  %v9042 = vld [vmem:[%s3 + $0x560] sm:$0xff]
  %v9043 = vld [vmem:[%s3 + $0x568] sm:$0xff]
  %v9044 = vld [vmem:[%s3 + $0x570] sm:$0xff]
  %v9045 = vld [vmem:[%s3 + $0x578] sm:$0xff]
  %v9046 = vld [vmem:[%s3 + $0x580] sm:$0xff]
  %v9047 = vld [vmem:[%s3 + $0x588] sm:$0xff]
  %v9048 = vld [vmem:[%s3 + $0x590] sm:$0xff]
  %v9049 = vld [vmem:[%s3 + $0x598] sm:$0xff]
  %v9050 = vld [vmem:[%s3 + $0x5a0] sm:$0xff]
  %v9051 = vld [vmem:[%s3 + $0x5a8] sm:$0xff]
  %v9052 = vld [vmem:[%s3 + $0x5b0] sm:$0xff]
  %v9053 = vld [vmem:[%s3 + $0x5b8] sm:$0xff]
  %v9054 = vld [vmem:[%s3 + $0x5c0] sm:$0xff]
  %v9055 = vld [vmem:[%s3 + $0x5c8] sm:$0xff]
  %v9056 = vld [vmem:[%s3 + $0x5d0] sm:$0xff]
  %v9057 = vld [vmem:[%s3 + $0x5d8] sm:$0xff]
  %v9058 = vld [vmem:[%s3 + $0x5e0] sm:$0xff]
  %v9059 = vld [vmem:[%s3 + $0x5e8] sm:$0xff]
  %v9060 = vld [vmem:[%s3 + $0x5f0] sm:$0xff]
  %v9061 = vld [vmem:[%s3 + $0x5f8] sm:$0xff]
  %v9062 = vld [vmem:[%s3 + $0x600] sm:$0xff]
  %v9063 = vld [vmem:[%s3 + $0x608] sm:$0xff]
  %v9064 = vld [vmem:[%s3 + $0x610] sm:$0xff]
  %v9065 = vld [vmem:[%s3 + $0x618] sm:$0xff]
  %v9066 = vld [vmem:[%s3 + $0x620] sm:$0xff]
  %v9067 = vld [vmem:[%s3 + $0x628] sm:$0xff]
  %v9068 = vld [vmem:[%s3 + $0x630] sm:$0xff]
  %v9069 = vld [vmem:[%s3 + $0x638] sm:$0xff]
  %v9070 = vld [vmem:[%s4] sm:$0xff]
  %v9072 = vlaneseq
  %v9073 = vshrl.u32 %v9072, 7
  %v9074 = vsub.s32 0, %v9073
  %v9075 = vrot.slane %v9070, %v9074
  %v9076 = vlaneseq
  %v9077 = vshrl.u32 %v9076, 7
  %v9078 = vsub.s32 1, %v9077
  %v9079 = vrot.slane %v9070, %v9078
  %v9080 = vlaneseq
  %v9081 = vshrl.u32 %v9080, 7
  %v9082 = vsub.s32 2, %v9081
  %v9083 = vrot.slane %v9070, %v9082
  %v9084 = vlaneseq
  %v9085 = vshrl.u32 %v9084, 7
  %v9086 = vsub.s32 3, %v9085
  %v9087 = vrot.slane %v9070, %v9086
  %v9088 = vlaneseq
  %v9089 = vshrl.u32 %v9088, 7
  %v9090 = vsub.s32 4, %v9089
  %v9091 = vrot.slane %v9070, %v9090
  %v9092 = vlaneseq
  %v9093 = vshrl.u32 %v9092, 7
  %v9094 = vsub.s32 5, %v9093
  %v9095 = vrot.slane %v9070, %v9094
  %v9096 = vlaneseq
  %v9097 = vshrl.u32 %v9096, 7
  %v9098 = vsub.s32 6, %v9097
  %v9099 = vrot.slane %v9070, %v9098
  %v9100 = vlaneseq
  %v9101 = vshrl.u32 %v9100, 7
  %v9102 = vsub.s32 7, %v9101
  %v9103 = vrot.slane %v9070, %v9102
  %v9312 = vunpack.c.l.b16 %v8870
  %v9313 = vunpack.c.h.b16 %v8870
  %v9314 = vunpack.c.l.b16 %v8871
  %v9315 = vunpack.c.h.b16 %v8871
  %v9316 = vunpack.c.l.b16 %v8872
  %v9317 = vunpack.c.h.b16 %v8872
  %v9318 = vunpack.c.l.b16 %v8873
  %v9319 = vunpack.c.h.b16 %v8873
  %v9320 = vunpack.c.l.b16 %v8874
  %v9321 = vunpack.c.h.b16 %v8874
  %v9322 = vunpack.c.l.b16 %v8875
  %v9323 = vunpack.c.h.b16 %v8875
  %v9324 = vunpack.c.l.b16 %v8876
  %v9325 = vunpack.c.h.b16 %v8876
  %v9326 = vunpack.c.l.b16 %v8877
  %v9327 = vunpack.c.h.b16 %v8877
  %v9328 = vunpack.c.l.b16 %v8878
  %v9329 = vunpack.c.h.b16 %v8878
  %v9330 = vunpack.c.l.b16 %v8879
  %v9331 = vunpack.c.h.b16 %v8879
  %v9332 = vunpack.c.l.b16 %v8880
  %v9333 = vunpack.c.h.b16 %v8880
  %v9334 = vunpack.c.l.b16 %v8881
  %v9335 = vunpack.c.h.b16 %v8881
  %v9336 = vunpack.c.l.b16 %v8882
  %v9337 = vunpack.c.h.b16 %v8882
  %v9338 = vunpack.c.l.b16 %v8883
  %v9339 = vunpack.c.h.b16 %v8883
  %v9340 = vunpack.c.l.b16 %v8884
  %v9341 = vunpack.c.h.b16 %v8884
  %v9342 = vunpack.c.l.b16 %v8885
  %v9343 = vunpack.c.h.b16 %v8885
  %v9344 = vunpack.c.l.b16 %v8886
  %v9345 = vunpack.c.h.b16 %v8886
  %v9346 = vunpack.c.l.b16 %v8887
  %v9347 = vunpack.c.h.b16 %v8887
  %v9348 = vunpack.c.l.b16 %v8888
  %v9349 = vunpack.c.h.b16 %v8888
  %v9350 = vunpack.c.l.b16 %v8889
  %v9351 = vunpack.c.h.b16 %v8889
  %v9352 = vunpack.c.l.b16 %v8890
  %v9353 = vunpack.c.h.b16 %v8890
  %v9354 = vunpack.c.l.b16 %v8891
  %v9355 = vunpack.c.h.b16 %v8891
  %v9356 = vunpack.c.l.b16 %v8892
  %v9357 = vunpack.c.h.b16 %v8892
  %v9358 = vunpack.c.l.b16 %v8893
  %v9359 = vunpack.c.h.b16 %v8893
  %v9360 = vunpack.c.l.b16 %v8894
  %v9361 = vunpack.c.h.b16 %v8894
  %v9362 = vunpack.c.l.b16 %v8895
  %v9363 = vunpack.c.h.b16 %v8895
  %v9364 = vunpack.c.l.b16 %v8896
  %v9365 = vunpack.c.h.b16 %v8896
  %v9366 = vunpack.c.l.b16 %v8897
  %v9367 = vunpack.c.h.b16 %v8897
  %v9368 = vunpack.c.l.b16 %v8898
  %v9369 = vunpack.c.h.b16 %v8898
  %v9370 = vunpack.c.l.b16 %v8899
  %v9371 = vunpack.c.h.b16 %v8899
  %v9372 = vunpack.c.l.b16 %v8900
  %v9373 = vunpack.c.h.b16 %v8900
  %v9374 = vunpack.c.l.b16 %v8901
  %v9375 = vunpack.c.h.b16 %v8901
  %v9376 = vunpack.c.l.b16 %v8902
  %v9377 = vunpack.c.h.b16 %v8902
  %v9378 = vunpack.c.l.b16 %v8903
  %v9379 = vunpack.c.h.b16 %v8903
  %v9380 = vunpack.c.l.b16 %v8904
  %v9381 = vunpack.c.h.b16 %v8904
  %v9382 = vunpack.c.l.b16 %v8905
  %v9383 = vunpack.c.h.b16 %v8905
  %v9384 = vunpack.c.l.b16 %v8906
  %v9385 = vunpack.c.h.b16 %v8906
  %v9386 = vunpack.c.l.b16 %v8907
  %v9387 = vunpack.c.h.b16 %v8907
  %v9388 = vunpack.c.l.b16 %v8908
  %v9389 = vunpack.c.h.b16 %v8908
  %v9390 = vunpack.c.l.b16 %v8909
  %v9391 = vunpack.c.h.b16 %v8909
  %v9392 = vunpack.c.l.b16 %v8910
  %v9393 = vunpack.c.h.b16 %v8910
  %v9394 = vunpack.c.l.b16 %v8911
  %v9395 = vunpack.c.h.b16 %v8911
  %v9396 = vunpack.c.l.b16 %v8912
  %v9397 = vunpack.c.h.b16 %v8912
  %v9398 = vunpack.c.l.b16 %v8913
  %v9399 = vunpack.c.h.b16 %v8913
  %v9400 = vunpack.c.l.b16 %v8914
  %v9401 = vunpack.c.h.b16 %v8914
  %v9402 = vunpack.c.l.b16 %v8915
  %v9403 = vunpack.c.h.b16 %v8915
  %v9404 = vunpack.c.l.b16 %v8916
  %v9405 = vunpack.c.h.b16 %v8916
  %v9406 = vunpack.c.l.b16 %v8917
  %v9407 = vunpack.c.h.b16 %v8917
  %v9408 = vunpack.c.l.b16 %v8918
  %v9409 = vunpack.c.h.b16 %v8918
  %v9410 = vunpack.c.l.b16 %v8919
  %v9411 = vunpack.c.h.b16 %v8919
  %v9412 = vunpack.c.l.b16 %v8920
  %v9413 = vunpack.c.h.b16 %v8920
  %v9414 = vunpack.c.l.b16 %v8921
  %v9415 = vunpack.c.h.b16 %v8921
  %v9416 = vunpack.c.l.b16 %v8922
  %v9417 = vunpack.c.h.b16 %v8922
  %v9418 = vunpack.c.l.b16 %v8923
  %v9419 = vunpack.c.h.b16 %v8923
  %v9420 = vunpack.c.l.b16 %v8924
  %v9421 = vunpack.c.h.b16 %v8924
  %v9422 = vunpack.c.l.b16 %v8925
  %v9423 = vunpack.c.h.b16 %v8925
  %v9424 = vunpack.c.l.b16 %v8926
  %v9425 = vunpack.c.h.b16 %v8926
  %v9426 = vunpack.c.l.b16 %v8927
  %v9427 = vunpack.c.h.b16 %v8927
  %v9428 = vunpack.c.l.b16 %v8928
  %v9429 = vunpack.c.h.b16 %v8928
  %v9430 = vunpack.c.l.b16 %v8929
  %v9431 = vunpack.c.h.b16 %v8929
  %v9432 = vunpack.c.l.b16 %v8930
  %v9433 = vunpack.c.h.b16 %v8930
  %v9434 = vunpack.c.l.b16 %v8931
  %v9435 = vunpack.c.h.b16 %v8931
  %v9436 = vunpack.c.l.b16 %v8932
  %v9437 = vunpack.c.h.b16 %v8932
  %v9438 = vunpack.c.l.b16 %v8933
  %v9439 = vunpack.c.h.b16 %v8933
  %v9440 = vunpack.c.l.b16 %v8934
  %v9441 = vunpack.c.h.b16 %v8934
  %v9442 = vunpack.c.l.b16 %v8935
  %v9443 = vunpack.c.h.b16 %v8935
  %v9444 = vunpack.c.l.b16 %v8936
  %v9445 = vunpack.c.h.b16 %v8936
  %v9446 = vunpack.c.l.b16 %v8937
  %v9447 = vunpack.c.h.b16 %v8937
  %v9448 = vunpack.c.l.b16 %v8938
  %v9449 = vunpack.c.h.b16 %v8938
  %v9450 = vunpack.c.l.b16 %v8939
  %v9451 = vunpack.c.h.b16 %v8939
  %v9452 = vunpack.c.l.b16 %v8940
  %v9453 = vunpack.c.h.b16 %v8940
  %v9454 = vunpack.c.l.b16 %v8941
  %v9455 = vunpack.c.h.b16 %v8941
  %v9456 = vunpack.c.l.b16 %v8942
  %v9457 = vunpack.c.h.b16 %v8942
  %v9458 = vunpack.c.l.b16 %v8943
  %v9459 = vunpack.c.h.b16 %v8943
  %v9460 = vunpack.c.l.b16 %v8944
  %v9461 = vunpack.c.h.b16 %v8944
  %v9462 = vunpack.c.l.b16 %v8945
  %v9463 = vunpack.c.h.b16 %v8945
  %v9464 = vunpack.c.l.b16 %v8946
  %v9465 = vunpack.c.h.b16 %v8946
  %v9466 = vunpack.c.l.b16 %v8947
  %v9467 = vunpack.c.h.b16 %v8947
  %v9468 = vunpack.c.l.b16 %v8948
  %v9469 = vunpack.c.h.b16 %v8948
  %v9470 = vunpack.c.l.b16 %v8949
  %v9471 = vunpack.c.h.b16 %v8949
  %v9472 = vunpack.c.l.b16 %v8950
  %v9473 = vunpack.c.h.b16 %v8950
  %v9474 = vunpack.c.l.b16 %v8951
  %v9475 = vunpack.c.h.b16 %v8951
  %v9476 = vunpack.c.l.b16 %v8952
  %v9477 = vunpack.c.h.b16 %v8952
  %v9478 = vunpack.c.l.b16 %v8953
  %v9479 = vunpack.c.h.b16 %v8953
  %v9480 = vunpack.c.l.b16 %v8954
  %v9481 = vunpack.c.h.b16 %v8954
  %v9482 = vunpack.c.l.b16 %v8955
  %v9483 = vunpack.c.h.b16 %v8955
  %v9484 = vunpack.c.l.b16 %v8956
  %v9485 = vunpack.c.h.b16 %v8956
  %v9486 = vunpack.c.l.b16 %v8957
  %v9487 = vunpack.c.h.b16 %v8957
  %v9488 = vunpack.c.l.b16 %v8958
  %v9489 = vunpack.c.h.b16 %v8958
  %v9490 = vunpack.c.l.b16 %v8959
  %v9491 = vunpack.c.h.b16 %v8959
  %v9492 = vunpack.c.l.b16 %v8960
  %v9493 = vunpack.c.h.b16 %v8960
  %v9494 = vunpack.c.l.b16 %v8961
  %v9495 = vunpack.c.h.b16 %v8961
  %v9496 = vunpack.c.l.b16 %v8962
  %v9497 = vunpack.c.h.b16 %v8962
  %v9498 = vunpack.c.l.b16 %v8963
  %v9499 = vunpack.c.h.b16 %v8963
  %v9500 = vunpack.c.l.b16 %v8964
  %v9501 = vunpack.c.h.b16 %v8964
  %v9502 = vunpack.c.l.b16 %v8965
  %v9503 = vunpack.c.h.b16 %v8965
  %v9504 = vunpack.c.l.b16 %v8966
  %v9505 = vunpack.c.h.b16 %v8966
  %v9506 = vunpack.c.l.b16 %v8967
  %v9507 = vunpack.c.h.b16 %v8967
  %v9508 = vunpack.c.l.b16 %v8968
  %v9509 = vunpack.c.h.b16 %v8968
  %v9510 = vunpack.c.l.b16 %v8969
  %v9511 = vunpack.c.h.b16 %v8969
  %v9512 = vunpack.c.l.b16 %v8970
  %v9513 = vunpack.c.h.b16 %v8970
  %v9514 = vunpack.c.l.b16 %v8971
  %v9515 = vunpack.c.h.b16 %v8971
  %v9516 = vunpack.c.l.b16 %v8972
  %v9517 = vunpack.c.h.b16 %v8972
  %v9518 = vunpack.c.l.b16 %v8973
  %v9519 = vunpack.c.h.b16 %v8973
  %v9520 = vunpack.c.l.b16 %v8974
  %v9521 = vunpack.c.h.b16 %v8974
  %v9522 = vunpack.c.l.b16 %v8975
  %v9523 = vunpack.c.h.b16 %v8975
  %v9524 = vunpack.c.l.b16 %v8976
  %v9525 = vunpack.c.h.b16 %v8976
  %v9526 = vunpack.c.l.b16 %v8977
  %v9527 = vunpack.c.h.b16 %v8977
  %v9528 = vunpack.c.l.b16 %v8978
  %v9529 = vunpack.c.h.b16 %v8978
  %v9530 = vunpack.c.l.b16 %v8979
  %v9531 = vunpack.c.h.b16 %v8979
  %v9532 = vunpack.c.l.b16 %v8980
  %v9533 = vunpack.c.h.b16 %v8980
  %v9534 = vunpack.c.l.b16 %v8981
  %v9535 = vunpack.c.h.b16 %v8981
  %v9536 = vunpack.c.l.b16 %v8982
  %v9537 = vunpack.c.h.b16 %v8982
  %v9538 = vunpack.c.l.b16 %v8983
  %v9539 = vunpack.c.h.b16 %v8983
  %v9540 = vunpack.c.l.b16 %v8984
  %v9541 = vunpack.c.h.b16 %v8984
  %v9542 = vunpack.c.l.b16 %v8985
  %v9543 = vunpack.c.h.b16 %v8985
  %v9544 = vunpack.c.l.b16 %v8986
  %v9545 = vunpack.c.h.b16 %v8986
  %v9546 = vunpack.c.l.b16 %v8987
  %v9547 = vunpack.c.h.b16 %v8987
  %v9548 = vunpack.c.l.b16 %v8988
  %v9549 = vunpack.c.h.b16 %v8988
  %v9550 = vunpack.c.l.b16 %v8989
  %v9551 = vunpack.c.h.b16 %v8989
  %v9552 = vunpack.c.l.b16 %v8990
  %v9553 = vunpack.c.h.b16 %v8990
  %v9554 = vunpack.c.l.b16 %v8991
  %v9555 = vunpack.c.h.b16 %v8991
  %v9556 = vunpack.c.l.b16 %v8992
  %v9557 = vunpack.c.h.b16 %v8992
  %v9558 = vunpack.c.l.b16 %v8993
  %v9559 = vunpack.c.h.b16 %v8993
  %v9560 = vunpack.c.l.b16 %v8994
  %v9561 = vunpack.c.h.b16 %v8994
  %v9562 = vunpack.c.l.b16 %v8995
  %v9563 = vunpack.c.h.b16 %v8995
  %v9564 = vunpack.c.l.b16 %v8996
  %v9565 = vunpack.c.h.b16 %v8996
  %v9566 = vunpack.c.l.b16 %v8997
  %v9567 = vunpack.c.h.b16 %v8997
  %v9568 = vunpack.c.l.b16 %v8998
  %v9569 = vunpack.c.h.b16 %v8998
  %v9570 = vunpack.c.l.b16 %v8999
  %v9571 = vunpack.c.h.b16 %v8999
  %v9572 = vunpack.c.l.b16 %v9000
  %v9573 = vunpack.c.h.b16 %v9000
  %v9574 = vunpack.c.l.b16 %v9001
  %v9575 = vunpack.c.h.b16 %v9001
  %v9576 = vunpack.c.l.b16 %v9002
  %v9577 = vunpack.c.h.b16 %v9002
  %v9578 = vunpack.c.l.b16 %v9003
  %v9579 = vunpack.c.h.b16 %v9003
  %v9580 = vunpack.c.l.b16 %v9004
  %v9581 = vunpack.c.h.b16 %v9004
  %v9582 = vunpack.c.l.b16 %v9005
  %v9583 = vunpack.c.h.b16 %v9005
  %v9584 = vunpack.c.l.b16 %v9006
  %v9585 = vunpack.c.h.b16 %v9006
  %v9586 = vunpack.c.l.b16 %v9007
  %v9587 = vunpack.c.h.b16 %v9007
  %v9588 = vunpack.c.l.b16 %v9008
  %v9589 = vunpack.c.h.b16 %v9008
  %v9590 = vunpack.c.l.b16 %v9009
  %v9591 = vunpack.c.h.b16 %v9009
  %v9592 = vunpack.c.l.b16 %v9010
  %v9593 = vunpack.c.h.b16 %v9010
  %v9594 = vunpack.c.l.b16 %v9011
  %v9595 = vunpack.c.h.b16 %v9011
  %v9596 = vunpack.c.l.b16 %v9012
  %v9597 = vunpack.c.h.b16 %v9012
  %v9598 = vunpack.c.l.b16 %v9013
  %v9599 = vunpack.c.h.b16 %v9013
  %v9600 = vunpack.c.l.b16 %v9014
  %v9601 = vunpack.c.h.b16 %v9014
  %v9602 = vunpack.c.l.b16 %v9015
  %v9603 = vunpack.c.h.b16 %v9015
  %v9604 = vunpack.c.l.b16 %v9016
  %v9605 = vunpack.c.h.b16 %v9016
  %v9606 = vunpack.c.l.b16 %v9017
  %v9607 = vunpack.c.h.b16 %v9017
  %v9608 = vunpack.c.l.b16 %v9018
  %v9609 = vunpack.c.h.b16 %v9018
  %v9610 = vunpack.c.l.b16 %v9019
  %v9611 = vunpack.c.h.b16 %v9019
  %v9612 = vunpack.c.l.b16 %v9020
  %v9613 = vunpack.c.h.b16 %v9020
  %v9614 = vunpack.c.l.b16 %v9021
  %v9615 = vunpack.c.h.b16 %v9021
  %v9616 = vunpack.c.l.b16 %v9022
  %v9617 = vunpack.c.h.b16 %v9022
  %v9618 = vunpack.c.l.b16 %v9023
  %v9619 = vunpack.c.h.b16 %v9023
  %v9620 = vunpack.c.l.b16 %v9024
  %v9621 = vunpack.c.h.b16 %v9024
  %v9622 = vunpack.c.l.b16 %v9025
  %v9623 = vunpack.c.h.b16 %v9025
  %v9624 = vunpack.c.l.b16 %v9026
  %v9625 = vunpack.c.h.b16 %v9026
  %v9626 = vunpack.c.l.b16 %v9027
  %v9627 = vunpack.c.h.b16 %v9027
  %v9628 = vunpack.c.l.b16 %v9028
  %v9629 = vunpack.c.h.b16 %v9028
  %v9630 = vunpack.c.l.b16 %v9029
  %v9631 = vunpack.c.h.b16 %v9029
  %v9632 = vunpack.c.l.b16 %v9030
  %v9633 = vunpack.c.h.b16 %v9030
  %v9634 = vunpack.c.l.b16 %v9031
  %v9635 = vunpack.c.h.b16 %v9031
  %v9636 = vunpack.c.l.b16 %v9032
  %v9637 = vunpack.c.h.b16 %v9032
  %v9638 = vunpack.c.l.b16 %v9033
  %v9639 = vunpack.c.h.b16 %v9033
  %v9640 = vunpack.c.l.b16 %v9034
  %v9641 = vunpack.c.h.b16 %v9034
  %v9642 = vunpack.c.l.b16 %v9035
  %v9643 = vunpack.c.h.b16 %v9035
  %v9644 = vunpack.c.l.b16 %v9036
  %v9645 = vunpack.c.h.b16 %v9036
  %v9646 = vunpack.c.l.b16 %v9037
  %v9647 = vunpack.c.h.b16 %v9037
  %v9648 = vunpack.c.l.b16 %v9038
  %v9649 = vunpack.c.h.b16 %v9038
  %v9650 = vunpack.c.l.b16 %v9039
  %v9651 = vunpack.c.h.b16 %v9039
  %v9652 = vunpack.c.l.b16 %v9040
  %v9653 = vunpack.c.h.b16 %v9040
  %v9654 = vunpack.c.l.b16 %v9041
  %v9655 = vunpack.c.h.b16 %v9041
  %v9656 = vunpack.c.l.b16 %v9042
  %v9657 = vunpack.c.h.b16 %v9042
  %v9658 = vunpack.c.l.b16 %v9043
  %v9659 = vunpack.c.h.b16 %v9043
  %v9660 = vunpack.c.l.b16 %v9044
  %v9661 = vunpack.c.h.b16 %v9044
  %v9662 = vunpack.c.l.b16 %v9045
  %v9663 = vunpack.c.h.b16 %v9045
  %v9664 = vunpack.c.l.b16 %v9046
  %v9665 = vunpack.c.h.b16 %v9046
  %v9666 = vunpack.c.l.b16 %v9047
  %v9667 = vunpack.c.h.b16 %v9047
  %v9668 = vunpack.c.l.b16 %v9048
  %v9669 = vunpack.c.h.b16 %v9048
  %v9670 = vunpack.c.l.b16 %v9049
  %v9671 = vunpack.c.h.b16 %v9049
  %v9672 = vunpack.c.l.b16 %v9050
  %v9673 = vunpack.c.h.b16 %v9050
  %v9674 = vunpack.c.l.b16 %v9051
  %v9675 = vunpack.c.h.b16 %v9051
  %v9676 = vunpack.c.l.b16 %v9052
  %v9677 = vunpack.c.h.b16 %v9052
  %v9678 = vunpack.c.l.b16 %v9053
  %v9679 = vunpack.c.h.b16 %v9053
  %v9680 = vunpack.c.l.b16 %v9054
  %v9681 = vunpack.c.h.b16 %v9054
  %v9682 = vunpack.c.l.b16 %v9055
  %v9683 = vunpack.c.h.b16 %v9055
  %v9684 = vunpack.c.l.b16 %v9056
  %v9685 = vunpack.c.h.b16 %v9056
  %v9686 = vunpack.c.l.b16 %v9057
  %v9687 = vunpack.c.h.b16 %v9057
  %v9688 = vunpack.c.l.b16 %v9058
  %v9689 = vunpack.c.h.b16 %v9058
  %v9690 = vunpack.c.l.b16 %v9059
  %v9691 = vunpack.c.h.b16 %v9059
  %v9692 = vunpack.c.l.b16 %v9060
  %v9693 = vunpack.c.h.b16 %v9060
  %v9694 = vunpack.c.l.b16 %v9061
  %v9695 = vunpack.c.h.b16 %v9061
  %v9696 = vunpack.c.l.b16 %v9062
  %v9697 = vunpack.c.h.b16 %v9062
  %v9698 = vunpack.c.l.b16 %v9063
  %v9699 = vunpack.c.h.b16 %v9063
  %v9700 = vunpack.c.l.b16 %v9064
  %v9701 = vunpack.c.h.b16 %v9064
  %v9702 = vunpack.c.l.b16 %v9065
  %v9703 = vunpack.c.h.b16 %v9065
  %v9704 = vunpack.c.l.b16 %v9066
  %v9705 = vunpack.c.h.b16 %v9066
  %v9706 = vunpack.c.l.b16 %v9067
  %v9707 = vunpack.c.h.b16 %v9067
  %v9708 = vunpack.c.l.b16 %v9068
  %v9709 = vunpack.c.h.b16 %v9068
  %v9710 = vunpack.c.l.b16 %v9069
  %v9711 = vunpack.c.h.b16 %v9069
  %v9712 = vpack.c.b16 %v9320, %v9312
  %v9713 = vpack.c.b16 %v9321, %v9313
  %v9714 = vpack.c.b16 %v9322, %v9314
  %v9715 = vpack.c.b16 %v9323, %v9315
  %v9716 = vpack.c.b16 %v9324, %v9316
  %v9717 = vpack.c.b16 %v9325, %v9317
  %v9718 = vpack.c.b16 %v9326, %v9318
  %v9719 = vpack.c.b16 %v9327, %v9319
  %v9720 = vpack.c.b16 %v9336, %v9328
  %v9721 = vpack.c.b16 %v9337, %v9329
  %v9722 = vpack.c.b16 %v9338, %v9330
  %v9723 = vpack.c.b16 %v9339, %v9331
  %v9724 = vpack.c.b16 %v9340, %v9332
  %v9725 = vpack.c.b16 %v9341, %v9333
  %v9726 = vpack.c.b16 %v9342, %v9334
  %v9727 = vpack.c.b16 %v9343, %v9335
  %v9728 = vpack.c.b16 %v9352, %v9344
  %v9729 = vpack.c.b16 %v9353, %v9345
  %v9730 = vpack.c.b16 %v9354, %v9346
  %v9731 = vpack.c.b16 %v9355, %v9347
  %v9732 = vpack.c.b16 %v9356, %v9348
  %v9733 = vpack.c.b16 %v9357, %v9349
  %v9734 = vpack.c.b16 %v9358, %v9350
  %v9735 = vpack.c.b16 %v9359, %v9351
  %v9736 = vpack.c.b16 %v9368, %v9360
  %v9737 = vpack.c.b16 %v9369, %v9361
  %v9738 = vpack.c.b16 %v9370, %v9362
  %v9739 = vpack.c.b16 %v9371, %v9363
  %v9740 = vpack.c.b16 %v9372, %v9364
  %v9741 = vpack.c.b16 %v9373, %v9365
  %v9742 = vpack.c.b16 %v9374, %v9366
  %v9743 = vpack.c.b16 %v9375, %v9367
  %v9744 = vpack.c.b16 %v9384, %v9376
  %v9745 = vpack.c.b16 %v9385, %v9377
  %v9746 = vpack.c.b16 %v9386, %v9378
  %v9747 = vpack.c.b16 %v9387, %v9379
  %v9748 = vpack.c.b16 %v9388, %v9380
  %v9749 = vpack.c.b16 %v9389, %v9381
  %v9750 = vpack.c.b16 %v9390, %v9382
  %v9751 = vpack.c.b16 %v9391, %v9383
  %v9752 = vpack.c.b16 %v9400, %v9392
  %v9753 = vpack.c.b16 %v9401, %v9393
  %v9754 = vpack.c.b16 %v9402, %v9394
  %v9755 = vpack.c.b16 %v9403, %v9395
  %v9756 = vpack.c.b16 %v9404, %v9396
  %v9757 = vpack.c.b16 %v9405, %v9397
  %v9758 = vpack.c.b16 %v9406, %v9398
  %v9759 = vpack.c.b16 %v9407, %v9399
  %v9760 = vpack.c.b16 %v9416, %v9408
  %v9761 = vpack.c.b16 %v9417, %v9409
  %v9762 = vpack.c.b16 %v9418, %v9410
  %v9763 = vpack.c.b16 %v9419, %v9411
  %v9764 = vpack.c.b16 %v9420, %v9412
  %v9765 = vpack.c.b16 %v9421, %v9413
  %v9766 = vpack.c.b16 %v9422, %v9414
  %v9767 = vpack.c.b16 %v9423, %v9415
  %v9768 = vpack.c.b16 %v9432, %v9424
  %v9769 = vpack.c.b16 %v9433, %v9425
  %v9770 = vpack.c.b16 %v9434, %v9426
  %v9771 = vpack.c.b16 %v9435, %v9427
  %v9772 = vpack.c.b16 %v9436, %v9428
  %v9773 = vpack.c.b16 %v9437, %v9429
  %v9774 = vpack.c.b16 %v9438, %v9430
  %v9775 = vpack.c.b16 %v9439, %v9431
  %v9776 = vpack.c.b16 %v9448, %v9440
  %v9777 = vpack.c.b16 %v9449, %v9441
  %v9778 = vpack.c.b16 %v9450, %v9442
  %v9779 = vpack.c.b16 %v9451, %v9443
  %v9780 = vpack.c.b16 %v9452, %v9444
  %v9781 = vpack.c.b16 %v9453, %v9445
  %v9782 = vpack.c.b16 %v9454, %v9446
  %v9783 = vpack.c.b16 %v9455, %v9447
  %v9784 = vpack.c.b16 %v9464, %v9456
  %v9785 = vpack.c.b16 %v9465, %v9457
  %v9786 = vpack.c.b16 %v9466, %v9458
  %v9787 = vpack.c.b16 %v9467, %v9459
  %v9788 = vpack.c.b16 %v9468, %v9460
  %v9789 = vpack.c.b16 %v9469, %v9461
  %v9790 = vpack.c.b16 %v9470, %v9462
  %v9791 = vpack.c.b16 %v9471, %v9463
  %v9792 = vpack.c.b16 %v9480, %v9472
  %v9793 = vpack.c.b16 %v9481, %v9473
  %v9794 = vpack.c.b16 %v9482, %v9474
  %v9795 = vpack.c.b16 %v9483, %v9475
  %v9796 = vpack.c.b16 %v9484, %v9476
  %v9797 = vpack.c.b16 %v9485, %v9477
  %v9798 = vpack.c.b16 %v9486, %v9478
  %v9799 = vpack.c.b16 %v9487, %v9479
  %v9800 = vpack.c.b16 %v9496, %v9488
  %v9801 = vpack.c.b16 %v9497, %v9489
  %v9802 = vpack.c.b16 %v9498, %v9490
  %v9803 = vpack.c.b16 %v9499, %v9491
  %v9804 = vpack.c.b16 %v9500, %v9492
  %v9805 = vpack.c.b16 %v9501, %v9493
  %v9806 = vpack.c.b16 %v9502, %v9494
  %v9807 = vpack.c.b16 %v9503, %v9495
  %v9808 = vpack.c.b16 %v9512, %v9504
  %v9809 = vpack.c.b16 %v9513, %v9505
  %v9810 = vpack.c.b16 %v9514, %v9506
  %v9811 = vpack.c.b16 %v9515, %v9507
  %v9812 = vpack.c.b16 %v9516, %v9508
  %v9813 = vpack.c.b16 %v9517, %v9509
  %v9814 = vpack.c.b16 %v9518, %v9510
  %v9815 = vpack.c.b16 %v9519, %v9511
  %v9816 = vpack.c.b16 %v9528, %v9520
  %v9817 = vpack.c.b16 %v9529, %v9521
  %v9818 = vpack.c.b16 %v9530, %v9522
  %v9819 = vpack.c.b16 %v9531, %v9523
  %v9820 = vpack.c.b16 %v9532, %v9524
  %v9821 = vpack.c.b16 %v9533, %v9525
  %v9822 = vpack.c.b16 %v9534, %v9526
  %v9823 = vpack.c.b16 %v9535, %v9527
  %v9824 = vpack.c.b16 %v9544, %v9536
  %v9825 = vpack.c.b16 %v9545, %v9537
  %v9826 = vpack.c.b16 %v9546, %v9538
  %v9827 = vpack.c.b16 %v9547, %v9539
  %v9828 = vpack.c.b16 %v9548, %v9540
  %v9829 = vpack.c.b16 %v9549, %v9541
  %v9830 = vpack.c.b16 %v9550, %v9542
  %v9831 = vpack.c.b16 %v9551, %v9543
  %v9832 = vpack.c.b16 %v9560, %v9552
  %v9833 = vpack.c.b16 %v9561, %v9553
  %v9834 = vpack.c.b16 %v9562, %v9554
  %v9835 = vpack.c.b16 %v9563, %v9555
  %v9836 = vpack.c.b16 %v9564, %v9556
  %v9837 = vpack.c.b16 %v9565, %v9557
  %v9838 = vpack.c.b16 %v9566, %v9558
  %v9839 = vpack.c.b16 %v9567, %v9559
  %v9840 = vpack.c.b16 %v9576, %v9568
  %v9841 = vpack.c.b16 %v9577, %v9569
  %v9842 = vpack.c.b16 %v9578, %v9570
  %v9843 = vpack.c.b16 %v9579, %v9571
  %v9844 = vpack.c.b16 %v9580, %v9572
  %v9845 = vpack.c.b16 %v9581, %v9573
  %v9846 = vpack.c.b16 %v9582, %v9574
  %v9847 = vpack.c.b16 %v9583, %v9575
  %v9848 = vpack.c.b16 %v9592, %v9584
  %v9849 = vpack.c.b16 %v9593, %v9585
  %v9850 = vpack.c.b16 %v9594, %v9586
  %v9851 = vpack.c.b16 %v9595, %v9587
  %v9852 = vpack.c.b16 %v9596, %v9588
  %v9853 = vpack.c.b16 %v9597, %v9589
  %v9854 = vpack.c.b16 %v9598, %v9590
  %v9855 = vpack.c.b16 %v9599, %v9591
  %v9856 = vpack.c.b16 %v9608, %v9600
  %v9857 = vpack.c.b16 %v9609, %v9601
  %v9858 = vpack.c.b16 %v9610, %v9602
  %v9859 = vpack.c.b16 %v9611, %v9603
  %v9860 = vpack.c.b16 %v9612, %v9604
  %v9861 = vpack.c.b16 %v9613, %v9605
  %v9862 = vpack.c.b16 %v9614, %v9606
  %v9863 = vpack.c.b16 %v9615, %v9607
  %v9864 = vpack.c.b16 %v9624, %v9616
  %v9865 = vpack.c.b16 %v9625, %v9617
  %v9866 = vpack.c.b16 %v9626, %v9618
  %v9867 = vpack.c.b16 %v9627, %v9619
  %v9868 = vpack.c.b16 %v9628, %v9620
  %v9869 = vpack.c.b16 %v9629, %v9621
  %v9870 = vpack.c.b16 %v9630, %v9622
  %v9871 = vpack.c.b16 %v9631, %v9623
  %v9872 = vpack.c.b16 %v9640, %v9632
  %v9873 = vpack.c.b16 %v9641, %v9633
  %v9874 = vpack.c.b16 %v9642, %v9634
  %v9875 = vpack.c.b16 %v9643, %v9635
  %v9876 = vpack.c.b16 %v9644, %v9636
  %v9877 = vpack.c.b16 %v9645, %v9637
  %v9878 = vpack.c.b16 %v9646, %v9638
  %v9879 = vpack.c.b16 %v9647, %v9639
  %v9880 = vpack.c.b16 %v9656, %v9648
  %v9881 = vpack.c.b16 %v9657, %v9649
  %v9882 = vpack.c.b16 %v9658, %v9650
  %v9883 = vpack.c.b16 %v9659, %v9651
  %v9884 = vpack.c.b16 %v9660, %v9652
  %v9885 = vpack.c.b16 %v9661, %v9653
  %v9886 = vpack.c.b16 %v9662, %v9654
  %v9887 = vpack.c.b16 %v9663, %v9655
  %v9888 = vpack.c.b16 %v9672, %v9664
  %v9889 = vpack.c.b16 %v9673, %v9665
  %v9890 = vpack.c.b16 %v9674, %v9666
  %v9891 = vpack.c.b16 %v9675, %v9667
  %v9892 = vpack.c.b16 %v9676, %v9668
  %v9893 = vpack.c.b16 %v9677, %v9669
  %v9894 = vpack.c.b16 %v9678, %v9670
  %v9895 = vpack.c.b16 %v9679, %v9671
  %v9896 = vpack.c.b16 %v9688, %v9680
  %v9897 = vpack.c.b16 %v9689, %v9681
  %v9898 = vpack.c.b16 %v9690, %v9682
  %v9899 = vpack.c.b16 %v9691, %v9683
  %v9900 = vpack.c.b16 %v9692, %v9684
  %v9901 = vpack.c.b16 %v9693, %v9685
  %v9902 = vpack.c.b16 %v9694, %v9686
  %v9903 = vpack.c.b16 %v9695, %v9687
  %v9904 = vpack.c.b16 %v9704, %v9696
  %v9905 = vpack.c.b16 %v9705, %v9697
  %v9906 = vpack.c.b16 %v9706, %v9698
  %v9907 = vpack.c.b16 %v9707, %v9699
  %v9908 = vpack.c.b16 %v9708, %v9700
  %v9909 = vpack.c.b16 %v9709, %v9701
  %v9910 = vpack.c.b16 %v9710, %v9702
  %v9911 = vpack.c.b16 %v9711, %v9703
  %vm10112 = vcmask 130048
  %v10114 = vsel %vm10112, %v8869, 0
  %10116 = vmatprep.subr.bf16.mxu0 %v9713
  %10117 = vmatpush1.bf16.msra.mxu0 %v9712
  %10118 = vmatprep.subr.bf16.mxu0 %v9721
  %10119 = vmatpush1.bf16.msra.mxu0 %v9720
  %10120 = vmatprep.subr.bf16.mxu0 %v9729
  %10121 = vmatpush1.bf16.msra.mxu0 %v9728
  %10122 = vmatprep.subr.bf16.mxu0 %v9737
  %10123 = vmatpush1.bf16.msra.mxu0 %v9736
  %10124 = vmatprep.subr.bf16.mxu0 %v9745
  %10125 = vmatpush1.bf16.msra.mxu0 %v9744
  %10126 = vmatprep.subr.bf16.mxu0 %v9753
  %10127 = vmatpush1.bf16.msra.mxu0 %v9752
  %10128 = vmatprep.subr.bf16.mxu0 %v9761
  %10129 = vmatpush1.bf16.msra.mxu0 %v9760
  %10130 = vmatprep.subr.bf16.mxu0 %v9769
  %10131 = vmatpush1.bf16.msra.mxu0 %v9768
  %10132 = vmatprep.subr.bf16.mxu0 %v9777
  %10133 = vmatpush1.bf16.msra.mxu0 %v9776
  %10134 = vmatprep.subr.bf16.mxu0 %v9785
  %10135 = vmatpush1.bf16.msra.mxu0 %v9784
  %10136 = vmatprep.subr.bf16.mxu0 %v9793
  %10137 = vmatpush1.bf16.msra.mxu0 %v9792
  %10138 = vmatprep.subr.bf16.mxu0 %v9801
  %10139 = vmatpush1.bf16.msra.mxu0 %v9800
  %10140 = vmatprep.subr.bf16.mxu0 %v9809
  %10141 = vmatpush1.bf16.msra.mxu0 %v9808
  %10142 = vmatprep.subr.bf16.mxu0 %v9817
  %10143 = vmatpush1.bf16.msra.mxu0 %v9816
  %10144 = vmatprep.subr.bf16.mxu0 %v9825
  %10145 = vmatpush1.bf16.msra.mxu0 %v9824
  %10146 = vmatprep.subr.bf16.mxu0 %v9833
  %10147 = vmatpush1.bf16.msra.mxu0 %v9832
  %10148 = vmatprep.mubr.bf16.mxu0 %v8867
  %10149 = vmatmul.mubr.bf16.gmra.mrb[0].mxu0 %v8866
  %v10150 = vpop.f32.mrb[0].mxu0
  %v10151 = vadd.f32 %v9075, %v10150
  %v10152 = vpop.f32.mrb[0].mxu0
  %v10153 = vadd.f32 %v9079, %v10152
  %v10154 = vpop.f32.mrb[0].mxu0
  %v10155 = vpop.f32.mrb[0].mxu0
  %10156 = vdwg.mxu0
  %10157 = vmatprep.subr.bf16.mxu0 %v9841
  %10158 = vmatpush1.bf16.msra.mxu0 %v9840
  %10159 = vmatprep.subr.bf16.mxu0 %v9849
  %10160 = vmatpush1.bf16.msra.mxu0 %v9848
  %10161 = vmatprep.subr.bf16.mxu0 %v9857
  %10162 = vmatpush1.bf16.msra.mxu0 %v9856
  %10163 = vmatprep.subr.bf16.mxu0 %v9865
  %10164 = vmatpush1.bf16.msra.mxu0 %v9864
  %10165 = vmatprep.subr.bf16.mxu0 %v9873
  %10166 = vmatpush1.bf16.msra.mxu0 %v9872
  %10167 = vmatprep.subr.bf16.mxu0 %v9881
  %10168 = vmatpush1.bf16.msra.mxu0 %v9880
  %10169 = vmatprep.subr.bf16.mxu0 %v9889
  %10170 = vmatpush1.bf16.msra.mxu0 %v9888
  %10171 = vmatprep.subr.bf16.mxu0 %v9897
  %10172 = vmatpush1.bf16.msra.mxu0 %v9896
  %10173 = vmatprep.subr.bf16.mxu0 %v9905
  %10174 = vmatpush1.bf16.msra.mxu0 %v9904
  %10175 = vmatprep.subr.bf16.mxu0 0
  %10176 = vmatpush1.bf16.msra.mxu0 0
  %10177 = vmatprep.subr.bf16.mxu0 0
  %10178 = vmatpush1.bf16.msra.mxu0 0
  %10179 = vmatprep.subr.bf16.mxu0 0
  %10180 = vmatpush1.bf16.msra.mxu0 0
  %10181 = vmatprep.subr.bf16.mxu0 0
  %10182 = vmatpush1.bf16.msra.mxu0 0
  %10183 = vmatprep.subr.bf16.mxu0 0
  %10184 = vmatpush1.bf16.msra.mxu0 0
  %10185 = vmatprep.subr.bf16.mxu0 0
  %10186 = vmatpush1.bf16.msra.mxu0 0
  %10187 = vmatprep.subr.bf16.mxu0 0
  %10188 = vmatpush1.bf16.msra.mxu0 0
  %10189 = vmatprep.mubr.bf16.mxu0 %v10114
  %10190 = vmatmul.mubr.bf16.gmra.mrb[0].mxu0 %v8868
  %v10191 = vpop.f32.mrb[0].mxu0
  %v10192 = vadd.f32 %v10151, %v10191
  %v10193 = vpop.f32.mrb[0].mxu0
  %v10194 = vadd.f32 %v10153, %v10193
  %v10195 = vpop.f32.mrb[0].mxu0
  %v10196 = vpop.f32.mrb[0].mxu0
  %10197 = vdwg.mxu0
  %10198 = vmatprep.subr.bf16.mxu0 %v9715
  %10199 = vmatpush1.bf16.msra.mxu0 %v9714
  %10200 = vmatprep.subr.bf16.mxu0 %v9723
  %10201 = vmatpush1.bf16.msra.mxu0 %v9722
  %10202 = vmatprep.subr.bf16.mxu0 %v9731
  %10203 = vmatpush1.bf16.msra.mxu0 %v9730
  %10204 = vmatprep.subr.bf16.mxu0 %v9739
  %10205 = vmatpush1.bf16.msra.mxu0 %v9738
  %10206 = vmatprep.subr.bf16.mxu0 %v9747
  %10207 = vmatpush1.bf16.msra.mxu0 %v9746
  %10208 = vmatprep.subr.bf16.mxu0 %v9755
  %10209 = vmatpush1.bf16.msra.mxu0 %v9754
  %10210 = vmatprep.subr.bf16.mxu0 %v9763
  %10211 = vmatpush1.bf16.msra.mxu0 %v9762
  %10212 = vmatprep.subr.bf16.mxu0 %v9771
  %10213 = vmatpush1.bf16.msra.mxu0 %v9770
  %10214 = vmatprep.subr.bf16.mxu0 %v9779
  %10215 = vmatpush1.bf16.msra.mxu0 %v9778
  %10216 = vmatprep.subr.bf16.mxu0 %v9787
  %10217 = vmatpush1.bf16.msra.mxu0 %v9786
  %10218 = vmatprep.subr.bf16.mxu0 %v9795
  %10219 = vmatpush1.bf16.msra.mxu0 %v9794
  %10220 = vmatprep.subr.bf16.mxu0 %v9803
  %10221 = vmatpush1.bf16.msra.mxu0 %v9802
  %10222 = vmatprep.subr.bf16.mxu0 %v9811
  %10223 = vmatpush1.bf16.msra.mxu0 %v9810
  %10224 = vmatprep.subr.bf16.mxu0 %v9819
  %10225 = vmatpush1.bf16.msra.mxu0 %v9818
  %10226 = vmatprep.subr.bf16.mxu0 %v9827
  %10227 = vmatpush1.bf16.msra.mxu0 %v9826
  %10228 = vmatprep.subr.bf16.mxu0 %v9835
  %10229 = vmatpush1.bf16.msra.mxu0 %v9834
  %10230 = vmatprep.mubr.bf16.mxu0 %v8867
  %10231 = vmatmul.mubr.bf16.gmra.mrb[0].mxu0 %v8866
  %v10232 = vpop.f32.mrb[0].mxu0
  %v10233 = vadd.f32 %v9083, %v10232
  %v10234 = vpop.f32.mrb[0].mxu0
  %v10235 = vadd.f32 %v9087, %v10234
  %v10236 = vpop.f32.mrb[0].mxu0
  %v10237 = vpop.f32.mrb[0].mxu0
  %10238 = vdwg.mxu0
  %10239 = vmatprep.subr.bf16.mxu0 %v9843
  %10240 = vmatpush1.bf16.msra.mxu0 %v9842
  %10241 = vmatprep.subr.bf16.mxu0 %v9851
  %10242 = vmatpush1.bf16.msra.mxu0 %v9850
  %10243 = vmatprep.subr.bf16.mxu0 %v9859
  %10244 = vmatpush1.bf16.msra.mxu0 %v9858
  %10245 = vmatprep.subr.bf16.mxu0 %v9867
  %10246 = vmatpush1.bf16.msra.mxu0 %v9866
  %10247 = vmatprep.subr.bf16.mxu0 %v9875
  %10248 = vmatpush1.bf16.msra.mxu0 %v9874
  %10249 = vmatprep.subr.bf16.mxu0 %v9883
  %10250 = vmatpush1.bf16.msra.mxu0 %v9882
  %10251 = vmatprep.subr.bf16.mxu0 %v9891
  %10252 = vmatpush1.bf16.msra.mxu0 %v9890
  %10253 = vmatprep.subr.bf16.mxu0 %v9899
  %10254 = vmatpush1.bf16.msra.mxu0 %v9898
  %10255 = vmatprep.subr.bf16.mxu0 %v9907
  %10256 = vmatpush1.bf16.msra.mxu0 %v9906
  %10257 = vmatprep.subr.bf16.mxu0 0
  %10258 = vmatpush1.bf16.msra.mxu0 0
  %10259 = vmatprep.subr.bf16.mxu0 0
  %10260 = vmatpush1.bf16.msra.mxu0 0
  %10261 = vmatprep.subr.bf16.mxu0 0
  %10262 = vmatpush1.bf16.msra.mxu0 0
  %10263 = vmatprep.subr.bf16.mxu0 0
  %10264 = vmatpush1.bf16.msra.mxu0 0
  %10265 = vmatprep.subr.bf16.mxu0 0
  %10266 = vmatpush1.bf16.msra.mxu0 0
  %10267 = vmatprep.subr.bf16.mxu0 0
  %10268 = vmatpush1.bf16.msra.mxu0 0
  %10269 = vmatprep.subr.bf16.mxu0 0
  %10270 = vmatpush1.bf16.msra.mxu0 0
  %10271 = vmatprep.mubr.bf16.mxu0 %v10114
  %10272 = vmatmul.mubr.bf16.gmra.mrb[0].mxu0 %v8868
  %v10273 = vpop.f32.mrb[0].mxu0
  %v10274 = vadd.f32 %v10233, %v10273
  %v10275 = vpop.f32.mrb[0].mxu0
  %v10276 = vadd.f32 %v10235, %v10275
  %v10277 = vpop.f32.mrb[0].mxu0
  %v10278 = vpop.f32.mrb[0].mxu0
  %10279 = vdwg.mxu0
  %10280 = vmatprep.subr.bf16.mxu0 %v9717
  %10281 = vmatpush1.bf16.msra.mxu0 %v9716
  %10282 = vmatprep.subr.bf16.mxu0 %v9725
  %10283 = vmatpush1.bf16.msra.mxu0 %v9724
  %10284 = vmatprep.subr.bf16.mxu0 %v9733
  %10285 = vmatpush1.bf16.msra.mxu0 %v9732
  %10286 = vmatprep.subr.bf16.mxu0 %v9741
  %10287 = vmatpush1.bf16.msra.mxu0 %v9740
  %10288 = vmatprep.subr.bf16.mxu0 %v9749
  %10289 = vmatpush1.bf16.msra.mxu0 %v9748
  %10290 = vmatprep.subr.bf16.mxu0 %v9757
  %10291 = vmatpush1.bf16.msra.mxu0 %v9756
  %10292 = vmatprep.subr.bf16.mxu0 %v9765
  %10293 = vmatpush1.bf16.msra.mxu0 %v9764
  %10294 = vmatprep.subr.bf16.mxu0 %v9773
  %10295 = vmatpush1.bf16.msra.mxu0 %v9772
  %10296 = vmatprep.subr.bf16.mxu0 %v9781
  %10297 = vmatpush1.bf16.msra.mxu0 %v9780
  %10298 = vmatprep.subr.bf16.mxu0 %v9789
  %10299 = vmatpush1.bf16.msra.mxu0 %v9788
  %10300 = vmatprep.subr.bf16.mxu0 %v9797
  %10301 = vmatpush1.bf16.msra.mxu0 %v9796
  %10302 = vmatprep.subr.bf16.mxu0 %v9805
  %10303 = vmatpush1.bf16.msra.mxu0 %v9804
  %10304 = vmatprep.subr.bf16.mxu0 %v9813
  %10305 = vmatpush1.bf16.msra.mxu0 %v9812
  %10306 = vmatprep.subr.bf16.mxu0 %v9821
  %10307 = vmatpush1.bf16.msra.mxu0 %v9820
  %10308 = vmatprep.subr.bf16.mxu0 %v9829
  %10309 = vmatpush1.bf16.msra.mxu0 %v9828
  %10310 = vmatprep.subr.bf16.mxu0 %v9837
  %10311 = vmatpush1.bf16.msra.mxu0 %v9836
  %10312 = vmatprep.mubr.bf16.mxu0 %v8867
  %10313 = vmatmul.mubr.bf16.gmra.mrb[0].mxu0 %v8866
  %v10314 = vpop.f32.mrb[0].mxu0
  %v10315 = vadd.f32 %v9091, %v10314
  %v10316 = vpop.f32.mrb[0].mxu0
  %v10317 = vadd.f32 %v9095, %v10316
  %v10318 = vpop.f32.mrb[0].mxu0
  %v10319 = vpop.f32.mrb[0].mxu0
  %10320 = vdwg.mxu0
  %10321 = vmatprep.subr.bf16.mxu0 %v9845
  %10322 = vmatpush1.bf16.msra.mxu0 %v9844
  %10323 = vmatprep.subr.bf16.mxu0 %v9853
  %10324 = vmatpush1.bf16.msra.mxu0 %v9852
  %10325 = vmatprep.subr.bf16.mxu0 %v9861
  %10326 = vmatpush1.bf16.msra.mxu0 %v9860
  %10327 = vmatprep.subr.bf16.mxu0 %v9869
  %10328 = vmatpush1.bf16.msra.mxu0 %v9868
  %10329 = vmatprep.subr.bf16.mxu0 %v9877
  %10330 = vmatpush1.bf16.msra.mxu0 %v9876
  %10331 = vmatprep.subr.bf16.mxu0 %v9885
  %10332 = vmatpush1.bf16.msra.mxu0 %v9884
  %10333 = vmatprep.subr.bf16.mxu0 %v9893
  %10334 = vmatpush1.bf16.msra.mxu0 %v9892
  %10335 = vmatprep.subr.bf16.mxu0 %v9901
  %10336 = vmatpush1.bf16.msra.mxu0 %v9900
  %10337 = vmatprep.subr.bf16.mxu0 %v9909
  %10338 = vmatpush1.bf16.msra.mxu0 %v9908
  %10339 = vmatprep.subr.bf16.mxu0 0
  %10340 = vmatpush1.bf16.msra.mxu0 0
  %10341 = vmatprep.subr.bf16.mxu0 0
  %10342 = vmatpush1.bf16.msra.mxu0 0
  %10343 = vmatprep.subr.bf16.mxu0 0
  %10344 = vmatpush1.bf16.msra.mxu0 0
  %10345 = vmatprep.subr.bf16.mxu0 0
  %10346 = vmatpush1.bf16.msra.mxu0 0
  %10347 = vmatprep.subr.bf16.mxu0 0
  %10348 = vmatpush1.bf16.msra.mxu0 0
  %10349 = vmatprep.subr.bf16.mxu0 0
  %10350 = vmatpush1.bf16.msra.mxu0 0
  %10351 = vmatprep.subr.bf16.mxu0 0
  %10352 = vmatpush1.bf16.msra.mxu0 0
  %10353 = vmatprep.mubr.bf16.mxu0 %v10114
  %10354 = vmatmul.mubr.bf16.gmra.mrb[0].mxu0 %v8868
  %v10355 = vpop.f32.mrb[0].mxu0
  %v10356 = vadd.f32 %v10315, %v10355
  %v10357 = vpop.f32.mrb[0].mxu0
  %v10358 = vadd.f32 %v10317, %v10357
  %v10359 = vpop.f32.mrb[0].mxu0
  %v10360 = vpop.f32.mrb[0].mxu0
  %10361 = vdwg.mxu0
  %10362 = vmatprep.subr.bf16.mxu0 %v9719
  %10363 = vmatpush1.bf16.msra.mxu0 %v9718
  %10364 = vmatprep.subr.bf16.mxu0 %v9727
  %10365 = vmatpush1.bf16.msra.mxu0 %v9726
  %10366 = vmatprep.subr.bf16.mxu0 %v9735
  %10367 = vmatpush1.bf16.msra.mxu0 %v9734
  %10368 = vmatprep.subr.bf16.mxu0 %v9743
  %10369 = vmatpush1.bf16.msra.mxu0 %v9742
  %10370 = vmatprep.subr.bf16.mxu0 %v9751
  %10371 = vmatpush1.bf16.msra.mxu0 %v9750
  %10372 = vmatprep.subr.bf16.mxu0 %v9759
  %10373 = vmatpush1.bf16.msra.mxu0 %v9758
  %10374 = vmatprep.subr.bf16.mxu0 %v9767
  %10375 = vmatpush1.bf16.msra.mxu0 %v9766
  %10376 = vmatprep.subr.bf16.mxu0 %v9775
  %10377 = vmatpush1.bf16.msra.mxu0 %v9774
  %10378 = vmatprep.subr.bf16.mxu0 %v9783
  %10379 = vmatpush1.bf16.msra.mxu0 %v9782
  %10380 = vmatprep.subr.bf16.mxu0 %v9791
  %10381 = vmatpush1.bf16.msra.mxu0 %v9790
  %10382 = vmatprep.subr.bf16.mxu0 %v9799
  %10383 = vmatpush1.bf16.msra.mxu0 %v9798
  %10384 = vmatprep.subr.bf16.mxu0 %v9807
  %10385 = vmatpush1.bf16.msra.mxu0 %v9806
  %10386 = vmatprep.subr.bf16.mxu0 %v9815
  %10387 = vmatpush1.bf16.msra.mxu0 %v9814
  %10388 = vmatprep.subr.bf16.mxu0 %v9823
  %10389 = vmatpush1.bf16.msra.mxu0 %v9822
  %10390 = vmatprep.subr.bf16.mxu0 %v9831
  %10391 = vmatpush1.bf16.msra.mxu0 %v9830
  %10392 = vmatprep.subr.bf16.mxu0 %v9839
  %10393 = vmatpush1.bf16.msra.mxu0 %v9838
  %10394 = vmatprep.mubr.bf16.mxu0 %v8867
  %10395 = vmatmul.mubr.bf16.gmra.mrb[0].mxu0 %v8866
  %v10396 = vpop.f32.mrb[0].mxu0
  %v10397 = vadd.f32 %v9099, %v10396
  %v10398 = vpop.f32.mrb[0].mxu0
  %v10399 = vadd.f32 %v9103, %v10398
  %v10400 = vpop.f32.mrb[0].mxu0
  %v10401 = vpop.f32.mrb[0].mxu0
  %10402 = vdwg.mxu0
  %10403 = vmatprep.subr.bf16.mxu0 %v9847
  %10404 = vmatpush1.bf16.msra.mxu0 %v9846
  %10405 = vmatprep.subr.bf16.mxu0 %v9855
  %10406 = vmatpush1.bf16.msra.mxu0 %v9854
  %10407 = vmatprep.subr.bf16.mxu0 %v9863
  %10408 = vmatpush1.bf16.msra.mxu0 %v9862
  %10409 = vmatprep.subr.bf16.mxu0 %v9871
  %10410 = vmatpush1.bf16.msra.mxu0 %v9870
  %10411 = vmatprep.subr.bf16.mxu0 %v9879
  %10412 = vmatpush1.bf16.msra.mxu0 %v9878
  %10413 = vmatprep.subr.bf16.mxu0 %v9887
  %10414 = vmatpush1.bf16.msra.mxu0 %v9886
  %10415 = vmatprep.subr.bf16.mxu0 %v9895
  %10416 = vmatpush1.bf16.msra.mxu0 %v9894
  %10417 = vmatprep.subr.bf16.mxu0 %v9903
  %10418 = vmatpush1.bf16.msra.mxu0 %v9902
  %10419 = vmatprep.subr.bf16.mxu0 %v9911
  %10420 = vmatpush1.bf16.msra.mxu0 %v9910
  %10421 = vmatprep.subr.bf16.mxu0 0
  %10422 = vmatpush1.bf16.msra.mxu0 0
  %10423 = vmatprep.subr.bf16.mxu0 0
  %10424 = vmatpush1.bf16.msra.mxu0 0
  %10425 = vmatprep.subr.bf16.mxu0 0
  %10426 = vmatpush1.bf16.msra.mxu0 0
  %10427 = vmatprep.subr.bf16.mxu0 0
  %10428 = vmatpush1.bf16.msra.mxu0 0
  %10429 = vmatprep.subr.bf16.mxu0 0
  %10430 = vmatpush1.bf16.msra.mxu0 0
  %10431 = vmatprep.subr.bf16.mxu0 0
  %10432 = vmatpush1.bf16.msra.mxu0 0
  %10433 = vmatprep.subr.bf16.mxu0 0
  %10434 = vmatpush1.bf16.msra.mxu0 0
  %10435 = vmatprep.mubr.bf16.mxu0 %v10114
  %10436 = vmatmul.mubr.bf16.gmra.mrb[0].mxu0 %v8868
  %v10437 = vpop.f32.mrb[0].mxu0
  %v10438 = vadd.f32 %v10397, %v10437
  %v10439 = vpop.f32.mrb[0].mxu0
  %v10440 = vadd.f32 %v10399, %v10439
  %v10441 = vpop.f32.mrb[0].mxu0
  %v10442 = vpop.f32.mrb[0].mxu0
  %10443 = vdwg.mxu0
  %v10444 = vmax.f32 %v10192, 0.0
  %v10445 = vmax.f32 %v10194, 0.0
  %v10446 = vmax.f32 %v10274, 0.0
  %v10447 = vmax.f32 %v10276, 0.0
  %v10448 = vmax.f32 %v10356, 0.0
  %v10449 = vmax.f32 %v10358, 0.0
  %v10450 = vmax.f32 %v10438, 0.0
  %v10451 = vmax.f32 %v10440, 0.0
  %v10452 = vpack.c.bf16 %v10444, %v10444
  %v10453 = vpack.c.bf16 %v10445, %v10445
  %v10454 = vpack.c.bf16 %v10446, %v10446
  %v10455 = vpack.c.bf16 %v10447, %v10447
  %v10456 = vpack.c.bf16 %v10448, %v10448
  %v10457 = vpack.c.bf16 %v10449, %v10449
  %v10458 = vpack.c.bf16 %v10450, %v10450
  %v10459 = vpack.c.bf16 %v10451, %v10451
  %v10460 = vld [vmem:[%s5] sm:$0xf]
  %v10461 = vld [vmem:[%s5 + $0x4] sm:$0xf]
  %v10462 = vld [vmem:[%s5 + $0x8] sm:$0xf]
  %v10463 = vld [vmem:[%s5 + $0xc] sm:$0xf]
  %v10464 = vld [vmem:[%s5 + $0x10] sm:$0xf]
  %v10465 = vld [vmem:[%s5 + $0x14] sm:$0xf]
  %v10466 = vld [vmem:[%s5 + $0x18] sm:$0xf]
  %v10467 = vld [vmem:[%s5 + $0x1c] sm:$0xf]
  %v10468 = vld [vmem:[%s5 + $0x20] sm:$0xf]
  %v10469 = vld [vmem:[%s5 + $0x24] sm:$0xf]
  %v10470 = vld [vmem:[%s5 + $0x28] sm:$0xf]
  %v10471 = vld [vmem:[%s5 + $0x2c] sm:$0xf]
  %v10472 = vld [vmem:[%s5 + $0x30] sm:$0xf]
  %v10473 = vld [vmem:[%s5 + $0x34] sm:$0xf]
  %v10474 = vld [vmem:[%s5 + $0x38] sm:$0xf]
  %v10475 = vld [vmem:[%s5 + $0x3c] sm:$0xf]
  %v10476 = vld [vmem:[%s5 + $0x40] sm:$0xf]
  %v10477 = vld [vmem:[%s5 + $0x44] sm:$0xf]
  %v10478 = vld [vmem:[%s5 + $0x48] sm:$0xf]
  %v10479 = vld [vmem:[%s5 + $0x4c] sm:$0xf]
  %v10480 = vld [vmem:[%s5 + $0x50] sm:$0xf]
  %v10481 = vld [vmem:[%s5 + $0x54] sm:$0xf]
  %v10482 = vld [vmem:[%s5 + $0x58] sm:$0xf]
  %v10483 = vld [vmem:[%s5 + $0x5c] sm:$0xf]
  %v10484 = vld [vmem:[%s5 + $0x60] sm:$0xf]
  %v10485 = vld [vmem:[%s5 + $0x64] sm:$0xf]
  %v10486 = vld [vmem:[%s5 + $0x68] sm:$0xf]
  %v10487 = vld [vmem:[%s5 + $0x6c] sm:$0xf]
  %v10488 = vld [vmem:[%s5 + $0x70] sm:$0xf]
  %v10489 = vld [vmem:[%s5 + $0x74] sm:$0xf]
  %v10490 = vld [vmem:[%s5 + $0x78] sm:$0xf]
  %v10491 = vld [vmem:[%s5 + $0x7c] sm:$0xf]
  %v10492 = vld [vmem:[%s5 + $0x80] sm:$0xf]
  %v10493 = vld [vmem:[%s5 + $0x84] sm:$0xf]
  %v10494 = vld [vmem:[%s5 + $0x88] sm:$0xf]
  %v10495 = vld [vmem:[%s5 + $0x8c] sm:$0xf]
  %v10496 = vld [vmem:[%s5 + $0x90] sm:$0xf]
  %v10497 = vld [vmem:[%s5 + $0x94] sm:$0xf]
  %v10498 = vld [vmem:[%s5 + $0x98] sm:$0xf]
  %v10499 = vld [vmem:[%s5 + $0x9c] sm:$0xf]
  %v10500 = vld [vmem:[%s5 + $0xa0] sm:$0xf]
  %v10501 = vld [vmem:[%s5 + $0xa4] sm:$0xf]
  %v10502 = vld [vmem:[%s5 + $0xa8] sm:$0xf]
  %v10503 = vld [vmem:[%s5 + $0xac] sm:$0xf]
  %v10504 = vld [vmem:[%s5 + $0xb0] sm:$0xf]
  %v10505 = vld [vmem:[%s5 + $0xb4] sm:$0xf]
  %v10506 = vld [vmem:[%s5 + $0xb8] sm:$0xf]
  %v10507 = vld [vmem:[%s5 + $0xbc] sm:$0xf]
  %v10508 = vld [vmem:[%s5 + $0xc0] sm:$0xf]
  %v10509 = vld [vmem:[%s5 + $0xc4] sm:$0xf]
  %v10510 = vld [vmem:[%s5 + $0xc8] sm:$0xf]
  %v10511 = vld [vmem:[%s5 + $0xcc] sm:$0xf]
  %v10512 = vld [vmem:[%s5 + $0xd0] sm:$0xf]
  %v10513 = vld [vmem:[%s5 + $0xd4] sm:$0xf]
  %v10514 = vld [vmem:[%s5 + $0xd8] sm:$0xf]
  %v10515 = vld [vmem:[%s5 + $0xdc] sm:$0xf]
  %v10516 = vld [vmem:[%s5 + $0xe0] sm:$0xf]
  %v10517 = vld [vmem:[%s5 + $0xe4] sm:$0xf]
  %v10518 = vld [vmem:[%s5 + $0xe8] sm:$0xf]
  %v10519 = vld [vmem:[%s5 + $0xec] sm:$0xf]
  %v10520 = vld [vmem:[%s5 + $0xf0] sm:$0xf]
  %v10521 = vld [vmem:[%s5 + $0xf4] sm:$0xf]
  %v10522 = vld [vmem:[%s5 + $0xf8] sm:$0xf]
  %v10523 = vld [vmem:[%s5 + $0xfc] sm:$0xf]
  %v10524 = vld [vmem:[%s5 + $0x100] sm:$0xf]
  %v10525 = vld [vmem:[%s5 + $0x104] sm:$0xf]
  %v10526 = vld [vmem:[%s5 + $0x108] sm:$0xf]
  %v10527 = vld [vmem:[%s5 + $0x10c] sm:$0xf]
  %v10528 = vld [vmem:[%s5 + $0x110] sm:$0xf]
  %v10529 = vld [vmem:[%s5 + $0x114] sm:$0xf]
  %v10530 = vld [vmem:[%s5 + $0x118] sm:$0xf]
  %v10531 = vld [vmem:[%s5 + $0x11c] sm:$0xf]
  %v10532 = vld [vmem:[%s5 + $0x120] sm:$0xf]
  %v10533 = vld [vmem:[%s5 + $0x124] sm:$0xf]
  %v10534 = vld [vmem:[%s5 + $0x128] sm:$0xf]
  %v10535 = vld [vmem:[%s5 + $0x12c] sm:$0xf]
  %v10536 = vld [vmem:[%s5 + $0x130] sm:$0xf]
  %v10537 = vld [vmem:[%s5 + $0x134] sm:$0xf]
  %v10538 = vld [vmem:[%s5 + $0x138] sm:$0xf]
  %v10539 = vld [vmem:[%s5 + $0x13c] sm:$0xf]
  %v10540 = vld [vmem:[%s5 + $0x140] sm:$0xf]
  %v10541 = vld [vmem:[%s5 + $0x144] sm:$0xf]
  %v10542 = vld [vmem:[%s5 + $0x148] sm:$0xf]
  %v10543 = vld [vmem:[%s5 + $0x14c] sm:$0xf]
  %v10544 = vld [vmem:[%s5 + $0x150] sm:$0xf]
  %v10545 = vld [vmem:[%s5 + $0x154] sm:$0xf]
  %v10546 = vld [vmem:[%s5 + $0x158] sm:$0xf]
  %v10547 = vld [vmem:[%s5 + $0x15c] sm:$0xf]
  %v10548 = vld [vmem:[%s5 + $0x160] sm:$0xf]
  %v10549 = vld [vmem:[%s5 + $0x164] sm:$0xf]
  %v10550 = vld [vmem:[%s5 + $0x168] sm:$0xf]
  %v10551 = vld [vmem:[%s5 + $0x16c] sm:$0xf]
  %v10552 = vld [vmem:[%s5 + $0x170] sm:$0xf]
  %v10553 = vld [vmem:[%s5 + $0x174] sm:$0xf]
  %v10554 = vld [vmem:[%s5 + $0x178] sm:$0xf]
  %v10555 = vld [vmem:[%s5 + $0x17c] sm:$0xf]
  %v10556 = vld [vmem:[%s5 + $0x180] sm:$0xf]
  %v10557 = vld [vmem:[%s5 + $0x184] sm:$0xf]
  %v10558 = vld [vmem:[%s5 + $0x188] sm:$0xf]
  %v10559 = vld [vmem:[%s5 + $0x18c] sm:$0xf]
  %v10560 = vld [vmem:[%s5 + $0x190] sm:$0xf]
  %v10561 = vld [vmem:[%s5 + $0x194] sm:$0xf]
  %v10562 = vld [vmem:[%s5 + $0x198] sm:$0xf]
  %v10563 = vld [vmem:[%s5 + $0x19c] sm:$0xf]
  %v10564 = vld [vmem:[%s5 + $0x1a0] sm:$0xf]
  %v10565 = vld [vmem:[%s5 + $0x1a4] sm:$0xf]
  %v10566 = vld [vmem:[%s5 + $0x1a8] sm:$0xf]
  %v10567 = vld [vmem:[%s5 + $0x1ac] sm:$0xf]
  %v10568 = vld [vmem:[%s5 + $0x1b0] sm:$0xf]
  %v10569 = vld [vmem:[%s5 + $0x1b4] sm:$0xf]
  %v10570 = vld [vmem:[%s5 + $0x1b8] sm:$0xf]
  %v10571 = vld [vmem:[%s5 + $0x1bc] sm:$0xf]
  %v10572 = vld [vmem:[%s5 + $0x1c0] sm:$0xf]
  %v10573 = vld [vmem:[%s5 + $0x1c4] sm:$0xf]
  %v10574 = vld [vmem:[%s5 + $0x1c8] sm:$0xf]
  %v10575 = vld [vmem:[%s5 + $0x1cc] sm:$0xf]
  %v10576 = vld [vmem:[%s5 + $0x1d0] sm:$0xf]
  %v10577 = vld [vmem:[%s5 + $0x1d4] sm:$0xf]
  %v10578 = vld [vmem:[%s5 + $0x1d8] sm:$0xf]
  %v10579 = vld [vmem:[%s5 + $0x1dc] sm:$0xf]
  %v10580 = vld [vmem:[%s5 + $0x1e0] sm:$0xf]
  %v10581 = vld [vmem:[%s5 + $0x1e4] sm:$0xf]
  %v10582 = vld [vmem:[%s5 + $0x1e8] sm:$0xf]
  %v10583 = vld [vmem:[%s5 + $0x1ec] sm:$0xf]
  %v10584 = vld [vmem:[%s5 + $0x1f0] sm:$0xf]
  %v10585 = vld [vmem:[%s5 + $0x1f4] sm:$0xf]
  %v10586 = vld [vmem:[%s5 + $0x1f8] sm:$0xf]
  %v10587 = vld [vmem:[%s5 + $0x1fc] sm:$0xf]
  %v10588 = vld [vmem:[%s6] sm:$0x1]
  %v10590 = vlaneseq
  %v10591 = vshrl.u32 %v10590, 7
  %v10592 = vsub.s32 0, %v10591
  %v10593 = vrot.slane %v10588, %v10592
  %v10723 = vunpack.c.l.b16 %v10460
  %v10724 = vunpack.c.l.b16 %v10461
  %v10725 = vunpack.c.l.b16 %v10462
  %v10726 = vunpack.c.l.b16 %v10463
  %v10727 = vunpack.c.l.b16 %v10464
  %v10728 = vunpack.c.l.b16 %v10465
  %v10729 = vunpack.c.l.b16 %v10466
  %v10730 = vunpack.c.l.b16 %v10467
  %v10731 = vunpack.c.l.b16 %v10468
  %v10732 = vunpack.c.l.b16 %v10469
  %v10733 = vunpack.c.l.b16 %v10470
  %v10734 = vunpack.c.l.b16 %v10471
  %v10735 = vunpack.c.l.b16 %v10472
  %v10736 = vunpack.c.l.b16 %v10473
  %v10737 = vunpack.c.l.b16 %v10474
  %v10738 = vunpack.c.l.b16 %v10475
  %v10739 = vunpack.c.l.b16 %v10476
  %v10740 = vunpack.c.l.b16 %v10477
  %v10741 = vunpack.c.l.b16 %v10478
  %v10742 = vunpack.c.l.b16 %v10479
  %v10743 = vunpack.c.l.b16 %v10480
  %v10744 = vunpack.c.l.b16 %v10481
  %v10745 = vunpack.c.l.b16 %v10482
  %v10746 = vunpack.c.l.b16 %v10483
  %v10747 = vunpack.c.l.b16 %v10484
  %v10748 = vunpack.c.l.b16 %v10485
  %v10749 = vunpack.c.l.b16 %v10486
  %v10750 = vunpack.c.l.b16 %v10487
  %v10751 = vunpack.c.l.b16 %v10488
  %v10752 = vunpack.c.l.b16 %v10489
  %v10753 = vunpack.c.l.b16 %v10490
  %v10754 = vunpack.c.l.b16 %v10491
  %v10755 = vunpack.c.l.b16 %v10492
  %v10756 = vunpack.c.l.b16 %v10493
  %v10757 = vunpack.c.l.b16 %v10494
  %v10758 = vunpack.c.l.b16 %v10495
  %v10759 = vunpack.c.l.b16 %v10496
  %v10760 = vunpack.c.l.b16 %v10497
  %v10761 = vunpack.c.l.b16 %v10498
  %v10762 = vunpack.c.l.b16 %v10499
  %v10763 = vunpack.c.l.b16 %v10500
  %v10764 = vunpack.c.l.b16 %v10501
  %v10765 = vunpack.c.l.b16 %v10502
  %v10766 = vunpack.c.l.b16 %v10503
  %v10767 = vunpack.c.l.b16 %v10504
  %v10768 = vunpack.c.l.b16 %v10505
  %v10769 = vunpack.c.l.b16 %v10506
  %v10770 = vunpack.c.l.b16 %v10507
  %v10771 = vunpack.c.l.b16 %v10508
  %v10772 = vunpack.c.l.b16 %v10509
  %v10773 = vunpack.c.l.b16 %v10510
  %v10774 = vunpack.c.l.b16 %v10511
  %v10775 = vunpack.c.l.b16 %v10512
  %v10776 = vunpack.c.l.b16 %v10513
  %v10777 = vunpack.c.l.b16 %v10514
  %v10778 = vunpack.c.l.b16 %v10515
  %v10779 = vunpack.c.l.b16 %v10516
  %v10780 = vunpack.c.l.b16 %v10517
  %v10781 = vunpack.c.l.b16 %v10518
  %v10782 = vunpack.c.l.b16 %v10519
  %v10783 = vunpack.c.l.b16 %v10520
  %v10784 = vunpack.c.l.b16 %v10521
  %v10785 = vunpack.c.l.b16 %v10522
  %v10786 = vunpack.c.l.b16 %v10523
  %v10787 = vunpack.c.l.b16 %v10524
  %v10788 = vunpack.c.l.b16 %v10525
  %v10789 = vunpack.c.l.b16 %v10526
  %v10790 = vunpack.c.l.b16 %v10527
  %v10791 = vunpack.c.l.b16 %v10528
  %v10792 = vunpack.c.l.b16 %v10529
  %v10793 = vunpack.c.l.b16 %v10530
  %v10794 = vunpack.c.l.b16 %v10531
  %v10795 = vunpack.c.l.b16 %v10532
  %v10796 = vunpack.c.l.b16 %v10533
  %v10797 = vunpack.c.l.b16 %v10534
  %v10798 = vunpack.c.l.b16 %v10535
  %v10799 = vunpack.c.l.b16 %v10536
  %v10800 = vunpack.c.l.b16 %v10537
  %v10801 = vunpack.c.l.b16 %v10538
  %v10802 = vunpack.c.l.b16 %v10539
  %v10803 = vunpack.c.l.b16 %v10540
  %v10804 = vunpack.c.l.b16 %v10541
  %v10805 = vunpack.c.l.b16 %v10542
  %v10806 = vunpack.c.l.b16 %v10543
  %v10807 = vunpack.c.l.b16 %v10544
  %v10808 = vunpack.c.l.b16 %v10545
  %v10809 = vunpack.c.l.b16 %v10546
  %v10810 = vunpack.c.l.b16 %v10547
  %v10811 = vunpack.c.l.b16 %v10548
  %v10812 = vunpack.c.l.b16 %v10549
  %v10813 = vunpack.c.l.b16 %v10550
  %v10814 = vunpack.c.l.b16 %v10551
  %v10815 = vunpack.c.l.b16 %v10552
  %v10816 = vunpack.c.l.b16 %v10553
  %v10817 = vunpack.c.l.b16 %v10554
  %v10818 = vunpack.c.l.b16 %v10555
  %v10819 = vunpack.c.l.b16 %v10556
  %v10820 = vunpack.c.l.b16 %v10557
  %v10821 = vunpack.c.l.b16 %v10558
  %v10822 = vunpack.c.l.b16 %v10559
  %v10823 = vunpack.c.l.b16 %v10560
  %v10824 = vunpack.c.l.b16 %v10561
  %v10825 = vunpack.c.l.b16 %v10562
  %v10826 = vunpack.c.l.b16 %v10563
  %v10827 = vunpack.c.l.b16 %v10564
  %v10828 = vunpack.c.l.b16 %v10565
  %v10829 = vunpack.c.l.b16 %v10566
  %v10830 = vunpack.c.l.b16 %v10567
  %v10831 = vunpack.c.l.b16 %v10568
  %v10832 = vunpack.c.l.b16 %v10569
  %v10833 = vunpack.c.l.b16 %v10570
  %v10834 = vunpack.c.l.b16 %v10571
  %v10835 = vunpack.c.l.b16 %v10572
  %v10836 = vunpack.c.l.b16 %v10573
  %v10837 = vunpack.c.l.b16 %v10574
  %v10838 = vunpack.c.l.b16 %v10575
  %v10839 = vunpack.c.l.b16 %v10576
  %v10840 = vunpack.c.l.b16 %v10577
  %v10841 = vunpack.c.l.b16 %v10578
  %v10842 = vunpack.c.l.b16 %v10579
  %v10843 = vunpack.c.l.b16 %v10580
  %v10844 = vunpack.c.l.b16 %v10581
  %v10845 = vunpack.c.l.b16 %v10582
  %v10846 = vunpack.c.l.b16 %v10583
  %v10847 = vunpack.c.l.b16 %v10584
  %v10848 = vunpack.c.l.b16 %v10585
  %v10849 = vunpack.c.l.b16 %v10586
  %v10850 = vunpack.c.l.b16 %v10587
  %v10851 = vpack.c.b16 %v10724, %v10723
  %v10852 = vpack.c.b16 %v10726, %v10725
  %v10853 = vpack.c.b16 %v10728, %v10727
  %v10854 = vpack.c.b16 %v10730, %v10729
  %v10855 = vpack.c.b16 %v10732, %v10731
  %v10856 = vpack.c.b16 %v10734, %v10733
  %v10857 = vpack.c.b16 %v10736, %v10735
  %v10858 = vpack.c.b16 %v10738, %v10737
  %v10859 = vpack.c.b16 %v10740, %v10739
  %v10860 = vpack.c.b16 %v10742, %v10741
  %v10861 = vpack.c.b16 %v10744, %v10743
  %v10862 = vpack.c.b16 %v10746, %v10745
  %v10863 = vpack.c.b16 %v10748, %v10747
  %v10864 = vpack.c.b16 %v10750, %v10749
  %v10865 = vpack.c.b16 %v10752, %v10751
  %v10866 = vpack.c.b16 %v10754, %v10753
  %v10867 = vpack.c.b16 %v10756, %v10755
  %v10868 = vpack.c.b16 %v10758, %v10757
  %v10869 = vpack.c.b16 %v10760, %v10759
  %v10870 = vpack.c.b16 %v10762, %v10761
  %v10871 = vpack.c.b16 %v10764, %v10763
  %v10872 = vpack.c.b16 %v10766, %v10765
  %v10873 = vpack.c.b16 %v10768, %v10767
  %v10874 = vpack.c.b16 %v10770, %v10769
  %v10875 = vpack.c.b16 %v10772, %v10771
  %v10876 = vpack.c.b16 %v10774, %v10773
  %v10877 = vpack.c.b16 %v10776, %v10775
  %v10878 = vpack.c.b16 %v10778, %v10777
  %v10879 = vpack.c.b16 %v10780, %v10779
  %v10880 = vpack.c.b16 %v10782, %v10781
  %v10881 = vpack.c.b16 %v10784, %v10783
  %v10882 = vpack.c.b16 %v10786, %v10785
  %v10883 = vpack.c.b16 %v10788, %v10787
  %v10884 = vpack.c.b16 %v10790, %v10789
  %v10885 = vpack.c.b16 %v10792, %v10791
  %v10886 = vpack.c.b16 %v10794, %v10793
  %v10887 = vpack.c.b16 %v10796, %v10795
  %v10888 = vpack.c.b16 %v10798, %v10797
  %v10889 = vpack.c.b16 %v10800, %v10799
  %v10890 = vpack.c.b16 %v10802, %v10801
  %v10891 = vpack.c.b16 %v10804, %v10803
  %v10892 = vpack.c.b16 %v10806, %v10805
  %v10893 = vpack.c.b16 %v10808, %v10807
  %v10894 = vpack.c.b16 %v10810, %v10809
  %v10895 = vpack.c.b16 %v10812, %v10811
  %v10896 = vpack.c.b16 %v10814, %v10813
  %v10897 = vpack.c.b16 %v10816, %v10815
  %v10898 = vpack.c.b16 %v10818, %v10817
  %v10899 = vpack.c.b16 %v10820, %v10819
  %v10900 = vpack.c.b16 %v10822, %v10821
  %v10901 = vpack.c.b16 %v10824, %v10823
  %v10902 = vpack.c.b16 %v10826, %v10825
  %v10903 = vpack.c.b16 %v10828, %v10827
  %v10904 = vpack.c.b16 %v10830, %v10829
  %v10905 = vpack.c.b16 %v10832, %v10831
  %v10906 = vpack.c.b16 %v10834, %v10833
  %v10907 = vpack.c.b16 %v10836, %v10835
  %v10908 = vpack.c.b16 %v10838, %v10837
  %v10909 = vpack.c.b16 %v10840, %v10839
  %v10910 = vpack.c.b16 %v10842, %v10841
  %v10911 = vpack.c.b16 %v10844, %v10843
  %v10912 = vpack.c.b16 %v10846, %v10845
  %v10913 = vpack.c.b16 %v10848, %v10847
  %v10914 = vpack.c.b16 %v10850, %v10849
  %10979 = vmatprep.subr.bf16.mxu0 0
  %10980 = vmatpush1.bf16.msra.mxu0 %v10851
  %10981 = vmatprep.subr.bf16.mxu0 0
  %10982 = vmatpush1.bf16.msra.mxu0 %v10852
  %10983 = vmatprep.subr.bf16.mxu0 0
  %10984 = vmatpush1.bf16.msra.mxu0 %v10853
  %10985 = vmatprep.subr.bf16.mxu0 0
  %10986 = vmatpush1.bf16.msra.mxu0 %v10854
  %10987 = vmatprep.subr.bf16.mxu0 0
  %10988 = vmatpush1.bf16.msra.mxu0 %v10855
  %10989 = vmatprep.subr.bf16.mxu0 0
  %10990 = vmatpush1.bf16.msra.mxu0 %v10856
  %10991 = vmatprep.subr.bf16.mxu0 0
  %10992 = vmatpush1.bf16.msra.mxu0 %v10857
  %10993 = vmatprep.subr.bf16.mxu0 0
  %10994 = vmatpush1.bf16.msra.mxu0 %v10858
  %10995 = vmatprep.subr.bf16.mxu0 0
  %10996 = vmatpush1.bf16.msra.mxu0 %v10859
  %10997 = vmatprep.subr.bf16.mxu0 0
  %10998 = vmatpush1.bf16.msra.mxu0 %v10860
  %10999 = vmatprep.subr.bf16.mxu0 0
  %11000 = vmatpush1.bf16.msra.mxu0 %v10861
  %11001 = vmatprep.subr.bf16.mxu0 0
  %11002 = vmatpush1.bf16.msra.mxu0 %v10862
  %11003 = vmatprep.subr.bf16.mxu0 0
  %11004 = vmatpush1.bf16.msra.mxu0 %v10863
  %11005 = vmatprep.subr.bf16.mxu0 0
  %11006 = vmatpush1.bf16.msra.mxu0 %v10864
  %11007 = vmatprep.subr.bf16.mxu0 0
  %11008 = vmatpush1.bf16.msra.mxu0 %v10865
  %11009 = vmatprep.subr.bf16.mxu0 0
  %11010 = vmatpush1.bf16.msra.mxu0 %v10866
  %11011 = vmatprep.mubr.bf16.mxu0 %v10453
  %11012 = vmatmul.mubr.bf16.gmra.mrb[0].mxu0 %v10452
  %v11013 = vpop.f32.mrb[0].mxu0
  %v11014 = vadd.f32 %v10593, %v11013
  %v11015 = vpop.f32.mrb[0].mxu0
  %v11016 = vpop.f32.mrb[0].mxu0
  %v11017 = vpop.f32.mrb[0].mxu0
  %11018 = vdwg.mxu0
  %11019 = vmatprep.subr.bf16.mxu0 0
  %11020 = vmatpush1.bf16.msra.mxu0 %v10867
  %11021 = vmatprep.subr.bf16.mxu0 0
  %11022 = vmatpush1.bf16.msra.mxu0 %v10868
  %11023 = vmatprep.subr.bf16.mxu0 0
  %11024 = vmatpush1.bf16.msra.mxu0 %v10869
  %11025 = vmatprep.subr.bf16.mxu0 0
  %11026 = vmatpush1.bf16.msra.mxu0 %v10870
  %11027 = vmatprep.subr.bf16.mxu0 0
  %11028 = vmatpush1.bf16.msra.mxu0 %v10871
  %11029 = vmatprep.subr.bf16.mxu0 0
  %11030 = vmatpush1.bf16.msra.mxu0 %v10872
  %11031 = vmatprep.subr.bf16.mxu0 0
  %11032 = vmatpush1.bf16.msra.mxu0 %v10873
  %11033 = vmatprep.subr.bf16.mxu0 0
  %11034 = vmatpush1.bf16.msra.mxu0 %v10874
  %11035 = vmatprep.subr.bf16.mxu0 0
  %11036 = vmatpush1.bf16.msra.mxu0 %v10875
  %11037 = vmatprep.subr.bf16.mxu0 0
  %11038 = vmatpush1.bf16.msra.mxu0 %v10876
  %11039 = vmatprep.subr.bf16.mxu0 0
  %11040 = vmatpush1.bf16.msra.mxu0 %v10877
  %11041 = vmatprep.subr.bf16.mxu0 0
  %11042 = vmatpush1.bf16.msra.mxu0 %v10878
  %11043 = vmatprep.subr.bf16.mxu0 0
  %11044 = vmatpush1.bf16.msra.mxu0 %v10879
  %11045 = vmatprep.subr.bf16.mxu0 0
  %11046 = vmatpush1.bf16.msra.mxu0 %v10880
  %11047 = vmatprep.subr.bf16.mxu0 0
  %11048 = vmatpush1.bf16.msra.mxu0 %v10881
  %11049 = vmatprep.subr.bf16.mxu0 0
  %11050 = vmatpush1.bf16.msra.mxu0 %v10882
  %11051 = vmatprep.mubr.bf16.mxu0 %v10455
  %11052 = vmatmul.mubr.bf16.gmra.mrb[0].mxu0 %v10454
  %v11053 = vpop.f32.mrb[0].mxu0
  %v11054 = vadd.f32 %v11014, %v11053
  %v11055 = vpop.f32.mrb[0].mxu0
  %v11056 = vpop.f32.mrb[0].mxu0
  %v11057 = vpop.f32.mrb[0].mxu0
  %11058 = vdwg.mxu0
  %11059 = vmatprep.subr.bf16.mxu0 0
  %11060 = vmatpush1.bf16.msra.mxu0 %v10883
  %11061 = vmatprep.subr.bf16.mxu0 0
  %11062 = vmatpush1.bf16.msra.mxu0 %v10884
  %11063 = vmatprep.subr.bf16.mxu0 0
  %11064 = vmatpush1.bf16.msra.mxu0 %v10885
  %11065 = vmatprep.subr.bf16.mxu0 0
  %11066 = vmatpush1.bf16.msra.mxu0 %v10886
  %11067 = vmatprep.subr.bf16.mxu0 0
  %11068 = vmatpush1.bf16.msra.mxu0 %v10887
  %11069 = vmatprep.subr.bf16.mxu0 0
  %11070 = vmatpush1.bf16.msra.mxu0 %v10888
  %11071 = vmatprep.subr.bf16.mxu0 0
  %11072 = vmatpush1.bf16.msra.mxu0 %v10889
  %11073 = vmatprep.subr.bf16.mxu0 0
  %11074 = vmatpush1.bf16.msra.mxu0 %v10890
  %11075 = vmatprep.subr.bf16.mxu0 0
  %11076 = vmatpush1.bf16.msra.mxu0 %v10891
  %11077 = vmatprep.subr.bf16.mxu0 0
  %11078 = vmatpush1.bf16.msra.mxu0 %v10892
  %11079 = vmatprep.subr.bf16.mxu0 0
  %11080 = vmatpush1.bf16.msra.mxu0 %v10893
  %11081 = vmatprep.subr.bf16.mxu0 0
  %11082 = vmatpush1.bf16.msra.mxu0 %v10894
  %11083 = vmatprep.subr.bf16.mxu0 0
  %11084 = vmatpush1.bf16.msra.mxu0 %v10895
  %11085 = vmatprep.subr.bf16.mxu0 0
  %11086 = vmatpush1.bf16.msra.mxu0 %v10896
  %11087 = vmatprep.subr.bf16.mxu0 0
  %11088 = vmatpush1.bf16.msra.mxu0 %v10897
  %11089 = vmatprep.subr.bf16.mxu0 0
  %11090 = vmatpush1.bf16.msra.mxu0 %v10898
  %11091 = vmatprep.mubr.bf16.mxu0 %v10457
  %11092 = vmatmul.mubr.bf16.gmra.mrb[0].mxu0 %v10456
  %v11093 = vpop.f32.mrb[0].mxu0
  %v11094 = vadd.f32 %v11054, %v11093
  %v11095 = vpop.f32.mrb[0].mxu0
  %v11096 = vpop.f32.mrb[0].mxu0
  %v11097 = vpop.f32.mrb[0].mxu0
  %11098 = vdwg.mxu0
  %11099 = vmatprep.subr.bf16.mxu0 0
  %11100 = vmatpush1.bf16.msra.mxu0 %v10899
  %11101 = vmatprep.subr.bf16.mxu0 0
  %11102 = vmatpush1.bf16.msra.mxu0 %v10900
  %11103 = vmatprep.subr.bf16.mxu0 0
  %11104 = vmatpush1.bf16.msra.mxu0 %v10901
  %11105 = vmatprep.subr.bf16.mxu0 0
  %11106 = vmatpush1.bf16.msra.mxu0 %v10902
  %11107 = vmatprep.subr.bf16.mxu0 0
  %11108 = vmatpush1.bf16.msra.mxu0 %v10903
  %11109 = vmatprep.subr.bf16.mxu0 0
  %11110 = vmatpush1.bf16.msra.mxu0 %v10904
  %11111 = vmatprep.subr.bf16.mxu0 0
  %11112 = vmatpush1.bf16.msra.mxu0 %v10905
  %11113 = vmatprep.subr.bf16.mxu0 0
  %11114 = vmatpush1.bf16.msra.mxu0 %v10906
  %11115 = vmatprep.subr.bf16.mxu0 0
  %11116 = vmatpush1.bf16.msra.mxu0 %v10907
  %11117 = vmatprep.subr.bf16.mxu0 0
  %11118 = vmatpush1.bf16.msra.mxu0 %v10908
  %11119 = vmatprep.subr.bf16.mxu0 0
  %11120 = vmatpush1.bf16.msra.mxu0 %v10909
  %11121 = vmatprep.subr.bf16.mxu0 0
  %11122 = vmatpush1.bf16.msra.mxu0 %v10910
  %11123 = vmatprep.subr.bf16.mxu0 0
  %11124 = vmatpush1.bf16.msra.mxu0 %v10911
  %11125 = vmatprep.subr.bf16.mxu0 0
  %11126 = vmatpush1.bf16.msra.mxu0 %v10912
  %11127 = vmatprep.subr.bf16.mxu0 0
  %11128 = vmatpush1.bf16.msra.mxu0 %v10913
  %11129 = vmatprep.subr.bf16.mxu0 0
  %11130 = vmatpush1.bf16.msra.mxu0 %v10914
  %11131 = vmatprep.mubr.bf16.mxu0 %v10459
  %11132 = vmatmul.mubr.bf16.gmra.mrb[0].mxu0 %v10458
  %v11133 = vpop.f32.mrb[0].mxu0
  %v11134 = vadd.f32 %v11094, %v11133
  %v11135 = vpop.f32.mrb[0].mxu0
  %v11136 = vpop.f32.mrb[0].mxu0
  %v11137 = vpop.f32.mrb[0].mxu0
  %11138 = vdwg.mxu0
  %v11139 = vmax.f32 %v11134, 0.0
  %v11140 = vpack.c.bf16 %v11139, %v11139
  %v11141 = vld [vmem:[%s7] sm:$0xf]
  %v11142 = vld [vmem:[%s7 + $0x4] sm:$0xf]
  %v11143 = vld [vmem:[%s7 + $0x8] sm:$0xf]
  %v11144 = vld [vmem:[%s7 + $0xc] sm:$0xf]
  %v11145 = vld [vmem:[%s7 + $0x10] sm:$0xf]
  %v11146 = vld [vmem:[%s7 + $0x14] sm:$0xf]
  %v11147 = vld [vmem:[%s7 + $0x18] sm:$0xf]
  %v11148 = vld [vmem:[%s7 + $0x1c] sm:$0xf]
  %v11149 = vld [vmem:[%s7 + $0x20] sm:$0xf]
  %v11150 = vld [vmem:[%s7 + $0x24] sm:$0xf]
  %v11151 = vld [vmem:[%s7 + $0x28] sm:$0xf]
  %v11152 = vld [vmem:[%s7 + $0x2c] sm:$0xf]
  %v11153 = vld [vmem:[%s7 + $0x30] sm:$0xf]
  %v11154 = vld [vmem:[%s7 + $0x34] sm:$0xf]
  %v11155 = vld [vmem:[%s7 + $0x38] sm:$0xf]
  %v11156 = vld [vmem:[%s7 + $0x3c] sm:$0xf]
  %v11157 = vld [vmem:[%s8] sm:$0x1]
  %v11159 = vlaneseq
  %v11160 = vshrl.u32 %v11159, 7
  %v11161 = vsub.s32 0, %v11160
  %v11162 = vrot.slane %v11157, %v11161
  %v11180 = vunpack.c.l.b16 %v11141
  %v11181 = vunpack.c.l.b16 %v11142
  %v11182 = vunpack.c.l.b16 %v11143
  %v11183 = vunpack.c.l.b16 %v11144
  %v11184 = vunpack.c.l.b16 %v11145
  %v11185 = vunpack.c.l.b16 %v11146
  %v11186 = vunpack.c.l.b16 %v11147
  %v11187 = vunpack.c.l.b16 %v11148
  %v11188 = vunpack.c.l.b16 %v11149
  %v11189 = vunpack.c.l.b16 %v11150
  %v11190 = vunpack.c.l.b16 %v11151
  %v11191 = vunpack.c.l.b16 %v11152
  %v11192 = vunpack.c.l.b16 %v11153
  %v11193 = vunpack.c.l.b16 %v11154
  %v11194 = vunpack.c.l.b16 %v11155
  %v11195 = vunpack.c.l.b16 %v11156
  %v11196 = vpack.c.b16 %v11181, %v11180
  %v11197 = vpack.c.b16 %v11183, %v11182
  %v11198 = vpack.c.b16 %v11185, %v11184
  %v11199 = vpack.c.b16 %v11187, %v11186
  %v11200 = vpack.c.b16 %v11189, %v11188
  %v11201 = vpack.c.b16 %v11191, %v11190
  %v11202 = vpack.c.b16 %v11193, %v11192
  %v11203 = vpack.c.b16 %v11195, %v11194
  %11212 = vmatprep.subr.bf16.mxu0 0
  %11213 = vmatpush1.bf16.msra.mxu0 %v11196
  %11214 = vmatprep.subr.bf16.mxu0 0
  %11215 = vmatpush1.bf16.msra.mxu0 %v11197
  %11216 = vmatprep.subr.bf16.mxu0 0
  %11217 = vmatpush1.bf16.msra.mxu0 %v11198
  %11218 = vmatprep.subr.bf16.mxu0 0
  %11219 = vmatpush1.bf16.msra.mxu0 %v11199
  %11220 = vmatprep.subr.bf16.mxu0 0
  %11221 = vmatpush1.bf16.msra.mxu0 %v11200
  %11222 = vmatprep.subr.bf16.mxu0 0
  %11223 = vmatpush1.bf16.msra.mxu0 %v11201
  %11224 = vmatprep.subr.bf16.mxu0 0
  %11225 = vmatpush1.bf16.msra.mxu0 %v11202
  %11226 = vmatprep.subr.bf16.mxu0 0
  %11227 = vmatpush1.bf16.msra.mxu0 %v11203
  %11228 = vmatprep.subr.bf16.mxu0 0
  %11229 = vmatpush1.bf16.msra.mxu0 0
  %11230 = vmatprep.subr.bf16.mxu0 0
  %11231 = vmatpush1.bf16.msra.mxu0 0
  %11232 = vmatprep.subr.bf16.mxu0 0
  %11233 = vmatpush1.bf16.msra.mxu0 0
  %11234 = vmatprep.subr.bf16.mxu0 0
  %11235 = vmatpush1.bf16.msra.mxu0 0
  %11236 = vmatprep.subr.bf16.mxu0 0
  %11237 = vmatpush1.bf16.msra.mxu0 0
  %11238 = vmatprep.subr.bf16.mxu0 0
  %11239 = vmatpush1.bf16.msra.mxu0 0
  %11240 = vmatprep.subr.bf16.mxu0 0
  %11241 = vmatpush1.bf16.msra.mxu0 0
  %11242 = vmatprep.subr.bf16.mxu0 0
  %11243 = vmatpush1.bf16.msra.mxu0 0
  %11244 = vmatprep.mubr.bf16.mxu0 0
  %11245 = vmatmul.mubr.bf16.gmra.mrb[0].mxu0 %v11140
  %v11246 = vpop.f32.mrb[0].mxu0
  %v11247 = vadd.f32 %v11162, %v11246
  %v11248 = vpop.f32.mrb[0].mxu0
  %v11249 = vpop.f32.mrb[0].mxu0
  %v11250 = vpop.f32.mrb[0].mxu0
  %11251 = vdwg.mxu0
  %11252 = vst [vmem:[%s9] sm:$0xff] %v11247
  // Predicated region
  $region38: #{feature_classifier_forward.1} parent=0 // pred_check
    _
  $region39: #{feature_classifier_forward.1} parent=0 // pred_check_branch
    %11254 = sbr.rel (0) target = $region41
  $region40: #{feature_classifier_forward.1} parent=0 // pred_region
    _
  $region41: #{feature_classifier_forward.1} parent=0 // pred_fallthru
    _
  // Predicated region
  $region42: #{feature_classifier_forward.1} parent=0 // pred_check
    _
  $region43: #{feature_classifier_forward.1} parent=0 // pred_check_branch
    %11256 = sbr.rel (0) target = $region45
  $region44: #{feature_classifier_forward.1} parent=0 // pred_region
    _
  $region45: #{feature_classifier_forward.1} parent=0 // pred_fallthru
    _

</llo_original>
